<compile_context>
chip_gen: v5e
topology: v5e:2x2
jax: 0.10.0
libtpu: 0.0.40
codegen_flags: <defaults>
</compile_context>

<pallas_src>
import math
import functools

import jax
import jax.numpy as jnp
from jax.experimental import pallas as pl
from jax.experimental.pallas import tpu as pltpu

# ----------------------------------------------------------------------------
# Hyper-parameters (match EEGTransformer defaults).
# ----------------------------------------------------------------------------
D_MODEL = 16        # d_model (== number of EEG channels C)
EMB_DIM = 8         # embedding_dim of the final Linear
NHEAD = 4           # encoder_layer_args={'nhead': 4}
HEAD_DIM = D_MODEL // NHEAD
DFF = 2048          # nn.TransformerEncoderLayer default dim_feedforward
MAX_LEN = 512       # PositionalEncoding max_len = seq_len default
LN_EPS = 1e-5       # nn.LayerNorm default eps
# TODO(synk): torch.nn.TransformerEncoder(encoder_layer, **{}) would raise
# (num_layers is required); a single encoder layer is implemented here.
# nn.Dropout layers (p=0.1) are identity in eval mode; inference semantics.


def _eeg_kernel(x_ref, pe_ref,
                wqkv_ref, bqkv_ref, wo_ref, bo_ref,
                g1_ref, b1n_ref, w1_ref, b1f_ref, w2_ref, b2f_ref,
                g2_ref, b2n_ref, fcwt_ref, fcb_ref,
                o_ref,
                *, inv_T, inv_nt):
    f32 = jnp.float32
    bf16 = jnp.bfloat16
    B, C, TT = x_ref.shape
    scale = 1.0 / math.sqrt(C // NHEAD)

    # [B, C, TT] + positional encoding, then lane-concatenate the batch:
    # token (b, t) lives at lane b*TT + t -> one wide [C, B*TT] slab.
    h_all = x_ref[...] + pe_ref[...][None]
    h = jnp.concatenate([h_all[b] for b in range(B)], axis=1)      # [C, B*TT]

    # Fused QKV projection: single [3C, C] @ [C, B*TT] MXU op (vs 3*B tiny ones).
    qkv = jnp.dot(wqkv_ref[...], h, preferred_element_type=f32) + bqkv_ref[...]

    # Self-attention over the BATCH axis (batch_first=False quirk): per head,
    # per key index b, scores/contexts are batched over all (query a, t) lanes.
    ctx_heads = []
    for hd in range(NHEAD):
        q_h = qkv[hd * HEAD_DIM:(hd + 1) * HEAD_DIM, :]            # [HD, B*TT]
        k_h = qkv[C + hd * HEAD_DIM:C + (hd + 1) * HEAD_DIM, :]
        v_h = qkv[2 * C + hd * HEAD_DIM:2 * C + (hd + 1) * HEAD_DIM, :]
        s_list, v_tiled = [], []
        for b in range(B):
            kb = jnp.concatenate([k_h[:, b * TT:(b + 1) * TT]] * B, axis=1)
            v_tiled.append(
                jnp.concatenate([v_h[:, b * TT:(b + 1) * TT]] * B, axis=1))
            s_list.append(jnp.sum(q_h * kb, axis=0, keepdims=True) * scale)
        m = s_list[0]
        for b in range(1, B):
            m = jnp.maximum(m, s_list[b])
        e0 = jnp.exp(s_list[0] - m)
        den = e0
        ctx = e0 * v_tiled[0]
        for b in range(1, B):
            e = jnp.exp(s_list[b] - m)
            den = den + e
            ctx = ctx + e * v_tiled[b]
        ctx_heads.append(ctx * pl.reciprocal(den, approx=True))    # EUP recip
    ctx_cat = jnp.concatenate(ctx_heads, axis=0)                   # [C, B*TT]

    # Output projection + residual + LayerNorm1 (per token, over channels).
    attn = jnp.dot(wo_ref[...], ctx_cat, preferred_element_type=f32) + bo_ref[...]
    x1 = h + attn
    mu = jnp.mean(x1, axis=0, keepdims=True)
    xc = x1 - mu
    var = jnp.mean(xc * xc, axis=0, keepdims=True)
    x1 = xc * jax.lax.rsqrt(var + LN_EPS) * g1_ref[...] + b1n_ref[...]

    # FFN batched over all B*TT tokens: one W1 GEMM with fused bias/ReLU/bf16
    # cast, one W2 GEMM (bf16 operands, f32 accumulation).  Only a bf16
    # [DFF, B*TT] intermediate is materialised between the two GEMMs.
    ff = jnp.maximum(
        jnp.dot(w1_ref[...], x1.astype(bf16), preferred_element_type=f32)
        + b1f_ref[...], 0.0).astype(bf16)
    ff = jnp.dot(w2_ref[...], ff, preferred_element_type=f32) + b2f_ref[...]

    x2 = x1 + ff
    mu2 = jnp.mean(x2, axis=0, keepdims=True)
    xc2 = x2 - mu2
    var2 = jnp.mean(xc2 * xc2, axis=0, keepdims=True)
    x2 = xc2 * jax.lax.rsqrt(var2 + LN_EPS) * g2_ref[...] + b2n_ref[...]

    # Time pooling + fc epilogue, no scratch / masked column stores / transpose:
    # per b, lane-reduce this tile's tokens to a [C,1] column, contract with
    # fc_w^T on the VPU, emit a [1, EMB] row; rows stack into [B, EMB].
    fcw_t = fcwt_ref[...]                                          # [C, EMB]
    rows = []
    for b in range(B):
        pooled = jnp.sum(x2[:, b * TT:(b + 1) * TT], axis=1, keepdims=True)
        rows.append(jnp.sum(pooled * fcw_t, axis=0, keepdims=True))
    # Partial contribution of this time tile to fc(mean_t(encoder(x))):
    # wrapper sums over tiles when nt > 1 (fc bias split as 1/nt per tile).
    o_ref[...] = (jnp.concatenate(rows, axis=0) * inv_T
                  + fcb_ref[...] * inv_nt)                         # [B, EMB]


def _const_spec(shape):
    n = len(shape)
    return pl.BlockSpec(shape, lambda t, _n=n: (0,) * _n)


def make_pos_encoding(max_len, d_model):
    position = jnp.arange(max_len, dtype=jnp.float32)[:, None]
    div_term = jnp.exp(jnp.arange(0, d_model, 2, dtype=jnp.float32)
                       * (-math.log(10000.0) / d_model))
    ang = position * div_term                              # [max_len, d_model//2]
    pe = jnp.stack([jnp.sin(ang), jnp.cos(ang)], axis=-1).reshape(max_len, d_model)
    return pe.astype(jnp.float32)


def eeg_transformer_forward(x, params):
    B, one, C, T = x.shape
    assert one == 1 and C == D_MODEL and T <= MAX_LEN

    # [B, 1, C, T] -> [B, C, T]: tokens already on the minor (lane) axis.
    xs = x[:, 0].astype(jnp.float32)

    # Tiling: single grid step (TT = T) on single-TensorCore parts (v5e/v6e) —
    # removes per-step pipeline overhead on this latency-bound kernel.  On v7x
    # (2 TCs/chip) keep >= 2 lane-dense 128-wide time tiles so both cores work.
    # TODO(synk): if T is a single 128 tile on v7x, a parallel axis over B or a
    # DFF split would be needed to use the second core.
    device_kind = jax.devices()[0].device_kind.lower()
    if "v7" in device_kind and T % 128 == 0 and T >= 256:
        TT = 128
    else:
        TT = T
    nt = T // TT

    pe_ct = jnp.transpose(params["pe"][:T])                # [C, T] (tiny)
    wqkv = jnp.concatenate([params["wq"], params["wk"], params["wv"]], axis=0)
    bqkv = jnp.concatenate([params["bq"], params["bk"], params["bv"]], axis=0)
    w1_bf = params["w1"].astype(jnp.bfloat16)              # [DFF, C]
    w2_bf = params["w2"].astype(jnp.bfloat16)              # [C, DFF]
    fcw_t = jnp.transpose(params["fc_w"])                  # [C, EMB]
    fcb_row = jnp.transpose(params["fc_b"])                # [1, EMB]

    args = (
        xs, pe_ct,
        wqkv, bqkv, params["wo"], params["bo"],
        params["ln1_g"], params["ln1_b"],
        w1_bf, params["b1"], w2_bf, params["b2"],
        params["ln2_g"], params["ln2_b"],
        fcw_t, fcb_row,
    )

    in_specs = [
        pl.BlockSpec((B, C, TT), lambda t: (0, 0, t)),     # x: one time tile
        pl.BlockSpec((C, TT), lambda t: (0, t)),           # pe: matching tile
    ] + [_const_spec(a.shape) for a in args[2:]]           # weights: resident

    if nt == 1:
        out_specs = pl.BlockSpec((B, EMB_DIM), lambda t: (0, 0))
        out_shape = jax.ShapeDtypeStruct((B, EMB_DIM), jnp.float32)
    else:
        out_specs = pl.BlockSpec((None, B, EMB_DIM), lambda t: (t, 0, 0))
        out_shape = jax.ShapeDtypeStruct((nt, B, EMB_DIM), jnp.float32)

    flops = int(B * T * (8 * C * C + 4 * C * DFF) + 4 * B * B * T * C
                + 2 * B * C * EMB_DIM)
    transcendentals = int(B * B * NHEAD * T + B * NHEAD * T + 4 * B * T)
    bytes_accessed = int(4 * (B * C * T + C * T) + 2 * 2 * DFF * C
                         + 4 * (4 * C * C + 4 * C + DFF + EMB_DIM * (C + 1))
                         + 4 * nt * B * EMB_DIM)

    kernel = functools.partial(_eeg_kernel, inv_T=1.0 / T, inv_nt=1.0 / nt)
    out = pl.pallas_call(
        kernel,
        grid=(nt,),
        in_specs=in_specs,
        out_specs=out_specs,
        out_shape=out_shape,
        compiler_params=pltpu.CompilerParams(
            dimension_semantics=("parallel",),
            vmem_limit_bytes=32 * 1024 * 1024,
        ),
        cost_estimate=pl.CostEstimate(
            flops=flops, transcendentals=transcendentals,
            bytes_accessed=bytes_accessed),
    )(*args)

    if nt > 1:
        out = jnp.sum(out, axis=0)                         # sum per-tile partials
    return out


# ----------------------------------------------------------------------------
# Pure-JAX f32 reference (mirrors the PyTorch module in eval mode).
# ----------------------------------------------------------------------------
def eeg_transformer_reference(x, params):
    B, _, C, T = x.shape
    h = jnp.transpose(x[:, 0].astype(jnp.float32), (0, 2, 1))   # [B, T, C]
    h = h + params["pe"][:T][None]                               # pe along time

    def lin(w, b, z):                                            # z @ w.T + b
        return jnp.einsum('btc,oc->bto', z, w) + b[:, 0]

    q = lin(params["wq"], params["bq"], h)
    k = lin(params["wk"], params["bk"], h)
    v = lin(params["wv"], params["bv"], h)
    HD = C // NHEAD
    qh = q.reshape(B, T, NHEAD, HD)
    kh = k.reshape(B, T, NHEAD, HD)
    vh = v.reshape(B, T, NHEAD, HD)
    # Attention mixes the batch axis (batch_first=False with [B, T, d] input).
    s = jnp.einsum('atnd,btnd->tnab', qh, kh) / math.sqrt(HD)
    p = jax.nn.softmax(s, axis=-1)
    ctx = jnp.einsum('tnab,btnd->atnd', p, vh).reshape(B, T, C)
    attn = lin(params["wo"], params["bo"], ctx)

    def ln(z, g, beta):
        mu = z.mean(-1, keepdims=True)
        var = ((z - mu) ** 2).mean(-1, keepdims=True)
        return (z - mu) * jax.lax.rsqrt(var + LN_EPS) * g[:, 0] + beta[:, 0]

    x1 = ln(h + attn, params["ln1_g"], params["ln1_b"])
    hid = jnp.maximum(jnp.einsum('btc,fc->btf', x1, params["w1"])
                      + params["b1"][:, 0], 0.0)
    ff = jnp.einsum('btf,cf->btc', hid, params["w2"]) + params["b2"][:, 0]
    x2 = ln(x1 + ff, params["ln2_g"], params["ln2_b"])
    pooled = x2.mean(axis=1)
    return pooled @ params["fc_w"].T + params["fc_b"][:, 0]


def init_params(key):
    ks = jax.random.split(key, 12)

    def w(k, shape, s=0.1):
        return s * jax.random.normal(k, shape, dtype=jnp.float32)

    # Weights kept in PyTorch [out, in] layout; the kernel computes y = W @ x + b
    # on [C, tokens] activations, so biases are stored as column vectors [out, 1].
    return {
        "pe": make_pos_encoding(MAX_LEN, D_MODEL),
        "wq": w(ks[0], (D_MODEL, D_MODEL)), "bq": w(ks[1], (D_MODEL, 1), 0.02),
        "wk": w(ks[2], (D_MODEL, D_MODEL)), "bk": w(ks[3], (D_MODEL, 1), 0.02),
        "wv": w(ks[4], (D_MODEL, D_MODEL)), "bv": w(ks[5], (D_MODEL, 1), 0.02),
        "wo": w(ks[6], (D_MODEL, D_MODEL)), "bo": w(ks[7], (D_MODEL, 1), 0.02),
        "ln1_g": jnp.ones((D_MODEL, 1), jnp.float32),
        "ln1_b": jnp.zeros((D_MODEL, 1), jnp.float32),
        "w1": w(ks[8], (DFF, D_MODEL)), "b1": jnp.zeros((DFF, 1), jnp.float32),
        "w2": w(ks[9], (D_MODEL, DFF)), "b2": jnp.zeros((D_MODEL, 1), jnp.float32),
        "ln2_g": jnp.ones((D_MODEL, 1), jnp.float32),
        "ln2_b": jnp.zeros((D_MODEL, 1), jnp.float32),
        "fc_w": w(ks[10], (EMB_DIM, D_MODEL)),
        "fc_b": w(ks[11], (EMB_DIM, 1), 0.02),
    }


if __name__ == "__main__":
    key = jax.random.PRNGKey(0)
    pkey, xkey = jax.random.split(key)
    params = init_params(pkey)

    # [batch=2, 1, channels=d_model=16, time=256].
    x = jax.random.normal(xkey, (2, 1, D_MODEL, 256), dtype=jnp.float32)

    out = eeg_transformer_forward(x, params)
    jax.block_until_ready(out)
    assert out.shape == (2, EMB_DIM) and out.dtype == jnp.float32

    # Tolerance-assert against the pure-f32 reference (kernel uses bf16 FFN
    # weights/activations and an approximate EUP reciprocal in the softmax).
    ref = eeg_transformer_reference(x, params)
    max_err = float(jnp.max(jnp.abs(out - ref)))
    assert max_err < 5e-2, max_err

    print("KERNEL_OK")
</pallas_src>

<mosaic_0001>
module attributes {stable_mosaic.version = 11 : i64} {
  func.func @_eeg_kernel(%arg0: i32, %arg1: memref<2x16x256xf32, #tpu.memory_space<vmem>>, %arg2: memref<16x256xf32, #tpu.memory_space<vmem>>, %arg3: memref<48x16xf32, #tpu.memory_space<vmem>>, %arg4: memref<48x1xf32, #tpu.memory_space<vmem>>, %arg5: memref<16x16xf32, #tpu.memory_space<vmem>>, %arg6: memref<16x1xf32, #tpu.memory_space<vmem>>, %arg7: memref<16x1xf32, #tpu.memory_space<vmem>>, %arg8: memref<16x1xf32, #tpu.memory_space<vmem>>, %arg9: memref<2048x16xbf16, #tpu.memory_space<vmem>>, %arg10: memref<2048x1xf32, #tpu.memory_space<vmem>>, %arg11: memref<16x2048xbf16, #tpu.memory_space<vmem>>, %arg12: memref<16x1xf32, #tpu.memory_space<vmem>>, %arg13: memref<16x1xf32, #tpu.memory_space<vmem>>, %arg14: memref<16x1xf32, #tpu.memory_space<vmem>>, %arg15: memref<16x8xf32, #tpu.memory_space<vmem>>, %arg16: memref<1x8xf32, #tpu.memory_space<vmem>>, %arg17: memref<2x8xf32, #tpu.memory_space<vmem>>) attributes {dimension_semantics = [#tpu.dimension_semantics<parallel>], iteration_bounds = array<i64: 1>, scalar_prefetch = 0 : i64, scratch_operands = 0 : i64, tpu.core_type = #tpu.core_type<tc>, window_params = [{transform_indices = @transform_0, window_bounds = array<i64: 2, 16, 256>}, {transform_indices = @transform_1, window_bounds = array<i64: 16, 256>}, {pipeline_mode = #tpu.pipeline_mode<synchronous>, transform_indices = @transform_2, window_bounds = array<i64: 48, 16>}, {pipeline_mode = #tpu.pipeline_mode<synchronous>, transform_indices = @transform_3, window_bounds = array<i64: 48, 1>}, {pipeline_mode = #tpu.pipeline_mode<synchronous>, transform_indices = @transform_4, window_bounds = array<i64: 16, 16>}, {pipeline_mode = #tpu.pipeline_mode<synchronous>, transform_indices = @transform_5, window_bounds = array<i64: 16, 1>}, {pipeline_mode = #tpu.pipeline_mode<synchronous>, transform_indices = @transform_6, window_bounds = array<i64: 16, 1>}, {pipeline_mode = #tpu.pipeline_mode<synchronous>, transform_indices = @transform_7, window_bounds = array<i64: 16, 1>}, {pipeline_mode = #tpu.pipeline_mode<synchronous>, transform_indices = @transform_8, window_bounds = array<i64: 2048, 16>}, {pipeline_mode = #tpu.pipeline_mode<synchronous>, transform_indices = @transform_9, window_bounds = array<i64: 2048, 1>}, {pipeline_mode = #tpu.pipeline_mode<synchronous>, transform_indices = @transform_10, window_bounds = array<i64: 16, 2048>}, {pipeline_mode = #tpu.pipeline_mode<synchronous>, transform_indices = @transform_11, window_bounds = array<i64: 16, 1>}, {pipeline_mode = #tpu.pipeline_mode<synchronous>, transform_indices = @transform_12, window_bounds = array<i64: 16, 1>}, {pipeline_mode = #tpu.pipeline_mode<synchronous>, transform_indices = @transform_13, window_bounds = array<i64: 16, 1>}, {pipeline_mode = #tpu.pipeline_mode<synchronous>, transform_indices = @transform_14, window_bounds = array<i64: 16, 8>}, {pipeline_mode = #tpu.pipeline_mode<synchronous>, transform_indices = @transform_15, window_bounds = array<i64: 1, 8>}, {pipeline_mode = #tpu.pipeline_mode<synchronous>, transform_indices = @transform_16, window_bounds = array<i64: 2, 8>}]} {
    %c0 = arith.constant 0 : index
    %c0_0 = arith.constant 0 : index
    %c0_1 = arith.constant 0 : index
    %0 = vector.load %arg1[%c0, %c0_0, %c0_1] : memref<2x16x256xf32, #tpu.memory_space<vmem>>, vector<2x16x256xf32>
    %c0_2 = arith.constant 0 : index
    %c0_3 = arith.constant 0 : index
    %1 = vector.load %arg2[%c0_2, %c0_3] : memref<16x256xf32, #tpu.memory_space<vmem>>, vector<16x256xf32>
    %2 = vector.shape_cast %1 : vector<16x256xf32> to vector<1x16x256xf32>
    %3 = vector.broadcast %2 : vector<1x16x256xf32> to vector<2x16x256xf32>
    %4 = arith.addf %0, %3 : vector<2x16x256xf32>
    %5 = vector.extract_strided_slice %4 {offsets = [0, 0, 0], sizes = [1, 16, 256], strides = [1, 1, 1]} : vector<2x16x256xf32> to vector<1x16x256xf32>
    %6 = vector.shape_cast %5 : vector<1x16x256xf32> to vector<16x256xf32>
    %7 = vector.extract_strided_slice %4 {offsets = [1, 0, 0], sizes = [1, 16, 256], strides = [1, 1, 1]} : vector<2x16x256xf32> to vector<1x16x256xf32>
    %8 = vector.shape_cast %7 : vector<1x16x256xf32> to vector<16x256xf32>
    %9 = tpu.concatenate %6, %8 in 1 : vector<16x256xf32>, vector<16x256xf32> -> vector<16x512xf32>
    %c0_4 = arith.constant 0 : index
    %c0_5 = arith.constant 0 : index
    %10 = vector.load %arg3[%c0_4, %c0_5] : memref<48x16xf32, #tpu.memory_space<vmem>>, vector<48x16xf32>
    %cst = arith.constant dense<0.000000e+00> : vector<48x512xf32>
    %11 = tpu.matmul %10, %9, %cst {dimension_numbers = #tpu.dot_dimension_numbers<[1], [0], [0], [1], [0, 0, 1, 1], [], []>} : vector<48x16xf32>, vector<16x512xf32>, vector<48x512xf32> -> vector<48x512xf32>
    %c0_6 = arith.constant 0 : index
    %c0_7 = arith.constant 0 : index
    %12 = vector.load %arg4[%c0_6, %c0_7] : memref<48x1xf32, #tpu.memory_space<vmem>>, vector<48x1xf32>
    %13 = vector.broadcast %12 : vector<48x1xf32> to vector<48x512xf32>
    %14 = arith.addf %11, %13 : vector<48x512xf32>
    %15 = vector.extract_strided_slice %14 {offsets = [0, 0], sizes = [4, 512], strides = [1, 1]} : vector<48x512xf32> to vector<4x512xf32>
    %16 = vector.extract_strided_slice %14 {offsets = [16, 0], sizes = [4, 512], strides = [1, 1]} : vector<48x512xf32> to vector<4x512xf32>
    %17 = vector.extract_strided_slice %14 {offsets = [32, 0], sizes = [4, 512], strides = [1, 1]} : vector<48x512xf32> to vector<4x512xf32>
    %18 = vector.extract_strided_slice %16 {offsets = [0, 0], sizes = [4, 256], strides = [1, 1]} : vector<4x512xf32> to vector<4x256xf32>
    %19 = tpu.concatenate %18, %18 in 1 : vector<4x256xf32>, vector<4x256xf32> -> vector<4x512xf32>
    %20 = vector.extract_strided_slice %17 {offsets = [0, 0], sizes = [4, 256], strides = [1, 1]} : vector<4x512xf32> to vector<4x256xf32>
    %21 = tpu.concatenate %20, %20 in 1 : vector<4x256xf32>, vector<4x256xf32> -> vector<4x512xf32>
    %22 = arith.mulf %15, %19 : vector<4x512xf32>
    %cst_8 = arith.constant dense<0.000000e+00> : vector<512xf32>
    %23 = vector.multi_reduction <add>, %22, %cst_8 [0] : vector<4x512xf32> to vector<512xf32>
    %24 = vector.shape_cast %23 : vector<512xf32> to vector<1x512xf32>
    %cst_9 = arith.constant 5.000000e-01 : f32
    %25 = vector.broadcast %cst_9 : f32 to vector<1x512xf32>
    %26 = arith.mulf %24, %25 : vector<1x512xf32>
    %27 = vector.extract_strided_slice %16 {offsets = [0, 256], sizes = [4, 256], strides = [1, 1]} : vector<4x512xf32> to vector<4x256xf32>
    %28 = tpu.concatenate %27, %27 in 1 : vector<4x256xf32>, vector<4x256xf32> -> vector<4x512xf32>
    %29 = vector.extract_strided_slice %17 {offsets = [0, 256], sizes = [4, 256], strides = [1, 1]} : vector<4x512xf32> to vector<4x256xf32>
    %30 = tpu.concatenate %29, %29 in 1 : vector<4x256xf32>, vector<4x256xf32> -> vector<4x512xf32>
    %31 = arith.mulf %15, %28 : vector<4x512xf32>
    %cst_10 = arith.constant dense<0.000000e+00> : vector<512xf32>
    %32 = vector.multi_reduction <add>, %31, %cst_10 [0] : vector<4x512xf32> to vector<512xf32>
    %33 = vector.shape_cast %32 : vector<512xf32> to vector<1x512xf32>
    %cst_11 = arith.constant 5.000000e-01 : f32
    %34 = vector.broadcast %cst_11 : f32 to vector<1x512xf32>
    %35 = arith.mulf %33, %34 : vector<1x512xf32>
    %36 = arith.maximumf %26, %35 : vector<1x512xf32>
    %37 = arith.subf %26, %36 : vector<1x512xf32>
    %38 = math.exp %37 : vector<1x512xf32>
    %39 = vector.broadcast %38 : vector<1x512xf32> to vector<4x512xf32>
    %40 = arith.mulf %39, %21 : vector<4x512xf32>
    %41 = arith.subf %35, %36 : vector<1x512xf32>
    %42 = math.exp %41 : vector<1x512xf32>
    %43 = arith.addf %38, %42 : vector<1x512xf32>
    %44 = vector.broadcast %42 : vector<1x512xf32> to vector<4x512xf32>
    %45 = arith.mulf %44, %30 : vector<4x512xf32>
    %46 = arith.addf %40, %45 : vector<4x512xf32>
    %47 = tpu.reciprocal %43 {approx = true} : vector<1x512xf32> -> vector<1x512xf32>
    %48 = vector.broadcast %47 : vector<1x512xf32> to vector<4x512xf32>
    %49 = arith.mulf %46, %48 : vector<4x512xf32>
    %50 = vector.extract_strided_slice %14 {offsets = [4, 0], sizes = [4, 512], strides = [1, 1]} : vector<48x512xf32> to vector<4x512xf32>
    %51 = vector.extract_strided_slice %14 {offsets = [20, 0], sizes = [4, 512], strides = [1, 1]} : vector<48x512xf32> to vector<4x512xf32>
    %52 = vector.extract_strided_slice %14 {offsets = [36, 0], sizes = [4, 512], strides = [1, 1]} : vector<48x512xf32> to vector<4x512xf32>
    %53 = vector.extract_strided_slice %51 {offsets = [0, 0], sizes = [4, 256], strides = [1, 1]} : vector<4x512xf32> to vector<4x256xf32>
    %54 = tpu.concatenate %53, %53 in 1 : vector<4x256xf32>, vector<4x256xf32> -> vector<4x512xf32>
    %55 = vector.extract_strided_slice %52 {offsets = [0, 0], sizes = [4, 256], strides = [1, 1]} : vector<4x512xf32> to vector<4x256xf32>
    %56 = tpu.concatenate %55, %55 in 1 : vector<4x256xf32>, vector<4x256xf32> -> vector<4x512xf32>
    %57 = arith.mulf %50, %54 : vector<4x512xf32>
    %cst_12 = arith.constant dense<0.000000e+00> : vector<512xf32>
    %58 = vector.multi_reduction <add>, %57, %cst_12 [0] : vector<4x512xf32> to vector<512xf32>
    %59 = vector.shape_cast %58 : vector<512xf32> to vector<1x512xf32>
    %cst_13 = arith.constant 5.000000e-01 : f32
    %60 = vector.broadcast %cst_13 : f32 to vector<1x512xf32>
    %61 = arith.mulf %59, %60 : vector<1x512xf32>
    %62 = vector.extract_strided_slice %51 {offsets = [0, 256], sizes = [4, 256], strides = [1, 1]} : vector<4x512xf32> to vector<4x256xf32>
    %63 = tpu.concatenate %62, %62 in 1 : vector<4x256xf32>, vector<4x256xf32> -> vector<4x512xf32>
    %64 = vector.extract_strided_slice %52 {offsets = [0, 256], sizes = [4, 256], strides = [1, 1]} : vector<4x512xf32> to vector<4x256xf32>
    %65 = tpu.concatenate %64, %64 in 1 : vector<4x256xf32>, vector<4x256xf32> -> vector<4x512xf32>
    %66 = arith.mulf %50, %63 : vector<4x512xf32>
    %cst_14 = arith.constant dense<0.000000e+00> : vector<512xf32>
    %67 = vector.multi_reduction <add>, %66, %cst_14 [0] : vector<4x512xf32> to vector<512xf32>
    %68 = vector.shape_cast %67 : vector<512xf32> to vector<1x512xf32>
    %cst_15 = arith.constant 5.000000e-01 : f32
    %69 = vector.broadcast %cst_15 : f32 to vector<1x512xf32>
    %70 = arith.mulf %68, %69 : vector<1x512xf32>
    %71 = arith.maximumf %61, %70 : vector<1x512xf32>
    %72 = arith.subf %61, %71 : vector<1x512xf32>
    %73 = math.exp %72 : vector<1x512xf32>
    %74 = vector.broadcast %73 : vector<1x512xf32> to vector<4x512xf32>
    %75 = arith.mulf %74, %56 : vector<4x512xf32>
    %76 = arith.subf %70, %71 : vector<1x512xf32>
    %77 = math.exp %76 : vector<1x512xf32>
    %78 = arith.addf %73, %77 : vector<1x512xf32>
    %79 = vector.broadcast %77 : vector<1x512xf32> to vector<4x512xf32>
    %80 = arith.mulf %79, %65 : vector<4x512xf32>
    %81 = arith.addf %75, %80 : vector<4x512xf32>
    %82 = tpu.reciprocal %78 {approx = true} : vector<1x512xf32> -> vector<1x512xf32>
    %83 = vector.broadcast %82 : vector<1x512xf32> to vector<4x512xf32>
    %84 = arith.mulf %81, %83 : vector<4x512xf32>
    %85 = vector.extract_strided_slice %14 {offsets = [8, 0], sizes = [4, 512], strides = [1, 1]} : vector<48x512xf32> to vector<4x512xf32>
    %86 = vector.extract_strided_slice %14 {offsets = [24, 0], sizes = [4, 512], strides = [1, 1]} : vector<48x512xf32> to vector<4x512xf32>
    %87 = vector.extract_strided_slice %14 {offsets = [40, 0], sizes = [4, 512], strides = [1, 1]} : vector<48x512xf32> to vector<4x512xf32>
    %88 = vector.extract_strided_slice %86 {offsets = [0, 0], sizes = [4, 256], strides = [1, 1]} : vector<4x512xf32> to vector<4x256xf32>
    %89 = tpu.concatenate %88, %88 in 1 : vector<4x256xf32>, vector<4x256xf32> -> vector<4x512xf32>
    %90 = vector.extract_strided_slice %87 {offsets = [0, 0], sizes = [4, 256], strides = [1, 1]} : vector<4x512xf32> to vector<4x256xf32>
    %91 = tpu.concatenate %90, %90 in 1 : vector<4x256xf32>, vector<4x256xf32> -> vector<4x512xf32>
    %92 = arith.mulf %85, %89 : vector<4x512xf32>
    %cst_16 = arith.constant dense<0.000000e+00> : vector<512xf32>
    %93 = vector.multi_reduction <add>, %92, %cst_16 [0] : vector<4x512xf32> to vector<512xf32>
    %94 = vector.shape_cast %93 : vector<512xf32> to vector<1x512xf32>
    %cst_17 = arith.constant 5.000000e-01 : f32
    %95 = vector.broadcast %cst_17 : f32 to vector<1x512xf32>
    %96 = arith.mulf %94, %95 : vector<1x512xf32>
    %97 = vector.extract_strided_slice %86 {offsets = [0, 256], sizes = [4, 256], strides = [1, 1]} : vector<4x512xf32> to vector<4x256xf32>
    %98 = tpu.concatenate %97, %97 in 1 : vector<4x256xf32>, vector<4x256xf32> -> vector<4x512xf32>
    %99 = vector.extract_strided_slice %87 {offsets = [0, 256], sizes = [4, 256], strides = [1, 1]} : vector<4x512xf32> to vector<4x256xf32>
    %100 = tpu.concatenate %99, %99 in 1 : vector<4x256xf32>, vector<4x256xf32> -> vector<4x512xf32>
    %101 = arith.mulf %85, %98 : vector<4x512xf32>
    %cst_18 = arith.constant dense<0.000000e+00> : vector<512xf32>
    %102 = vector.multi_reduction <add>, %101, %cst_18 [0] : vector<4x512xf32> to vector<512xf32>
    %103 = vector.shape_cast %102 : vector<512xf32> to vector<1x512xf32>
    %cst_19 = arith.constant 5.000000e-01 : f32
    %104 = vector.broadcast %cst_19 : f32 to vector<1x512xf32>
    %105 = arith.mulf %103, %104 : vector<1x512xf32>
    %106 = arith.maximumf %96, %105 : vector<1x512xf32>
    %107 = arith.subf %96, %106 : vector<1x512xf32>
    %108 = math.exp %107 : vector<1x512xf32>
    %109 = vector.broadcast %108 : vector<1x512xf32> to vector<4x512xf32>
    %110 = arith.mulf %109, %91 : vector<4x512xf32>
    %111 = arith.subf %105, %106 : vector<1x512xf32>
    %112 = math.exp %111 : vector<1x512xf32>
    %113 = arith.addf %108, %112 : vector<1x512xf32>
    %114 = vector.broadcast %112 : vector<1x512xf32> to vector<4x512xf32>
    %115 = arith.mulf %114, %100 : vector<4x512xf32>
    %116 = arith.addf %110, %115 : vector<4x512xf32>
    %117 = tpu.reciprocal %113 {approx = true} : vector<1x512xf32> -> vector<1x512xf32>
    %118 = vector.broadcast %117 : vector<1x512xf32> to vector<4x512xf32>
    %119 = arith.mulf %116, %118 : vector<4x512xf32>
    %120 = vector.extract_strided_slice %14 {offsets = [12, 0], sizes = [4, 512], strides = [1, 1]} : vector<48x512xf32> to vector<4x512xf32>
    %121 = vector.extract_strided_slice %14 {offsets = [28, 0], sizes = [4, 512], strides = [1, 1]} : vector<48x512xf32> to vector<4x512xf32>
    %122 = vector.extract_strided_slice %14 {offsets = [44, 0], sizes = [4, 512], strides = [1, 1]} : vector<48x512xf32> to vector<4x512xf32>
    %123 = vector.extract_strided_slice %121 {offsets = [0, 0], sizes = [4, 256], strides = [1, 1]} : vector<4x512xf32> to vector<4x256xf32>
    %124 = tpu.concatenate %123, %123 in 1 : vector<4x256xf32>, vector<4x256xf32> -> vector<4x512xf32>
    %125 = vector.extract_strided_slice %122 {offsets = [0, 0], sizes = [4, 256], strides = [1, 1]} : vector<4x512xf32> to vector<4x256xf32>
    %126 = tpu.concatenate %125, %125 in 1 : vector<4x256xf32>, vector<4x256xf32> -> vector<4x512xf32>
    %127 = arith.mulf %120, %124 : vector<4x512xf32>
    %cst_20 = arith.constant dense<0.000000e+00> : vector<512xf32>
    %128 = vector.multi_reduction <add>, %127, %cst_20 [0] : vector<4x512xf32> to vector<512xf32>
    %129 = vector.shape_cast %128 : vector<512xf32> to vector<1x512xf32>
    %cst_21 = arith.constant 5.000000e-01 : f32
    %130 = vector.broadcast %cst_21 : f32 to vector<1x512xf32>
    %131 = arith.mulf %129, %130 : vector<1x512xf32>
    %132 = vector.extract_strided_slice %121 {offsets = [0, 256], sizes = [4, 256], strides = [1, 1]} : vector<4x512xf32> to vector<4x256xf32>
    %133 = tpu.concatenate %132, %132 in 1 : vector<4x256xf32>, vector<4x256xf32> -> vector<4x512xf32>
    %134 = vector.extract_strided_slice %122 {offsets = [0, 256], sizes = [4, 256], strides = [1, 1]} : vector<4x512xf32> to vector<4x256xf32>
    %135 = tpu.concatenate %134, %134 in 1 : vector<4x256xf32>, vector<4x256xf32> -> vector<4x512xf32>
    %136 = arith.mulf %120, %133 : vector<4x512xf32>
    %cst_22 = arith.constant dense<0.000000e+00> : vector<512xf32>
    %137 = vector.multi_reduction <add>, %136, %cst_22 [0] : vector<4x512xf32> to vector<512xf32>
    %138 = vector.shape_cast %137 : vector<512xf32> to vector<1x512xf32>
    %cst_23 = arith.constant 5.000000e-01 : f32
    %139 = vector.broadcast %cst_23 : f32 to vector<1x512xf32>
    %140 = arith.mulf %138, %139 : vector<1x512xf32>
    %141 = arith.maximumf %131, %140 : vector<1x512xf32>
    %142 = arith.subf %131, %141 : vector<1x512xf32>
    %143 = math.exp %142 : vector<1x512xf32>
    %144 = vector.broadcast %143 : vector<1x512xf32> to vector<4x512xf32>
    %145 = arith.mulf %144, %126 : vector<4x512xf32>
    %146 = arith.subf %140, %141 : vector<1x512xf32>
    %147 = math.exp %146 : vector<1x512xf32>
    %148 = arith.addf %143, %147 : vector<1x512xf32>
    %149 = vector.broadcast %147 : vector<1x512xf32> to vector<4x512xf32>
    %150 = arith.mulf %149, %135 : vector<4x512xf32>
    %151 = arith.addf %145, %150 : vector<4x512xf32>
    %152 = tpu.reciprocal %148 {approx = true} : vector<1x512xf32> -> vector<1x512xf32>
    %153 = vector.broadcast %152 : vector<1x512xf32> to vector<4x512xf32>
    %154 = arith.mulf %151, %153 : vector<4x512xf32>
    %155 = tpu.concatenate %49, %84, %119, %154 in 0 : vector<4x512xf32>, vector<4x512xf32>, vector<4x512xf32>, vector<4x512xf32> -> vector<16x512xf32>
    %c0_24 = arith.constant 0 : index
    %c0_25 = arith.constant 0 : index
    %156 = vector.load %arg5[%c0_24, %c0_25] : memref<16x16xf32, #tpu.memory_space<vmem>>, vector<16x16xf32>
    %cst_26 = arith.constant dense<0.000000e+00> : vector<16x512xf32>
    %157 = tpu.matmul %156, %155, %cst_26 {dimension_numbers = #tpu.dot_dimension_numbers<[1], [0], [0], [1], [0, 0, 1, 1], [], []>} : vector<16x16xf32>, vector<16x512xf32>, vector<16x512xf32> -> vector<16x512xf32>
    %c0_27 = arith.constant 0 : index
    %c0_28 = arith.constant 0 : index
    %158 = vector.load %arg6[%c0_27, %c0_28] : memref<16x1xf32, #tpu.memory_space<vmem>>, vector<16x1xf32>
    %159 = vector.broadcast %158 : vector<16x1xf32> to vector<16x512xf32>
    %160 = arith.addf %157, %159 : vector<16x512xf32>
    %161 = arith.addf %9, %160 : vector<16x512xf32>
    %cst_29 = arith.constant dense<0.000000e+00> : vector<512xf32>
    %162 = vector.multi_reduction <add>, %161, %cst_29 [0] : vector<16x512xf32> to vector<512xf32>
    %163 = vector.shape_cast %162 : vector<512xf32> to vector<1x512xf32>
    %cst_30 = arith.constant 1.600000e+01 : f32
    %164 = vector.broadcast %cst_30 : f32 to vector<1x512xf32>
    %165 = arith.divf %163, %164 : vector<1x512xf32>
    %166 = vector.broadcast %165 : vector<1x512xf32> to vector<16x512xf32>
    %167 = arith.subf %161, %166 : vector<16x512xf32>
    %168 = arith.mulf %167, %167 : vector<16x512xf32>
    %cst_31 = arith.constant dense<0.000000e+00> : vector<512xf32>
    %169 = vector.multi_reduction <add>, %168, %cst_31 [0] : vector<16x512xf32> to vector<512xf32>
    %170 = vector.shape_cast %169 : vector<512xf32> to vector<1x512xf32>
    %cst_32 = arith.constant 1.600000e+01 : f32
    %171 = vector.broadcast %cst_32 : f32 to vector<1x512xf32>
    %172 = arith.divf %170, %171 : vector<1x512xf32>
    %cst_33 = arith.constant 9.99999974E-6 : f32
    %173 = vector.broadcast %cst_33 : f32 to vector<1x512xf32>
    %174 = arith.addf %172, %173 : vector<1x512xf32>
    %175 = math.rsqrt %174 : vector<1x512xf32>
    %176 = vector.broadcast %175 : vector<1x512xf32> to vector<16x512xf32>
    %177 = arith.mulf %167, %176 : vector<16x512xf32>
    %c0_34 = arith.constant 0 : index
    %c0_35 = arith.constant 0 : index
    %178 = vector.load %arg7[%c0_34, %c0_35] : memref<16x1xf32, #tpu.memory_space<vmem>>, vector<16x1xf32>
    %179 = vector.broadcast %178 : vector<16x1xf32> to vector<16x512xf32>
    %180 = arith.mulf %177, %179 : vector<16x512xf32>
    %c0_36 = arith.constant 0 : index
    %c0_37 = arith.constant 0 : index
    %181 = vector.load %arg8[%c0_36, %c0_37] : memref<16x1xf32, #tpu.memory_space<vmem>>, vector<16x1xf32>
    %182 = vector.broadcast %181 : vector<16x1xf32> to vector<16x512xf32>
    %183 = arith.addf %180, %182 : vector<16x512xf32>
    %c0_38 = arith.constant 0 : index
    %c0_39 = arith.constant 0 : index
    %184 = vector.load %arg9[%c0_38, %c0_39] : memref<2048x16xbf16, #tpu.memory_space<vmem>>, vector<2048x16xbf16>
    %185 = arith.truncf %183 : vector<16x512xf32> to vector<16x512xbf16>
    %cst_40 = arith.constant dense<0.000000e+00> : vector<2048x512xf32>
    %186 = tpu.matmul %184, %185, %cst_40 {dimension_numbers = #tpu.dot_dimension_numbers<[1], [0], [0], [1], [0, 0, 1, 1], [], []>} : vector<2048x16xbf16>, vector<16x512xbf16>, vector<2048x512xf32> -> vector<2048x512xf32>
    %c0_41 = arith.constant 0 : index
    %c0_42 = arith.constant 0 : index
    %187 = vector.load %arg10[%c0_41, %c0_42] : memref<2048x1xf32, #tpu.memory_space<vmem>>, vector<2048x1xf32>
    %188 = vector.broadcast %187 : vector<2048x1xf32> to vector<2048x512xf32>
    %189 = arith.addf %186, %188 : vector<2048x512xf32>
    %cst_43 = arith.constant 0.000000e+00 : f32
    %190 = vector.broadcast %cst_43 : f32 to vector<2048x512xf32>
    %191 = arith.maximumf %189, %190 : vector<2048x512xf32>
    %192 = arith.truncf %191 : vector<2048x512xf32> to vector<2048x512xbf16>
    %c0_44 = arith.constant 0 : index
    %c0_45 = arith.constant 0 : index
    %193 = vector.load %arg11[%c0_44, %c0_45] : memref<16x2048xbf16, #tpu.memory_space<vmem>>, vector<16x2048xbf16>
    %cst_46 = arith.constant dense<0.000000e+00> : vector<16x512xf32>
    %194 = tpu.matmul %193, %192, %cst_46 {dimension_numbers = #tpu.dot_dimension_numbers<[1], [0], [0], [1], [0, 0, 1, 1], [], []>} : vector<16x2048xbf16>, vector<2048x512xbf16>, vector<16x512xf32> -> vector<16x512xf32>
    %c0_47 = arith.constant 0 : index
    %c0_48 = arith.constant 0 : index
    %195 = vector.load %arg12[%c0_47, %c0_48] : memref<16x1xf32, #tpu.memory_space<vmem>>, vector<16x1xf32>
    %196 = vector.broadcast %195 : vector<16x1xf32> to vector<16x512xf32>
    %197 = arith.addf %194, %196 : vector<16x512xf32>
    %198 = arith.addf %183, %197 : vector<16x512xf32>
    %cst_49 = arith.constant dense<0.000000e+00> : vector<512xf32>
    %199 = vector.multi_reduction <add>, %198, %cst_49 [0] : vector<16x512xf32> to vector<512xf32>
    %200 = vector.shape_cast %199 : vector<512xf32> to vector<1x512xf32>
    %cst_50 = arith.constant 1.600000e+01 : f32
    %201 = vector.broadcast %cst_50 : f32 to vector<1x512xf32>
    %202 = arith.divf %200, %201 : vector<1x512xf32>
    %203 = vector.broadcast %202 : vector<1x512xf32> to vector<16x512xf32>
    %204 = arith.subf %198, %203 : vector<16x512xf32>
    %205 = arith.mulf %204, %204 : vector<16x512xf32>
    %cst_51 = arith.constant dense<0.000000e+00> : vector<512xf32>
    %206 = vector.multi_reduction <add>, %205, %cst_51 [0] : vector<16x512xf32> to vector<512xf32>
    %207 = vector.shape_cast %206 : vector<512xf32> to vector<1x512xf32>
    %cst_52 = arith.constant 1.600000e+01 : f32
    %208 = vector.broadcast %cst_52 : f32 to vector<1x512xf32>
    %209 = arith.divf %207, %208 : vector<1x512xf32>
    %cst_53 = arith.constant 9.99999974E-6 : f32
    %210 = vector.broadcast %cst_53 : f32 to vector<1x512xf32>
    %211 = arith.addf %209, %210 : vector<1x512xf32>
    %212 = math.rsqrt %211 : vector<1x512xf32>
    %213 = vector.broadcast %212 : vector<1x512xf32> to vector<16x512xf32>
    %214 = arith.mulf %204, %213 : vector<16x512xf32>
    %c0_54 = arith.constant 0 : index
    %c0_55 = arith.constant 0 : index
    %215 = vector.load %arg13[%c0_54, %c0_55] : memref<16x1xf32, #tpu.memory_space<vmem>>, vector<16x1xf32>
    %216 = vector.broadcast %215 : vector<16x1xf32> to vector<16x512xf32>
    %217 = arith.mulf %214, %216 : vector<16x512xf32>
    %c0_56 = arith.constant 0 : index
    %c0_57 = arith.constant 0 : index
    %218 = vector.load %arg14[%c0_56, %c0_57] : memref<16x1xf32, #tpu.memory_space<vmem>>, vector<16x1xf32>
    %219 = vector.broadcast %218 : vector<16x1xf32> to vector<16x512xf32>
    %220 = arith.addf %217, %219 : vector<16x512xf32>
    %c0_58 = arith.constant 0 : index
    %c0_59 = arith.constant 0 : index
    %221 = vector.load %arg15[%c0_58, %c0_59] : memref<16x8xf32, #tpu.memory_space<vmem>>, vector<16x8xf32>
    %222 = vector.extract_strided_slice %220 {offsets = [0, 0], sizes = [16, 256], strides = [1, 1]} : vector<16x512xf32> to vector<16x256xf32>
    %cst_60 = arith.constant dense<0.000000e+00> : vector<16xf32>
    %223 = vector.multi_reduction <add>, %222, %cst_60 [1] : vector<16x256xf32> to vector<16xf32>
    %224 = vector.shape_cast %223 : vector<16xf32> to vector<16x1xf32>
    %225 = vector.broadcast %224 : vector<16x1xf32> to vector<16x8xf32>
    %226 = arith.mulf %225, %221 : vector<16x8xf32>
    %cst_61 = arith.constant dense<0.000000e+00> : vector<8xf32>
    %227 = vector.multi_reduction <add>, %226, %cst_61 [0] : vector<16x8xf32> to vector<8xf32>
    %228 = vector.shape_cast %227 : vector<8xf32> to vector<1x8xf32>
    %229 = vector.extract_strided_slice %220 {offsets = [0, 256], sizes = [16, 256], strides = [1, 1]} : vector<16x512xf32> to vector<16x256xf32>
    %cst_62 = arith.constant dense<0.000000e+00> : vector<16xf32>
    %230 = vector.multi_reduction <add>, %229, %cst_62 [1] : vector<16x256xf32> to vector<16xf32>
    %231 = vector.shape_cast %230 : vector<16xf32> to vector<16x1xf32>
    %232 = vector.broadcast %231 : vector<16x1xf32> to vector<16x8xf32>
    %233 = arith.mulf %232, %221 : vector<16x8xf32>
    %cst_63 = arith.constant dense<0.000000e+00> : vector<8xf32>
    %234 = vector.multi_reduction <add>, %233, %cst_63 [0] : vector<16x8xf32> to vector<8xf32>
    %235 = vector.shape_cast %234 : vector<8xf32> to vector<1x8xf32>
    %236 = tpu.concatenate %228, %235 in 0 : vector<1x8xf32>, vector<1x8xf32> -> vector<2x8xf32>
    %cst_64 = arith.constant 3.906250e-03 : f32
    %237 = vector.broadcast %cst_64 : f32 to vector<2x8xf32>
    %238 = arith.mulf %236, %237 : vector<2x8xf32>
    %c0_65 = arith.constant 0 : index
    %c0_66 = arith.constant 0 : index
    %239 = vector.load %arg16[%c0_65, %c0_66] : memref<1x8xf32, #tpu.memory_space<vmem>>, vector<1x8xf32>
    %cst_67 = arith.constant 1.000000e+00 : f32
    %240 = vector.broadcast %cst_67 : f32 to vector<1x8xf32>
    %241 = arith.mulf %239, %240 : vector<1x8xf32>
    %242 = vector.broadcast %241 : vector<1x8xf32> to vector<2x8xf32>
    %243 = arith.addf %238, %242 : vector<2x8xf32>
    %c0_68 = arith.constant 0 : index
    %c0_69 = arith.constant 0 : index
    %244 = vector.load %arg17[%c0_68, %c0_69] : memref<2x8xf32, #tpu.memory_space<vmem>>, vector<2x8xf32>
    tpu.vector_store %arg17[%c0_68, %c0_69], %243 {strides = array<i32>} : memref<2x8xf32, #tpu.memory_space<vmem>>, vector<2x8xf32>,
    return
  }
  func.func @transform_0(%arg0: i32) -> (i32, i32, i32) {
    %c0_i32 = arith.constant 0 : i32
    %c0_i32_0 = arith.constant 0 : i32
    %c0_i32_1 = arith.constant 0 : i32
    return %c0_i32, %c0_i32_0, %arg0 : i32, i32, i32
  }
  func.func @transform_1(%arg0: i32) -> (i32, i32) {
    %c0_i32 = arith.constant 0 : i32
    %c0_i32_0 = arith.constant 0 : i32
    return %c0_i32, %arg0 : i32, i32
  }
  func.func @transform_2(%arg0: i32) -> (i32, i32) {
    %c0_i32 = arith.constant 0 : i32
    %c0_i32_0 = arith.constant 0 : i32
    %c0_i32_1 = arith.constant 0 : i32
    return %c0_i32, %c0_i32_0 : i32, i32
  }
  func.func @transform_3(%arg0: i32) -> (i32, i32) {
    %c0_i32 = arith.constant 0 : i32
    %c0_i32_0 = arith.constant 0 : i32
    %c0_i32_1 = arith.constant 0 : i32
    return %c0_i32, %c0_i32_0 : i32, i32
  }
  func.func @transform_4(%arg0: i32) -> (i32, i32) {
    %c0_i32 = arith.constant 0 : i32
    %c0_i32_0 = arith.constant 0 : i32
    %c0_i32_1 = arith.constant 0 : i32
    return %c0_i32, %c0_i32_0 : i32, i32
  }
  func.func @transform_5(%arg0: i32) -> (i32, i32) {
    %c0_i32 = arith.constant 0 : i32
    %c0_i32_0 = arith.constant 0 : i32
    %c0_i32_1 = arith.constant 0 : i32
    return %c0_i32, %c0_i32_0 : i32, i32
  }
  func.func @transform_6(%arg0: i32) -> (i32, i32) {
    %c0_i32 = arith.constant 0 : i32
    %c0_i32_0 = arith.constant 0 : i32
    %c0_i32_1 = arith.constant 0 : i32
    return %c0_i32, %c0_i32_0 : i32, i32
  }
  func.func @transform_7(%arg0: i32) -> (i32, i32) {
    %c0_i32 = arith.constant 0 : i32
    %c0_i32_0 = arith.constant 0 : i32
    %c0_i32_1 = arith.constant 0 : i32
    return %c0_i32, %c0_i32_0 : i32, i32
  }
  func.func @transform_8(%arg0: i32) -> (i32, i32) {
    %c0_i32 = arith.constant 0 : i32
    %c0_i32_0 = arith.constant 0 : i32
    %c0_i32_1 = arith.constant 0 : i32
    return %c0_i32, %c0_i32_0 : i32, i32
  }
  func.func @transform_9(%arg0: i32) -> (i32, i32) {
    %c0_i32 = arith.constant 0 : i32
    %c0_i32_0 = arith.constant 0 : i32
    %c0_i32_1 = arith.constant 0 : i32
    return %c0_i32, %c0_i32_0 : i32, i32
  }
  func.func @transform_10(%arg0: i32) -> (i32, i32) {
    %c0_i32 = arith.constant 0 : i32
    %c0_i32_0 = arith.constant 0 : i32
    %c0_i32_1 = arith.constant 0 : i32
    return %c0_i32, %c0_i32_0 : i32, i32
  }
  func.func @transform_11(%arg0: i32) -> (i32, i32) {
    %c0_i32 = arith.constant 0 : i32
    %c0_i32_0 = arith.constant 0 : i32
    %c0_i32_1 = arith.constant 0 : i32
    return %c0_i32, %c0_i32_0 : i32, i32
  }
  func.func @transform_12(%arg0: i32) -> (i32, i32) {
    %c0_i32 = arith.constant 0 : i32
    %c0_i32_0 = arith.constant 0 : i32
    %c0_i32_1 = arith.constant 0 : i32
    return %c0_i32, %c0_i32_0 : i32, i32
  }
  func.func @transform_13(%arg0: i32) -> (i32, i32) {
    %c0_i32 = arith.constant 0 : i32
    %c0_i32_0 = arith.constant 0 : i32
    %c0_i32_1 = arith.constant 0 : i32
    return %c0_i32, %c0_i32_0 : i32, i32
  }
  func.func @transform_14(%arg0: i32) -> (i32, i32) {
    %c0_i32 = arith.constant 0 : i32
    %c0_i32_0 = arith.constant 0 : i32
    %c0_i32_1 = arith.constant 0 : i32
    return %c0_i32, %c0_i32_0 : i32, i32
  }
  func.func @transform_15(%arg0: i32) -> (i32, i32) {
    %c0_i32 = arith.constant 0 : i32
    %c0_i32_0 = arith.constant 0 : i32
    %c0_i32_1 = arith.constant 0 : i32
    return %c0_i32, %c0_i32_0 : i32, i32
  }
  func.func @transform_16(%arg0: i32) -> (i32, i32) {
    %c0_i32 = arith.constant 0 : i32
    %c0_i32_0 = arith.constant 0 : i32
    %c0_i32_1 = arith.constant 0 : i32
    return %c0_i32, %c0_i32_0 : i32, i32
  }
}

</mosaic_0001>

<llo_original>
// kernel: tpu_custom_call.1
$region0: #{tpu_custom_call.1}
  #allocation0 [shape = 'u32[]', space=smem, size = 0x4, offset = 0x4, fixed_abs, tag = 'smem constant byte address 0x4 - core index']
  #allocation1 [shape = 'u32[72,128]{1,0:T(1,128)}', space=vmem, size = 0x9000, scoped, tag = 'internal scratch']
  %s0 = inlined_call_operand.vmem [shape: f32[2,16,256], index: 0, kind: input, shape index: {}]
  %s1 = inlined_call_operand.vmem [shape: f32[16,256], index: 1, kind: input, shape index: {}]
  %s2 = inlined_call_operand.vmem [shape: f32[48,16], index: 2, kind: input, shape index: {}]
  %s3 = inlined_call_operand.vmem [shape: f32[48,1], index: 3, kind: input, shape index: {}]
  %s4 = inlined_call_operand.vmem [shape: f32[16,16], index: 4, kind: input, shape index: {}]
  %s5 = inlined_call_operand.vmem [shape: f32[16,1], index: 5, kind: input, shape index: {}]
  %s6 = inlined_call_operand.vmem [shape: f32[16,1], index: 6, kind: input, shape index: {}]
  %s7 = inlined_call_operand.vmem [shape: f32[16,1], index: 7, kind: input, shape index: {}]
  %s8 = inlined_call_operand.vmem [shape: bf16[2048,16], index: 8, kind: input, shape index: {}]
  %s9 = inlined_call_operand.vmem [shape: f32[2048,1], index: 9, kind: input, shape index: {}]
  %s10 = inlined_call_operand.vmem [shape: bf16[16,2048], index: 10, kind: input, shape index: {}]
  %s11 = inlined_call_operand.vmem [shape: f32[16,1], index: 11, kind: input, shape index: {}]
  %s12 = inlined_call_operand.vmem [shape: f32[16,1], index: 12, kind: input, shape index: {}]
  %s13 = inlined_call_operand.vmem [shape: f32[16,1], index: 13, kind: input, shape index: {}]
  %s14 = inlined_call_operand.vmem [shape: f32[16,8], index: 14, kind: input, shape index: {}]
  %s15 = inlined_call_operand.vmem [shape: f32[1,8], index: 15, kind: input, shape index: {}]
  %s16 = inlined_call_operand.hbm [shape: f32[2,8], index: 16, kind: output, shape index: {}]
  %s17 = sld [smem:[#allocation0]]
  $region74: #{tpu_custom_call.1} parent=0
    _
  %s19 = ssub.s32 1, %s17
  %s20 = scalar_select 0, %s19, %s17
  $region1: #{tpu_custom_call.1} parent=0
    #allocation2 [shape = 'u8[1024]{0}', space=vmem, size = 0x400, scoped, tag = 'output window, operand 0, single buffered']
    #allocation3 [shape = 's32[1]{0}', space=sflag, size = 0x4, scoped, tag = 'scoped memory for tpu_custom_call.1']
    %21 = vsyncpa [#allocation3], 0
    // Predicated region
    $region2: #{tpu_custom_call.1} parent=1 // pred_check
      _
    $region3: #{tpu_custom_call.1} parent=1 // pred_check_branch
      %23 = sbr.rel (0) target = $region5
    $region4: #{tpu_custom_call.1} parent=1 // pred_region
      _
    $region5: #{tpu_custom_call.1} parent=1 // pred_fallthru
      _
    // Predicated region
    $region6: #{tpu_custom_call.1} parent=1 // pred_check
      _
    $region7: #{tpu_custom_call.1} parent=1 // pred_check_branch
      %25 = sbr.rel (0) target = $region9
    $region8: #{tpu_custom_call.1} parent=1 // pred_region
      _
    $region9: #{tpu_custom_call.1} parent=1 // pred_fallthru
      _
    // Predicated region
    $region10: #{tpu_custom_call.1} parent=1 // pred_check
      _
    $region11: #{tpu_custom_call.1} parent=1 // pred_check_branch
      %27 = sbr.rel (0) target = $region13
    $region12: #{tpu_custom_call.1} parent=1 // pred_region
      _
    $region13: #{tpu_custom_call.1} parent=1 // pred_fallthru
      _
    // Predicated region
    $region14: #{tpu_custom_call.1} parent=1 // pred_check
      _
    $region15: #{tpu_custom_call.1} parent=1 // pred_check_branch
      %29 = sbr.rel (0) target = $region17
    $region16: #{tpu_custom_call.1} parent=1 // pred_region
      _
    $region17: #{tpu_custom_call.1} parent=1 // pred_fallthru
      _
    // Predicated region
    $region18: #{tpu_custom_call.1} parent=1 // pred_check
      _
    $region19: #{tpu_custom_call.1} parent=1 // pred_check_branch
      %31 = sbr.rel (0) target = $region21
    $region20: #{tpu_custom_call.1} parent=1 // pred_region
      _
    $region21: #{tpu_custom_call.1} parent=1 // pred_fallthru
      _
    // Predicated region
    $region22: #{tpu_custom_call.1} parent=1 // pred_check
      _
    $region23: #{tpu_custom_call.1} parent=1 // pred_check_branch
      %33 = sbr.rel (0) target = $region25
    $region24: #{tpu_custom_call.1} parent=1 // pred_region
      _
    $region25: #{tpu_custom_call.1} parent=1 // pred_fallthru
      _
    // Predicated region
    $region26: #{tpu_custom_call.1} parent=1 // pred_check
      _
    $region27: #{tpu_custom_call.1} parent=1 // pred_check_branch
      %35 = sbr.rel (0) target = $region29
    $region28: #{tpu_custom_call.1} parent=1 // pred_region
      _
    $region29: #{tpu_custom_call.1} parent=1 // pred_fallthru
      _
    // Predicated region
    $region30: #{tpu_custom_call.1} parent=1 // pred_check
      _
    $region31: #{tpu_custom_call.1} parent=1 // pred_check_branch
      %37 = sbr.rel (0) target = $region33
    $region32: #{tpu_custom_call.1} parent=1 // pred_region
      _
    $region33: #{tpu_custom_call.1} parent=1 // pred_fallthru
      _
    // Predicated region
    $region34: #{tpu_custom_call.1} parent=1 // pred_check
      _
    $region35: #{tpu_custom_call.1} parent=1 // pred_check_branch
      %39 = sbr.rel (0) target = $region37
    $region36: #{tpu_custom_call.1} parent=1 // pred_region
      _
    $region37: #{tpu_custom_call.1} parent=1 // pred_fallthru
      _
    // Predicated region
    $region38: #{tpu_custom_call.1} parent=1 // pred_check
      _
    $region39: #{tpu_custom_call.1} parent=1 // pred_check_branch
      %41 = sbr.rel (0) target = $region41
    $region40: #{tpu_custom_call.1} parent=1 // pred_region
      _
    $region41: #{tpu_custom_call.1} parent=1 // pred_fallthru
      _
    // Predicated region
    $region42: #{tpu_custom_call.1} parent=1 // pred_check
      _
    $region43: #{tpu_custom_call.1} parent=1 // pred_check_branch
      %43 = sbr.rel (0) target = $region45
    $region44: #{tpu_custom_call.1} parent=1 // pred_region
      _
    $region45: #{tpu_custom_call.1} parent=1 // pred_fallthru
      _
    // Predicated region
    $region46: #{tpu_custom_call.1} parent=1 // pred_check
      _
    $region47: #{tpu_custom_call.1} parent=1 // pred_check_branch
      %45 = sbr.rel (0) target = $region49
    $region48: #{tpu_custom_call.1} parent=1 // pred_region
      _
    $region49: #{tpu_custom_call.1} parent=1 // pred_fallthru
      _
    // Predicated region
    $region50: #{tpu_custom_call.1} parent=1 // pred_check
      _
    $region51: #{tpu_custom_call.1} parent=1 // pred_check_branch
      %47 = sbr.rel (0) target = $region53
    $region52: #{tpu_custom_call.1} parent=1 // pred_region
      _
    $region53: #{tpu_custom_call.1} parent=1 // pred_fallthru
      _
    // Predicated region
    $region54: #{tpu_custom_call.1} parent=1 // pred_check
      _
    $region55: #{tpu_custom_call.1} parent=1 // pred_check_branch
      %49 = sbr.rel (0) target = $region57
    $region56: #{tpu_custom_call.1} parent=1 // pred_region
      _
    $region57: #{tpu_custom_call.1} parent=1 // pred_fallthru
      _
    // Predicated region
    $region58: #{tpu_custom_call.1} parent=1 // pred_check
      _
    $region59: #{tpu_custom_call.1} parent=1 // pred_check_branch
      %51 = sbr.rel (0) target = $region61
    $region60: #{tpu_custom_call.1} parent=1 // pred_region
      _
    $region61: #{tpu_custom_call.1} parent=1 // pred_fallthru
      _
    // Predicated region
    $region62: #{tpu_custom_call.1} parent=1 // pred_check
      _
    $region63: #{tpu_custom_call.1} parent=1 // pred_check_branch
      %53 = sbr.rel (0) target = $region65
    $region64: #{tpu_custom_call.1} parent=1 // pred_region
      _
    $region65: #{tpu_custom_call.1} parent=1 // pred_fallthru
      _
    %v55 = vld [vmem:[%s0] sm:$0xff]
    %v56 = vld [vmem:[%s0 + $0x8] sm:$0xff]
    %v57 = vld [vmem:[%s0 + $0x10] sm:$0xff]
    %v58 = vld [vmem:[%s0 + $0x18] sm:$0xff]
    %v59 = vld [vmem:[%s0 + $0x20] sm:$0xff]
    %v60 = vld [vmem:[%s0 + $0x28] sm:$0xff]
    %v61 = vld [vmem:[%s0 + $0x30] sm:$0xff]
    %v62 = vld [vmem:[%s0 + $0x38] sm:$0xff]
    %v63 = vld [vmem:[%s1] sm:$0xff]
    %v64 = vld [vmem:[%s1 + $0x8] sm:$0xff]
    %v65 = vld [vmem:[%s1 + $0x10] sm:$0xff]
    %v66 = vld [vmem:[%s1 + $0x18] sm:$0xff]
    %v67 = vadd.f32 %v55, %v63
    %v68 = vadd.f32 %v56, %v64
    %v69 = vadd.f32 %v57, %v65
    %v70 = vadd.f32 %v58, %v66
    %v71 = vadd.f32 %v59, %v63
    %v72 = vadd.f32 %v60, %v64
    %v73 = vadd.f32 %v61, %v65
    %v74 = vadd.f32 %v62, %v66
    %v75 = vld [vmem:[%s2] sm:$0xff]
    %v76 = vld [vmem:[%s2 + $0x8] sm:$0xff]
    %v77 = vld [vmem:[%s2 + $0x10] sm:$0xff]
    %v78 = vld [vmem:[%s2 + $0x18] sm:$0xff]
    %v79 = vld [vmem:[%s2 + $0x20] sm:$0xff]
    %v80 = vld [vmem:[%s2 + $0x28] sm:$0xff]
    %v81 = vld [vmem:[%s3] sm:$0xff]
    %v82 = vld [vmem:[%s3 + $0x8] sm:$0xff]
    %v83 = vld [vmem:[%s3 + $0x10] sm:$0xff]
    %v84 = vld [vmem:[%s3 + $0x18] sm:$0xff]
    %v85 = vld [vmem:[%s3 + $0x20] sm:$0xff]
    %v86 = vld [vmem:[%s3 + $0x28] sm:$0xff]
    %88 = vset.pattern.permute.xlu0 0
    %89 = vperm.xlu0 %88, %v81
    %v90 = vpop.permute.xlu0 %89
    %93 = vset.pattern.permute.xlu0 0
    %94 = vperm.xlu0 %93, %v82
    %v95 = vpop.permute.xlu0 %94
    %98 = vset.pattern.permute.xlu0 0
    %99 = vperm.xlu0 %98, %v83
    %v100 = vpop.permute.xlu0 %99
    %103 = vset.pattern.permute.xlu0 0
    %104 = vperm.xlu0 %103, %v84
    %v105 = vpop.permute.xlu0 %104
    %108 = vset.pattern.permute.xlu0 0
    %109 = vperm.xlu0 %108, %v85
    %v110 = vpop.permute.xlu0 %109
    %113 = vset.pattern.permute.xlu0 0
    %114 = vperm.xlu0 %113, %v86
    %v115 = vpop.permute.xlu0 %114
    %vm117 = vcmask 130048
    %v119 = vsel %vm117, %v75, 0
    %v122 = vsel %vm117, %v76, 0
    %v125 = vsel %vm117, %v77, 0
    %v128 = vsel %vm117, %v78, 0
    %v131 = vsel %vm117, %v79, 0
    %v134 = vsel %vm117, %v80, 0
    %136 = vmatpush.msra.mxu0 0.0
    %137 = vmatpush.msra.mxu0 0.0
    %138 = vmatpush.msra.mxu0 0.0
    %139 = vmatpush.msra.mxu0 0.0
    %140 = vmatpush.msra.mxu0 0.0
    %141 = vmatpush.msra.mxu0 0.0
    %142 = vmatpush.msra.mxu0 0.0
    %143 = vmatpush.msra.mxu0 0.0
    %144 = vmatpush.msra.mxu0 0.0
    %145 = vmatpush.msra.mxu0 0.0
    %146 = vmatpush.msra.mxu0 0.0
    %147 = vmatpush.msra.mxu0 0.0
    %148 = vmatpush.msra.mxu0 0.0
    %149 = vmatpush.msra.mxu0 0.0
    %150 = vmatpush.msra.mxu0 %v69
    %151 = vmatpush.msra.mxu0 %v67
    %152 = vmatmul.f32.gmra.mxu0 %v119
    %v153 = vpop.f32.mrf.mxu0
    %v154 = vadd.f32 %v90, %v153
    %155 = vmatmul.f32.gmra.mxu0 %v122
    %v156 = vpop.f32.mrf.mxu0
    %v157 = vadd.f32 %v95, %v156
    %158 = vmatmul.f32.gmra.mxu0 %v125
    %v159 = vpop.f32.mrf.mxu0
    %v160 = vadd.f32 %v100, %v159
    %161 = vmatmul.f32.gmra.mxu0 %v128
    %v162 = vpop.f32.mrf.mxu0
    %v163 = vadd.f32 %v105, %v162
    %164 = vmatmul.f32.gmra.mxu0 %v131
    %v165 = vpop.f32.mrf.mxu0
    %v166 = vadd.f32 %v110, %v165
    %167 = vmatmul.f32.gmra.mxu0 %v134
    %v168 = vpop.f32.mrf.mxu0
    %v169 = vadd.f32 %v115, %v168
    %170 = vdwg.mxu0
    %171 = vmatpush.msra.mxu0 0.0
    %172 = vmatpush.msra.mxu0 0.0
    %173 = vmatpush.msra.mxu0 0.0
    %174 = vmatpush.msra.mxu0 0.0
    %175 = vmatpush.msra.mxu0 0.0
    %176 = vmatpush.msra.mxu0 0.0
    %177 = vmatpush.msra.mxu0 0.0
    %178 = vmatpush.msra.mxu0 0.0
    %179 = vmatpush.msra.mxu0 0.0
    %180 = vmatpush.msra.mxu0 0.0
    %181 = vmatpush.msra.mxu0 0.0
    %182 = vmatpush.msra.mxu0 0.0
    %183 = vmatpush.msra.mxu0 0.0
    %184 = vmatpush.msra.mxu0 0.0
    %185 = vmatpush.msra.mxu0 %v70
    %186 = vmatpush.msra.mxu0 %v68
    %187 = vmatmul.f32.gmra.mxu0 %v119
    %v188 = vpop.f32.mrf.mxu0
    %v189 = vadd.f32 %v90, %v188
    %190 = vmatmul.f32.gmra.mxu0 %v122
    %v191 = vpop.f32.mrf.mxu0
    %v192 = vadd.f32 %v95, %v191
    %193 = vmatmul.f32.gmra.mxu0 %v125
    %v194 = vpop.f32.mrf.mxu0
    %v195 = vadd.f32 %v100, %v194
    %196 = vmatmul.f32.gmra.mxu0 %v128
    %v197 = vpop.f32.mrf.mxu0
    %v198 = vadd.f32 %v105, %v197
    %199 = vmatmul.f32.gmra.mxu0 %v131
    %v200 = vpop.f32.mrf.mxu0
    %v201 = vadd.f32 %v110, %v200
    %202 = vmatmul.f32.gmra.mxu0 %v134
    %v203 = vpop.f32.mrf.mxu0
    %v204 = vadd.f32 %v115, %v203
    %205 = vdwg.mxu0
    %206 = vmatpush.msra.mxu0 0.0
    %207 = vmatpush.msra.mxu0 0.0
    %208 = vmatpush.msra.mxu0 0.0
    %209 = vmatpush.msra.mxu0 0.0
    %210 = vmatpush.msra.mxu0 0.0
    %211 = vmatpush.msra.mxu0 0.0
    %212 = vmatpush.msra.mxu0 0.0
    %213 = vmatpush.msra.mxu0 0.0
    %214 = vmatpush.msra.mxu0 0.0
    %215 = vmatpush.msra.mxu0 0.0
    %216 = vmatpush.msra.mxu0 0.0
    %217 = vmatpush.msra.mxu0 0.0
    %218 = vmatpush.msra.mxu0 0.0
    %219 = vmatpush.msra.mxu0 0.0
    %220 = vmatpush.msra.mxu0 %v73
    %221 = vmatpush.msra.mxu0 %v71
    %222 = vmatmul.f32.gmra.mxu0 %v119
    %v223 = vpop.f32.mrf.mxu0
    %v224 = vadd.f32 %v90, %v223
    %225 = vmatmul.f32.gmra.mxu0 %v122
    %v226 = vpop.f32.mrf.mxu0
    %v227 = vadd.f32 %v95, %v226
    %228 = vmatmul.f32.gmra.mxu0 %v125
    %v229 = vpop.f32.mrf.mxu0
    %v230 = vadd.f32 %v100, %v229
    %231 = vmatmul.f32.gmra.mxu0 %v128
    %v232 = vpop.f32.mrf.mxu0
    %v233 = vadd.f32 %v105, %v232
    %234 = vmatmul.f32.gmra.mxu0 %v131
    %v235 = vpop.f32.mrf.mxu0
    %v236 = vadd.f32 %v110, %v235
    %237 = vmatmul.f32.gmra.mxu0 %v134
    %v238 = vpop.f32.mrf.mxu0
    %v239 = vadd.f32 %v115, %v238
    %240 = vdwg.mxu0
    %241 = vmatpush.msra.mxu0 0.0
    %242 = vmatpush.msra.mxu0 0.0
    %243 = vmatpush.msra.mxu0 0.0
    %244 = vmatpush.msra.mxu0 0.0
    %245 = vmatpush.msra.mxu0 0.0
    %246 = vmatpush.msra.mxu0 0.0
    %247 = vmatpush.msra.mxu0 0.0
    %248 = vmatpush.msra.mxu0 0.0
    %249 = vmatpush.msra.mxu0 0.0
    %250 = vmatpush.msra.mxu0 0.0
    %251 = vmatpush.msra.mxu0 0.0
    %252 = vmatpush.msra.mxu0 0.0
    %253 = vmatpush.msra.mxu0 0.0
    %254 = vmatpush.msra.mxu0 0.0
    %255 = vmatpush.msra.mxu0 %v74
    %256 = vmatpush.msra.mxu0 %v72
    %257 = vmatmul.f32.gmra.mxu0 %v119
    %v258 = vpop.f32.mrf.mxu0
    %v259 = vadd.f32 %v90, %v258
    %260 = vmatmul.f32.gmra.mxu0 %v122
    %v261 = vpop.f32.mrf.mxu0
    %v262 = vadd.f32 %v95, %v261
    %263 = vmatmul.f32.gmra.mxu0 %v125
    %v264 = vpop.f32.mrf.mxu0
    %v265 = vadd.f32 %v100, %v264
    %266 = vmatmul.f32.gmra.mxu0 %v128
    %v267 = vpop.f32.mrf.mxu0
    %v268 = vadd.f32 %v105, %v267
    %269 = vmatmul.f32.gmra.mxu0 %v131
    %v270 = vpop.f32.mrf.mxu0
    %v271 = vadd.f32 %v110, %v270
    %272 = vmatmul.f32.gmra.mxu0 %v134
    %v273 = vpop.f32.mrf.mxu0
    %v274 = vadd.f32 %v115, %v273
    %275 = vdwg.mxu0
    %v276 = vmul.f32 %v154, %v160
    %v277 = vmul.f32 %v189, %v195
    %v278 = vmul.f32 %v224, %v160
    %v279 = vmul.f32 %v259, %v195
    %vm280 = vcmask 1043456
    %v281 = vsel %vm280, %v276, 0.0
    %v282 = vrot.slane %v281, 4
    %v283 = vadd.f32 %v281, %v282
    %v284 = vrot.slane %v283, 2
    %v285 = vadd.f32 %v283, %v284
    %v286 = vrot.slane %v285, 1
    %v287 = vadd.f32 %v285, %v286
    %v288 = vsel %vm280, %v277, 0.0
    %v289 = vrot.slane %v288, 4
    %v290 = vadd.f32 %v288, %v289
    %v291 = vrot.slane %v290, 2
    %v292 = vadd.f32 %v290, %v291
    %v293 = vrot.slane %v292, 1
    %v294 = vadd.f32 %v292, %v293
    %v295 = vsel %vm280, %v278, 0.0
    %v296 = vrot.slane %v295, 4
    %v297 = vadd.f32 %v295, %v296
    %v298 = vrot.slane %v297, 2
    %v299 = vadd.f32 %v297, %v298
    %v300 = vrot.slane %v299, 1
    %v301 = vadd.f32 %v299, %v300
    %v302 = vsel %vm280, %v279, 0.0
    %v303 = vrot.slane %v302, 4
    %v304 = vadd.f32 %v302, %v303
    %v305 = vrot.slane %v304, 2
    %v306 = vadd.f32 %v304, %v305
    %v307 = vrot.slane %v306, 1
    %v308 = vadd.f32 %v306, %v307
    %v309 = vmul.f32 %v287, 0.5
    %v310 = vmul.f32 %v294, 0.5
    %v311 = vmul.f32 %v301, 0.5
    %v312 = vmul.f32 %v308, 0.5
    %v313 = vmul.f32 %v154, %v230
    %v314 = vmul.f32 %v189, %v265
    %v315 = vmul.f32 %v224, %v230
    %v316 = vmul.f32 %v259, %v265
    %v317 = vsel %vm280, %v313, 0.0
    %v318 = vrot.slane %v317, 4
    %v319 = vadd.f32 %v317, %v318
    %v320 = vrot.slane %v319, 2
    %v321 = vadd.f32 %v319, %v320
    %v322 = vrot.slane %v321, 1
    %v323 = vadd.f32 %v321, %v322
    %v324 = vsel %vm280, %v314, 0.0
    %v325 = vrot.slane %v324, 4
    %v326 = vadd.f32 %v324, %v325
    %v327 = vrot.slane %v326, 2
    %v328 = vadd.f32 %v326, %v327
    %v329 = vrot.slane %v328, 1
    %v330 = vadd.f32 %v328, %v329
    %v331 = vsel %vm280, %v315, 0.0
    %v332 = vrot.slane %v331, 4
    %v333 = vadd.f32 %v331, %v332
    %v334 = vrot.slane %v333, 2
    %v335 = vadd.f32 %v333, %v334
    %v336 = vrot.slane %v335, 1
    %v337 = vadd.f32 %v335, %v336
    %v338 = vsel %vm280, %v316, 0.0
    %v339 = vrot.slane %v338, 4
    %v340 = vadd.f32 %v338, %v339
    %v341 = vrot.slane %v340, 2
    %v342 = vadd.f32 %v340, %v341
    %v343 = vrot.slane %v342, 1
    %v344 = vadd.f32 %v342, %v343
    %v345 = vmul.f32 %v323, 0.5
    %v346 = vmul.f32 %v330, 0.5
    %v347 = vmul.f32 %v337, 0.5
    %v348 = vmul.f32 %v344, 0.5
    %v349 = vmax.f32 %v309, %v345
    %v350 = vmax.f32 %v310, %v346
    %v351 = vmax.f32 %v311, %v347
    %v352 = vmax.f32 %v312, %v348
    %v353 = vsub.f32 %v309, %v349
    %v354 = vsub.f32 %v310, %v350
    %v355 = vsub.f32 %v311, %v351
    %v356 = vsub.f32 %v312, %v352
    %v357 = vmul.f32 %v353, 1.442695
    %v358 = vpow.pop %v357
    %v359 = vmul.f32 %v354, 1.442695
    %v360 = vpow.pop %v359
    %v361 = vmul.f32 %v355, 1.442695
    %v362 = vpow.pop %v361
    %v363 = vmul.f32 %v356, 1.442695
    %v364 = vpow.pop %v363
    %v365 = vmul.f32 %v358, %v166
    %v366 = vmul.f32 %v360, %v201
    %v367 = vmul.f32 %v362, %v166
    %v368 = vmul.f32 %v364, %v201
    %v369 = vsub.f32 %v345, %v349
    %v370 = vsub.f32 %v346, %v350
    %v371 = vsub.f32 %v347, %v351
    %v372 = vsub.f32 %v348, %v352
    %v373 = vmul.f32 %v369, 1.442695
    %v374 = vpow.pop %v373
    %v375 = vmul.f32 %v370, 1.442695
    %v376 = vpow.pop %v375
    %v377 = vmul.f32 %v371, 1.442695
    %v378 = vpow.pop %v377
    %v379 = vmul.f32 %v372, 1.442695
    %v380 = vpow.pop %v379
    %v381 = vadd.f32 %v358, %v374
    %v382 = vadd.f32 %v360, %v376
    %v383 = vadd.f32 %v362, %v378
    %v384 = vadd.f32 %v364, %v380
    %v385 = vmul.f32 %v374, %v236
    %v386 = vmul.f32 %v376, %v271
    %v387 = vmul.f32 %v378, %v236
    %v388 = vmul.f32 %v380, %v271
    %v389 = vadd.f32 %v365, %v385
    %v390 = vadd.f32 %v366, %v386
    %v391 = vadd.f32 %v367, %v387
    %v392 = vadd.f32 %v368, %v388
    %v393 = vrcp.pop %v381
    %v394 = vrcp.pop %v382
    %v395 = vrcp.pop %v383
    %v396 = vrcp.pop %v384
    %v397 = vmul.f32 %v389, %v393
    %v398 = vmul.f32 %v390, %v394
    %v399 = vmul.f32 %v391, %v395
    %v400 = vmul.f32 %v392, %v396
    %v405 = vrot.slane %v276, 4
    %v406 = vrot.slane %v277, 4
    %v407 = vrot.slane %v278, 4
    %v408 = vrot.slane %v279, 4
    %v413 = vsel %vm280, %v405, 0.0
    %v414 = vrot.slane %v413, 4
    %v415 = vadd.f32 %v413, %v414
    %v416 = vrot.slane %v415, 2
    %v417 = vadd.f32 %v415, %v416
    %v418 = vrot.slane %v417, 1
    %v419 = vadd.f32 %v417, %v418
    %v420 = vsel %vm280, %v406, 0.0
    %v421 = vrot.slane %v420, 4
    %v422 = vadd.f32 %v420, %v421
    %v423 = vrot.slane %v422, 2
    %v424 = vadd.f32 %v422, %v423
    %v425 = vrot.slane %v424, 1
    %v426 = vadd.f32 %v424, %v425
    %v427 = vsel %vm280, %v407, 0.0
    %v428 = vrot.slane %v427, 4
    %v429 = vadd.f32 %v427, %v428
    %v430 = vrot.slane %v429, 2
    %v431 = vadd.f32 %v429, %v430
    %v432 = vrot.slane %v431, 1
    %v433 = vadd.f32 %v431, %v432
    %v434 = vsel %vm280, %v408, 0.0
    %v435 = vrot.slane %v434, 4
    %v436 = vadd.f32 %v434, %v435
    %v437 = vrot.slane %v436, 2
    %v438 = vadd.f32 %v436, %v437
    %v439 = vrot.slane %v438, 1
    %v440 = vadd.f32 %v438, %v439
    %v441 = vmul.f32 %v419, 0.5
    %v442 = vmul.f32 %v426, 0.5
    %v443 = vmul.f32 %v433, 0.5
    %v444 = vmul.f32 %v440, 0.5
    %v449 = vrot.slane %v313, 4
    %v450 = vrot.slane %v314, 4
    %v451 = vrot.slane %v315, 4
    %v452 = vrot.slane %v316, 4
    %v457 = vsel %vm280, %v449, 0.0
    %v458 = vrot.slane %v457, 4
    %v459 = vadd.f32 %v457, %v458
    %v460 = vrot.slane %v459, 2
    %v461 = vadd.f32 %v459, %v460
    %v462 = vrot.slane %v461, 1
    %v463 = vadd.f32 %v461, %v462
    %v464 = vsel %vm280, %v450, 0.0
    %v465 = vrot.slane %v464, 4
    %v466 = vadd.f32 %v464, %v465
    %v467 = vrot.slane %v466, 2
    %v468 = vadd.f32 %v466, %v467
    %v469 = vrot.slane %v468, 1
    %v470 = vadd.f32 %v468, %v469
    %v471 = vsel %vm280, %v451, 0.0
    %v472 = vrot.slane %v471, 4
    %v473 = vadd.f32 %v471, %v472
    %v474 = vrot.slane %v473, 2
    %v475 = vadd.f32 %v473, %v474
    %v476 = vrot.slane %v475, 1
    %v477 = vadd.f32 %v475, %v476
    %v478 = vsel %vm280, %v452, 0.0
    %v479 = vrot.slane %v478, 4
    %v480 = vadd.f32 %v478, %v479
    %v481 = vrot.slane %v480, 2
    %v482 = vadd.f32 %v480, %v481
    %v483 = vrot.slane %v482, 1
    %v484 = vadd.f32 %v482, %v483
    %v485 = vmul.f32 %v463, 0.5
    %v486 = vmul.f32 %v470, 0.5
    %v487 = vmul.f32 %v477, 0.5
    %v488 = vmul.f32 %v484, 0.5
    %v489 = vmax.f32 %v441, %v485
    %v490 = vmax.f32 %v442, %v486
    %v491 = vmax.f32 %v443, %v487
    %v492 = vmax.f32 %v444, %v488
    %v493 = vsub.f32 %v441, %v489
    %v494 = vsub.f32 %v442, %v490
    %v495 = vsub.f32 %v443, %v491
    %v496 = vsub.f32 %v444, %v492
    %v497 = vmul.f32 %v493, 1.442695
    %v498 = vpow.pop %v497
    %v499 = vmul.f32 %v494, 1.442695
    %v500 = vpow.pop %v499
    %v501 = vmul.f32 %v495, 1.442695
    %v502 = vpow.pop %v501
    %v503 = vmul.f32 %v496, 1.442695
    %v504 = vpow.pop %v503
    %v505 = vmul.f32 %v498, %v166
    %v506 = vmul.f32 %v500, %v201
    %v507 = vmul.f32 %v502, %v166
    %v508 = vmul.f32 %v504, %v201
    %v509 = vsub.f32 %v485, %v489
    %v510 = vsub.f32 %v486, %v490
    %v511 = vsub.f32 %v487, %v491
    %v512 = vsub.f32 %v488, %v492
    %v513 = vmul.f32 %v509, 1.442695
    %v514 = vpow.pop %v513
    %v515 = vmul.f32 %v510, 1.442695
    %v516 = vpow.pop %v515
    %v517 = vmul.f32 %v511, 1.442695
    %v518 = vpow.pop %v517
    %v519 = vmul.f32 %v512, 1.442695
    %v520 = vpow.pop %v519
    %v521 = vadd.f32 %v498, %v514
    %v522 = vadd.f32 %v500, %v516
    %v523 = vadd.f32 %v502, %v518
    %v524 = vadd.f32 %v504, %v520
    %v525 = vmul.f32 %v514, %v236
    %v526 = vmul.f32 %v516, %v271
    %v527 = vmul.f32 %v518, %v236
    %v528 = vmul.f32 %v520, %v271
    %v529 = vadd.f32 %v505, %v525
    %v530 = vadd.f32 %v506, %v526
    %v531 = vadd.f32 %v507, %v527
    %v532 = vadd.f32 %v508, %v528
    %v533 = vrcp.pop %v521
    %v534 = vrcp.pop %v522
    %v535 = vrcp.pop %v523
    %v536 = vrcp.pop %v524
    %v537 = vmul.f32 %v529, %v533
    %v538 = vmul.f32 %v530, %v534
    %v539 = vmul.f32 %v531, %v535
    %v540 = vmul.f32 %v532, %v536
    %v541 = vmul.f32 %v157, %v163
    %v542 = vmul.f32 %v192, %v198
    %v543 = vmul.f32 %v227, %v163
    %v544 = vmul.f32 %v262, %v198
    %v545 = vsel %vm280, %v541, 0.0
    %v546 = vrot.slane %v545, 4
    %v547 = vadd.f32 %v545, %v546
    %v548 = vrot.slane %v547, 2
    %v549 = vadd.f32 %v547, %v548
    %v550 = vrot.slane %v549, 1
    %v551 = vadd.f32 %v549, %v550
    %v552 = vsel %vm280, %v542, 0.0
    %v553 = vrot.slane %v552, 4
    %v554 = vadd.f32 %v552, %v553
    %v555 = vrot.slane %v554, 2
    %v556 = vadd.f32 %v554, %v555
    %v557 = vrot.slane %v556, 1
    %v558 = vadd.f32 %v556, %v557
    %v559 = vsel %vm280, %v543, 0.0
    %v560 = vrot.slane %v559, 4
    %v561 = vadd.f32 %v559, %v560
    %v562 = vrot.slane %v561, 2
    %v563 = vadd.f32 %v561, %v562
    %v564 = vrot.slane %v563, 1
    %v565 = vadd.f32 %v563, %v564
    %v566 = vsel %vm280, %v544, 0.0
    %v567 = vrot.slane %v566, 4
    %v568 = vadd.f32 %v566, %v567
    %v569 = vrot.slane %v568, 2
    %v570 = vadd.f32 %v568, %v569
    %v571 = vrot.slane %v570, 1
    %v572 = vadd.f32 %v570, %v571
    %v573 = vmul.f32 %v551, 0.5
    %v574 = vmul.f32 %v558, 0.5
    %v575 = vmul.f32 %v565, 0.5
    %v576 = vmul.f32 %v572, 0.5
    %v577 = vmul.f32 %v157, %v233
    %v578 = vmul.f32 %v192, %v268
    %v579 = vmul.f32 %v227, %v233
    %v580 = vmul.f32 %v262, %v268
    %v581 = vsel %vm280, %v577, 0.0
    %v582 = vrot.slane %v581, 4
    %v583 = vadd.f32 %v581, %v582
    %v584 = vrot.slane %v583, 2
    %v585 = vadd.f32 %v583, %v584
    %v586 = vrot.slane %v585, 1
    %v587 = vadd.f32 %v585, %v586
    %v588 = vsel %vm280, %v578, 0.0
    %v589 = vrot.slane %v588, 4
    %v590 = vadd.f32 %v588, %v589
    %v591 = vrot.slane %v590, 2
    %v592 = vadd.f32 %v590, %v591
    %v593 = vrot.slane %v592, 1
    %v594 = vadd.f32 %v592, %v593
    %v595 = vsel %vm280, %v579, 0.0
    %v596 = vrot.slane %v595, 4
    %v597 = vadd.f32 %v595, %v596
    %v598 = vrot.slane %v597, 2
    %v599 = vadd.f32 %v597, %v598
    %v600 = vrot.slane %v599, 1
    %v601 = vadd.f32 %v599, %v600
    %v602 = vsel %vm280, %v580, 0.0
    %v603 = vrot.slane %v602, 4
    %v604 = vadd.f32 %v602, %v603
    %v605 = vrot.slane %v604, 2
    %v606 = vadd.f32 %v604, %v605
    %v607 = vrot.slane %v606, 1
    %v608 = vadd.f32 %v606, %v607
    %v609 = vmul.f32 %v587, 0.5
    %v610 = vmul.f32 %v594, 0.5
    %v611 = vmul.f32 %v601, 0.5
    %v612 = vmul.f32 %v608, 0.5
    %v613 = vmax.f32 %v573, %v609
    %v614 = vmax.f32 %v574, %v610
    %v615 = vmax.f32 %v575, %v611
    %v616 = vmax.f32 %v576, %v612
    %v617 = vsub.f32 %v573, %v613
    %v618 = vsub.f32 %v574, %v614
    %v619 = vsub.f32 %v575, %v615
    %v620 = vsub.f32 %v576, %v616
    %v621 = vmul.f32 %v617, 1.442695
    %v622 = vpow.pop %v621
    %v623 = vmul.f32 %v618, 1.442695
    %v624 = vpow.pop %v623
    %v625 = vmul.f32 %v619, 1.442695
    %v626 = vpow.pop %v625
    %v627 = vmul.f32 %v620, 1.442695
    %v628 = vpow.pop %v627
    %v629 = vmul.f32 %v622, %v169
    %v630 = vmul.f32 %v624, %v204
    %v631 = vmul.f32 %v626, %v169
    %v632 = vmul.f32 %v628, %v204
    %v633 = vsub.f32 %v609, %v613
    %v634 = vsub.f32 %v610, %v614
    %v635 = vsub.f32 %v611, %v615
    %v636 = vsub.f32 %v612, %v616
    %v637 = vmul.f32 %v633, 1.442695
    %v638 = vpow.pop %v637
    %v639 = vmul.f32 %v634, 1.442695
    %v640 = vpow.pop %v639
    %v641 = vmul.f32 %v635, 1.442695
    %v642 = vpow.pop %v641
    %v643 = vmul.f32 %v636, 1.442695
    %v644 = vpow.pop %v643
    %v645 = vadd.f32 %v622, %v638
    %v646 = vadd.f32 %v624, %v640
    %v647 = vadd.f32 %v626, %v642
    %v648 = vadd.f32 %v628, %v644
    %v649 = vmul.f32 %v638, %v239
    %v650 = vmul.f32 %v640, %v274
    %v651 = vmul.f32 %v642, %v239
    %v652 = vmul.f32 %v644, %v274
    %v653 = vadd.f32 %v629, %v649
    %v654 = vadd.f32 %v630, %v650
    %v655 = vadd.f32 %v631, %v651
    %v656 = vadd.f32 %v632, %v652
    %v657 = vrcp.pop %v645
    %v658 = vrcp.pop %v646
    %v659 = vrcp.pop %v647
    %v660 = vrcp.pop %v648
    %v661 = vmul.f32 %v653, %v657
    %v662 = vmul.f32 %v654, %v658
    %v663 = vmul.f32 %v655, %v659
    %v664 = vmul.f32 %v656, %v660
    %v669 = vrot.slane %v541, 4
    %v670 = vrot.slane %v542, 4
    %v671 = vrot.slane %v543, 4
    %v672 = vrot.slane %v544, 4
    %v677 = vsel %vm280, %v669, 0.0
    %v678 = vrot.slane %v677, 4
    %v679 = vadd.f32 %v677, %v678
    %v680 = vrot.slane %v679, 2
    %v681 = vadd.f32 %v679, %v680
    %v682 = vrot.slane %v681, 1
    %v683 = vadd.f32 %v681, %v682
    %v684 = vsel %vm280, %v670, 0.0
    %v685 = vrot.slane %v684, 4
    %v686 = vadd.f32 %v684, %v685
    %v687 = vrot.slane %v686, 2
    %v688 = vadd.f32 %v686, %v687
    %v689 = vrot.slane %v688, 1
    %v690 = vadd.f32 %v688, %v689
    %v691 = vsel %vm280, %v671, 0.0
    %v692 = vrot.slane %v691, 4
    %v693 = vadd.f32 %v691, %v692
    %v694 = vrot.slane %v693, 2
    %v695 = vadd.f32 %v693, %v694
    %v696 = vrot.slane %v695, 1
    %v697 = vadd.f32 %v695, %v696
    %v698 = vsel %vm280, %v672, 0.0
    %v699 = vrot.slane %v698, 4
    %v700 = vadd.f32 %v698, %v699
    %v701 = vrot.slane %v700, 2
    %v702 = vadd.f32 %v700, %v701
    %v703 = vrot.slane %v702, 1
    %v704 = vadd.f32 %v702, %v703
    %v705 = vmul.f32 %v683, 0.5
    %v706 = vmul.f32 %v690, 0.5
    %v707 = vmul.f32 %v697, 0.5
    %v708 = vmul.f32 %v704, 0.5
    %v713 = vrot.slane %v577, 4
    %v714 = vrot.slane %v578, 4
    %v715 = vrot.slane %v579, 4
    %v716 = vrot.slane %v580, 4
    %v721 = vsel %vm280, %v713, 0.0
    %v722 = vrot.slane %v721, 4
    %v723 = vadd.f32 %v721, %v722
    %v724 = vrot.slane %v723, 2
    %v725 = vadd.f32 %v723, %v724
    %v726 = vrot.slane %v725, 1
    %v727 = vadd.f32 %v725, %v726
    %v728 = vsel %vm280, %v714, 0.0
    %v729 = vrot.slane %v728, 4
    %v730 = vadd.f32 %v728, %v729
    %v731 = vrot.slane %v730, 2
    %v732 = vadd.f32 %v730, %v731
    %v733 = vrot.slane %v732, 1
    %v734 = vadd.f32 %v732, %v733
    %v735 = vsel %vm280, %v715, 0.0
    %v736 = vrot.slane %v735, 4
    %v737 = vadd.f32 %v735, %v736
    %v738 = vrot.slane %v737, 2
    %v739 = vadd.f32 %v737, %v738
    %v740 = vrot.slane %v739, 1
    %v741 = vadd.f32 %v739, %v740
    %v742 = vsel %vm280, %v716, 0.0
    %v743 = vrot.slane %v742, 4
    %v744 = vadd.f32 %v742, %v743
    %v745 = vrot.slane %v744, 2
    %v746 = vadd.f32 %v744, %v745
    %v747 = vrot.slane %v746, 1
    %v748 = vadd.f32 %v746, %v747
    %v749 = vmul.f32 %v727, 0.5
    %v750 = vmul.f32 %v734, 0.5
    %v751 = vmul.f32 %v741, 0.5
    %v752 = vmul.f32 %v748, 0.5
    %v753 = vmax.f32 %v705, %v749
    %v754 = vmax.f32 %v706, %v750
    %v755 = vmax.f32 %v707, %v751
    %v756 = vmax.f32 %v708, %v752
    %v757 = vsub.f32 %v705, %v753
    %v758 = vsub.f32 %v706, %v754
    %v759 = vsub.f32 %v707, %v755
    %v760 = vsub.f32 %v708, %v756
    %v761 = vmul.f32 %v757, 1.442695
    %v762 = vpow.pop %v761
    %v763 = vmul.f32 %v758, 1.442695
    %v764 = vpow.pop %v763
    %v765 = vmul.f32 %v759, 1.442695
    %v766 = vpow.pop %v765
    %v767 = vmul.f32 %v760, 1.442695
    %v768 = vpow.pop %v767
    %v769 = vmul.f32 %v762, %v169
    %v770 = vmul.f32 %v764, %v204
    %v771 = vmul.f32 %v766, %v169
    %v772 = vmul.f32 %v768, %v204
    %v773 = vsub.f32 %v749, %v753
    %v774 = vsub.f32 %v750, %v754
    %v775 = vsub.f32 %v751, %v755
    %v776 = vsub.f32 %v752, %v756
    %v777 = vmul.f32 %v773, 1.442695
    %v778 = vpow.pop %v777
    %v779 = vmul.f32 %v774, 1.442695
    %v780 = vpow.pop %v779
    %v781 = vmul.f32 %v775, 1.442695
    %v782 = vpow.pop %v781
    %v783 = vmul.f32 %v776, 1.442695
    %v784 = vpow.pop %v783
    %v785 = vadd.f32 %v762, %v778
    %v786 = vadd.f32 %v764, %v780
    %v787 = vadd.f32 %v766, %v782
    %v788 = vadd.f32 %v768, %v784
    %v789 = vmul.f32 %v778, %v239
    %v790 = vmul.f32 %v780, %v274
    %v791 = vmul.f32 %v782, %v239
    %v792 = vmul.f32 %v784, %v274
    %v793 = vadd.f32 %v769, %v789
    %v794 = vadd.f32 %v770, %v790
    %v795 = vadd.f32 %v771, %v791
    %v796 = vadd.f32 %v772, %v792
    %v797 = vrcp.pop %v785
    %v798 = vrcp.pop %v786
    %v799 = vrcp.pop %v787
    %v800 = vrcp.pop %v788
    %v801 = vmul.f32 %v793, %v797
    %v802 = vmul.f32 %v794, %v798
    %v803 = vmul.f32 %v795, %v799
    %v804 = vmul.f32 %v796, %v800
    %v805 = vsel %vm280, %v397, %v537
    %v806 = vsel %vm280, %v398, %v538
    %v807 = vsel %vm280, %v399, %v539
    %v808 = vsel %vm280, %v400, %v540
    %v809 = vsel %vm280, %v661, %v801
    %v810 = vsel %vm280, %v662, %v802
    %v811 = vsel %vm280, %v663, %v803
    %v812 = vsel %vm280, %v664, %v804
    %v813 = vld [vmem:[%s4] sm:$0xff]
    %v814 = vld [vmem:[%s4 + $0x8] sm:$0xff]
    %v815 = vld [vmem:[%s5] sm:$0xff]
    %v816 = vld [vmem:[%s5 + $0x8] sm:$0xff]
    %818 = vset.pattern.permute.xlu0 0
    %819 = vperm.xlu0 %818, %v815
    %v820 = vpop.permute.xlu0 %819
    %823 = vset.pattern.permute.xlu0 0
    %824 = vperm.xlu0 %823, %v816
    %v825 = vpop.permute.xlu0 %824
    %v828 = vsel %vm117, %v813, 0
    %v831 = vsel %vm117, %v814, 0
    %833 = vmatpush.msra.mxu0 0.0
    %834 = vmatpush.msra.mxu0 0.0
    %835 = vmatpush.msra.mxu0 0.0
    %836 = vmatpush.msra.mxu0 0.0
    %837 = vmatpush.msra.mxu0 0.0
    %838 = vmatpush.msra.mxu0 0.0
    %839 = vmatpush.msra.mxu0 0.0
    %840 = vmatpush.msra.mxu0 0.0
    %841 = vmatpush.msra.mxu0 0.0
    %842 = vmatpush.msra.mxu0 0.0
    %843 = vmatpush.msra.mxu0 0.0
    %844 = vmatpush.msra.mxu0 0.0
    %845 = vmatpush.msra.mxu0 0.0
    %846 = vmatpush.msra.mxu0 0.0
    %847 = vmatpush.msra.mxu0 %v809
    %848 = vmatpush.msra.mxu0 %v805
    %849 = vmatmul.f32.gmra.mxu0 %v828
    %v850 = vpop.f32.mrf.mxu0
    %v851 = vadd.f32 %v820, %v850
    %852 = vmatmul.f32.gmra.mxu0 %v831
    %v853 = vpop.f32.mrf.mxu0
    %v854 = vadd.f32 %v825, %v853
    %855 = vdwg.mxu0
    %856 = vmatpush.msra.mxu0 0.0
    %857 = vmatpush.msra.mxu0 0.0
    %858 = vmatpush.msra.mxu0 0.0
    %859 = vmatpush.msra.mxu0 0.0
    %860 = vmatpush.msra.mxu0 0.0
    %861 = vmatpush.msra.mxu0 0.0
    %862 = vmatpush.msra.mxu0 0.0
    %863 = vmatpush.msra.mxu0 0.0
    %864 = vmatpush.msra.mxu0 0.0
    %865 = vmatpush.msra.mxu0 0.0
    %866 = vmatpush.msra.mxu0 0.0
    %867 = vmatpush.msra.mxu0 0.0
    %868 = vmatpush.msra.mxu0 0.0
    %869 = vmatpush.msra.mxu0 0.0
    %870 = vmatpush.msra.mxu0 %v810
    %871 = vmatpush.msra.mxu0 %v806
    %872 = vmatmul.f32.gmra.mxu0 %v828
    %v873 = vpop.f32.mrf.mxu0
    %v874 = vadd.f32 %v820, %v873
    %875 = vmatmul.f32.gmra.mxu0 %v831
    %v876 = vpop.f32.mrf.mxu0
    %v877 = vadd.f32 %v825, %v876
    %878 = vdwg.mxu0
    %879 = vmatpush.msra.mxu0 0.0
    %880 = vmatpush.msra.mxu0 0.0
    %881 = vmatpush.msra.mxu0 0.0
    %882 = vmatpush.msra.mxu0 0.0
    %883 = vmatpush.msra.mxu0 0.0
    %884 = vmatpush.msra.mxu0 0.0
    %885 = vmatpush.msra.mxu0 0.0
    %886 = vmatpush.msra.mxu0 0.0
    %887 = vmatpush.msra.mxu0 0.0
    %888 = vmatpush.msra.mxu0 0.0
    %889 = vmatpush.msra.mxu0 0.0
    %890 = vmatpush.msra.mxu0 0.0
    %891 = vmatpush.msra.mxu0 0.0
    %892 = vmatpush.msra.mxu0 0.0
    %893 = vmatpush.msra.mxu0 %v811
    %894 = vmatpush.msra.mxu0 %v807
    %895 = vmatmul.f32.gmra.mxu0 %v828
    %v896 = vpop.f32.mrf.mxu0
    %v897 = vadd.f32 %v820, %v896
    %898 = vmatmul.f32.gmra.mxu0 %v831
    %v899 = vpop.f32.mrf.mxu0
    %v900 = vadd.f32 %v825, %v899
    %901 = vdwg.mxu0
    %902 = vmatpush.msra.mxu0 0.0
    %903 = vmatpush.msra.mxu0 0.0
    %904 = vmatpush.msra.mxu0 0.0
    %905 = vmatpush.msra.mxu0 0.0
    %906 = vmatpush.msra.mxu0 0.0
    %907 = vmatpush.msra.mxu0 0.0
    %908 = vmatpush.msra.mxu0 0.0
    %909 = vmatpush.msra.mxu0 0.0
    %910 = vmatpush.msra.mxu0 0.0
    %911 = vmatpush.msra.mxu0 0.0
    %912 = vmatpush.msra.mxu0 0.0
    %913 = vmatpush.msra.mxu0 0.0
    %914 = vmatpush.msra.mxu0 0.0
    %915 = vmatpush.msra.mxu0 0.0
    %916 = vmatpush.msra.mxu0 %v812
    %917 = vmatpush.msra.mxu0 %v808
    %918 = vmatmul.f32.gmra.mxu0 %v828
    %v919 = vpop.f32.mrf.mxu0
    %v920 = vadd.f32 %v820, %v919
    %921 = vmatmul.f32.gmra.mxu0 %v831
    %v922 = vpop.f32.mrf.mxu0
    %v923 = vadd.f32 %v825, %v922
    %924 = vdwg.mxu0
    %v925 = vadd.f32 %v67, %v851
    %v926 = vadd.f32 %v68, %v874
    %v927 = vadd.f32 %v71, %v897
    %v928 = vadd.f32 %v72, %v920
    %v929 = vadd.f32 %v69, %v854
    %v930 = vadd.f32 %v70, %v877
    %v931 = vadd.f32 %v73, %v900
    %v932 = vadd.f32 %v74, %v923
    %v933 = vadd.f32 %v925, %v929
    %v934 = vrot.slane %v933, 4
    %v935 = vadd.f32 %v933, %v934
    %v936 = vrot.slane %v935, 2
    %v937 = vadd.f32 %v935, %v936
    %v938 = vrot.slane %v937, 1
    %v939 = vadd.f32 %v937, %v938
    %v940 = vadd.f32 %v926, %v930
    %v941 = vrot.slane %v940, 4
    %v942 = vadd.f32 %v940, %v941
    %v943 = vrot.slane %v942, 2
    %v944 = vadd.f32 %v942, %v943
    %v945 = vrot.slane %v944, 1
    %v946 = vadd.f32 %v944, %v945
    %v947 = vadd.f32 %v927, %v931
    %v948 = vrot.slane %v947, 4
    %v949 = vadd.f32 %v947, %v948
    %v950 = vrot.slane %v949, 2
    %v951 = vadd.f32 %v949, %v950
    %v952 = vrot.slane %v951, 1
    %v953 = vadd.f32 %v951, %v952
    %v954 = vadd.f32 %v928, %v932
    %v955 = vrot.slane %v954, 4
    %v956 = vadd.f32 %v954, %v955
    %v957 = vrot.slane %v956, 2
    %v958 = vadd.f32 %v956, %v957
    %v959 = vrot.slane %v958, 1
    %v960 = vadd.f32 %v958, %v959
    %v961 = vrcp.pop 16.0
    %v962 = vmul.f32 16.0, %v961
    %v963 = vsub.f32 1.0, %v962
    %v964 = vmul.f32 %v961, %v963
    %v965 = vadd.f32 %v961, %v964
    %vm966 = vweird.f32 %v961
    %v967 = vsel %vm966, %v961, %v965
    %v968 = vmul.f32 %v939, %v967
    %v969 = vmul.f32 %v946, %v967
    %v970 = vmul.f32 %v953, %v967
    %v971 = vmul.f32 %v960, %v967
    %v972 = vsub.f32 %v925, %v968
    %v973 = vsub.f32 %v926, %v969
    %v974 = vsub.f32 %v927, %v970
    %v975 = vsub.f32 %v928, %v971
    %v976 = vsub.f32 %v929, %v968
    %v977 = vsub.f32 %v930, %v969
    %v978 = vsub.f32 %v931, %v970
    %v979 = vsub.f32 %v932, %v971
    %v980 = vmul.f32 %v972, %v972
    %v981 = vmul.f32 %v973, %v973
    %v982 = vmul.f32 %v974, %v974
    %v983 = vmul.f32 %v975, %v975
    %v984 = vmul.f32 %v976, %v976
    %v985 = vmul.f32 %v977, %v977
    %v986 = vmul.f32 %v978, %v978
    %v987 = vmul.f32 %v979, %v979
    %v988 = vadd.f32 %v980, %v984
    %v989 = vrot.slane %v988, 4
    %v990 = vadd.f32 %v988, %v989
    %v991 = vrot.slane %v990, 2
    %v992 = vadd.f32 %v990, %v991
    %v993 = vrot.slane %v992, 1
    %v994 = vadd.f32 %v992, %v993
    %v995 = vadd.f32 %v981, %v985
    %v996 = vrot.slane %v995, 4
    %v997 = vadd.f32 %v995, %v996
    %v998 = vrot.slane %v997, 2
    %v999 = vadd.f32 %v997, %v998
    %v1000 = vrot.slane %v999, 1
    %v1001 = vadd.f32 %v999, %v1000
    %v1002 = vadd.f32 %v982, %v986
    %v1003 = vrot.slane %v1002, 4
    %v1004 = vadd.f32 %v1002, %v1003
    %v1005 = vrot.slane %v1004, 2
    %v1006 = vadd.f32 %v1004, %v1005
    %v1007 = vrot.slane %v1006, 1
    %v1008 = vadd.f32 %v1006, %v1007
    %v1009 = vadd.f32 %v983, %v987
    %v1010 = vrot.slane %v1009, 4
    %v1011 = vadd.f32 %v1009, %v1010
    %v1012 = vrot.slane %v1011, 2
    %v1013 = vadd.f32 %v1011, %v1012
    %v1014 = vrot.slane %v1013, 1
    %v1015 = vadd.f32 %v1013, %v1014
    %v1016 = vmul.f32 %v994, %v967
    %v1017 = vmul.f32 %v1001, %v967
    %v1018 = vmul.f32 %v1008, %v967
    %v1019 = vmul.f32 %v1015, %v967
    %v1020 = vadd.f32 %v1016, 1e-05
    %v1021 = vadd.f32 %v1017, 1e-05
    %v1022 = vadd.f32 %v1018, 1e-05
    %v1023 = vadd.f32 %v1019, 1e-05
    %v1024 = vrsqrt.pop %v1020
    %v1025 = vmul.f32 %v1024, %v1020
    %v1026 = vmul.f32 %v1025, %v1024
    %v1027 = vmul.f32 0.5, %v1026
    %v1028 = vsub.f32 1.5, %v1027
    %v1029 = vmul.f32 %v1024, %v1028
    %vm1030 = vweird.f32 %v1020
    %vm1031 = vweird.f32 %v1024
    %vm1032 = vmor %vm1030, %vm1031
    %v1033 = vsel %vm1032, %v1024, %v1029
    %v1034 = vrsqrt.pop %v1021
    %v1035 = vmul.f32 %v1034, %v1021
    %v1036 = vmul.f32 %v1035, %v1034
    %v1037 = vmul.f32 0.5, %v1036
    %v1038 = vsub.f32 1.5, %v1037
    %v1039 = vmul.f32 %v1034, %v1038
    %vm1040 = vweird.f32 %v1021
    %vm1041 = vweird.f32 %v1034
    %vm1042 = vmor %vm1040, %vm1041
    %v1043 = vsel %vm1042, %v1034, %v1039
    %v1044 = vrsqrt.pop %v1022
    %v1045 = vmul.f32 %v1044, %v1022
    %v1046 = vmul.f32 %v1045, %v1044
    %v1047 = vmul.f32 0.5, %v1046
    %v1048 = vsub.f32 1.5, %v1047
    %v1049 = vmul.f32 %v1044, %v1048
    %vm1050 = vweird.f32 %v1022
    %vm1051 = vweird.f32 %v1044
    %vm1052 = vmor %vm1050, %vm1051
    %v1053 = vsel %vm1052, %v1044, %v1049
    %v1054 = vrsqrt.pop %v1023
    %v1055 = vmul.f32 %v1054, %v1023
    %v1056 = vmul.f32 %v1055, %v1054
    %v1057 = vmul.f32 0.5, %v1056
    %v1058 = vsub.f32 1.5, %v1057
    %v1059 = vmul.f32 %v1054, %v1058
    %vm1060 = vweird.f32 %v1023
    %vm1061 = vweird.f32 %v1054
    %vm1062 = vmor %vm1060, %vm1061
    %v1063 = vsel %vm1062, %v1054, %v1059
    %v1064 = vmul.f32 %v972, %v1033
    %v1065 = vmul.f32 %v973, %v1043
    %v1066 = vmul.f32 %v974, %v1053
    %v1067 = vmul.f32 %v975, %v1063
    %v1068 = vmul.f32 %v976, %v1033
    %v1069 = vmul.f32 %v977, %v1043
    %v1070 = vmul.f32 %v978, %v1053
    %v1071 = vmul.f32 %v979, %v1063
    %v1072 = vld [vmem:[%s6] sm:$0xff]
    %v1073 = vld [vmem:[%s6 + $0x8] sm:$0xff]
    %1075 = vset.pattern.permute.xlu0 0
    %1076 = vperm.xlu0 %1075, %v1072
    %v1077 = vpop.permute.xlu0 %1076
    %1080 = vset.pattern.permute.xlu0 0
    %1081 = vperm.xlu0 %1080, %v1073
    %v1082 = vpop.permute.xlu0 %1081
    %v1084 = vmul.f32 %v1064, %v1077
    %v1085 = vmul.f32 %v1065, %v1077
    %v1086 = vmul.f32 %v1066, %v1077
    %v1087 = vmul.f32 %v1067, %v1077
    %v1088 = vmul.f32 %v1068, %v1082
    %v1089 = vmul.f32 %v1069, %v1082
    %v1090 = vmul.f32 %v1070, %v1082
    %v1091 = vmul.f32 %v1071, %v1082
    %v1092 = vld [vmem:[%s7] sm:$0xff]
    %v1093 = vld [vmem:[%s7 + $0x8] sm:$0xff]
    %1095 = vset.pattern.permute.xlu0 0
    %1096 = vperm.xlu0 %1095, %v1092
    %v1097 = vpop.permute.xlu0 %1096
    %1100 = vset.pattern.permute.xlu0 0
    %1101 = vperm.xlu0 %1100, %v1093
    %v1102 = vpop.permute.xlu0 %1101
    %v1104 = vadd.f32 %v1084, %v1097
    %v1105 = vadd.f32 %v1085, %v1097
    %v1106 = vadd.f32 %v1086, %v1097
    %v1107 = vadd.f32 %v1087, %v1097
    %v1108 = vadd.f32 %v1088, %v1102
    %v1109 = vadd.f32 %v1089, %v1102
    %v1110 = vadd.f32 %v1090, %v1102
    %v1111 = vadd.f32 %v1091, %v1102
    %v1112 = vld [vmem:[%s8] sm:$0xf]
    %v1113 = vld [vmem:[%s8 + $0x4] sm:$0xf]
    %v1114 = vld [vmem:[%s8 + $0x8] sm:$0xf]
    %v1115 = vld [vmem:[%s8 + $0xc] sm:$0xf]
    %v1116 = vld [vmem:[%s8 + $0x10] sm:$0xf]
    %v1117 = vld [vmem:[%s8 + $0x14] sm:$0xf]
    %v1118 = vld [vmem:[%s8 + $0x18] sm:$0xf]
    %v1119 = vld [vmem:[%s8 + $0x1c] sm:$0xf]
    %v1120 = vld [vmem:[%s8 + $0x20] sm:$0xf]
    %v1121 = vld [vmem:[%s8 + $0x24] sm:$0xf]
    %v1122 = vld [vmem:[%s8 + $0x28] sm:$0xf]
    %v1123 = vld [vmem:[%s8 + $0x2c] sm:$0xf]
    %v1124 = vld [vmem:[%s8 + $0x30] sm:$0xf]
    %v1125 = vld [vmem:[%s8 + $0x34] sm:$0xf]
    %v1126 = vld [vmem:[%s8 + $0x38] sm:$0xf]
    %v1127 = vld [vmem:[%s8 + $0x3c] sm:$0xf]
    %v1128 = vld [vmem:[%s8 + $0x40] sm:$0xf]
    %v1129 = vld [vmem:[%s8 + $0x44] sm:$0xf]
    %v1130 = vld [vmem:[%s8 + $0x48] sm:$0xf]
    %v1131 = vld [vmem:[%s8 + $0x4c] sm:$0xf]
    %v1132 = vld [vmem:[%s8 + $0x50] sm:$0xf]
    %v1133 = vld [vmem:[%s8 + $0x54] sm:$0xf]
    %v1134 = vld [vmem:[%s8 + $0x58] sm:$0xf]
    %v1135 = vld [vmem:[%s8 + $0x5c] sm:$0xf]
    %v1136 = vld [vmem:[%s8 + $0x60] sm:$0xf]
    %v1137 = vld [vmem:[%s8 + $0x64] sm:$0xf]
    %v1138 = vld [vmem:[%s8 + $0x68] sm:$0xf]
    %v1139 = vld [vmem:[%s8 + $0x6c] sm:$0xf]
    %v1140 = vld [vmem:[%s8 + $0x70] sm:$0xf]
    %v1141 = vld [vmem:[%s8 + $0x74] sm:$0xf]
    %v1142 = vld [vmem:[%s8 + $0x78] sm:$0xf]
    %v1143 = vld [vmem:[%s8 + $0x7c] sm:$0xf]
    %v1144 = vld [vmem:[%s8 + $0x80] sm:$0xf]
    %v1145 = vld [vmem:[%s8 + $0x84] sm:$0xf]
    %v1146 = vld [vmem:[%s8 + $0x88] sm:$0xf]
    %v1147 = vld [vmem:[%s8 + $0x8c] sm:$0xf]
    %v1148 = vld [vmem:[%s8 + $0x90] sm:$0xf]
    %v1149 = vld [vmem:[%s8 + $0x94] sm:$0xf]
    %v1150 = vld [vmem:[%s8 + $0x98] sm:$0xf]
    %v1151 = vld [vmem:[%s8 + $0x9c] sm:$0xf]
    %v1152 = vld [vmem:[%s8 + $0xa0] sm:$0xf]
    %v1153 = vld [vmem:[%s8 + $0xa4] sm:$0xf]
    %v1154 = vld [vmem:[%s8 + $0xa8] sm:$0xf]
    %v1155 = vld [vmem:[%s8 + $0xac] sm:$0xf]
    %v1156 = vld [vmem:[%s8 + $0xb0] sm:$0xf]
    %v1157 = vld [vmem:[%s8 + $0xb4] sm:$0xf]
    %v1158 = vld [vmem:[%s8 + $0xb8] sm:$0xf]
    %v1159 = vld [vmem:[%s8 + $0xbc] sm:$0xf]
    %v1160 = vld [vmem:[%s8 + $0xc0] sm:$0xf]
    %v1161 = vld [vmem:[%s8 + $0xc4] sm:$0xf]
    %v1162 = vld [vmem:[%s8 + $0xc8] sm:$0xf]
    %v1163 = vld [vmem:[%s8 + $0xcc] sm:$0xf]
    %v1164 = vld [vmem:[%s8 + $0xd0] sm:$0xf]
    %v1165 = vld [vmem:[%s8 + $0xd4] sm:$0xf]
    %v1166 = vld [vmem:[%s8 + $0xd8] sm:$0xf]
    %v1167 = vld [vmem:[%s8 + $0xdc] sm:$0xf]
    %v1168 = vld [vmem:[%s8 + $0xe0] sm:$0xf]
    %v1169 = vld [vmem:[%s8 + $0xe4] sm:$0xf]
    %v1170 = vld [vmem:[%s8 + $0xe8] sm:$0xf]
    %v1171 = vld [vmem:[%s8 + $0xec] sm:$0xf]
    %v1172 = vld [vmem:[%s8 + $0xf0] sm:$0xf]
    %v1173 = vld [vmem:[%s8 + $0xf4] sm:$0xf]
    %v1174 = vld [vmem:[%s8 + $0xf8] sm:$0xf]
    %v1175 = vld [vmem:[%s8 + $0xfc] sm:$0xf]
    %v1176 = vld [vmem:[%s8 + $0x100] sm:$0xf]
    %v1177 = vld [vmem:[%s8 + $0x104] sm:$0xf]
    %v1178 = vld [vmem:[%s8 + $0x108] sm:$0xf]
    %v1179 = vld [vmem:[%s8 + $0x10c] sm:$0xf]
    %v1180 = vld [vmem:[%s8 + $0x110] sm:$0xf]
    %v1181 = vld [vmem:[%s8 + $0x114] sm:$0xf]
    %v1182 = vld [vmem:[%s8 + $0x118] sm:$0xf]
    %v1183 = vld [vmem:[%s8 + $0x11c] sm:$0xf]
    %v1184 = vld [vmem:[%s8 + $0x120] sm:$0xf]
    %v1185 = vld [vmem:[%s8 + $0x124] sm:$0xf]
    %v1186 = vld [vmem:[%s8 + $0x128] sm:$0xf]
    %v1187 = vld [vmem:[%s8 + $0x12c] sm:$0xf]
    %v1188 = vld [vmem:[%s8 + $0x130] sm:$0xf]
    %v1189 = vld [vmem:[%s8 + $0x134] sm:$0xf]
    %v1190 = vld [vmem:[%s8 + $0x138] sm:$0xf]
    %v1191 = vld [vmem:[%s8 + $0x13c] sm:$0xf]
    %v1192 = vld [vmem:[%s8 + $0x140] sm:$0xf]
    %v1193 = vld [vmem:[%s8 + $0x144] sm:$0xf]
    %v1194 = vld [vmem:[%s8 + $0x148] sm:$0xf]
    %v1195 = vld [vmem:[%s8 + $0x14c] sm:$0xf]
    %v1196 = vld [vmem:[%s8 + $0x150] sm:$0xf]
    %v1197 = vld [vmem:[%s8 + $0x154] sm:$0xf]
    %v1198 = vld [vmem:[%s8 + $0x158] sm:$0xf]
    %v1199 = vld [vmem:[%s8 + $0x15c] sm:$0xf]
    %v1200 = vld [vmem:[%s8 + $0x160] sm:$0xf]
    %v1201 = vld [vmem:[%s8 + $0x164] sm:$0xf]
    %v1202 = vld [vmem:[%s8 + $0x168] sm:$0xf]
    %v1203 = vld [vmem:[%s8 + $0x16c] sm:$0xf]
    %v1204 = vld [vmem:[%s8 + $0x170] sm:$0xf]
    %v1205 = vld [vmem:[%s8 + $0x174] sm:$0xf]
    %v1206 = vld [vmem:[%s8 + $0x178] sm:$0xf]
    %v1207 = vld [vmem:[%s8 + $0x17c] sm:$0xf]
    %v1208 = vld [vmem:[%s8 + $0x180] sm:$0xf]
    %v1209 = vld [vmem:[%s8 + $0x184] sm:$0xf]
    %v1210 = vld [vmem:[%s8 + $0x188] sm:$0xf]
    %v1211 = vld [vmem:[%s8 + $0x18c] sm:$0xf]
    %v1212 = vld [vmem:[%s8 + $0x190] sm:$0xf]
    %v1213 = vld [vmem:[%s8 + $0x194] sm:$0xf]
    %v1214 = vld [vmem:[%s8 + $0x198] sm:$0xf]
    %v1215 = vld [vmem:[%s8 + $0x19c] sm:$0xf]
    %v1216 = vld [vmem:[%s8 + $0x1a0] sm:$0xf]
    %v1217 = vld [vmem:[%s8 + $0x1a4] sm:$0xf]
    %v1218 = vld [vmem:[%s8 + $0x1a8] sm:$0xf]
    %v1219 = vld [vmem:[%s8 + $0x1ac] sm:$0xf]
    %v1220 = vld [vmem:[%s8 + $0x1b0] sm:$0xf]
    %v1221 = vld [vmem:[%s8 + $0x1b4] sm:$0xf]
    %v1222 = vld [vmem:[%s8 + $0x1b8] sm:$0xf]
    %v1223 = vld [vmem:[%s8 + $0x1bc] sm:$0xf]
    %v1224 = vld [vmem:[%s8 + $0x1c0] sm:$0xf]
    %v1225 = vld [vmem:[%s8 + $0x1c4] sm:$0xf]
    %v1226 = vld [vmem:[%s8 + $0x1c8] sm:$0xf]
    %v1227 = vld [vmem:[%s8 + $0x1cc] sm:$0xf]
    %v1228 = vld [vmem:[%s8 + $0x1d0] sm:$0xf]
    %v1229 = vld [vmem:[%s8 + $0x1d4] sm:$0xf]
    %v1230 = vld [vmem:[%s8 + $0x1d8] sm:$0xf]
    %v1231 = vld [vmem:[%s8 + $0x1dc] sm:$0xf]
    %v1232 = vld [vmem:[%s8 + $0x1e0] sm:$0xf]
    %v1233 = vld [vmem:[%s8 + $0x1e4] sm:$0xf]
    %v1234 = vld [vmem:[%s8 + $0x1e8] sm:$0xf]
    %v1235 = vld [vmem:[%s8 + $0x1ec] sm:$0xf]
    %v1236 = vld [vmem:[%s8 + $0x1f0] sm:$0xf]
    %v1237 = vld [vmem:[%s8 + $0x1f4] sm:$0xf]
    %v1238 = vld [vmem:[%s8 + $0x1f8] sm:$0xf]
    %v1239 = vld [vmem:[%s8 + $0x1fc] sm:$0xf]
    %v1240 = vld [vmem:[%s8 + $0x200] sm:$0xf]
    %v1241 = vld [vmem:[%s8 + $0x204] sm:$0xf]
    %v1242 = vld [vmem:[%s8 + $0x208] sm:$0xf]
    %v1243 = vld [vmem:[%s8 + $0x20c] sm:$0xf]
    %v1244 = vld [vmem:[%s8 + $0x210] sm:$0xf]
    %v1245 = vld [vmem:[%s8 + $0x214] sm:$0xf]
    %v1246 = vld [vmem:[%s8 + $0x218] sm:$0xf]
    %v1247 = vld [vmem:[%s8 + $0x21c] sm:$0xf]
    %v1248 = vld [vmem:[%s8 + $0x220] sm:$0xf]
    %v1249 = vld [vmem:[%s8 + $0x224] sm:$0xf]
    %v1250 = vld [vmem:[%s8 + $0x228] sm:$0xf]
    %v1251 = vld [vmem:[%s8 + $0x22c] sm:$0xf]
    %v1252 = vld [vmem:[%s8 + $0x230] sm:$0xf]
    %v1253 = vld [vmem:[%s8 + $0x234] sm:$0xf]
    %v1254 = vld [vmem:[%s8 + $0x238] sm:$0xf]
    %v1255 = vld [vmem:[%s8 + $0x23c] sm:$0xf]
    %v1256 = vld [vmem:[%s8 + $0x240] sm:$0xf]
    %v1257 = vld [vmem:[%s8 + $0x244] sm:$0xf]
    %v1258 = vld [vmem:[%s8 + $0x248] sm:$0xf]
    %v1259 = vld [vmem:[%s8 + $0x24c] sm:$0xf]
    %v1260 = vld [vmem:[%s8 + $0x250] sm:$0xf]
    %v1261 = vld [vmem:[%s8 + $0x254] sm:$0xf]
    %v1262 = vld [vmem:[%s8 + $0x258] sm:$0xf]
    %v1263 = vld [vmem:[%s8 + $0x25c] sm:$0xf]
    %v1264 = vld [vmem:[%s8 + $0x260] sm:$0xf]
    %v1265 = vld [vmem:[%s8 + $0x264] sm:$0xf]
    %v1266 = vld [vmem:[%s8 + $0x268] sm:$0xf]
    %v1267 = vld [vmem:[%s8 + $0x26c] sm:$0xf]
    %v1268 = vld [vmem:[%s8 + $0x270] sm:$0xf]
    %v1269 = vld [vmem:[%s8 + $0x274] sm:$0xf]
    %v1270 = vld [vmem:[%s8 + $0x278] sm:$0xf]
    %v1271 = vld [vmem:[%s8 + $0x27c] sm:$0xf]
    %v1272 = vld [vmem:[%s8 + $0x280] sm:$0xf]
    %v1273 = vld [vmem:[%s8 + $0x284] sm:$0xf]
    %v1274 = vld [vmem:[%s8 + $0x288] sm:$0xf]
    %v1275 = vld [vmem:[%s8 + $0x28c] sm:$0xf]
    %v1276 = vld [vmem:[%s8 + $0x290] sm:$0xf]
    %v1277 = vld [vmem:[%s8 + $0x294] sm:$0xf]
    %v1278 = vld [vmem:[%s8 + $0x298] sm:$0xf]
    %v1279 = vld [vmem:[%s8 + $0x29c] sm:$0xf]
    %v1280 = vld [vmem:[%s8 + $0x2a0] sm:$0xf]
    %v1281 = vld [vmem:[%s8 + $0x2a4] sm:$0xf]
    %v1282 = vld [vmem:[%s8 + $0x2a8] sm:$0xf]
    %v1283 = vld [vmem:[%s8 + $0x2ac] sm:$0xf]
    %v1284 = vld [vmem:[%s8 + $0x2b0] sm:$0xf]
    %v1285 = vld [vmem:[%s8 + $0x2b4] sm:$0xf]
    %v1286 = vld [vmem:[%s8 + $0x2b8] sm:$0xf]
    %v1287 = vld [vmem:[%s8 + $0x2bc] sm:$0xf]
    %v1288 = vld [vmem:[%s8 + $0x2c0] sm:$0xf]
    %v1289 = vld [vmem:[%s8 + $0x2c4] sm:$0xf]
    %v1290 = vld [vmem:[%s8 + $0x2c8] sm:$0xf]
    %v1291 = vld [vmem:[%s8 + $0x2cc] sm:$0xf]
    %v1292 = vld [vmem:[%s8 + $0x2d0] sm:$0xf]
    %v1293 = vld [vmem:[%s8 + $0x2d4] sm:$0xf]
    %v1294 = vld [vmem:[%s8 + $0x2d8] sm:$0xf]
    %v1295 = vld [vmem:[%s8 + $0x2dc] sm:$0xf]
    %v1296 = vld [vmem:[%s8 + $0x2e0] sm:$0xf]
    %v1297 = vld [vmem:[%s8 + $0x2e4] sm:$0xf]
    %v1298 = vld [vmem:[%s8 + $0x2e8] sm:$0xf]
    %v1299 = vld [vmem:[%s8 + $0x2ec] sm:$0xf]
    %v1300 = vld [vmem:[%s8 + $0x2f0] sm:$0xf]
    %v1301 = vld [vmem:[%s8 + $0x2f4] sm:$0xf]
    %v1302 = vld [vmem:[%s8 + $0x2f8] sm:$0xf]
    %v1303 = vld [vmem:[%s8 + $0x2fc] sm:$0xf]
    %v1304 = vld [vmem:[%s8 + $0x300] sm:$0xf]
    %v1305 = vld [vmem:[%s8 + $0x304] sm:$0xf]
    %v1306 = vld [vmem:[%s8 + $0x308] sm:$0xf]
    %v1307 = vld [vmem:[%s8 + $0x30c] sm:$0xf]
    %v1308 = vld [vmem:[%s8 + $0x310] sm:$0xf]
    %v1309 = vld [vmem:[%s8 + $0x314] sm:$0xf]
    %v1310 = vld [vmem:[%s8 + $0x318] sm:$0xf]
    %v1311 = vld [vmem:[%s8 + $0x31c] sm:$0xf]
    %v1312 = vld [vmem:[%s8 + $0x320] sm:$0xf]
    %v1313 = vld [vmem:[%s8 + $0x324] sm:$0xf]
    %v1314 = vld [vmem:[%s8 + $0x328] sm:$0xf]
    %v1315 = vld [vmem:[%s8 + $0x32c] sm:$0xf]
    %v1316 = vld [vmem:[%s8 + $0x330] sm:$0xf]
    %v1317 = vld [vmem:[%s8 + $0x334] sm:$0xf]
    %v1318 = vld [vmem:[%s8 + $0x338] sm:$0xf]
    %v1319 = vld [vmem:[%s8 + $0x33c] sm:$0xf]
    %v1320 = vld [vmem:[%s8 + $0x340] sm:$0xf]
    %v1321 = vld [vmem:[%s8 + $0x344] sm:$0xf]
    %v1322 = vld [vmem:[%s8 + $0x348] sm:$0xf]
    %v1323 = vld [vmem:[%s8 + $0x34c] sm:$0xf]
    %v1324 = vld [vmem:[%s8 + $0x350] sm:$0xf]
    %v1325 = vld [vmem:[%s8 + $0x354] sm:$0xf]
    %v1326 = vld [vmem:[%s8 + $0x358] sm:$0xf]
    %v1327 = vld [vmem:[%s8 + $0x35c] sm:$0xf]
    %v1328 = vld [vmem:[%s8 + $0x360] sm:$0xf]
    %v1329 = vld [vmem:[%s8 + $0x364] sm:$0xf]
    %v1330 = vld [vmem:[%s8 + $0x368] sm:$0xf]
    %v1331 = vld [vmem:[%s8 + $0x36c] sm:$0xf]
    %v1332 = vld [vmem:[%s8 + $0x370] sm:$0xf]
    %v1333 = vld [vmem:[%s8 + $0x374] sm:$0xf]
    %v1334 = vld [vmem:[%s8 + $0x378] sm:$0xf]
    %v1335 = vld [vmem:[%s8 + $0x37c] sm:$0xf]
    %v1336 = vld [vmem:[%s8 + $0x380] sm:$0xf]
    %v1337 = vld [vmem:[%s8 + $0x384] sm:$0xf]
    %v1338 = vld [vmem:[%s8 + $0x388] sm:$0xf]
    %v1339 = vld [vmem:[%s8 + $0x38c] sm:$0xf]
    %v1340 = vld [vmem:[%s8 + $0x390] sm:$0xf]
    %v1341 = vld [vmem:[%s8 + $0x394] sm:$0xf]
    %v1342 = vld [vmem:[%s8 + $0x398] sm:$0xf]
    %v1343 = vld [vmem:[%s8 + $0x39c] sm:$0xf]
    %v1344 = vld [vmem:[%s8 + $0x3a0] sm:$0xf]
    %v1345 = vld [vmem:[%s8 + $0x3a4] sm:$0xf]
    %v1346 = vld [vmem:[%s8 + $0x3a8] sm:$0xf]
    %v1347 = vld [vmem:[%s8 + $0x3ac] sm:$0xf]
    %v1348 = vld [vmem:[%s8 + $0x3b0] sm:$0xf]
    %v1349 = vld [vmem:[%s8 + $0x3b4] sm:$0xf]
    %v1350 = vld [vmem:[%s8 + $0x3b8] sm:$0xf]
    %v1351 = vld [vmem:[%s8 + $0x3bc] sm:$0xf]
    %v1352 = vld [vmem:[%s8 + $0x3c0] sm:$0xf]
    %v1353 = vld [vmem:[%s8 + $0x3c4] sm:$0xf]
    %v1354 = vld [vmem:[%s8 + $0x3c8] sm:$0xf]
    %v1355 = vld [vmem:[%s8 + $0x3cc] sm:$0xf]
    %v1356 = vld [vmem:[%s8 + $0x3d0] sm:$0xf]
    %v1357 = vld [vmem:[%s8 + $0x3d4] sm:$0xf]
    %v1358 = vld [vmem:[%s8 + $0x3d8] sm:$0xf]
    %v1359 = vld [vmem:[%s8 + $0x3dc] sm:$0xf]
    %v1360 = vld [vmem:[%s8 + $0x3e0] sm:$0xf]
    %v1361 = vld [vmem:[%s8 + $0x3e4] sm:$0xf]
    %v1362 = vld [vmem:[%s8 + $0x3e8] sm:$0xf]
    %v1363 = vld [vmem:[%s8 + $0x3ec] sm:$0xf]
    %v1364 = vld [vmem:[%s8 + $0x3f0] sm:$0xf]
    %v1365 = vld [vmem:[%s8 + $0x3f4] sm:$0xf]
    %v1366 = vld [vmem:[%s8 + $0x3f8] sm:$0xf]
    %v1367 = vld [vmem:[%s8 + $0x3fc] sm:$0xf]
    %v1368 = vpack.c.bf16 %v1108, %v1104
    %v1369 = vpack.c.bf16 %v1109, %v1105
    %v1370 = vpack.c.bf16 %v1110, %v1106
    %v1371 = vpack.c.bf16 %v1111, %v1107
    %v1372 = vld [vmem:[%s9] sm:$0xff]
    %v1373 = vld [vmem:[%s9 + $0x8] sm:$0xff]
    %v1374 = vld [vmem:[%s9 + $0x10] sm:$0xff]
    %v1375 = vld [vmem:[%s9 + $0x18] sm:$0xff]
    %v1376 = vld [vmem:[%s9 + $0x20] sm:$0xff]
    %v1377 = vld [vmem:[%s9 + $0x28] sm:$0xff]
    %v1378 = vld [vmem:[%s9 + $0x30] sm:$0xff]
    %v1379 = vld [vmem:[%s9 + $0x38] sm:$0xff]
    %v1380 = vld [vmem:[%s9 + $0x40] sm:$0xff]
    %v1381 = vld [vmem:[%s9 + $0x48] sm:$0xff]
    %v1382 = vld [vmem:[%s9 + $0x50] sm:$0xff]
    %v1383 = vld [vmem:[%s9 + $0x58] sm:$0xff]
    %v1384 = vld [vmem:[%s9 + $0x60] sm:$0xff]
    %v1385 = vld [vmem:[%s9 + $0x68] sm:$0xff]
    %v1386 = vld [vmem:[%s9 + $0x70] sm:$0xff]
    %v1387 = vld [vmem:[%s9 + $0x78] sm:$0xff]
    %v1388 = vld [vmem:[%s9 + $0x80] sm:$0xff]
    %v1389 = vld [vmem:[%s9 + $0x88] sm:$0xff]
    %v1390 = vld [vmem:[%s9 + $0x90] sm:$0xff]
    %v1391 = vld [vmem:[%s9 + $0x98] sm:$0xff]
    %v1392 = vld [vmem:[%s9 + $0xa0] sm:$0xff]
    %v1393 = vld [vmem:[%s9 + $0xa8] sm:$0xff]
    %v1394 = vld [vmem:[%s9 + $0xb0] sm:$0xff]
    %v1395 = vld [vmem:[%s9 + $0xb8] sm:$0xff]
    %v1396 = vld [vmem:[%s9 + $0xc0] sm:$0xff]
    %v1397 = vld [vmem:[%s9 + $0xc8] sm:$0xff]
    %v1398 = vld [vmem:[%s9 + $0xd0] sm:$0xff]
    %v1399 = vld [vmem:[%s9 + $0xd8] sm:$0xff]
    %v1400 = vld [vmem:[%s9 + $0xe0] sm:$0xff]
    %v1401 = vld [vmem:[%s9 + $0xe8] sm:$0xff]
    %v1402 = vld [vmem:[%s9 + $0xf0] sm:$0xff]
    %v1403 = vld [vmem:[%s9 + $0xf8] sm:$0xff]
    %v1404 = vld [vmem:[%s9 + $0x100] sm:$0xff]
    %v1405 = vld [vmem:[%s9 + $0x108] sm:$0xff]
    %v1406 = vld [vmem:[%s9 + $0x110] sm:$0xff]
    %v1407 = vld [vmem:[%s9 + $0x118] sm:$0xff]
    %v1408 = vld [vmem:[%s9 + $0x120] sm:$0xff]
    %v1409 = vld [vmem:[%s9 + $0x128] sm:$0xff]
    %v1410 = vld [vmem:[%s9 + $0x130] sm:$0xff]
    %v1411 = vld [vmem:[%s9 + $0x138] sm:$0xff]
    %v1412 = vld [vmem:[%s9 + $0x140] sm:$0xff]
    %v1413 = vld [vmem:[%s9 + $0x148] sm:$0xff]
    %v1414 = vld [vmem:[%s9 + $0x150] sm:$0xff]
    %v1415 = vld [vmem:[%s9 + $0x158] sm:$0xff]
    %v1416 = vld [vmem:[%s9 + $0x160] sm:$0xff]
    %v1417 = vld [vmem:[%s9 + $0x168] sm:$0xff]
    %v1418 = vld [vmem:[%s9 + $0x170] sm:$0xff]
    %v1419 = vld [vmem:[%s9 + $0x178] sm:$0xff]
    %v1420 = vld [vmem:[%s9 + $0x180] sm:$0xff]
    %v1421 = vld [vmem:[%s9 + $0x188] sm:$0xff]
    %v1422 = vld [vmem:[%s9 + $0x190] sm:$0xff]
    %v1423 = vld [vmem:[%s9 + $0x198] sm:$0xff]
    %v1424 = vld [vmem:[%s9 + $0x1a0] sm:$0xff]
    %v1425 = vld [vmem:[%s9 + $0x1a8] sm:$0xff]
    %v1426 = vld [vmem:[%s9 + $0x1b0] sm:$0xff]
    %v1427 = vld [vmem:[%s9 + $0x1b8] sm:$0xff]
    %v1428 = vld [vmem:[%s9 + $0x1c0] sm:$0xff]
    %v1429 = vld [vmem:[%s9 + $0x1c8] sm:$0xff]
    %v1430 = vld [vmem:[%s9 + $0x1d0] sm:$0xff]
    %v1431 = vld [vmem:[%s9 + $0x1d8] sm:$0xff]
    %v1432 = vld [vmem:[%s9 + $0x1e0] sm:$0xff]
    %v1433 = vld [vmem:[%s9 + $0x1e8] sm:$0xff]
    %v1434 = vld [vmem:[%s9 + $0x1f0] sm:$0xff]
    %v1435 = vld [vmem:[%s9 + $0x1f8] sm:$0xff]
    %v1436 = vld [vmem:[%s9 + $0x200] sm:$0xff]
    %v1437 = vld [vmem:[%s9 + $0x208] sm:$0xff]
    %v1438 = vld [vmem:[%s9 + $0x210] sm:$0xff]
    %v1439 = vld [vmem:[%s9 + $0x218] sm:$0xff]
    %v1440 = vld [vmem:[%s9 + $0x220] sm:$0xff]
    %v1441 = vld [vmem:[%s9 + $0x228] sm:$0xff]
    %v1442 = vld [vmem:[%s9 + $0x230] sm:$0xff]
    %v1443 = vld [vmem:[%s9 + $0x238] sm:$0xff]
    %v1444 = vld [vmem:[%s9 + $0x240] sm:$0xff]
    %v1445 = vld [vmem:[%s9 + $0x248] sm:$0xff]
    %v1446 = vld [vmem:[%s9 + $0x250] sm:$0xff]
    %v1447 = vld [vmem:[%s9 + $0x258] sm:$0xff]
    %v1448 = vld [vmem:[%s9 + $0x260] sm:$0xff]
    %v1449 = vld [vmem:[%s9 + $0x268] sm:$0xff]
    %v1450 = vld [vmem:[%s9 + $0x270] sm:$0xff]
    %v1451 = vld [vmem:[%s9 + $0x278] sm:$0xff]
    %v1452 = vld [vmem:[%s9 + $0x280] sm:$0xff]
    %v1453 = vld [vmem:[%s9 + $0x288] sm:$0xff]
    %v1454 = vld [vmem:[%s9 + $0x290] sm:$0xff]
    %v1455 = vld [vmem:[%s9 + $0x298] sm:$0xff]
    %v1456 = vld [vmem:[%s9 + $0x2a0] sm:$0xff]
    %v1457 = vld [vmem:[%s9 + $0x2a8] sm:$0xff]
    %v1458 = vld [vmem:[%s9 + $0x2b0] sm:$0xff]
    %v1459 = vld [vmem:[%s9 + $0x2b8] sm:$0xff]
    %v1460 = vld [vmem:[%s9 + $0x2c0] sm:$0xff]
    %v1461 = vld [vmem:[%s9 + $0x2c8] sm:$0xff]
    %v1462 = vld [vmem:[%s9 + $0x2d0] sm:$0xff]
    %v1463 = vld [vmem:[%s9 + $0x2d8] sm:$0xff]
    %v1464 = vld [vmem:[%s9 + $0x2e0] sm:$0xff]
    %v1465 = vld [vmem:[%s9 + $0x2e8] sm:$0xff]
    %v1466 = vld [vmem:[%s9 + $0x2f0] sm:$0xff]
    %v1467 = vld [vmem:[%s9 + $0x2f8] sm:$0xff]
    %v1468 = vld [vmem:[%s9 + $0x300] sm:$0xff]
    %v1469 = vld [vmem:[%s9 + $0x308] sm:$0xff]
    %v1470 = vld [vmem:[%s9 + $0x310] sm:$0xff]
    %v1471 = vld [vmem:[%s9 + $0x318] sm:$0xff]
    %v1472 = vld [vmem:[%s9 + $0x320] sm:$0xff]
    %v1473 = vld [vmem:[%s9 + $0x328] sm:$0xff]
    %v1474 = vld [vmem:[%s9 + $0x330] sm:$0xff]
    %v1475 = vld [vmem:[%s9 + $0x338] sm:$0xff]
    %v1476 = vld [vmem:[%s9 + $0x340] sm:$0xff]
    %v1477 = vld [vmem:[%s9 + $0x348] sm:$0xff]
    %v1478 = vld [vmem:[%s9 + $0x350] sm:$0xff]
    %v1479 = vld [vmem:[%s9 + $0x358] sm:$0xff]
    %v1480 = vld [vmem:[%s9 + $0x360] sm:$0xff]
    %v1481 = vld [vmem:[%s9 + $0x368] sm:$0xff]
    %v1482 = vld [vmem:[%s9 + $0x370] sm:$0xff]
    %v1483 = vld [vmem:[%s9 + $0x378] sm:$0xff]
    %v1484 = vld [vmem:[%s9 + $0x380] sm:$0xff]
    %v1485 = vld [vmem:[%s9 + $0x388] sm:$0xff]
    %v1486 = vld [vmem:[%s9 + $0x390] sm:$0xff]
    %v1487 = vld [vmem:[%s9 + $0x398] sm:$0xff]
    %v1488 = vld [vmem:[%s9 + $0x3a0] sm:$0xff]
    %v1489 = vld [vmem:[%s9 + $0x3a8] sm:$0xff]
    %v1490 = vld [vmem:[%s9 + $0x3b0] sm:$0xff]
    %v1491 = vld [vmem:[%s9 + $0x3b8] sm:$0xff]
    %v1492 = vld [vmem:[%s9 + $0x3c0] sm:$0xff]
    %v1493 = vld [vmem:[%s9 + $0x3c8] sm:$0xff]
    %v1494 = vld [vmem:[%s9 + $0x3d0] sm:$0xff]
    %v1495 = vld [vmem:[%s9 + $0x3d8] sm:$0xff]
    %v1496 = vld [vmem:[%s9 + $0x3e0] sm:$0xff]
    %v1497 = vld [vmem:[%s9 + $0x3e8] sm:$0xff]
    %v1498 = vld [vmem:[%s9 + $0x3f0] sm:$0xff]
    %v1499 = vld [vmem:[%s9 + $0x3f8] sm:$0xff]
    %v1500 = vld [vmem:[%s9 + $0x400] sm:$0xff]
    %v1501 = vld [vmem:[%s9 + $0x408] sm:$0xff]
    %v1502 = vld [vmem:[%s9 + $0x410] sm:$0xff]
    %v1503 = vld [vmem:[%s9 + $0x418] sm:$0xff]
    %v1504 = vld [vmem:[%s9 + $0x420] sm:$0xff]
    %v1505 = vld [vmem:[%s9 + $0x428] sm:$0xff]
    %v1506 = vld [vmem:[%s9 + $0x430] sm:$0xff]
    %v1507 = vld [vmem:[%s9 + $0x438] sm:$0xff]
    %v1508 = vld [vmem:[%s9 + $0x440] sm:$0xff]
    %v1509 = vld [vmem:[%s9 + $0x448] sm:$0xff]
    %v1510 = vld [vmem:[%s9 + $0x450] sm:$0xff]
    %v1511 = vld [vmem:[%s9 + $0x458] sm:$0xff]
    %v1512 = vld [vmem:[%s9 + $0x460] sm:$0xff]
    %v1513 = vld [vmem:[%s9 + $0x468] sm:$0xff]
    %v1514 = vld [vmem:[%s9 + $0x470] sm:$0xff]
    %v1515 = vld [vmem:[%s9 + $0x478] sm:$0xff]
    %v1516 = vld [vmem:[%s9 + $0x480] sm:$0xff]
    %v1517 = vld [vmem:[%s9 + $0x488] sm:$0xff]
    %v1518 = vld [vmem:[%s9 + $0x490] sm:$0xff]
    %v1519 = vld [vmem:[%s9 + $0x498] sm:$0xff]
    %v1520 = vld [vmem:[%s9 + $0x4a0] sm:$0xff]
    %v1521 = vld [vmem:[%s9 + $0x4a8] sm:$0xff]
    %v1522 = vld [vmem:[%s9 + $0x4b0] sm:$0xff]
    %v1523 = vld [vmem:[%s9 + $0x4b8] sm:$0xff]
    %v1524 = vld [vmem:[%s9 + $0x4c0] sm:$0xff]
    %v1525 = vld [vmem:[%s9 + $0x4c8] sm:$0xff]
    %v1526 = vld [vmem:[%s9 + $0x4d0] sm:$0xff]
    %v1527 = vld [vmem:[%s9 + $0x4d8] sm:$0xff]
    %v1528 = vld [vmem:[%s9 + $0x4e0] sm:$0xff]
    %v1529 = vld [vmem:[%s9 + $0x4e8] sm:$0xff]
    %v1530 = vld [vmem:[%s9 + $0x4f0] sm:$0xff]
    %v1531 = vld [vmem:[%s9 + $0x4f8] sm:$0xff]
    %v1532 = vld [vmem:[%s9 + $0x500] sm:$0xff]
    %v1533 = vld [vmem:[%s9 + $0x508] sm:$0xff]
    %v1534 = vld [vmem:[%s9 + $0x510] sm:$0xff]
    %v1535 = vld [vmem:[%s9 + $0x518] sm:$0xff]
    %v1536 = vld [vmem:[%s9 + $0x520] sm:$0xff]
    %v1537 = vld [vmem:[%s9 + $0x528] sm:$0xff]
    %v1538 = vld [vmem:[%s9 + $0x530] sm:$0xff]
    %v1539 = vld [vmem:[%s9 + $0x538] sm:$0xff]
    %v1540 = vld [vmem:[%s9 + $0x540] sm:$0xff]
    %v1541 = vld [vmem:[%s9 + $0x548] sm:$0xff]
    %v1542 = vld [vmem:[%s9 + $0x550] sm:$0xff]
    %v1543 = vld [vmem:[%s9 + $0x558] sm:$0xff]
    %v1544 = vld [vmem:[%s9 + $0x560] sm:$0xff]
    %v1545 = vld [vmem:[%s9 + $0x568] sm:$0xff]
    %v1546 = vld [vmem:[%s9 + $0x570] sm:$0xff]
    %v1547 = vld [vmem:[%s9 + $0x578] sm:$0xff]
    %v1548 = vld [vmem:[%s9 + $0x580] sm:$0xff]
    %v1549 = vld [vmem:[%s9 + $0x588] sm:$0xff]
    %v1550 = vld [vmem:[%s9 + $0x590] sm:$0xff]
    %v1551 = vld [vmem:[%s9 + $0x598] sm:$0xff]
    %v1552 = vld [vmem:[%s9 + $0x5a0] sm:$0xff]
    %v1553 = vld [vmem:[%s9 + $0x5a8] sm:$0xff]
    %v1554 = vld [vmem:[%s9 + $0x5b0] sm:$0xff]
    %v1555 = vld [vmem:[%s9 + $0x5b8] sm:$0xff]
    %v1556 = vld [vmem:[%s9 + $0x5c0] sm:$0xff]
    %v1557 = vld [vmem:[%s9 + $0x5c8] sm:$0xff]
    %v1558 = vld [vmem:[%s9 + $0x5d0] sm:$0xff]
    %v1559 = vld [vmem:[%s9 + $0x5d8] sm:$0xff]
    %v1560 = vld [vmem:[%s9 + $0x5e0] sm:$0xff]
    %v1561 = vld [vmem:[%s9 + $0x5e8] sm:$0xff]
    %v1562 = vld [vmem:[%s9 + $0x5f0] sm:$0xff]
    %v1563 = vld [vmem:[%s9 + $0x5f8] sm:$0xff]
    %v1564 = vld [vmem:[%s9 + $0x600] sm:$0xff]
    %v1565 = vld [vmem:[%s9 + $0x608] sm:$0xff]
    %v1566 = vld [vmem:[%s9 + $0x610] sm:$0xff]
    %v1567 = vld [vmem:[%s9 + $0x618] sm:$0xff]
    %v1568 = vld [vmem:[%s9 + $0x620] sm:$0xff]
    %v1569 = vld [vmem:[%s9 + $0x628] sm:$0xff]
    %v1570 = vld [vmem:[%s9 + $0x630] sm:$0xff]
    %v1571 = vld [vmem:[%s9 + $0x638] sm:$0xff]
    %v1572 = vld [vmem:[%s9 + $0x640] sm:$0xff]
    %v1573 = vld [vmem:[%s9 + $0x648] sm:$0xff]
    %v1574 = vld [vmem:[%s9 + $0x650] sm:$0xff]
    %v1575 = vld [vmem:[%s9 + $0x658] sm:$0xff]
    %v1576 = vld [vmem:[%s9 + $0x660] sm:$0xff]
    %v1577 = vld [vmem:[%s9 + $0x668] sm:$0xff]
    %v1578 = vld [vmem:[%s9 + $0x670] sm:$0xff]
    %v1579 = vld [vmem:[%s9 + $0x678] sm:$0xff]
    %v1580 = vld [vmem:[%s9 + $0x680] sm:$0xff]
    %v1581 = vld [vmem:[%s9 + $0x688] sm:$0xff]
    %v1582 = vld [vmem:[%s9 + $0x690] sm:$0xff]
    %v1583 = vld [vmem:[%s9 + $0x698] sm:$0xff]
    %v1584 = vld [vmem:[%s9 + $0x6a0] sm:$0xff]
    %v1585 = vld [vmem:[%s9 + $0x6a8] sm:$0xff]
    %v1586 = vld [vmem:[%s9 + $0x6b0] sm:$0xff]
    %v1587 = vld [vmem:[%s9 + $0x6b8] sm:$0xff]
    %v1588 = vld [vmem:[%s9 + $0x6c0] sm:$0xff]
    %v1589 = vld [vmem:[%s9 + $0x6c8] sm:$0xff]
    %v1590 = vld [vmem:[%s9 + $0x6d0] sm:$0xff]
    %v1591 = vld [vmem:[%s9 + $0x6d8] sm:$0xff]
    %v1592 = vld [vmem:[%s9 + $0x6e0] sm:$0xff]
    %v1593 = vld [vmem:[%s9 + $0x6e8] sm:$0xff]
    %v1594 = vld [vmem:[%s9 + $0x6f0] sm:$0xff]
    %v1595 = vld [vmem:[%s9 + $0x6f8] sm:$0xff]
    %v1596 = vld [vmem:[%s9 + $0x700] sm:$0xff]
    %v1597 = vld [vmem:[%s9 + $0x708] sm:$0xff]
    %v1598 = vld [vmem:[%s9 + $0x710] sm:$0xff]
    %v1599 = vld [vmem:[%s9 + $0x718] sm:$0xff]
    %v1600 = vld [vmem:[%s9 + $0x720] sm:$0xff]
    %v1601 = vld [vmem:[%s9 + $0x728] sm:$0xff]
    %v1602 = vld [vmem:[%s9 + $0x730] sm:$0xff]
    %v1603 = vld [vmem:[%s9 + $0x738] sm:$0xff]
    %v1604 = vld [vmem:[%s9 + $0x740] sm:$0xff]
    %v1605 = vld [vmem:[%s9 + $0x748] sm:$0xff]
    %v1606 = vld [vmem:[%s9 + $0x750] sm:$0xff]
    %v1607 = vld [vmem:[%s9 + $0x758] sm:$0xff]
    %v1608 = vld [vmem:[%s9 + $0x760] sm:$0xff]
    %v1609 = vld [vmem:[%s9 + $0x768] sm:$0xff]
    %v1610 = vld [vmem:[%s9 + $0x770] sm:$0xff]
    %v1611 = vld [vmem:[%s9 + $0x778] sm:$0xff]
    %v1612 = vld [vmem:[%s9 + $0x780] sm:$0xff]
    %v1613 = vld [vmem:[%s9 + $0x788] sm:$0xff]
    %v1614 = vld [vmem:[%s9 + $0x790] sm:$0xff]
    %v1615 = vld [vmem:[%s9 + $0x798] sm:$0xff]
    %v1616 = vld [vmem:[%s9 + $0x7a0] sm:$0xff]
    %v1617 = vld [vmem:[%s9 + $0x7a8] sm:$0xff]
    %v1618 = vld [vmem:[%s9 + $0x7b0] sm:$0xff]
    %v1619 = vld [vmem:[%s9 + $0x7b8] sm:$0xff]
    %v1620 = vld [vmem:[%s9 + $0x7c0] sm:$0xff]
    %v1621 = vld [vmem:[%s9 + $0x7c8] sm:$0xff]
    %v1622 = vld [vmem:[%s9 + $0x7d0] sm:$0xff]
    %v1623 = vld [vmem:[%s9 + $0x7d8] sm:$0xff]
    %v1624 = vld [vmem:[%s9 + $0x7e0] sm:$0xff]
    %v1625 = vld [vmem:[%s9 + $0x7e8] sm:$0xff]
    %v1626 = vld [vmem:[%s9 + $0x7f0] sm:$0xff]
    %v1627 = vld [vmem:[%s9 + $0x7f8] sm:$0xff]
    %1629 = vset.pattern.permute.xlu0 0
    %1630 = vperm.xlu0 %1629, %v1372
    %v1631 = vpop.permute.xlu0 %1630
    %1634 = vset.pattern.permute.xlu0 0
    %1635 = vperm.xlu0 %1634, %v1373
    %v1636 = vpop.permute.xlu0 %1635
    %1639 = vset.pattern.permute.xlu0 0
    %1640 = vperm.xlu0 %1639, %v1374
    %v1641 = vpop.permute.xlu0 %1640
    %1644 = vset.pattern.permute.xlu0 0
    %1645 = vperm.xlu0 %1644, %v1375
    %v1646 = vpop.permute.xlu0 %1645
    %1649 = vset.pattern.permute.xlu0 0
    %1650 = vperm.xlu0 %1649, %v1376
    %v1651 = vpop.permute.xlu0 %1650
    %1654 = vset.pattern.permute.xlu0 0
    %1655 = vperm.xlu0 %1654, %v1377
    %v1656 = vpop.permute.xlu0 %1655
    %1659 = vset.pattern.permute.xlu0 0
    %1660 = vperm.xlu0 %1659, %v1378
    %v1661 = vpop.permute.xlu0 %1660
    %1664 = vset.pattern.permute.xlu0 0
    %1665 = vperm.xlu0 %1664, %v1379
    %v1666 = vpop.permute.xlu0 %1665
    %1669 = vset.pattern.permute.xlu0 0
    %1670 = vperm.xlu0 %1669, %v1380
    %v1671 = vpop.permute.xlu0 %1670
    %1674 = vset.pattern.permute.xlu0 0
    %1675 = vperm.xlu0 %1674, %v1381
    %v1676 = vpop.permute.xlu0 %1675
    %1679 = vset.pattern.permute.xlu0 0
    %1680 = vperm.xlu0 %1679, %v1382
    %v1681 = vpop.permute.xlu0 %1680
    %1684 = vset.pattern.permute.xlu0 0
    %1685 = vperm.xlu0 %1684, %v1383
    %v1686 = vpop.permute.xlu0 %1685
    %1689 = vset.pattern.permute.xlu0 0
    %1690 = vperm.xlu0 %1689, %v1384
    %v1691 = vpop.permute.xlu0 %1690
    %1694 = vset.pattern.permute.xlu0 0
    %1695 = vperm.xlu0 %1694, %v1385
    %v1696 = vpop.permute.xlu0 %1695
    %1699 = vset.pattern.permute.xlu0 0
    %1700 = vperm.xlu0 %1699, %v1386
    %v1701 = vpop.permute.xlu0 %1700
    %1704 = vset.pattern.permute.xlu0 0
    %1705 = vperm.xlu0 %1704, %v1387
    %v1706 = vpop.permute.xlu0 %1705
    %1709 = vset.pattern.permute.xlu0 0
    %1710 = vperm.xlu0 %1709, %v1388
    %v1711 = vpop.permute.xlu0 %1710
    %1714 = vset.pattern.permute.xlu0 0
    %1715 = vperm.xlu0 %1714, %v1389
    %v1716 = vpop.permute.xlu0 %1715
    %1719 = vset.pattern.permute.xlu0 0
    %1720 = vperm.xlu0 %1719, %v1390
    %v1721 = vpop.permute.xlu0 %1720
    %1724 = vset.pattern.permute.xlu0 0
    %1725 = vperm.xlu0 %1724, %v1391
    %v1726 = vpop.permute.xlu0 %1725
    %1729 = vset.pattern.permute.xlu0 0
    %1730 = vperm.xlu0 %1729, %v1392
    %v1731 = vpop.permute.xlu0 %1730
    %1734 = vset.pattern.permute.xlu0 0
    %1735 = vperm.xlu0 %1734, %v1393
    %v1736 = vpop.permute.xlu0 %1735
    %1739 = vset.pattern.permute.xlu0 0
    %1740 = vperm.xlu0 %1739, %v1394
    %v1741 = vpop.permute.xlu0 %1740
    %1744 = vset.pattern.permute.xlu0 0
    %1745 = vperm.xlu0 %1744, %v1395
    %v1746 = vpop.permute.xlu0 %1745
    %1749 = vset.pattern.permute.xlu0 0
    %1750 = vperm.xlu0 %1749, %v1396
    %v1751 = vpop.permute.xlu0 %1750
    %1754 = vset.pattern.permute.xlu0 0
    %1755 = vperm.xlu0 %1754, %v1397
    %v1756 = vpop.permute.xlu0 %1755
    %1759 = vset.pattern.permute.xlu0 0
    %1760 = vperm.xlu0 %1759, %v1398
    %v1761 = vpop.permute.xlu0 %1760
    %1764 = vset.pattern.permute.xlu0 0
    %1765 = vperm.xlu0 %1764, %v1399
    %v1766 = vpop.permute.xlu0 %1765
    %1769 = vset.pattern.permute.xlu0 0
    %1770 = vperm.xlu0 %1769, %v1400
    %v1771 = vpop.permute.xlu0 %1770
    %1774 = vset.pattern.permute.xlu0 0
    %1775 = vperm.xlu0 %1774, %v1401
    %v1776 = vpop.permute.xlu0 %1775
    %1779 = vset.pattern.permute.xlu0 0
    %1780 = vperm.xlu0 %1779, %v1402
    %v1781 = vpop.permute.xlu0 %1780
    %1784 = vset.pattern.permute.xlu0 0
    %1785 = vperm.xlu0 %1784, %v1403
    %v1786 = vpop.permute.xlu0 %1785
    %1789 = vset.pattern.permute.xlu0 0
    %1790 = vperm.xlu0 %1789, %v1404
    %v1791 = vpop.permute.xlu0 %1790
    %1794 = vset.pattern.permute.xlu0 0
    %1795 = vperm.xlu0 %1794, %v1405
    %v1796 = vpop.permute.xlu0 %1795
    %1799 = vset.pattern.permute.xlu0 0
    %1800 = vperm.xlu0 %1799, %v1406
    %v1801 = vpop.permute.xlu0 %1800
    %1804 = vset.pattern.permute.xlu0 0
    %1805 = vperm.xlu0 %1804, %v1407
    %v1806 = vpop.permute.xlu0 %1805
    %1809 = vset.pattern.permute.xlu0 0
    %1810 = vperm.xlu0 %1809, %v1408
    %v1811 = vpop.permute.xlu0 %1810
    %1814 = vset.pattern.permute.xlu0 0
    %1815 = vperm.xlu0 %1814, %v1409
    %v1816 = vpop.permute.xlu0 %1815
    %1819 = vset.pattern.permute.xlu0 0
    %1820 = vperm.xlu0 %1819, %v1410
    %v1821 = vpop.permute.xlu0 %1820
    %1824 = vset.pattern.permute.xlu0 0
    %1825 = vperm.xlu0 %1824, %v1411
    %v1826 = vpop.permute.xlu0 %1825
    %1829 = vset.pattern.permute.xlu0 0
    %1830 = vperm.xlu0 %1829, %v1412
    %v1831 = vpop.permute.xlu0 %1830
    %1834 = vset.pattern.permute.xlu0 0
    %1835 = vperm.xlu0 %1834, %v1413
    %v1836 = vpop.permute.xlu0 %1835
    %1839 = vset.pattern.permute.xlu0 0
    %1840 = vperm.xlu0 %1839, %v1414
    %v1841 = vpop.permute.xlu0 %1840
    %1844 = vset.pattern.permute.xlu0 0
    %1845 = vperm.xlu0 %1844, %v1415
    %v1846 = vpop.permute.xlu0 %1845
    %1849 = vset.pattern.permute.xlu0 0
    %1850 = vperm.xlu0 %1849, %v1416
    %v1851 = vpop.permute.xlu0 %1850
    %1854 = vset.pattern.permute.xlu0 0
    %1855 = vperm.xlu0 %1854, %v1417
    %v1856 = vpop.permute.xlu0 %1855
    %1859 = vset.pattern.permute.xlu0 0
    %1860 = vperm.xlu0 %1859, %v1418
    %v1861 = vpop.permute.xlu0 %1860
    %1864 = vset.pattern.permute.xlu0 0
    %1865 = vperm.xlu0 %1864, %v1419
    %v1866 = vpop.permute.xlu0 %1865
    %1869 = vset.pattern.permute.xlu0 0
    %1870 = vperm.xlu0 %1869, %v1420
    %v1871 = vpop.permute.xlu0 %1870
    %1874 = vset.pattern.permute.xlu0 0
    %1875 = vperm.xlu0 %1874, %v1421
    %v1876 = vpop.permute.xlu0 %1875
    %1879 = vset.pattern.permute.xlu0 0
    %1880 = vperm.xlu0 %1879, %v1422
    %v1881 = vpop.permute.xlu0 %1880
    %1884 = vset.pattern.permute.xlu0 0
    %1885 = vperm.xlu0 %1884, %v1423
    %v1886 = vpop.permute.xlu0 %1885
    %1889 = vset.pattern.permute.xlu0 0
    %1890 = vperm.xlu0 %1889, %v1424
    %v1891 = vpop.permute.xlu0 %1890
    %1894 = vset.pattern.permute.xlu0 0
    %1895 = vperm.xlu0 %1894, %v1425
    %v1896 = vpop.permute.xlu0 %1895
    %1899 = vset.pattern.permute.xlu0 0
    %1900 = vperm.xlu0 %1899, %v1426
    %v1901 = vpop.permute.xlu0 %1900
    %1904 = vset.pattern.permute.xlu0 0
    %1905 = vperm.xlu0 %1904, %v1427
    %v1906 = vpop.permute.xlu0 %1905
    %1909 = vset.pattern.permute.xlu0 0
    %1910 = vperm.xlu0 %1909, %v1428
    %v1911 = vpop.permute.xlu0 %1910
    %1914 = vset.pattern.permute.xlu0 0
    %1915 = vperm.xlu0 %1914, %v1429
    %v1916 = vpop.permute.xlu0 %1915
    %1919 = vset.pattern.permute.xlu0 0
    %1920 = vperm.xlu0 %1919, %v1430
    %v1921 = vpop.permute.xlu0 %1920
    %1924 = vset.pattern.permute.xlu0 0
    %1925 = vperm.xlu0 %1924, %v1431
    %v1926 = vpop.permute.xlu0 %1925
    %1929 = vset.pattern.permute.xlu0 0
    %1930 = vperm.xlu0 %1929, %v1432
    %v1931 = vpop.permute.xlu0 %1930
    %1934 = vset.pattern.permute.xlu0 0
    %1935 = vperm.xlu0 %1934, %v1433
    %v1936 = vpop.permute.xlu0 %1935
    %1939 = vset.pattern.permute.xlu0 0
    %1940 = vperm.xlu0 %1939, %v1434
    %v1941 = vpop.permute.xlu0 %1940
    %1944 = vset.pattern.permute.xlu0 0
    %1945 = vperm.xlu0 %1944, %v1435
    %v1946 = vpop.permute.xlu0 %1945
    %1949 = vset.pattern.permute.xlu0 0
    %1950 = vperm.xlu0 %1949, %v1436
    %v1951 = vpop.permute.xlu0 %1950
    %1954 = vset.pattern.permute.xlu0 0
    %1955 = vperm.xlu0 %1954, %v1437
    %v1956 = vpop.permute.xlu0 %1955
    %1959 = vset.pattern.permute.xlu0 0
    %1960 = vperm.xlu0 %1959, %v1438
    %v1961 = vpop.permute.xlu0 %1960
    %1964 = vset.pattern.permute.xlu0 0
    %1965 = vperm.xlu0 %1964, %v1439
    %v1966 = vpop.permute.xlu0 %1965
    %1969 = vset.pattern.permute.xlu0 0
    %1970 = vperm.xlu0 %1969, %v1440
    %v1971 = vpop.permute.xlu0 %1970
    %1974 = vset.pattern.permute.xlu0 0
    %1975 = vperm.xlu0 %1974, %v1441
    %v1976 = vpop.permute.xlu0 %1975
    %1979 = vset.pattern.permute.xlu0 0
    %1980 = vperm.xlu0 %1979, %v1442
    %v1981 = vpop.permute.xlu0 %1980
    %1984 = vset.pattern.permute.xlu0 0
    %1985 = vperm.xlu0 %1984, %v1443
    %v1986 = vpop.permute.xlu0 %1985
    %1989 = vset.pattern.permute.xlu0 0
    %1990 = vperm.xlu0 %1989, %v1444
    %v1991 = vpop.permute.xlu0 %1990
    %1994 = vset.pattern.permute.xlu0 0
    %1995 = vperm.xlu0 %1994, %v1445
    %v1996 = vpop.permute.xlu0 %1995
    %1999 = vset.pattern.permute.xlu0 0
    %2000 = vperm.xlu0 %1999, %v1446
    %v2001 = vpop.permute.xlu0 %2000
    %2004 = vset.pattern.permute.xlu0 0
    %2005 = vperm.xlu0 %2004, %v1447
    %v2006 = vpop.permute.xlu0 %2005
    %2009 = vset.pattern.permute.xlu0 0
    %2010 = vperm.xlu0 %2009, %v1448
    %v2011 = vpop.permute.xlu0 %2010
    %2014 = vset.pattern.permute.xlu0 0
    %2015 = vperm.xlu0 %2014, %v1449
    %v2016 = vpop.permute.xlu0 %2015
    %2019 = vset.pattern.permute.xlu0 0
    %2020 = vperm.xlu0 %2019, %v1450
    %v2021 = vpop.permute.xlu0 %2020
    %2024 = vset.pattern.permute.xlu0 0
    %2025 = vperm.xlu0 %2024, %v1451
    %v2026 = vpop.permute.xlu0 %2025
    %2029 = vset.pattern.permute.xlu0 0
    %2030 = vperm.xlu0 %2029, %v1452
    %v2031 = vpop.permute.xlu0 %2030
    %2034 = vset.pattern.permute.xlu0 0
    %2035 = vperm.xlu0 %2034, %v1453
    %v2036 = vpop.permute.xlu0 %2035
    %2039 = vset.pattern.permute.xlu0 0
    %2040 = vperm.xlu0 %2039, %v1454
    %v2041 = vpop.permute.xlu0 %2040
    %2044 = vset.pattern.permute.xlu0 0
    %2045 = vperm.xlu0 %2044, %v1455
    %v2046 = vpop.permute.xlu0 %2045
    %2049 = vset.pattern.permute.xlu0 0
    %2050 = vperm.xlu0 %2049, %v1456
    %v2051 = vpop.permute.xlu0 %2050
    %2054 = vset.pattern.permute.xlu0 0
    %2055 = vperm.xlu0 %2054, %v1457
    %v2056 = vpop.permute.xlu0 %2055
    %2059 = vset.pattern.permute.xlu0 0
    %2060 = vperm.xlu0 %2059, %v1458
    %v2061 = vpop.permute.xlu0 %2060
    %2064 = vset.pattern.permute.xlu0 0
    %2065 = vperm.xlu0 %2064, %v1459
    %v2066 = vpop.permute.xlu0 %2065
    %2069 = vset.pattern.permute.xlu0 0
    %2070 = vperm.xlu0 %2069, %v1460
    %v2071 = vpop.permute.xlu0 %2070
    %2074 = vset.pattern.permute.xlu0 0
    %2075 = vperm.xlu0 %2074, %v1461
    %v2076 = vpop.permute.xlu0 %2075
    %2079 = vset.pattern.permute.xlu0 0
    %2080 = vperm.xlu0 %2079, %v1462
    %v2081 = vpop.permute.xlu0 %2080
    %2084 = vset.pattern.permute.xlu0 0
    %2085 = vperm.xlu0 %2084, %v1463
    %v2086 = vpop.permute.xlu0 %2085
    %2089 = vset.pattern.permute.xlu0 0
    %2090 = vperm.xlu0 %2089, %v1464
    %v2091 = vpop.permute.xlu0 %2090
    %2094 = vset.pattern.permute.xlu0 0
    %2095 = vperm.xlu0 %2094, %v1465
    %v2096 = vpop.permute.xlu0 %2095
    %2099 = vset.pattern.permute.xlu0 0
    %2100 = vperm.xlu0 %2099, %v1466
    %v2101 = vpop.permute.xlu0 %2100
    %2104 = vset.pattern.permute.xlu0 0
    %2105 = vperm.xlu0 %2104, %v1467
    %v2106 = vpop.permute.xlu0 %2105
    %2109 = vset.pattern.permute.xlu0 0
    %2110 = vperm.xlu0 %2109, %v1468
    %v2111 = vpop.permute.xlu0 %2110
    %2114 = vset.pattern.permute.xlu0 0
    %2115 = vperm.xlu0 %2114, %v1469
    %v2116 = vpop.permute.xlu0 %2115
    %2119 = vset.pattern.permute.xlu0 0
    %2120 = vperm.xlu0 %2119, %v1470
    %v2121 = vpop.permute.xlu0 %2120
    %2124 = vset.pattern.permute.xlu0 0
    %2125 = vperm.xlu0 %2124, %v1471
    %v2126 = vpop.permute.xlu0 %2125
    %2129 = vset.pattern.permute.xlu0 0
    %2130 = vperm.xlu0 %2129, %v1472
    %v2131 = vpop.permute.xlu0 %2130
    %2134 = vset.pattern.permute.xlu0 0
    %2135 = vperm.xlu0 %2134, %v1473
    %v2136 = vpop.permute.xlu0 %2135
    %2139 = vset.pattern.permute.xlu0 0
    %2140 = vperm.xlu0 %2139, %v1474
    %v2141 = vpop.permute.xlu0 %2140
    %2144 = vset.pattern.permute.xlu0 0
    %2145 = vperm.xlu0 %2144, %v1475
    %v2146 = vpop.permute.xlu0 %2145
    %2149 = vset.pattern.permute.xlu0 0
    %2150 = vperm.xlu0 %2149, %v1476
    %v2151 = vpop.permute.xlu0 %2150
    %2154 = vset.pattern.permute.xlu0 0
    %2155 = vperm.xlu0 %2154, %v1477
    %v2156 = vpop.permute.xlu0 %2155
    %2159 = vset.pattern.permute.xlu0 0
    %2160 = vperm.xlu0 %2159, %v1478
    %v2161 = vpop.permute.xlu0 %2160
    %2164 = vset.pattern.permute.xlu0 0
    %2165 = vperm.xlu0 %2164, %v1479
    %v2166 = vpop.permute.xlu0 %2165
    %2169 = vset.pattern.permute.xlu0 0
    %2170 = vperm.xlu0 %2169, %v1480
    %v2171 = vpop.permute.xlu0 %2170
    %2174 = vset.pattern.permute.xlu0 0
    %2175 = vperm.xlu0 %2174, %v1481
    %v2176 = vpop.permute.xlu0 %2175
    %2179 = vset.pattern.permute.xlu0 0
    %2180 = vperm.xlu0 %2179, %v1482
    %v2181 = vpop.permute.xlu0 %2180
    %2184 = vset.pattern.permute.xlu0 0
    %2185 = vperm.xlu0 %2184, %v1483
    %v2186 = vpop.permute.xlu0 %2185
    %2189 = vset.pattern.permute.xlu0 0
    %2190 = vperm.xlu0 %2189, %v1484
    %v2191 = vpop.permute.xlu0 %2190
    %2194 = vset.pattern.permute.xlu0 0
    %2195 = vperm.xlu0 %2194, %v1485
    %v2196 = vpop.permute.xlu0 %2195
    %2199 = vset.pattern.permute.xlu0 0
    %2200 = vperm.xlu0 %2199, %v1486
    %v2201 = vpop.permute.xlu0 %2200
    %2204 = vset.pattern.permute.xlu0 0
    %2205 = vperm.xlu0 %2204, %v1487
    %v2206 = vpop.permute.xlu0 %2205
    %2209 = vset.pattern.permute.xlu0 0
    %2210 = vperm.xlu0 %2209, %v1488
    %v2211 = vpop.permute.xlu0 %2210
    %2214 = vset.pattern.permute.xlu0 0
    %2215 = vperm.xlu0 %2214, %v1489
    %v2216 = vpop.permute.xlu0 %2215
    %2219 = vset.pattern.permute.xlu0 0
    %2220 = vperm.xlu0 %2219, %v1490
    %v2221 = vpop.permute.xlu0 %2220
    %2224 = vset.pattern.permute.xlu0 0
    %2225 = vperm.xlu0 %2224, %v1491
    %v2226 = vpop.permute.xlu0 %2225
    %2229 = vset.pattern.permute.xlu0 0
    %2230 = vperm.xlu0 %2229, %v1492
    %v2231 = vpop.permute.xlu0 %2230
    %2234 = vset.pattern.permute.xlu0 0
    %2235 = vperm.xlu0 %2234, %v1493
    %v2236 = vpop.permute.xlu0 %2235
    %2239 = vset.pattern.permute.xlu0 0
    %2240 = vperm.xlu0 %2239, %v1494
    %v2241 = vpop.permute.xlu0 %2240
    %2244 = vset.pattern.permute.xlu0 0
    %2245 = vperm.xlu0 %2244, %v1495
    %v2246 = vpop.permute.xlu0 %2245
    %2249 = vset.pattern.permute.xlu0 0
    %2250 = vperm.xlu0 %2249, %v1496
    %v2251 = vpop.permute.xlu0 %2250
    %2254 = vset.pattern.permute.xlu0 0
    %2255 = vperm.xlu0 %2254, %v1497
    %v2256 = vpop.permute.xlu0 %2255
    %2259 = vset.pattern.permute.xlu0 0
    %2260 = vperm.xlu0 %2259, %v1498
    %v2261 = vpop.permute.xlu0 %2260
    %2264 = vset.pattern.permute.xlu0 0
    %2265 = vperm.xlu0 %2264, %v1499
    %v2266 = vpop.permute.xlu0 %2265
    %2269 = vset.pattern.permute.xlu0 0
    %2270 = vperm.xlu0 %2269, %v1500
    %v2271 = vpop.permute.xlu0 %2270
    %2274 = vset.pattern.permute.xlu0 0
    %2275 = vperm.xlu0 %2274, %v1501
    %v2276 = vpop.permute.xlu0 %2275
    %2279 = vset.pattern.permute.xlu0 0
    %2280 = vperm.xlu0 %2279, %v1502
    %v2281 = vpop.permute.xlu0 %2280
    %2284 = vset.pattern.permute.xlu0 0
    %2285 = vperm.xlu0 %2284, %v1503
    %v2286 = vpop.permute.xlu0 %2285
    %2289 = vset.pattern.permute.xlu0 0
    %2290 = vperm.xlu0 %2289, %v1504
    %v2291 = vpop.permute.xlu0 %2290
    %2294 = vset.pattern.permute.xlu0 0
    %2295 = vperm.xlu0 %2294, %v1505
    %v2296 = vpop.permute.xlu0 %2295
    %2299 = vset.pattern.permute.xlu0 0
    %2300 = vperm.xlu0 %2299, %v1506
    %v2301 = vpop.permute.xlu0 %2300
    %2304 = vset.pattern.permute.xlu0 0
    %2305 = vperm.xlu0 %2304, %v1507
    %v2306 = vpop.permute.xlu0 %2305
    %2309 = vset.pattern.permute.xlu0 0
    %2310 = vperm.xlu0 %2309, %v1508
    %v2311 = vpop.permute.xlu0 %2310
    %2314 = vset.pattern.permute.xlu0 0
    %2315 = vperm.xlu0 %2314, %v1509
    %v2316 = vpop.permute.xlu0 %2315
    %2319 = vset.pattern.permute.xlu0 0
    %2320 = vperm.xlu0 %2319, %v1510
    %v2321 = vpop.permute.xlu0 %2320
    %2324 = vset.pattern.permute.xlu0 0
    %2325 = vperm.xlu0 %2324, %v1511
    %v2326 = vpop.permute.xlu0 %2325
    %2329 = vset.pattern.permute.xlu0 0
    %2330 = vperm.xlu0 %2329, %v1512
    %v2331 = vpop.permute.xlu0 %2330
    %2334 = vset.pattern.permute.xlu0 0
    %2335 = vperm.xlu0 %2334, %v1513
    %v2336 = vpop.permute.xlu0 %2335
    %2339 = vset.pattern.permute.xlu0 0
    %2340 = vperm.xlu0 %2339, %v1514
    %v2341 = vpop.permute.xlu0 %2340
    %2344 = vset.pattern.permute.xlu0 0
    %2345 = vperm.xlu0 %2344, %v1515
    %v2346 = vpop.permute.xlu0 %2345
    %2349 = vset.pattern.permute.xlu0 0
    %2350 = vperm.xlu0 %2349, %v1516
    %v2351 = vpop.permute.xlu0 %2350
    %2354 = vset.pattern.permute.xlu0 0
    %2355 = vperm.xlu0 %2354, %v1517
    %v2356 = vpop.permute.xlu0 %2355
    %2359 = vset.pattern.permute.xlu0 0
    %2360 = vperm.xlu0 %2359, %v1518
    %v2361 = vpop.permute.xlu0 %2360
    %2364 = vset.pattern.permute.xlu0 0
    %2365 = vperm.xlu0 %2364, %v1519
    %v2366 = vpop.permute.xlu0 %2365
    %2369 = vset.pattern.permute.xlu0 0
    %2370 = vperm.xlu0 %2369, %v1520
    %v2371 = vpop.permute.xlu0 %2370
    %2374 = vset.pattern.permute.xlu0 0
    %2375 = vperm.xlu0 %2374, %v1521
    %v2376 = vpop.permute.xlu0 %2375
    %2379 = vset.pattern.permute.xlu0 0
    %2380 = vperm.xlu0 %2379, %v1522
    %v2381 = vpop.permute.xlu0 %2380
    %2384 = vset.pattern.permute.xlu0 0
    %2385 = vperm.xlu0 %2384, %v1523
    %v2386 = vpop.permute.xlu0 %2385
    %2389 = vset.pattern.permute.xlu0 0
    %2390 = vperm.xlu0 %2389, %v1524
    %v2391 = vpop.permute.xlu0 %2390
    %2394 = vset.pattern.permute.xlu0 0
    %2395 = vperm.xlu0 %2394, %v1525
    %v2396 = vpop.permute.xlu0 %2395
    %2399 = vset.pattern.permute.xlu0 0
    %2400 = vperm.xlu0 %2399, %v1526
    %v2401 = vpop.permute.xlu0 %2400
    %2404 = vset.pattern.permute.xlu0 0
    %2405 = vperm.xlu0 %2404, %v1527
    %v2406 = vpop.permute.xlu0 %2405
    %2409 = vset.pattern.permute.xlu0 0
    %2410 = vperm.xlu0 %2409, %v1528
    %v2411 = vpop.permute.xlu0 %2410
    %2414 = vset.pattern.permute.xlu0 0
    %2415 = vperm.xlu0 %2414, %v1529
    %v2416 = vpop.permute.xlu0 %2415
    %2419 = vset.pattern.permute.xlu0 0
    %2420 = vperm.xlu0 %2419, %v1530
    %v2421 = vpop.permute.xlu0 %2420
    %2424 = vset.pattern.permute.xlu0 0
    %2425 = vperm.xlu0 %2424, %v1531
    %v2426 = vpop.permute.xlu0 %2425
    %2429 = vset.pattern.permute.xlu0 0
    %2430 = vperm.xlu0 %2429, %v1532
    %v2431 = vpop.permute.xlu0 %2430
    %2434 = vset.pattern.permute.xlu0 0
    %2435 = vperm.xlu0 %2434, %v1533
    %v2436 = vpop.permute.xlu0 %2435
    %2439 = vset.pattern.permute.xlu0 0
    %2440 = vperm.xlu0 %2439, %v1534
    %v2441 = vpop.permute.xlu0 %2440
    %2444 = vset.pattern.permute.xlu0 0
    %2445 = vperm.xlu0 %2444, %v1535
    %v2446 = vpop.permute.xlu0 %2445
    %2449 = vset.pattern.permute.xlu0 0
    %2450 = vperm.xlu0 %2449, %v1536
    %v2451 = vpop.permute.xlu0 %2450
    %2454 = vset.pattern.permute.xlu0 0
    %2455 = vperm.xlu0 %2454, %v1537
    %v2456 = vpop.permute.xlu0 %2455
    %2459 = vset.pattern.permute.xlu0 0
    %2460 = vperm.xlu0 %2459, %v1538
    %v2461 = vpop.permute.xlu0 %2460
    %2464 = vset.pattern.permute.xlu0 0
    %2465 = vperm.xlu0 %2464, %v1539
    %v2466 = vpop.permute.xlu0 %2465
    %2469 = vset.pattern.permute.xlu0 0
    %2470 = vperm.xlu0 %2469, %v1540
    %v2471 = vpop.permute.xlu0 %2470
    %2474 = vset.pattern.permute.xlu0 0
    %2475 = vperm.xlu0 %2474, %v1541
    %v2476 = vpop.permute.xlu0 %2475
    %2479 = vset.pattern.permute.xlu0 0
    %2480 = vperm.xlu0 %2479, %v1542
    %v2481 = vpop.permute.xlu0 %2480
    %2484 = vset.pattern.permute.xlu0 0
    %2485 = vperm.xlu0 %2484, %v1543
    %v2486 = vpop.permute.xlu0 %2485
    %2489 = vset.pattern.permute.xlu0 0
    %2490 = vperm.xlu0 %2489, %v1544
    %v2491 = vpop.permute.xlu0 %2490
    %2494 = vset.pattern.permute.xlu0 0
    %2495 = vperm.xlu0 %2494, %v1545
    %v2496 = vpop.permute.xlu0 %2495
    %2499 = vset.pattern.permute.xlu0 0
    %2500 = vperm.xlu0 %2499, %v1546
    %v2501 = vpop.permute.xlu0 %2500
    %2504 = vset.pattern.permute.xlu0 0
    %2505 = vperm.xlu0 %2504, %v1547
    %v2506 = vpop.permute.xlu0 %2505
    %2509 = vset.pattern.permute.xlu0 0
    %2510 = vperm.xlu0 %2509, %v1548
    %v2511 = vpop.permute.xlu0 %2510
    %2514 = vset.pattern.permute.xlu0 0
    %2515 = vperm.xlu0 %2514, %v1549
    %v2516 = vpop.permute.xlu0 %2515
    %2519 = vset.pattern.permute.xlu0 0
    %2520 = vperm.xlu0 %2519, %v1550
    %v2521 = vpop.permute.xlu0 %2520
    %2524 = vset.pattern.permute.xlu0 0
    %2525 = vperm.xlu0 %2524, %v1551
    %v2526 = vpop.permute.xlu0 %2525
    %2529 = vset.pattern.permute.xlu0 0
    %2530 = vperm.xlu0 %2529, %v1552
    %v2531 = vpop.permute.xlu0 %2530
    %2534 = vset.pattern.permute.xlu0 0
    %2535 = vperm.xlu0 %2534, %v1553
    %v2536 = vpop.permute.xlu0 %2535
    %2539 = vset.pattern.permute.xlu0 0
    %2540 = vperm.xlu0 %2539, %v1554
    %v2541 = vpop.permute.xlu0 %2540
    %2544 = vset.pattern.permute.xlu0 0
    %2545 = vperm.xlu0 %2544, %v1555
    %v2546 = vpop.permute.xlu0 %2545
    %2549 = vset.pattern.permute.xlu0 0
    %2550 = vperm.xlu0 %2549, %v1556
    %v2551 = vpop.permute.xlu0 %2550
    %2554 = vset.pattern.permute.xlu0 0
    %2555 = vperm.xlu0 %2554, %v1557
    %v2556 = vpop.permute.xlu0 %2555
    %2559 = vset.pattern.permute.xlu0 0
    %2560 = vperm.xlu0 %2559, %v1558
    %v2561 = vpop.permute.xlu0 %2560
    %2564 = vset.pattern.permute.xlu0 0
    %2565 = vperm.xlu0 %2564, %v1559
    %v2566 = vpop.permute.xlu0 %2565
    %2569 = vset.pattern.permute.xlu0 0
    %2570 = vperm.xlu0 %2569, %v1560
    %v2571 = vpop.permute.xlu0 %2570
    %2574 = vset.pattern.permute.xlu0 0
    %2575 = vperm.xlu0 %2574, %v1561
    %v2576 = vpop.permute.xlu0 %2575
    %2579 = vset.pattern.permute.xlu0 0
    %2580 = vperm.xlu0 %2579, %v1562
    %v2581 = vpop.permute.xlu0 %2580
    %2584 = vset.pattern.permute.xlu0 0
    %2585 = vperm.xlu0 %2584, %v1563
    %v2586 = vpop.permute.xlu0 %2585
    %2589 = vset.pattern.permute.xlu0 0
    %2590 = vperm.xlu0 %2589, %v1564
    %v2591 = vpop.permute.xlu0 %2590
    %2594 = vset.pattern.permute.xlu0 0
    %2595 = vperm.xlu0 %2594, %v1565
    %v2596 = vpop.permute.xlu0 %2595
    %2599 = vset.pattern.permute.xlu0 0
    %2600 = vperm.xlu0 %2599, %v1566
    %v2601 = vpop.permute.xlu0 %2600
    %2604 = vset.pattern.permute.xlu0 0
    %2605 = vperm.xlu0 %2604, %v1567
    %v2606 = vpop.permute.xlu0 %2605
    %2609 = vset.pattern.permute.xlu0 0
    %2610 = vperm.xlu0 %2609, %v1568
    %v2611 = vpop.permute.xlu0 %2610
    %2614 = vset.pattern.permute.xlu0 0
    %2615 = vperm.xlu0 %2614, %v1569
    %v2616 = vpop.permute.xlu0 %2615
    %2619 = vset.pattern.permute.xlu0 0
    %2620 = vperm.xlu0 %2619, %v1570
    %v2621 = vpop.permute.xlu0 %2620
    %2624 = vset.pattern.permute.xlu0 0
    %2625 = vperm.xlu0 %2624, %v1571
    %v2626 = vpop.permute.xlu0 %2625
    %2629 = vset.pattern.permute.xlu0 0
    %2630 = vperm.xlu0 %2629, %v1572
    %v2631 = vpop.permute.xlu0 %2630
    %2634 = vset.pattern.permute.xlu0 0
    %2635 = vperm.xlu0 %2634, %v1573
    %v2636 = vpop.permute.xlu0 %2635
    %2639 = vset.pattern.permute.xlu0 0
    %2640 = vperm.xlu0 %2639, %v1574
    %v2641 = vpop.permute.xlu0 %2640
    %2644 = vset.pattern.permute.xlu0 0
    %2645 = vperm.xlu0 %2644, %v1575
    %v2646 = vpop.permute.xlu0 %2645
    %2649 = vset.pattern.permute.xlu0 0
    %2650 = vperm.xlu0 %2649, %v1576
    %v2651 = vpop.permute.xlu0 %2650
    %2654 = vset.pattern.permute.xlu0 0
    %2655 = vperm.xlu0 %2654, %v1577
    %v2656 = vpop.permute.xlu0 %2655
    %2659 = vset.pattern.permute.xlu0 0
    %2660 = vperm.xlu0 %2659, %v1578
    %v2661 = vpop.permute.xlu0 %2660
    %2664 = vset.pattern.permute.xlu0 0
    %2665 = vperm.xlu0 %2664, %v1579
    %v2666 = vpop.permute.xlu0 %2665
    %2669 = vset.pattern.permute.xlu0 0
    %2670 = vperm.xlu0 %2669, %v1580
    %v2671 = vpop.permute.xlu0 %2670
    %2674 = vset.pattern.permute.xlu0 0
    %2675 = vperm.xlu0 %2674, %v1581
    %v2676 = vpop.permute.xlu0 %2675
    %2679 = vset.pattern.permute.xlu0 0
    %2680 = vperm.xlu0 %2679, %v1582
    %v2681 = vpop.permute.xlu0 %2680
    %2684 = vset.pattern.permute.xlu0 0
    %2685 = vperm.xlu0 %2684, %v1583
    %v2686 = vpop.permute.xlu0 %2685
    %2689 = vset.pattern.permute.xlu0 0
    %2690 = vperm.xlu0 %2689, %v1584
    %v2691 = vpop.permute.xlu0 %2690
    %2694 = vset.pattern.permute.xlu0 0
    %2695 = vperm.xlu0 %2694, %v1585
    %v2696 = vpop.permute.xlu0 %2695
    %2699 = vset.pattern.permute.xlu0 0
    %2700 = vperm.xlu0 %2699, %v1586
    %v2701 = vpop.permute.xlu0 %2700
    %2704 = vset.pattern.permute.xlu0 0
    %2705 = vperm.xlu0 %2704, %v1587
    %v2706 = vpop.permute.xlu0 %2705
    %2709 = vset.pattern.permute.xlu0 0
    %2710 = vperm.xlu0 %2709, %v1588
    %v2711 = vpop.permute.xlu0 %2710
    %2714 = vset.pattern.permute.xlu0 0
    %2715 = vperm.xlu0 %2714, %v1589
    %v2716 = vpop.permute.xlu0 %2715
    %2719 = vset.pattern.permute.xlu0 0
    %2720 = vperm.xlu0 %2719, %v1590
    %v2721 = vpop.permute.xlu0 %2720
    %2724 = vset.pattern.permute.xlu0 0
    %2725 = vperm.xlu0 %2724, %v1591
    %v2726 = vpop.permute.xlu0 %2725
    %2729 = vset.pattern.permute.xlu0 0
    %2730 = vperm.xlu0 %2729, %v1592
    %v2731 = vpop.permute.xlu0 %2730
    %2734 = vset.pattern.permute.xlu0 0
    %2735 = vperm.xlu0 %2734, %v1593
    %v2736 = vpop.permute.xlu0 %2735
    %2739 = vset.pattern.permute.xlu0 0
    %2740 = vperm.xlu0 %2739, %v1594
    %v2741 = vpop.permute.xlu0 %2740
    %2744 = vset.pattern.permute.xlu0 0
    %2745 = vperm.xlu0 %2744, %v1595
    %v2746 = vpop.permute.xlu0 %2745
    %2749 = vset.pattern.permute.xlu0 0
    %2750 = vperm.xlu0 %2749, %v1596
    %v2751 = vpop.permute.xlu0 %2750
    %2754 = vset.pattern.permute.xlu0 0
    %2755 = vperm.xlu0 %2754, %v1597
    %v2756 = vpop.permute.xlu0 %2755
    %2759 = vset.pattern.permute.xlu0 0
    %2760 = vperm.xlu0 %2759, %v1598
    %v2761 = vpop.permute.xlu0 %2760
    %2764 = vset.pattern.permute.xlu0 0
    %2765 = vperm.xlu0 %2764, %v1599
    %v2766 = vpop.permute.xlu0 %2765
    %2769 = vset.pattern.permute.xlu0 0
    %2770 = vperm.xlu0 %2769, %v1600
    %v2771 = vpop.permute.xlu0 %2770
    %2774 = vset.pattern.permute.xlu0 0
    %2775 = vperm.xlu0 %2774, %v1601
    %v2776 = vpop.permute.xlu0 %2775
    %2779 = vset.pattern.permute.xlu0 0
    %2780 = vperm.xlu0 %2779, %v1602
    %v2781 = vpop.permute.xlu0 %2780
    %2784 = vset.pattern.permute.xlu0 0
    %2785 = vperm.xlu0 %2784, %v1603
    %v2786 = vpop.permute.xlu0 %2785
    %2789 = vset.pattern.permute.xlu0 0
    %2790 = vperm.xlu0 %2789, %v1604
    %v2791 = vpop.permute.xlu0 %2790
    %2794 = vset.pattern.permute.xlu0 0
    %2795 = vperm.xlu0 %2794, %v1605
    %v2796 = vpop.permute.xlu0 %2795
    %2799 = vset.pattern.permute.xlu0 0
    %2800 = vperm.xlu0 %2799, %v1606
    %v2801 = vpop.permute.xlu0 %2800
    %2804 = vset.pattern.permute.xlu0 0
    %2805 = vperm.xlu0 %2804, %v1607
    %v2806 = vpop.permute.xlu0 %2805
    %2809 = vset.pattern.permute.xlu0 0
    %2810 = vperm.xlu0 %2809, %v1608
    %v2811 = vpop.permute.xlu0 %2810
    %2814 = vset.pattern.permute.xlu0 0
    %2815 = vperm.xlu0 %2814, %v1609
    %v2816 = vpop.permute.xlu0 %2815
    %2819 = vset.pattern.permute.xlu0 0
    %2820 = vperm.xlu0 %2819, %v1610
    %v2821 = vpop.permute.xlu0 %2820
    %2824 = vset.pattern.permute.xlu0 0
    %2825 = vperm.xlu0 %2824, %v1611
    %v2826 = vpop.permute.xlu0 %2825
    %2829 = vset.pattern.permute.xlu0 0
    %2830 = vperm.xlu0 %2829, %v1612
    %v2831 = vpop.permute.xlu0 %2830
    %2834 = vset.pattern.permute.xlu0 0
    %2835 = vperm.xlu0 %2834, %v1613
    %v2836 = vpop.permute.xlu0 %2835
    %2839 = vset.pattern.permute.xlu0 0
    %2840 = vperm.xlu0 %2839, %v1614
    %v2841 = vpop.permute.xlu0 %2840
    %2844 = vset.pattern.permute.xlu0 0
    %2845 = vperm.xlu0 %2844, %v1615
    %v2846 = vpop.permute.xlu0 %2845
    %2849 = vset.pattern.permute.xlu0 0
    %2850 = vperm.xlu0 %2849, %v1616
    %v2851 = vpop.permute.xlu0 %2850
    %2854 = vset.pattern.permute.xlu0 0
    %2855 = vperm.xlu0 %2854, %v1617
    %v2856 = vpop.permute.xlu0 %2855
    %2859 = vset.pattern.permute.xlu0 0
    %2860 = vperm.xlu0 %2859, %v1618
    %v2861 = vpop.permute.xlu0 %2860
    %2864 = vset.pattern.permute.xlu0 0
    %2865 = vperm.xlu0 %2864, %v1619
    %v2866 = vpop.permute.xlu0 %2865
    %2869 = vset.pattern.permute.xlu0 0
    %2870 = vperm.xlu0 %2869, %v1620
    %v2871 = vpop.permute.xlu0 %2870
    %2874 = vset.pattern.permute.xlu0 0
    %2875 = vperm.xlu0 %2874, %v1621
    %v2876 = vpop.permute.xlu0 %2875
    %2879 = vset.pattern.permute.xlu0 0
    %2880 = vperm.xlu0 %2879, %v1622
    %v2881 = vpop.permute.xlu0 %2880
    %2884 = vset.pattern.permute.xlu0 0
    %2885 = vperm.xlu0 %2884, %v1623
    %v2886 = vpop.permute.xlu0 %2885
    %2889 = vset.pattern.permute.xlu0 0
    %2890 = vperm.xlu0 %2889, %v1624
    %v2891 = vpop.permute.xlu0 %2890
    %2894 = vset.pattern.permute.xlu0 0
    %2895 = vperm.xlu0 %2894, %v1625
    %v2896 = vpop.permute.xlu0 %2895
    %2899 = vset.pattern.permute.xlu0 0
    %2900 = vperm.xlu0 %2899, %v1626
    %v2901 = vpop.permute.xlu0 %2900
    %2904 = vset.pattern.permute.xlu0 0
    %2905 = vperm.xlu0 %2904, %v1627
    %v2906 = vpop.permute.xlu0 %2905
    %v3164 = vunpack.c.l.b16 %v1112
    %v3165 = vunpack.c.l.b16 %v1113
    %v3166 = vunpack.c.l.b16 %v1114
    %v3167 = vunpack.c.l.b16 %v1115
    %v3168 = vunpack.c.l.b16 %v1116
    %v3169 = vunpack.c.l.b16 %v1117
    %v3170 = vunpack.c.l.b16 %v1118
    %v3171 = vunpack.c.l.b16 %v1119
    %v3172 = vunpack.c.l.b16 %v1120
    %v3173 = vunpack.c.l.b16 %v1121
    %v3174 = vunpack.c.l.b16 %v1122
    %v3175 = vunpack.c.l.b16 %v1123
    %v3176 = vunpack.c.l.b16 %v1124
    %v3177 = vunpack.c.l.b16 %v1125
    %v3178 = vunpack.c.l.b16 %v1126
    %v3179 = vunpack.c.l.b16 %v1127
    %v3180 = vunpack.c.l.b16 %v1128
    %v3181 = vunpack.c.l.b16 %v1129
    %v3182 = vunpack.c.l.b16 %v1130
    %v3183 = vunpack.c.l.b16 %v1131
    %v3184 = vunpack.c.l.b16 %v1132
    %v3185 = vunpack.c.l.b16 %v1133
    %v3186 = vunpack.c.l.b16 %v1134
    %v3187 = vunpack.c.l.b16 %v1135
    %v3188 = vunpack.c.l.b16 %v1136
    %v3189 = vunpack.c.l.b16 %v1137
    %v3190 = vunpack.c.l.b16 %v1138
    %v3191 = vunpack.c.l.b16 %v1139
    %v3192 = vunpack.c.l.b16 %v1140
    %v3193 = vunpack.c.l.b16 %v1141
    %v3194 = vunpack.c.l.b16 %v1142
    %v3195 = vunpack.c.l.b16 %v1143
    %v3196 = vunpack.c.l.b16 %v1144
    %v3197 = vunpack.c.l.b16 %v1145
    %v3198 = vunpack.c.l.b16 %v1146
    %v3199 = vunpack.c.l.b16 %v1147
    %v3200 = vunpack.c.l.b16 %v1148
    %v3201 = vunpack.c.l.b16 %v1149
    %v3202 = vunpack.c.l.b16 %v1150
    %v3203 = vunpack.c.l.b16 %v1151
    %v3204 = vunpack.c.l.b16 %v1152
    %v3205 = vunpack.c.l.b16 %v1153
    %v3206 = vunpack.c.l.b16 %v1154
    %v3207 = vunpack.c.l.b16 %v1155
    %v3208 = vunpack.c.l.b16 %v1156
    %v3209 = vunpack.c.l.b16 %v1157
    %v3210 = vunpack.c.l.b16 %v1158
    %v3211 = vunpack.c.l.b16 %v1159
    %v3212 = vunpack.c.l.b16 %v1160
    %v3213 = vunpack.c.l.b16 %v1161
    %v3214 = vunpack.c.l.b16 %v1162
    %v3215 = vunpack.c.l.b16 %v1163
    %v3216 = vunpack.c.l.b16 %v1164
    %v3217 = vunpack.c.l.b16 %v1165
    %v3218 = vunpack.c.l.b16 %v1166
    %v3219 = vunpack.c.l.b16 %v1167
    %v3220 = vunpack.c.l.b16 %v1168
    %v3221 = vunpack.c.l.b16 %v1169
    %v3222 = vunpack.c.l.b16 %v1170
    %v3223 = vunpack.c.l.b16 %v1171
    %v3224 = vunpack.c.l.b16 %v1172
    %v3225 = vunpack.c.l.b16 %v1173
    %v3226 = vunpack.c.l.b16 %v1174
    %v3227 = vunpack.c.l.b16 %v1175
    %v3228 = vunpack.c.l.b16 %v1176
    %v3229 = vunpack.c.l.b16 %v1177
    %v3230 = vunpack.c.l.b16 %v1178
    %v3231 = vunpack.c.l.b16 %v1179
    %v3232 = vunpack.c.l.b16 %v1180
    %v3233 = vunpack.c.l.b16 %v1181
    %v3234 = vunpack.c.l.b16 %v1182
    %v3235 = vunpack.c.l.b16 %v1183
    %v3236 = vunpack.c.l.b16 %v1184
    %v3237 = vunpack.c.l.b16 %v1185
    %v3238 = vunpack.c.l.b16 %v1186
    %v3239 = vunpack.c.l.b16 %v1187
    %v3240 = vunpack.c.l.b16 %v1188
    %v3241 = vunpack.c.l.b16 %v1189
    %v3242 = vunpack.c.l.b16 %v1190
    %v3243 = vunpack.c.l.b16 %v1191
    %v3244 = vunpack.c.l.b16 %v1192
    %v3245 = vunpack.c.l.b16 %v1193
    %v3246 = vunpack.c.l.b16 %v1194
    %v3247 = vunpack.c.l.b16 %v1195
    %v3248 = vunpack.c.l.b16 %v1196
    %v3249 = vunpack.c.l.b16 %v1197
    %v3250 = vunpack.c.l.b16 %v1198
    %v3251 = vunpack.c.l.b16 %v1199
    %v3252 = vunpack.c.l.b16 %v1200
    %v3253 = vunpack.c.l.b16 %v1201
    %v3254 = vunpack.c.l.b16 %v1202
    %v3255 = vunpack.c.l.b16 %v1203
    %v3256 = vunpack.c.l.b16 %v1204
    %v3257 = vunpack.c.l.b16 %v1205
    %v3258 = vunpack.c.l.b16 %v1206
    %v3259 = vunpack.c.l.b16 %v1207
    %v3260 = vunpack.c.l.b16 %v1208
    %v3261 = vunpack.c.l.b16 %v1209
    %v3262 = vunpack.c.l.b16 %v1210
    %v3263 = vunpack.c.l.b16 %v1211
    %v3264 = vunpack.c.l.b16 %v1212
    %v3265 = vunpack.c.l.b16 %v1213
    %v3266 = vunpack.c.l.b16 %v1214
    %v3267 = vunpack.c.l.b16 %v1215
    %v3268 = vunpack.c.l.b16 %v1216
    %v3269 = vunpack.c.l.b16 %v1217
    %v3270 = vunpack.c.l.b16 %v1218
    %v3271 = vunpack.c.l.b16 %v1219
    %v3272 = vunpack.c.l.b16 %v1220
    %v3273 = vunpack.c.l.b16 %v1221
    %v3274 = vunpack.c.l.b16 %v1222
    %v3275 = vunpack.c.l.b16 %v1223
    %v3276 = vunpack.c.l.b16 %v1224
    %v3277 = vunpack.c.l.b16 %v1225
    %v3278 = vunpack.c.l.b16 %v1226
    %v3279 = vunpack.c.l.b16 %v1227
    %v3280 = vunpack.c.l.b16 %v1228
    %v3281 = vunpack.c.l.b16 %v1229
    %v3282 = vunpack.c.l.b16 %v1230
    %v3283 = vunpack.c.l.b16 %v1231
    %v3284 = vunpack.c.l.b16 %v1232
    %v3285 = vunpack.c.l.b16 %v1233
    %v3286 = vunpack.c.l.b16 %v1234
    %v3287 = vunpack.c.l.b16 %v1235
    %v3288 = vunpack.c.l.b16 %v1236
    %v3289 = vunpack.c.l.b16 %v1237
    %v3290 = vunpack.c.l.b16 %v1238
    %v3291 = vunpack.c.l.b16 %v1239
    %v3292 = vunpack.c.l.b16 %v1240
    %v3293 = vunpack.c.l.b16 %v1241
    %v3294 = vunpack.c.l.b16 %v1242
    %v3295 = vunpack.c.l.b16 %v1243
    %v3296 = vunpack.c.l.b16 %v1244
    %v3297 = vunpack.c.l.b16 %v1245
    %v3298 = vunpack.c.l.b16 %v1246
    %v3299 = vunpack.c.l.b16 %v1247
    %v3300 = vunpack.c.l.b16 %v1248
    %v3301 = vunpack.c.l.b16 %v1249
    %v3302 = vunpack.c.l.b16 %v1250
    %v3303 = vunpack.c.l.b16 %v1251
    %v3304 = vunpack.c.l.b16 %v1252
    %v3305 = vunpack.c.l.b16 %v1253
    %v3306 = vunpack.c.l.b16 %v1254
    %v3307 = vunpack.c.l.b16 %v1255
    %v3308 = vunpack.c.l.b16 %v1256
    %v3309 = vunpack.c.l.b16 %v1257
    %v3310 = vunpack.c.l.b16 %v1258
    %v3311 = vunpack.c.l.b16 %v1259
    %v3312 = vunpack.c.l.b16 %v1260
    %v3313 = vunpack.c.l.b16 %v1261
    %v3314 = vunpack.c.l.b16 %v1262
    %v3315 = vunpack.c.l.b16 %v1263
    %v3316 = vunpack.c.l.b16 %v1264
    %v3317 = vunpack.c.l.b16 %v1265
    %v3318 = vunpack.c.l.b16 %v1266
    %v3319 = vunpack.c.l.b16 %v1267
    %v3320 = vunpack.c.l.b16 %v1268
    %v3321 = vunpack.c.l.b16 %v1269
    %v3322 = vunpack.c.l.b16 %v1270
    %v3323 = vunpack.c.l.b16 %v1271
    %v3324 = vunpack.c.l.b16 %v1272
    %v3325 = vunpack.c.l.b16 %v1273
    %v3326 = vunpack.c.l.b16 %v1274
    %v3327 = vunpack.c.l.b16 %v1275
    %v3328 = vunpack.c.l.b16 %v1276
    %v3329 = vunpack.c.l.b16 %v1277
    %v3330 = vunpack.c.l.b16 %v1278
    %v3331 = vunpack.c.l.b16 %v1279
    %v3332 = vunpack.c.l.b16 %v1280
    %v3333 = vunpack.c.l.b16 %v1281
    %v3334 = vunpack.c.l.b16 %v1282
    %v3335 = vunpack.c.l.b16 %v1283
    %v3336 = vunpack.c.l.b16 %v1284
    %v3337 = vunpack.c.l.b16 %v1285
    %v3338 = vunpack.c.l.b16 %v1286
    %v3339 = vunpack.c.l.b16 %v1287
    %v3340 = vunpack.c.l.b16 %v1288
    %v3341 = vunpack.c.l.b16 %v1289
    %v3342 = vunpack.c.l.b16 %v1290
    %v3343 = vunpack.c.l.b16 %v1291
    %v3344 = vunpack.c.l.b16 %v1292
    %v3345 = vunpack.c.l.b16 %v1293
    %v3346 = vunpack.c.l.b16 %v1294
    %v3347 = vunpack.c.l.b16 %v1295
    %v3348 = vunpack.c.l.b16 %v1296
    %v3349 = vunpack.c.l.b16 %v1297
    %v3350 = vunpack.c.l.b16 %v1298
    %v3351 = vunpack.c.l.b16 %v1299
    %v3352 = vunpack.c.l.b16 %v1300
    %v3353 = vunpack.c.l.b16 %v1301
    %v3354 = vunpack.c.l.b16 %v1302
    %v3355 = vunpack.c.l.b16 %v1303
    %v3356 = vunpack.c.l.b16 %v1304
    %v3357 = vunpack.c.l.b16 %v1305
    %v3358 = vunpack.c.l.b16 %v1306
    %v3359 = vunpack.c.l.b16 %v1307
    %v3360 = vunpack.c.l.b16 %v1308
    %v3361 = vunpack.c.l.b16 %v1309
    %v3362 = vunpack.c.l.b16 %v1310
    %v3363 = vunpack.c.l.b16 %v1311
    %v3364 = vunpack.c.l.b16 %v1312
    %v3365 = vunpack.c.l.b16 %v1313
    %v3366 = vunpack.c.l.b16 %v1314
    %v3367 = vunpack.c.l.b16 %v1315
    %v3368 = vunpack.c.l.b16 %v1316
    %v3369 = vunpack.c.l.b16 %v1317
    %v3370 = vunpack.c.l.b16 %v1318
    %v3371 = vunpack.c.l.b16 %v1319
    %v3372 = vunpack.c.l.b16 %v1320
    %v3373 = vunpack.c.l.b16 %v1321
    %v3374 = vunpack.c.l.b16 %v1322
    %v3375 = vunpack.c.l.b16 %v1323
    %v3376 = vunpack.c.l.b16 %v1324
    %v3377 = vunpack.c.l.b16 %v1325
    %v3378 = vunpack.c.l.b16 %v1326
    %v3379 = vunpack.c.l.b16 %v1327
    %v3380 = vunpack.c.l.b16 %v1328
    %v3381 = vunpack.c.l.b16 %v1329
    %v3382 = vunpack.c.l.b16 %v1330
    %v3383 = vunpack.c.l.b16 %v1331
    %v3384 = vunpack.c.l.b16 %v1332
    %v3385 = vunpack.c.l.b16 %v1333
    %v3386 = vunpack.c.l.b16 %v1334
    %v3387 = vunpack.c.l.b16 %v1335
    %v3388 = vunpack.c.l.b16 %v1336
    %v3389 = vunpack.c.l.b16 %v1337
    %v3390 = vunpack.c.l.b16 %v1338
    %v3391 = vunpack.c.l.b16 %v1339
    %v3392 = vunpack.c.l.b16 %v1340
    %v3393 = vunpack.c.l.b16 %v1341
    %v3394 = vunpack.c.l.b16 %v1342
    %v3395 = vunpack.c.l.b16 %v1343
    %v3396 = vunpack.c.l.b16 %v1344
    %v3397 = vunpack.c.l.b16 %v1345
    %v3398 = vunpack.c.l.b16 %v1346
    %v3399 = vunpack.c.l.b16 %v1347
    %v3400 = vunpack.c.l.b16 %v1348
    %v3401 = vunpack.c.l.b16 %v1349
    %v3402 = vunpack.c.l.b16 %v1350
    %v3403 = vunpack.c.l.b16 %v1351
    %v3404 = vunpack.c.l.b16 %v1352
    %v3405 = vunpack.c.l.b16 %v1353
    %v3406 = vunpack.c.l.b16 %v1354
    %v3407 = vunpack.c.l.b16 %v1355
    %v3408 = vunpack.c.l.b16 %v1356
    %v3409 = vunpack.c.l.b16 %v1357
    %v3410 = vunpack.c.l.b16 %v1358
    %v3411 = vunpack.c.l.b16 %v1359
    %v3412 = vunpack.c.l.b16 %v1360
    %v3413 = vunpack.c.l.b16 %v1361
    %v3414 = vunpack.c.l.b16 %v1362
    %v3415 = vunpack.c.l.b16 %v1363
    %v3416 = vunpack.c.l.b16 %v1364
    %v3417 = vunpack.c.l.b16 %v1365
    %v3418 = vunpack.c.l.b16 %v1366
    %v3419 = vunpack.c.l.b16 %v1367
    %v3420 = vpack.c.b16 %v3165, %v3164
    %v3421 = vpack.c.b16 %v3167, %v3166
    %v3422 = vpack.c.b16 %v3169, %v3168
    %v3423 = vpack.c.b16 %v3171, %v3170
    %v3424 = vpack.c.b16 %v3173, %v3172
    %v3425 = vpack.c.b16 %v3175, %v3174
    %v3426 = vpack.c.b16 %v3177, %v3176
    %v3427 = vpack.c.b16 %v3179, %v3178
    %v3428 = vpack.c.b16 %v3181, %v3180
    %v3429 = vpack.c.b16 %v3183, %v3182
    %v3430 = vpack.c.b16 %v3185, %v3184
    %v3431 = vpack.c.b16 %v3187, %v3186
    %v3432 = vpack.c.b16 %v3189, %v3188
    %v3433 = vpack.c.b16 %v3191, %v3190
    %v3434 = vpack.c.b16 %v3193, %v3192
    %v3435 = vpack.c.b16 %v3195, %v3194
    %v3436 = vpack.c.b16 %v3197, %v3196
    %v3437 = vpack.c.b16 %v3199, %v3198
    %v3438 = vpack.c.b16 %v3201, %v3200
    %v3439 = vpack.c.b16 %v3203, %v3202
    %v3440 = vpack.c.b16 %v3205, %v3204
    %v3441 = vpack.c.b16 %v3207, %v3206
    %v3442 = vpack.c.b16 %v3209, %v3208
    %v3443 = vpack.c.b16 %v3211, %v3210
    %v3444 = vpack.c.b16 %v3213, %v3212
    %v3445 = vpack.c.b16 %v3215, %v3214
    %v3446 = vpack.c.b16 %v3217, %v3216
    %v3447 = vpack.c.b16 %v3219, %v3218
    %v3448 = vpack.c.b16 %v3221, %v3220
    %v3449 = vpack.c.b16 %v3223, %v3222
    %v3450 = vpack.c.b16 %v3225, %v3224
    %v3451 = vpack.c.b16 %v3227, %v3226
    %v3452 = vpack.c.b16 %v3229, %v3228
    %v3453 = vpack.c.b16 %v3231, %v3230
    %v3454 = vpack.c.b16 %v3233, %v3232
    %v3455 = vpack.c.b16 %v3235, %v3234
    %v3456 = vpack.c.b16 %v3237, %v3236
    %v3457 = vpack.c.b16 %v3239, %v3238
    %v3458 = vpack.c.b16 %v3241, %v3240
    %v3459 = vpack.c.b16 %v3243, %v3242
    %v3460 = vpack.c.b16 %v3245, %v3244
    %v3461 = vpack.c.b16 %v3247, %v3246
    %v3462 = vpack.c.b16 %v3249, %v3248
    %v3463 = vpack.c.b16 %v3251, %v3250
    %v3464 = vpack.c.b16 %v3253, %v3252
    %v3465 = vpack.c.b16 %v3255, %v3254
    %v3466 = vpack.c.b16 %v3257, %v3256
    %v3467 = vpack.c.b16 %v3259, %v3258
    %v3468 = vpack.c.b16 %v3261, %v3260
    %v3469 = vpack.c.b16 %v3263, %v3262
    %v3470 = vpack.c.b16 %v3265, %v3264
    %v3471 = vpack.c.b16 %v3267, %v3266
    %v3472 = vpack.c.b16 %v3269, %v3268
    %v3473 = vpack.c.b16 %v3271, %v3270
    %v3474 = vpack.c.b16 %v3273, %v3272
    %v3475 = vpack.c.b16 %v3275, %v3274
    %v3476 = vpack.c.b16 %v3277, %v3276
    %v3477 = vpack.c.b16 %v3279, %v3278
    %v3478 = vpack.c.b16 %v3281, %v3280
    %v3479 = vpack.c.b16 %v3283, %v3282
    %v3480 = vpack.c.b16 %v3285, %v3284
    %v3481 = vpack.c.b16 %v3287, %v3286
    %v3482 = vpack.c.b16 %v3289, %v3288
    %v3483 = vpack.c.b16 %v3291, %v3290
    %v3484 = vpack.c.b16 %v3293, %v3292
    %v3485 = vpack.c.b16 %v3295, %v3294
    %v3486 = vpack.c.b16 %v3297, %v3296
    %v3487 = vpack.c.b16 %v3299, %v3298
    %v3488 = vpack.c.b16 %v3301, %v3300
    %v3489 = vpack.c.b16 %v3303, %v3302
    %v3490 = vpack.c.b16 %v3305, %v3304
    %v3491 = vpack.c.b16 %v3307, %v3306
    %v3492 = vpack.c.b16 %v3309, %v3308
    %v3493 = vpack.c.b16 %v3311, %v3310
    %v3494 = vpack.c.b16 %v3313, %v3312
    %v3495 = vpack.c.b16 %v3315, %v3314
    %v3496 = vpack.c.b16 %v3317, %v3316
    %v3497 = vpack.c.b16 %v3319, %v3318
    %v3498 = vpack.c.b16 %v3321, %v3320
    %v3499 = vpack.c.b16 %v3323, %v3322
    %v3500 = vpack.c.b16 %v3325, %v3324
    %v3501 = vpack.c.b16 %v3327, %v3326
    %v3502 = vpack.c.b16 %v3329, %v3328
    %v3503 = vpack.c.b16 %v3331, %v3330
    %v3504 = vpack.c.b16 %v3333, %v3332
    %v3505 = vpack.c.b16 %v3335, %v3334
    %v3506 = vpack.c.b16 %v3337, %v3336
    %v3507 = vpack.c.b16 %v3339, %v3338
    %v3508 = vpack.c.b16 %v3341, %v3340
    %v3509 = vpack.c.b16 %v3343, %v3342
    %v3510 = vpack.c.b16 %v3345, %v3344
    %v3511 = vpack.c.b16 %v3347, %v3346
    %v3512 = vpack.c.b16 %v3349, %v3348
    %v3513 = vpack.c.b16 %v3351, %v3350
    %v3514 = vpack.c.b16 %v3353, %v3352
    %v3515 = vpack.c.b16 %v3355, %v3354
    %v3516 = vpack.c.b16 %v3357, %v3356
    %v3517 = vpack.c.b16 %v3359, %v3358
    %v3518 = vpack.c.b16 %v3361, %v3360
    %v3519 = vpack.c.b16 %v3363, %v3362
    %v3520 = vpack.c.b16 %v3365, %v3364
    %v3521 = vpack.c.b16 %v3367, %v3366
    %v3522 = vpack.c.b16 %v3369, %v3368
    %v3523 = vpack.c.b16 %v3371, %v3370
    %v3524 = vpack.c.b16 %v3373, %v3372
    %v3525 = vpack.c.b16 %v3375, %v3374
    %v3526 = vpack.c.b16 %v3377, %v3376
    %v3527 = vpack.c.b16 %v3379, %v3378
    %v3528 = vpack.c.b16 %v3381, %v3380
    %v3529 = vpack.c.b16 %v3383, %v3382
    %v3530 = vpack.c.b16 %v3385, %v3384
    %v3531 = vpack.c.b16 %v3387, %v3386
    %v3532 = vpack.c.b16 %v3389, %v3388
    %v3533 = vpack.c.b16 %v3391, %v3390
    %v3534 = vpack.c.b16 %v3393, %v3392
    %v3535 = vpack.c.b16 %v3395, %v3394
    %v3536 = vpack.c.b16 %v3397, %v3396
    %v3537 = vpack.c.b16 %v3399, %v3398
    %v3538 = vpack.c.b16 %v3401, %v3400
    %v3539 = vpack.c.b16 %v3403, %v3402
    %v3540 = vpack.c.b16 %v3405, %v3404
    %v3541 = vpack.c.b16 %v3407, %v3406
    %v3542 = vpack.c.b16 %v3409, %v3408
    %v3543 = vpack.c.b16 %v3411, %v3410
    %v3544 = vpack.c.b16 %v3413, %v3412
    %v3545 = vpack.c.b16 %v3415, %v3414
    %v3546 = vpack.c.b16 %v3417, %v3416
    %v3547 = vpack.c.b16 %v3419, %v3418
    %v3549 = vsel %vm117, %v3420, 0
    %v3552 = vsel %vm117, %v3421, 0
    %v3555 = vsel %vm117, %v3422, 0
    %v3558 = vsel %vm117, %v3423, 0
    %v3561 = vsel %vm117, %v3424, 0
    %v3564 = vsel %vm117, %v3425, 0
    %v3567 = vsel %vm117, %v3426, 0
    %v3570 = vsel %vm117, %v3427, 0
    %v3573 = vsel %vm117, %v3428, 0
    %v3576 = vsel %vm117, %v3429, 0
    %v3579 = vsel %vm117, %v3430, 0
    %v3582 = vsel %vm117, %v3431, 0
    %v3585 = vsel %vm117, %v3432, 0
    %v3588 = vsel %vm117, %v3433, 0
    %v3591 = vsel %vm117, %v3434, 0
    %v3594 = vsel %vm117, %v3435, 0
    %v3597 = vsel %vm117, %v3436, 0
    %v3600 = vsel %vm117, %v3437, 0
    %v3603 = vsel %vm117, %v3438, 0
    %v3606 = vsel %vm117, %v3439, 0
    %v3609 = vsel %vm117, %v3440, 0
    %v3612 = vsel %vm117, %v3441, 0
    %v3615 = vsel %vm117, %v3442, 0
    %v3618 = vsel %vm117, %v3443, 0
    %v3621 = vsel %vm117, %v3444, 0
    %v3624 = vsel %vm117, %v3445, 0
    %v3627 = vsel %vm117, %v3446, 0
    %v3630 = vsel %vm117, %v3447, 0
    %v3633 = vsel %vm117, %v3448, 0
    %v3636 = vsel %vm117, %v3449, 0
    %v3639 = vsel %vm117, %v3450, 0
    %v3642 = vsel %vm117, %v3451, 0
    %v3645 = vsel %vm117, %v3452, 0
    %v3648 = vsel %vm117, %v3453, 0
    %v3651 = vsel %vm117, %v3454, 0
    %v3654 = vsel %vm117, %v3455, 0
    %v3657 = vsel %vm117, %v3456, 0
    %v3660 = vsel %vm117, %v3457, 0
    %v3663 = vsel %vm117, %v3458, 0
    %v3666 = vsel %vm117, %v3459, 0
    %v3669 = vsel %vm117, %v3460, 0
    %v3672 = vsel %vm117, %v3461, 0
    %v3675 = vsel %vm117, %v3462, 0
    %v3678 = vsel %vm117, %v3463, 0
    %v3681 = vsel %vm117, %v3464, 0
    %v3684 = vsel %vm117, %v3465, 0
    %v3687 = vsel %vm117, %v3466, 0
    %v3690 = vsel %vm117, %v3467, 0
    %v3693 = vsel %vm117, %v3468, 0
    %v3696 = vsel %vm117, %v3469, 0
    %v3699 = vsel %vm117, %v3470, 0
    %v3702 = vsel %vm117, %v3471, 0
    %v3705 = vsel %vm117, %v3472, 0
    %v3708 = vsel %vm117, %v3473, 0
    %v3711 = vsel %vm117, %v3474, 0
    %v3714 = vsel %vm117, %v3475, 0
    %v3717 = vsel %vm117, %v3476, 0
    %v3720 = vsel %vm117, %v3477, 0
    %v3723 = vsel %vm117, %v3478, 0
    %v3726 = vsel %vm117, %v3479, 0
    %v3729 = vsel %vm117, %v3480, 0
    %v3732 = vsel %vm117, %v3481, 0
    %v3735 = vsel %vm117, %v3482, 0
    %v3738 = vsel %vm117, %v3483, 0
    %v3741 = vsel %vm117, %v3484, 0
    %v3744 = vsel %vm117, %v3485, 0
    %v3747 = vsel %vm117, %v3486, 0
    %v3750 = vsel %vm117, %v3487, 0
    %v3753 = vsel %vm117, %v3488, 0
    %v3756 = vsel %vm117, %v3489, 0
    %v3759 = vsel %vm117, %v3490, 0
    %v3762 = vsel %vm117, %v3491, 0
    %v3765 = vsel %vm117, %v3492, 0
    %v3768 = vsel %vm117, %v3493, 0
    %v3771 = vsel %vm117, %v3494, 0
    %v3774 = vsel %vm117, %v3495, 0
    %v3777 = vsel %vm117, %v3496, 0
    %v3780 = vsel %vm117, %v3497, 0
    %v3783 = vsel %vm117, %v3498, 0
    %v3786 = vsel %vm117, %v3499, 0
    %v3789 = vsel %vm117, %v3500, 0
    %v3792 = vsel %vm117, %v3501, 0
    %v3795 = vsel %vm117, %v3502, 0
    %v3798 = vsel %vm117, %v3503, 0
    %v3801 = vsel %vm117, %v3504, 0
    %v3804 = vsel %vm117, %v3505, 0
    %v3807 = vsel %vm117, %v3506, 0
    %v3810 = vsel %vm117, %v3507, 0
    %v3813 = vsel %vm117, %v3508, 0
    %v3816 = vsel %vm117, %v3509, 0
    %v3819 = vsel %vm117, %v3510, 0
    %v3822 = vsel %vm117, %v3511, 0
    %v3825 = vsel %vm117, %v3512, 0
    %v3828 = vsel %vm117, %v3513, 0
    %v3831 = vsel %vm117, %v3514, 0
    %v3834 = vsel %vm117, %v3515, 0
    %v3837 = vsel %vm117, %v3516, 0
    %v3840 = vsel %vm117, %v3517, 0
    %v3843 = vsel %vm117, %v3518, 0
    %v3846 = vsel %vm117, %v3519, 0
    %v3849 = vsel %vm117, %v3520, 0
    %v3852 = vsel %vm117, %v3521, 0
    %v3855 = vsel %vm117, %v3522, 0
    %v3858 = vsel %vm117, %v3523, 0
    %v3861 = vsel %vm117, %v3524, 0
    %v3864 = vsel %vm117, %v3525, 0
    %v3867 = vsel %vm117, %v3526, 0
    %v3870 = vsel %vm117, %v3527, 0
    %v3873 = vsel %vm117, %v3528, 0
    %v3876 = vsel %vm117, %v3529, 0
    %v3879 = vsel %vm117, %v3530, 0
    %v3882 = vsel %vm117, %v3531, 0
    %v3885 = vsel %vm117, %v3532, 0
    %v3888 = vsel %vm117, %v3533, 0
    %v3891 = vsel %vm117, %v3534, 0
    %v3894 = vsel %vm117, %v3535, 0
    %v3897 = vsel %vm117, %v3536, 0
    %v3900 = vsel %vm117, %v3537, 0
    %v3903 = vsel %vm117, %v3538, 0
    %v3906 = vsel %vm117, %v3539, 0
    %v3909 = vsel %vm117, %v3540, 0
    %v3912 = vsel %vm117, %v3541, 0
    %v3915 = vsel %vm117, %v3542, 0
    %v3918 = vsel %vm117, %v3543, 0
    %v3921 = vsel %vm117, %v3544, 0
    %v3924 = vsel %vm117, %v3545, 0
    %v3927 = vsel %vm117, %v3546, 0
    %v3930 = vsel %vm117, %v3547, 0
    %3932 = vmatpush.bf16.msra.mxu0 0
    %3933 = vmatpush.bf16.msra.mxu0 0
    %3934 = vmatpush.bf16.msra.mxu0 0
    %3935 = vmatpush.bf16.msra.mxu0 0
    %3936 = vmatpush.bf16.msra.mxu0 0
    %3937 = vmatpush.bf16.msra.mxu0 0
    %3938 = vmatpush.bf16.msra.mxu0 0
    %3939 = vmatpush.bf16.msra.mxu0 %v1368
    %3940 = vmatmul.bf16.gmra.mxu0 %v3549
    %v3941 = vpop.f32.mrf.mxu0
    %v3942 = vadd.f32 %v1631, %v3941
    %v3943 = vpop.f32.mrf.mxu0
    %v3944 = vadd.f32 %v1636, %v3943
    %3945 = vmatmul.bf16.gmra.mxu0 %v3552
    %v3946 = vpop.f32.mrf.mxu0
    %v3947 = vadd.f32 %v1641, %v3946
    %v3948 = vpop.f32.mrf.mxu0
    %v3949 = vadd.f32 %v1646, %v3948
    %3950 = vmatmul.bf16.gmra.mxu0 %v3555
    %v3951 = vpop.f32.mrf.mxu0
    %v3952 = vadd.f32 %v1651, %v3951
    %v3953 = vpop.f32.mrf.mxu0
    %v3954 = vadd.f32 %v1656, %v3953
    %3955 = vmatmul.bf16.gmra.mxu0 %v3558
    %v3956 = vpop.f32.mrf.mxu0
    %v3957 = vadd.f32 %v1661, %v3956
    %v3958 = vpop.f32.mrf.mxu0
    %v3959 = vadd.f32 %v1666, %v3958
    %3960 = vmatmul.bf16.gmra.mxu0 %v3561
    %v3961 = vpop.f32.mrf.mxu0
    %v3962 = vadd.f32 %v1671, %v3961
    %v3963 = vpop.f32.mrf.mxu0
    %v3964 = vadd.f32 %v1676, %v3963
    %3965 = vmatmul.bf16.gmra.mxu0 %v3564
    %v3966 = vpop.f32.mrf.mxu0
    %v3967 = vadd.f32 %v1681, %v3966
    %v3968 = vpop.f32.mrf.mxu0
    %v3969 = vadd.f32 %v1686, %v3968
    %3970 = vmatmul.bf16.gmra.mxu0 %v3567
    %v3971 = vpop.f32.mrf.mxu0
    %v3972 = vadd.f32 %v1691, %v3971
    %v3973 = vpop.f32.mrf.mxu0
    %v3974 = vadd.f32 %v1696, %v3973
    %3975 = vmatmul.bf16.gmra.mxu0 %v3570
    %v3976 = vpop.f32.mrf.mxu0
    %v3977 = vadd.f32 %v1701, %v3976
    %v3978 = vpop.f32.mrf.mxu0
    %v3979 = vadd.f32 %v1706, %v3978
    %3980 = vmatmul.bf16.gmra.mxu0 %v3573
    %v3981 = vpop.f32.mrf.mxu0
    %v3982 = vadd.f32 %v1711, %v3981
    %v3983 = vpop.f32.mrf.mxu0
    %v3984 = vadd.f32 %v1716, %v3983
    %3985 = vmatmul.bf16.gmra.mxu0 %v3576
    %v3986 = vpop.f32.mrf.mxu0
    %v3987 = vadd.f32 %v1721, %v3986
    %v3988 = vpop.f32.mrf.mxu0
    %v3989 = vadd.f32 %v1726, %v3988
    %3990 = vmatmul.bf16.gmra.mxu0 %v3579
    %v3991 = vpop.f32.mrf.mxu0
    %v3992 = vadd.f32 %v1731, %v3991
    %v3993 = vpop.f32.mrf.mxu0
    %v3994 = vadd.f32 %v1736, %v3993
    %3995 = vmatmul.bf16.gmra.mxu0 %v3582
    %v3996 = vpop.f32.mrf.mxu0
    %v3997 = vadd.f32 %v1741, %v3996
    %v3998 = vpop.f32.mrf.mxu0
    %v3999 = vadd.f32 %v1746, %v3998
    %4000 = vmatmul.bf16.gmra.mxu0 %v3585
    %v4001 = vpop.f32.mrf.mxu0
    %v4002 = vadd.f32 %v1751, %v4001
    %v4003 = vpop.f32.mrf.mxu0
    %v4004 = vadd.f32 %v1756, %v4003
    %4005 = vmatmul.bf16.gmra.mxu0 %v3588
    %v4006 = vpop.f32.mrf.mxu0
    %v4007 = vadd.f32 %v1761, %v4006
    %v4008 = vpop.f32.mrf.mxu0
    %v4009 = vadd.f32 %v1766, %v4008
    %4010 = vmatmul.bf16.gmra.mxu0 %v3591
    %v4011 = vpop.f32.mrf.mxu0
    %v4012 = vadd.f32 %v1771, %v4011
    %v4013 = vpop.f32.mrf.mxu0
    %v4014 = vadd.f32 %v1776, %v4013
    %4015 = vmatmul.bf16.gmra.mxu0 %v3594
    %v4016 = vpop.f32.mrf.mxu0
    %v4017 = vadd.f32 %v1781, %v4016
    %v4018 = vpop.f32.mrf.mxu0
    %v4019 = vadd.f32 %v1786, %v4018
    %4020 = vmatmul.bf16.gmra.mxu0 %v3597
    %v4021 = vpop.f32.mrf.mxu0
    %v4022 = vadd.f32 %v1791, %v4021
    %v4023 = vpop.f32.mrf.mxu0
    %v4024 = vadd.f32 %v1796, %v4023
    %4025 = vmatmul.bf16.gmra.mxu0 %v3600
    %v4026 = vpop.f32.mrf.mxu0
    %v4027 = vadd.f32 %v1801, %v4026
    %v4028 = vpop.f32.mrf.mxu0
    %v4029 = vadd.f32 %v1806, %v4028
    %4030 = vmatmul.bf16.gmra.mxu0 %v3603
    %v4031 = vpop.f32.mrf.mxu0
    %v4032 = vadd.f32 %v1811, %v4031
    %v4033 = vpop.f32.mrf.mxu0
    %v4034 = vadd.f32 %v1816, %v4033
    %4035 = vmatmul.bf16.gmra.mxu0 %v3606
    %v4036 = vpop.f32.mrf.mxu0
    %v4037 = vadd.f32 %v1821, %v4036
    %v4038 = vpop.f32.mrf.mxu0
    %v4039 = vadd.f32 %v1826, %v4038
    %4040 = vmatmul.bf16.gmra.mxu0 %v3609
    %v4041 = vpop.f32.mrf.mxu0
    %v4042 = vadd.f32 %v1831, %v4041
    %v4043 = vpop.f32.mrf.mxu0
    %v4044 = vadd.f32 %v1836, %v4043
    %4045 = vmatmul.bf16.gmra.mxu0 %v3612
    %v4046 = vpop.f32.mrf.mxu0
    %v4047 = vadd.f32 %v1841, %v4046
    %v4048 = vpop.f32.mrf.mxu0
    %v4049 = vadd.f32 %v1846, %v4048
    %4050 = vmatmul.bf16.gmra.mxu0 %v3615
    %v4051 = vpop.f32.mrf.mxu0
    %v4052 = vadd.f32 %v1851, %v4051
    %v4053 = vpop.f32.mrf.mxu0
    %v4054 = vadd.f32 %v1856, %v4053
    %4055 = vmatmul.bf16.gmra.mxu0 %v3618
    %v4056 = vpop.f32.mrf.mxu0
    %v4057 = vadd.f32 %v1861, %v4056
    %v4058 = vpop.f32.mrf.mxu0
    %v4059 = vadd.f32 %v1866, %v4058
    %4060 = vmatmul.bf16.gmra.mxu0 %v3621
    %v4061 = vpop.f32.mrf.mxu0
    %v4062 = vadd.f32 %v1871, %v4061
    %v4063 = vpop.f32.mrf.mxu0
    %v4064 = vadd.f32 %v1876, %v4063
    %4065 = vmatmul.bf16.gmra.mxu0 %v3624
    %v4066 = vpop.f32.mrf.mxu0
    %v4067 = vadd.f32 %v1881, %v4066
    %v4068 = vpop.f32.mrf.mxu0
    %v4069 = vadd.f32 %v1886, %v4068
    %4070 = vmatmul.bf16.gmra.mxu0 %v3627
    %v4071 = vpop.f32.mrf.mxu0
    %v4072 = vadd.f32 %v1891, %v4071
    %v4073 = vpop.f32.mrf.mxu0
    %v4074 = vadd.f32 %v1896, %v4073
    %4075 = vmatmul.bf16.gmra.mxu0 %v3630
    %v4076 = vpop.f32.mrf.mxu0
    %v4077 = vadd.f32 %v1901, %v4076
    %v4078 = vpop.f32.mrf.mxu0
    %v4079 = vadd.f32 %v1906, %v4078
    %4080 = vmatmul.bf16.gmra.mxu0 %v3633
    %v4081 = vpop.f32.mrf.mxu0
    %v4082 = vadd.f32 %v1911, %v4081
    %v4083 = vpop.f32.mrf.mxu0
    %v4084 = vadd.f32 %v1916, %v4083
    %4085 = vmatmul.bf16.gmra.mxu0 %v3636
    %v4086 = vpop.f32.mrf.mxu0
    %v4087 = vadd.f32 %v1921, %v4086
    %v4088 = vpop.f32.mrf.mxu0
    %v4089 = vadd.f32 %v1926, %v4088
    %4090 = vmatmul.bf16.gmra.mxu0 %v3639
    %v4091 = vpop.f32.mrf.mxu0
    %v4092 = vadd.f32 %v1931, %v4091
    %v4093 = vpop.f32.mrf.mxu0
    %v4094 = vadd.f32 %v1936, %v4093
    %4095 = vmatmul.bf16.gmra.mxu0 %v3642
    %v4096 = vpop.f32.mrf.mxu0
    %v4097 = vadd.f32 %v1941, %v4096
    %v4098 = vpop.f32.mrf.mxu0
    %v4099 = vadd.f32 %v1946, %v4098
    %4100 = vmatmul.bf16.gmra.mxu0 %v3645
    %v4101 = vpop.f32.mrf.mxu0
    %v4102 = vadd.f32 %v1951, %v4101
    %v4103 = vpop.f32.mrf.mxu0
    %v4104 = vadd.f32 %v1956, %v4103
    %4105 = vmatmul.bf16.gmra.mxu0 %v3648
    %v4106 = vpop.f32.mrf.mxu0
    %v4107 = vadd.f32 %v1961, %v4106
    %v4108 = vpop.f32.mrf.mxu0
    %v4109 = vadd.f32 %v1966, %v4108
    %4110 = vmatmul.bf16.gmra.mxu0 %v3651
    %v4111 = vpop.f32.mrf.mxu0
    %v4112 = vadd.f32 %v1971, %v4111
    %v4113 = vpop.f32.mrf.mxu0
    %v4114 = vadd.f32 %v1976, %v4113
    %4115 = vmatmul.bf16.gmra.mxu0 %v3654
    %v4116 = vpop.f32.mrf.mxu0
    %v4117 = vadd.f32 %v1981, %v4116
    %v4118 = vpop.f32.mrf.mxu0
    %v4119 = vadd.f32 %v1986, %v4118
    %4120 = vmatmul.bf16.gmra.mxu0 %v3657
    %v4121 = vpop.f32.mrf.mxu0
    %v4122 = vadd.f32 %v1991, %v4121
    %v4123 = vpop.f32.mrf.mxu0
    %v4124 = vadd.f32 %v1996, %v4123
    %4125 = vmatmul.bf16.gmra.mxu0 %v3660
    %v4126 = vpop.f32.mrf.mxu0
    %v4127 = vadd.f32 %v2001, %v4126
    %v4128 = vpop.f32.mrf.mxu0
    %v4129 = vadd.f32 %v2006, %v4128
    %4130 = vmatmul.bf16.gmra.mxu0 %v3663
    %v4131 = vpop.f32.mrf.mxu0
    %v4132 = vadd.f32 %v2011, %v4131
    %v4133 = vpop.f32.mrf.mxu0
    %v4134 = vadd.f32 %v2016, %v4133
    %4135 = vmatmul.bf16.gmra.mxu0 %v3666
    %v4136 = vpop.f32.mrf.mxu0
    %v4137 = vadd.f32 %v2021, %v4136
    %v4138 = vpop.f32.mrf.mxu0
    %v4139 = vadd.f32 %v2026, %v4138
    %4140 = vmatmul.bf16.gmra.mxu0 %v3669
    %v4141 = vpop.f32.mrf.mxu0
    %v4142 = vadd.f32 %v2031, %v4141
    %v4143 = vpop.f32.mrf.mxu0
    %v4144 = vadd.f32 %v2036, %v4143
    %4145 = vmatmul.bf16.gmra.mxu0 %v3672
    %v4146 = vpop.f32.mrf.mxu0
    %v4147 = vadd.f32 %v2041, %v4146
    %v4148 = vpop.f32.mrf.mxu0
    %v4149 = vadd.f32 %v2046, %v4148
    %4150 = vmatmul.bf16.gmra.mxu0 %v3675
    %v4151 = vpop.f32.mrf.mxu0
    %v4152 = vadd.f32 %v2051, %v4151
    %v4153 = vpop.f32.mrf.mxu0
    %v4154 = vadd.f32 %v2056, %v4153
    %4155 = vmatmul.bf16.gmra.mxu0 %v3678
    %v4156 = vpop.f32.mrf.mxu0
    %v4157 = vadd.f32 %v2061, %v4156
    %v4158 = vpop.f32.mrf.mxu0
    %v4159 = vadd.f32 %v2066, %v4158
    %4160 = vmatmul.bf16.gmra.mxu0 %v3681
    %v4161 = vpop.f32.mrf.mxu0
    %v4162 = vadd.f32 %v2071, %v4161
    %v4163 = vpop.f32.mrf.mxu0
    %v4164 = vadd.f32 %v2076, %v4163
    %4165 = vmatmul.bf16.gmra.mxu0 %v3684
    %v4166 = vpop.f32.mrf.mxu0
    %v4167 = vadd.f32 %v2081, %v4166
    %v4168 = vpop.f32.mrf.mxu0
    %v4169 = vadd.f32 %v2086, %v4168
    %4170 = vmatmul.bf16.gmra.mxu0 %v3687
    %v4171 = vpop.f32.mrf.mxu0
    %v4172 = vadd.f32 %v2091, %v4171
    %v4173 = vpop.f32.mrf.mxu0
    %v4174 = vadd.f32 %v2096, %v4173
    %4175 = vmatmul.bf16.gmra.mxu0 %v3690
    %v4176 = vpop.f32.mrf.mxu0
    %v4177 = vadd.f32 %v2101, %v4176
    %v4178 = vpop.f32.mrf.mxu0
    %v4179 = vadd.f32 %v2106, %v4178
    %4180 = vmatmul.bf16.gmra.mxu0 %v3693
    %v4181 = vpop.f32.mrf.mxu0
    %v4182 = vadd.f32 %v2111, %v4181
    %v4183 = vpop.f32.mrf.mxu0
    %v4184 = vadd.f32 %v2116, %v4183
    %4185 = vmatmul.bf16.gmra.mxu0 %v3696
    %v4186 = vpop.f32.mrf.mxu0
    %v4187 = vadd.f32 %v2121, %v4186
    %v4188 = vpop.f32.mrf.mxu0
    %v4189 = vadd.f32 %v2126, %v4188
    %4190 = vmatmul.bf16.gmra.mxu0 %v3699
    %v4191 = vpop.f32.mrf.mxu0
    %v4192 = vadd.f32 %v2131, %v4191
    %v4193 = vpop.f32.mrf.mxu0
    %v4194 = vadd.f32 %v2136, %v4193
    %4195 = vmatmul.bf16.gmra.mxu0 %v3702
    %v4196 = vpop.f32.mrf.mxu0
    %v4197 = vadd.f32 %v2141, %v4196
    %v4198 = vpop.f32.mrf.mxu0
    %v4199 = vadd.f32 %v2146, %v4198
    %4200 = vmatmul.bf16.gmra.mxu0 %v3705
    %v4201 = vpop.f32.mrf.mxu0
    %v4202 = vadd.f32 %v2151, %v4201
    %v4203 = vpop.f32.mrf.mxu0
    %v4204 = vadd.f32 %v2156, %v4203
    %4205 = vmatmul.bf16.gmra.mxu0 %v3708
    %v4206 = vpop.f32.mrf.mxu0
    %v4207 = vadd.f32 %v2161, %v4206
    %v4208 = vpop.f32.mrf.mxu0
    %v4209 = vadd.f32 %v2166, %v4208
    %4210 = vmatmul.bf16.gmra.mxu0 %v3711
    %v4211 = vpop.f32.mrf.mxu0
    %v4212 = vadd.f32 %v2171, %v4211
    %v4213 = vpop.f32.mrf.mxu0
    %v4214 = vadd.f32 %v2176, %v4213
    %4215 = vmatmul.bf16.gmra.mxu0 %v3714
    %v4216 = vpop.f32.mrf.mxu0
    %v4217 = vadd.f32 %v2181, %v4216
    %v4218 = vpop.f32.mrf.mxu0
    %v4219 = vadd.f32 %v2186, %v4218
    %4220 = vmatmul.bf16.gmra.mxu0 %v3717
    %v4221 = vpop.f32.mrf.mxu0
    %v4222 = vadd.f32 %v2191, %v4221
    %v4223 = vpop.f32.mrf.mxu0
    %v4224 = vadd.f32 %v2196, %v4223
    %4225 = vmatmul.bf16.gmra.mxu0 %v3720
    %v4226 = vpop.f32.mrf.mxu0
    %v4227 = vadd.f32 %v2201, %v4226
    %v4228 = vpop.f32.mrf.mxu0
    %v4229 = vadd.f32 %v2206, %v4228
    %4230 = vmatmul.bf16.gmra.mxu0 %v3723
    %v4231 = vpop.f32.mrf.mxu0
    %v4232 = vadd.f32 %v2211, %v4231
    %v4233 = vpop.f32.mrf.mxu0
    %v4234 = vadd.f32 %v2216, %v4233
    %4235 = vmatmul.bf16.gmra.mxu0 %v3726
    %v4236 = vpop.f32.mrf.mxu0
    %v4237 = vadd.f32 %v2221, %v4236
    %v4238 = vpop.f32.mrf.mxu0
    %v4239 = vadd.f32 %v2226, %v4238
    %4240 = vmatmul.bf16.gmra.mxu0 %v3729
    %v4241 = vpop.f32.mrf.mxu0
    %v4242 = vadd.f32 %v2231, %v4241
    %v4243 = vpop.f32.mrf.mxu0
    %v4244 = vadd.f32 %v2236, %v4243
    %4245 = vmatmul.bf16.gmra.mxu0 %v3732
    %v4246 = vpop.f32.mrf.mxu0
    %v4247 = vadd.f32 %v2241, %v4246
    %v4248 = vpop.f32.mrf.mxu0
    %v4249 = vadd.f32 %v2246, %v4248
    %4250 = vmatmul.bf16.gmra.mxu0 %v3735
    %v4251 = vpop.f32.mrf.mxu0
    %v4252 = vadd.f32 %v2251, %v4251
    %v4253 = vpop.f32.mrf.mxu0
    %v4254 = vadd.f32 %v2256, %v4253
    %4255 = vmatmul.bf16.gmra.mxu0 %v3738
    %v4256 = vpop.f32.mrf.mxu0
    %v4257 = vadd.f32 %v2261, %v4256
    %v4258 = vpop.f32.mrf.mxu0
    %v4259 = vadd.f32 %v2266, %v4258
    %4260 = vmatmul.bf16.gmra.mxu0 %v3741
    %v4261 = vpop.f32.mrf.mxu0
    %v4262 = vadd.f32 %v2271, %v4261
    %v4263 = vpop.f32.mrf.mxu0
    %v4264 = vadd.f32 %v2276, %v4263
    %4265 = vmatmul.bf16.gmra.mxu0 %v3744
    %v4266 = vpop.f32.mrf.mxu0
    %v4267 = vadd.f32 %v2281, %v4266
    %v4268 = vpop.f32.mrf.mxu0
    %v4269 = vadd.f32 %v2286, %v4268
    %4270 = vmatmul.bf16.gmra.mxu0 %v3747
    %v4271 = vpop.f32.mrf.mxu0
    %v4272 = vadd.f32 %v2291, %v4271
    %v4273 = vpop.f32.mrf.mxu0
    %v4274 = vadd.f32 %v2296, %v4273
    %4275 = vmatmul.bf16.gmra.mxu0 %v3750
    %v4276 = vpop.f32.mrf.mxu0
    %v4277 = vadd.f32 %v2301, %v4276
    %v4278 = vpop.f32.mrf.mxu0
    %v4279 = vadd.f32 %v2306, %v4278
    %4280 = vmatmul.bf16.gmra.mxu0 %v3753
    %v4281 = vpop.f32.mrf.mxu0
    %v4282 = vadd.f32 %v2311, %v4281
    %v4283 = vpop.f32.mrf.mxu0
    %v4284 = vadd.f32 %v2316, %v4283
    %4285 = vmatmul.bf16.gmra.mxu0 %v3756
    %v4286 = vpop.f32.mrf.mxu0
    %v4287 = vadd.f32 %v2321, %v4286
    %v4288 = vpop.f32.mrf.mxu0
    %v4289 = vadd.f32 %v2326, %v4288
    %4290 = vmatmul.bf16.gmra.mxu0 %v3759
    %v4291 = vpop.f32.mrf.mxu0
    %v4292 = vadd.f32 %v2331, %v4291
    %v4293 = vpop.f32.mrf.mxu0
    %v4294 = vadd.f32 %v2336, %v4293
    %4295 = vmatmul.bf16.gmra.mxu0 %v3762
    %v4296 = vpop.f32.mrf.mxu0
    %v4297 = vadd.f32 %v2341, %v4296
    %v4298 = vpop.f32.mrf.mxu0
    %v4299 = vadd.f32 %v2346, %v4298
    %4300 = vmatmul.bf16.gmra.mxu0 %v3765
    %v4301 = vpop.f32.mrf.mxu0
    %v4302 = vadd.f32 %v2351, %v4301
    %v4303 = vpop.f32.mrf.mxu0
    %v4304 = vadd.f32 %v2356, %v4303
    %4305 = vmatmul.bf16.gmra.mxu0 %v3768
    %v4306 = vpop.f32.mrf.mxu0
    %v4307 = vadd.f32 %v2361, %v4306
    %v4308 = vpop.f32.mrf.mxu0
    %v4309 = vadd.f32 %v2366, %v4308
    %4310 = vmatmul.bf16.gmra.mxu0 %v3771
    %v4311 = vpop.f32.mrf.mxu0
    %v4312 = vadd.f32 %v2371, %v4311
    %v4313 = vpop.f32.mrf.mxu0
    %v4314 = vadd.f32 %v2376, %v4313
    %4315 = vmatmul.bf16.gmra.mxu0 %v3774
    %v4316 = vpop.f32.mrf.mxu0
    %v4317 = vadd.f32 %v2381, %v4316
    %v4318 = vpop.f32.mrf.mxu0
    %v4319 = vadd.f32 %v2386, %v4318
    %4320 = vmatmul.bf16.gmra.mxu0 %v3777
    %v4321 = vpop.f32.mrf.mxu0
    %v4322 = vadd.f32 %v2391, %v4321
    %v4323 = vpop.f32.mrf.mxu0
    %v4324 = vadd.f32 %v2396, %v4323
    %4325 = vmatmul.bf16.gmra.mxu0 %v3780
    %v4326 = vpop.f32.mrf.mxu0
    %v4327 = vadd.f32 %v2401, %v4326
    %v4328 = vpop.f32.mrf.mxu0
    %v4329 = vadd.f32 %v2406, %v4328
    %4330 = vmatmul.bf16.gmra.mxu0 %v3783
    %v4331 = vpop.f32.mrf.mxu0
    %v4332 = vadd.f32 %v2411, %v4331
    %v4333 = vpop.f32.mrf.mxu0
    %v4334 = vadd.f32 %v2416, %v4333
    %4335 = vmatmul.bf16.gmra.mxu0 %v3786
    %v4336 = vpop.f32.mrf.mxu0
    %v4337 = vadd.f32 %v2421, %v4336
    %v4338 = vpop.f32.mrf.mxu0
    %v4339 = vadd.f32 %v2426, %v4338
    %4340 = vmatmul.bf16.gmra.mxu0 %v3789
    %v4341 = vpop.f32.mrf.mxu0
    %v4342 = vadd.f32 %v2431, %v4341
    %v4343 = vpop.f32.mrf.mxu0
    %v4344 = vadd.f32 %v2436, %v4343
    %4345 = vmatmul.bf16.gmra.mxu0 %v3792
    %v4346 = vpop.f32.mrf.mxu0
    %v4347 = vadd.f32 %v2441, %v4346
    %v4348 = vpop.f32.mrf.mxu0
    %v4349 = vadd.f32 %v2446, %v4348
    %4350 = vmatmul.bf16.gmra.mxu0 %v3795
    %v4351 = vpop.f32.mrf.mxu0
    %v4352 = vadd.f32 %v2451, %v4351
    %v4353 = vpop.f32.mrf.mxu0
    %v4354 = vadd.f32 %v2456, %v4353
    %4355 = vmatmul.bf16.gmra.mxu0 %v3798
    %v4356 = vpop.f32.mrf.mxu0
    %v4357 = vadd.f32 %v2461, %v4356
    %v4358 = vpop.f32.mrf.mxu0
    %v4359 = vadd.f32 %v2466, %v4358
    %4360 = vmatmul.bf16.gmra.mxu0 %v3801
    %v4361 = vpop.f32.mrf.mxu0
    %v4362 = vadd.f32 %v2471, %v4361
    %v4363 = vpop.f32.mrf.mxu0
    %v4364 = vadd.f32 %v2476, %v4363
    %4365 = vmatmul.bf16.gmra.mxu0 %v3804
    %v4366 = vpop.f32.mrf.mxu0
    %v4367 = vadd.f32 %v2481, %v4366
    %v4368 = vpop.f32.mrf.mxu0
    %v4369 = vadd.f32 %v2486, %v4368
    %4370 = vmatmul.bf16.gmra.mxu0 %v3807
    %v4371 = vpop.f32.mrf.mxu0
    %v4372 = vadd.f32 %v2491, %v4371
    %v4373 = vpop.f32.mrf.mxu0
    %v4374 = vadd.f32 %v2496, %v4373
    %4375 = vmatmul.bf16.gmra.mxu0 %v3810
    %v4376 = vpop.f32.mrf.mxu0
    %v4377 = vadd.f32 %v2501, %v4376
    %v4378 = vpop.f32.mrf.mxu0
    %v4379 = vadd.f32 %v2506, %v4378
    %4380 = vmatmul.bf16.gmra.mxu0 %v3813
    %v4381 = vpop.f32.mrf.mxu0
    %v4382 = vadd.f32 %v2511, %v4381
    %v4383 = vpop.f32.mrf.mxu0
    %v4384 = vadd.f32 %v2516, %v4383
    %4385 = vmatmul.bf16.gmra.mxu0 %v3816
    %v4386 = vpop.f32.mrf.mxu0
    %v4387 = vadd.f32 %v2521, %v4386
    %v4388 = vpop.f32.mrf.mxu0
    %v4389 = vadd.f32 %v2526, %v4388
    %4390 = vmatmul.bf16.gmra.mxu0 %v3819
    %v4391 = vpop.f32.mrf.mxu0
    %v4392 = vadd.f32 %v2531, %v4391
    %v4393 = vpop.f32.mrf.mxu0
    %v4394 = vadd.f32 %v2536, %v4393
    %4395 = vmatmul.bf16.gmra.mxu0 %v3822
    %v4396 = vpop.f32.mrf.mxu0
    %v4397 = vadd.f32 %v2541, %v4396
    %v4398 = vpop.f32.mrf.mxu0
    %v4399 = vadd.f32 %v2546, %v4398
    %4400 = vmatmul.bf16.gmra.mxu0 %v3825
    %v4401 = vpop.f32.mrf.mxu0
    %v4402 = vadd.f32 %v2551, %v4401
    %v4403 = vpop.f32.mrf.mxu0
    %v4404 = vadd.f32 %v2556, %v4403
    %4405 = vmatmul.bf16.gmra.mxu0 %v3828
    %v4406 = vpop.f32.mrf.mxu0
    %v4407 = vadd.f32 %v2561, %v4406
    %v4408 = vpop.f32.mrf.mxu0
    %v4409 = vadd.f32 %v2566, %v4408
    %4410 = vmatmul.bf16.gmra.mxu0 %v3831
    %v4411 = vpop.f32.mrf.mxu0
    %v4412 = vadd.f32 %v2571, %v4411
    %v4413 = vpop.f32.mrf.mxu0
    %v4414 = vadd.f32 %v2576, %v4413
    %4415 = vmatmul.bf16.gmra.mxu0 %v3834
    %v4416 = vpop.f32.mrf.mxu0
    %v4417 = vadd.f32 %v2581, %v4416
    %v4418 = vpop.f32.mrf.mxu0
    %v4419 = vadd.f32 %v2586, %v4418
    %4420 = vmatmul.bf16.gmra.mxu0 %v3837
    %v4421 = vpop.f32.mrf.mxu0
    %v4422 = vadd.f32 %v2591, %v4421
    %v4423 = vpop.f32.mrf.mxu0
    %v4424 = vadd.f32 %v2596, %v4423
    %4425 = vmatmul.bf16.gmra.mxu0 %v3840
    %v4426 = vpop.f32.mrf.mxu0
    %v4427 = vadd.f32 %v2601, %v4426
    %v4428 = vpop.f32.mrf.mxu0
    %v4429 = vadd.f32 %v2606, %v4428
    %4430 = vmatmul.bf16.gmra.mxu0 %v3843
    %v4431 = vpop.f32.mrf.mxu0
    %v4432 = vadd.f32 %v2611, %v4431
    %v4433 = vpop.f32.mrf.mxu0
    %v4434 = vadd.f32 %v2616, %v4433
    %4435 = vmatmul.bf16.gmra.mxu0 %v3846
    %v4436 = vpop.f32.mrf.mxu0
    %v4437 = vadd.f32 %v2621, %v4436
    %v4438 = vpop.f32.mrf.mxu0
    %v4439 = vadd.f32 %v2626, %v4438
    %4440 = vmatmul.bf16.gmra.mxu0 %v3849
    %v4441 = vpop.f32.mrf.mxu0
    %v4442 = vadd.f32 %v2631, %v4441
    %v4443 = vpop.f32.mrf.mxu0
    %v4444 = vadd.f32 %v2636, %v4443
    %4445 = vmatmul.bf16.gmra.mxu0 %v3852
    %v4446 = vpop.f32.mrf.mxu0
    %v4447 = vadd.f32 %v2641, %v4446
    %v4448 = vpop.f32.mrf.mxu0
    %v4449 = vadd.f32 %v2646, %v4448
    %4450 = vmatmul.bf16.gmra.mxu0 %v3855
    %v4451 = vpop.f32.mrf.mxu0
    %v4452 = vadd.f32 %v2651, %v4451
    %v4453 = vpop.f32.mrf.mxu0
    %v4454 = vadd.f32 %v2656, %v4453
    %4455 = vmatmul.bf16.gmra.mxu0 %v3858
    %v4456 = vpop.f32.mrf.mxu0
    %v4457 = vadd.f32 %v2661, %v4456
    %v4458 = vpop.f32.mrf.mxu0
    %v4459 = vadd.f32 %v2666, %v4458
    %4460 = vmatmul.bf16.gmra.mxu0 %v3861
    %v4461 = vpop.f32.mrf.mxu0
    %v4462 = vadd.f32 %v2671, %v4461
    %v4463 = vpop.f32.mrf.mxu0
    %v4464 = vadd.f32 %v2676, %v4463
    %4465 = vmatmul.bf16.gmra.mxu0 %v3864
    %v4466 = vpop.f32.mrf.mxu0
    %v4467 = vadd.f32 %v2681, %v4466
    %v4468 = vpop.f32.mrf.mxu0
    %v4469 = vadd.f32 %v2686, %v4468
    %4470 = vmatmul.bf16.gmra.mxu0 %v3867
    %v4471 = vpop.f32.mrf.mxu0
    %v4472 = vadd.f32 %v2691, %v4471
    %v4473 = vpop.f32.mrf.mxu0
    %v4474 = vadd.f32 %v2696, %v4473
    %4475 = vmatmul.bf16.gmra.mxu0 %v3870
    %v4476 = vpop.f32.mrf.mxu0
    %v4477 = vadd.f32 %v2701, %v4476
    %v4478 = vpop.f32.mrf.mxu0
    %v4479 = vadd.f32 %v2706, %v4478
    %4480 = vmatmul.bf16.gmra.mxu0 %v3873
    %v4481 = vpop.f32.mrf.mxu0
    %v4482 = vadd.f32 %v2711, %v4481
    %v4483 = vpop.f32.mrf.mxu0
    %v4484 = vadd.f32 %v2716, %v4483
    %4485 = vmatmul.bf16.gmra.mxu0 %v3876
    %v4486 = vpop.f32.mrf.mxu0
    %v4487 = vadd.f32 %v2721, %v4486
    %v4488 = vpop.f32.mrf.mxu0
    %v4489 = vadd.f32 %v2726, %v4488
    %4490 = vmatmul.bf16.gmra.mxu0 %v3879
    %v4491 = vpop.f32.mrf.mxu0
    %v4492 = vadd.f32 %v2731, %v4491
    %v4493 = vpop.f32.mrf.mxu0
    %v4494 = vadd.f32 %v2736, %v4493
    %4495 = vmatmul.bf16.gmra.mxu0 %v3882
    %v4496 = vpop.f32.mrf.mxu0
    %v4497 = vadd.f32 %v2741, %v4496
    %v4498 = vpop.f32.mrf.mxu0
    %v4499 = vadd.f32 %v2746, %v4498
    %4500 = vmatmul.bf16.gmra.mxu0 %v3885
    %v4501 = vpop.f32.mrf.mxu0
    %v4502 = vadd.f32 %v2751, %v4501
    %v4503 = vpop.f32.mrf.mxu0
    %v4504 = vadd.f32 %v2756, %v4503
    %4505 = vmatmul.bf16.gmra.mxu0 %v3888
    %v4506 = vpop.f32.mrf.mxu0
    %v4507 = vadd.f32 %v2761, %v4506
    %v4508 = vpop.f32.mrf.mxu0
    %v4509 = vadd.f32 %v2766, %v4508
    %4510 = vmatmul.bf16.gmra.mxu0 %v3891
    %v4511 = vpop.f32.mrf.mxu0
    %v4512 = vadd.f32 %v2771, %v4511
    %v4513 = vpop.f32.mrf.mxu0
    %v4514 = vadd.f32 %v2776, %v4513
    %4515 = vmatmul.bf16.gmra.mxu0 %v3894
    %v4516 = vpop.f32.mrf.mxu0
    %v4517 = vadd.f32 %v2781, %v4516
    %v4518 = vpop.f32.mrf.mxu0
    %v4519 = vadd.f32 %v2786, %v4518
    %4520 = vmatmul.bf16.gmra.mxu0 %v3897
    %v4521 = vpop.f32.mrf.mxu0
    %v4522 = vadd.f32 %v2791, %v4521
    %v4523 = vpop.f32.mrf.mxu0
    %v4524 = vadd.f32 %v2796, %v4523
    %4525 = vmatmul.bf16.gmra.mxu0 %v3900
    %v4526 = vpop.f32.mrf.mxu0
    %v4527 = vadd.f32 %v2801, %v4526
    %v4528 = vpop.f32.mrf.mxu0
    %v4529 = vadd.f32 %v2806, %v4528
    %4530 = vmatmul.bf16.gmra.mxu0 %v3903
    %v4531 = vpop.f32.mrf.mxu0
    %v4532 = vadd.f32 %v2811, %v4531
    %v4533 = vpop.f32.mrf.mxu0
    %v4534 = vadd.f32 %v2816, %v4533
    %4535 = vmatmul.bf16.gmra.mxu0 %v3906
    %v4536 = vpop.f32.mrf.mxu0
    %v4537 = vadd.f32 %v2821, %v4536
    %v4538 = vpop.f32.mrf.mxu0
    %v4539 = vadd.f32 %v2826, %v4538
    %4540 = vmatmul.bf16.gmra.mxu0 %v3909
    %v4541 = vpop.f32.mrf.mxu0
    %v4542 = vadd.f32 %v2831, %v4541
    %v4543 = vpop.f32.mrf.mxu0
    %v4544 = vadd.f32 %v2836, %v4543
    %4545 = vmatmul.bf16.gmra.mxu0 %v3912
    %v4546 = vpop.f32.mrf.mxu0
    %v4547 = vadd.f32 %v2841, %v4546
    %v4548 = vpop.f32.mrf.mxu0
    %v4549 = vadd.f32 %v2846, %v4548
    %4550 = vmatmul.bf16.gmra.mxu0 %v3915
    %v4551 = vpop.f32.mrf.mxu0
    %v4552 = vadd.f32 %v2851, %v4551
    %v4553 = vpop.f32.mrf.mxu0
    %v4554 = vadd.f32 %v2856, %v4553
    %4555 = vmatmul.bf16.gmra.mxu0 %v3918
    %v4556 = vpop.f32.mrf.mxu0
    %v4557 = vadd.f32 %v2861, %v4556
    %v4558 = vpop.f32.mrf.mxu0
    %v4559 = vadd.f32 %v2866, %v4558
    %4560 = vmatmul.bf16.gmra.mxu0 %v3921
    %v4561 = vpop.f32.mrf.mxu0
    %v4562 = vadd.f32 %v2871, %v4561
    %v4563 = vpop.f32.mrf.mxu0
    %v4564 = vadd.f32 %v2876, %v4563
    %4565 = vmatmul.bf16.gmra.mxu0 %v3924
    %v4566 = vpop.f32.mrf.mxu0
    %v4567 = vadd.f32 %v2881, %v4566
    %v4568 = vpop.f32.mrf.mxu0
    %v4569 = vadd.f32 %v2886, %v4568
    %4570 = vmatmul.bf16.gmra.mxu0 %v3927
    %v4571 = vpop.f32.mrf.mxu0
    %v4572 = vadd.f32 %v2891, %v4571
    %v4573 = vpop.f32.mrf.mxu0
    %v4574 = vadd.f32 %v2896, %v4573
    %4575 = vmatmul.bf16.gmra.mxu0 %v3930
    %v4576 = vpop.f32.mrf.mxu0
    %v4577 = vadd.f32 %v2901, %v4576
    %v4578 = vpop.f32.mrf.mxu0
    %v4579 = vadd.f32 %v2906, %v4578
    %4580 = vdwg.mxu0
    %4581 = vmatpush.bf16.msra.mxu0 0
    %4582 = vmatpush.bf16.msra.mxu0 0
    %4583 = vmatpush.bf16.msra.mxu0 0
    %4584 = vmatpush.bf16.msra.mxu0 0
    %4585 = vmatpush.bf16.msra.mxu0 0
    %4586 = vmatpush.bf16.msra.mxu0 0
    %4587 = vmatpush.bf16.msra.mxu0 0
    %4588 = vmatpush.bf16.msra.mxu0 %v1369
    %4589 = vmatmul.bf16.gmra.mxu0 %v3549
    %v4590 = vpop.f32.mrf.mxu0
    %v4591 = vadd.f32 %v1631, %v4590
    %v4592 = vpop.f32.mrf.mxu0
    %v4593 = vadd.f32 %v1636, %v4592
    %4594 = vmatmul.bf16.gmra.mxu0 %v3552
    %v4595 = vpop.f32.mrf.mxu0
    %v4596 = vadd.f32 %v1641, %v4595
    %v4597 = vpop.f32.mrf.mxu0
    %v4598 = vadd.f32 %v1646, %v4597
    %4599 = vmatmul.bf16.gmra.mxu0 %v3555
    %v4600 = vpop.f32.mrf.mxu0
    %v4601 = vadd.f32 %v1651, %v4600
    %v4602 = vpop.f32.mrf.mxu0
    %v4603 = vadd.f32 %v1656, %v4602
    %4604 = vmatmul.bf16.gmra.mxu0 %v3558
    %v4605 = vpop.f32.mrf.mxu0
    %v4606 = vadd.f32 %v1661, %v4605
    %v4607 = vpop.f32.mrf.mxu0
    %v4608 = vadd.f32 %v1666, %v4607
    %4609 = vmatmul.bf16.gmra.mxu0 %v3561
    %v4610 = vpop.f32.mrf.mxu0
    %v4611 = vadd.f32 %v1671, %v4610
    %v4612 = vpop.f32.mrf.mxu0
    %v4613 = vadd.f32 %v1676, %v4612
    %4614 = vmatmul.bf16.gmra.mxu0 %v3564
    %v4615 = vpop.f32.mrf.mxu0
    %v4616 = vadd.f32 %v1681, %v4615
    %v4617 = vpop.f32.mrf.mxu0
    %v4618 = vadd.f32 %v1686, %v4617
    %4619 = vmatmul.bf16.gmra.mxu0 %v3567
    %v4620 = vpop.f32.mrf.mxu0
    %v4621 = vadd.f32 %v1691, %v4620
    %v4622 = vpop.f32.mrf.mxu0
    %v4623 = vadd.f32 %v1696, %v4622
    %4624 = vmatmul.bf16.gmra.mxu0 %v3570
    %v4625 = vpop.f32.mrf.mxu0
    %v4626 = vadd.f32 %v1701, %v4625
    %v4627 = vpop.f32.mrf.mxu0
    %v4628 = vadd.f32 %v1706, %v4627
    %4629 = vmatmul.bf16.gmra.mxu0 %v3573
    %v4630 = vpop.f32.mrf.mxu0
    %v4631 = vadd.f32 %v1711, %v4630
    %v4632 = vpop.f32.mrf.mxu0
    %v4633 = vadd.f32 %v1716, %v4632
    %4634 = vmatmul.bf16.gmra.mxu0 %v3576
    %v4635 = vpop.f32.mrf.mxu0
    %v4636 = vadd.f32 %v1721, %v4635
    %v4637 = vpop.f32.mrf.mxu0
    %v4638 = vadd.f32 %v1726, %v4637
    %4639 = vmatmul.bf16.gmra.mxu0 %v3579
    %v4640 = vpop.f32.mrf.mxu0
    %v4641 = vadd.f32 %v1731, %v4640
    %v4642 = vpop.f32.mrf.mxu0
    %v4643 = vadd.f32 %v1736, %v4642
    %4644 = vmatmul.bf16.gmra.mxu0 %v3582
    %v4645 = vpop.f32.mrf.mxu0
    %v4646 = vadd.f32 %v1741, %v4645
    %v4647 = vpop.f32.mrf.mxu0
    %v4648 = vadd.f32 %v1746, %v4647
    %4649 = vmatmul.bf16.gmra.mxu0 %v3585
    %v4650 = vpop.f32.mrf.mxu0
    %v4651 = vadd.f32 %v1751, %v4650
    %v4652 = vpop.f32.mrf.mxu0
    %v4653 = vadd.f32 %v1756, %v4652
    %4654 = vmatmul.bf16.gmra.mxu0 %v3588
    %v4655 = vpop.f32.mrf.mxu0
    %v4656 = vadd.f32 %v1761, %v4655
    %v4657 = vpop.f32.mrf.mxu0
    %v4658 = vadd.f32 %v1766, %v4657
    %4659 = vmatmul.bf16.gmra.mxu0 %v3591
    %v4660 = vpop.f32.mrf.mxu0
    %v4661 = vadd.f32 %v1771, %v4660
    %v4662 = vpop.f32.mrf.mxu0
    %v4663 = vadd.f32 %v1776, %v4662
    %4664 = vmatmul.bf16.gmra.mxu0 %v3594
    %v4665 = vpop.f32.mrf.mxu0
    %v4666 = vadd.f32 %v1781, %v4665
    %v4667 = vpop.f32.mrf.mxu0
    %v4668 = vadd.f32 %v1786, %v4667
    %4669 = vmatmul.bf16.gmra.mxu0 %v3597
    %v4670 = vpop.f32.mrf.mxu0
    %v4671 = vadd.f32 %v1791, %v4670
    %v4672 = vpop.f32.mrf.mxu0
    %v4673 = vadd.f32 %v1796, %v4672
    %4674 = vmatmul.bf16.gmra.mxu0 %v3600
    %v4675 = vpop.f32.mrf.mxu0
    %v4676 = vadd.f32 %v1801, %v4675
    %v4677 = vpop.f32.mrf.mxu0
    %v4678 = vadd.f32 %v1806, %v4677
    %4679 = vmatmul.bf16.gmra.mxu0 %v3603
    %v4680 = vpop.f32.mrf.mxu0
    %v4681 = vadd.f32 %v1811, %v4680
    %v4682 = vpop.f32.mrf.mxu0
    %v4683 = vadd.f32 %v1816, %v4682
    %4684 = vmatmul.bf16.gmra.mxu0 %v3606
    %v4685 = vpop.f32.mrf.mxu0
    %v4686 = vadd.f32 %v1821, %v4685
    %v4687 = vpop.f32.mrf.mxu0
    %v4688 = vadd.f32 %v1826, %v4687
    %4689 = vmatmul.bf16.gmra.mxu0 %v3609
    %v4690 = vpop.f32.mrf.mxu0
    %v4691 = vadd.f32 %v1831, %v4690
    %v4692 = vpop.f32.mrf.mxu0
    %v4693 = vadd.f32 %v1836, %v4692
    %4694 = vmatmul.bf16.gmra.mxu0 %v3612
    %v4695 = vpop.f32.mrf.mxu0
    %v4696 = vadd.f32 %v1841, %v4695
    %v4697 = vpop.f32.mrf.mxu0
    %v4698 = vadd.f32 %v1846, %v4697
    %4699 = vmatmul.bf16.gmra.mxu0 %v3615
    %v4700 = vpop.f32.mrf.mxu0
    %v4701 = vadd.f32 %v1851, %v4700
    %v4702 = vpop.f32.mrf.mxu0
    %v4703 = vadd.f32 %v1856, %v4702
    %4704 = vmatmul.bf16.gmra.mxu0 %v3618
    %v4705 = vpop.f32.mrf.mxu0
    %v4706 = vadd.f32 %v1861, %v4705
    %v4707 = vpop.f32.mrf.mxu0
    %v4708 = vadd.f32 %v1866, %v4707
    %4709 = vmatmul.bf16.gmra.mxu0 %v3621
    %v4710 = vpop.f32.mrf.mxu0
    %v4711 = vadd.f32 %v1871, %v4710
    %v4712 = vpop.f32.mrf.mxu0
    %v4713 = vadd.f32 %v1876, %v4712
    %4714 = vmatmul.bf16.gmra.mxu0 %v3624
    %v4715 = vpop.f32.mrf.mxu0
    %v4716 = vadd.f32 %v1881, %v4715
    %v4717 = vpop.f32.mrf.mxu0
    %v4718 = vadd.f32 %v1886, %v4717
    %4719 = vmatmul.bf16.gmra.mxu0 %v3627
    %v4720 = vpop.f32.mrf.mxu0
    %v4721 = vadd.f32 %v1891, %v4720
    %v4722 = vpop.f32.mrf.mxu0
    %v4723 = vadd.f32 %v1896, %v4722
    %4724 = vmatmul.bf16.gmra.mxu0 %v3630
    %v4725 = vpop.f32.mrf.mxu0
    %v4726 = vadd.f32 %v1901, %v4725
    %v4727 = vpop.f32.mrf.mxu0
    %v4728 = vadd.f32 %v1906, %v4727
    %4729 = vmatmul.bf16.gmra.mxu0 %v3633
    %v4730 = vpop.f32.mrf.mxu0
    %v4731 = vadd.f32 %v1911, %v4730
    %v4732 = vpop.f32.mrf.mxu0
    %v4733 = vadd.f32 %v1916, %v4732
    %4734 = vmatmul.bf16.gmra.mxu0 %v3636
    %v4735 = vpop.f32.mrf.mxu0
    %v4736 = vadd.f32 %v1921, %v4735
    %v4737 = vpop.f32.mrf.mxu0
    %v4738 = vadd.f32 %v1926, %v4737
    %4739 = vmatmul.bf16.gmra.mxu0 %v3639
    %v4740 = vpop.f32.mrf.mxu0
    %v4741 = vadd.f32 %v1931, %v4740
    %v4742 = vpop.f32.mrf.mxu0
    %v4743 = vadd.f32 %v1936, %v4742
    %4744 = vmatmul.bf16.gmra.mxu0 %v3642
    %v4745 = vpop.f32.mrf.mxu0
    %v4746 = vadd.f32 %v1941, %v4745
    %v4747 = vpop.f32.mrf.mxu0
    %v4748 = vadd.f32 %v1946, %v4747
    %4749 = vmatmul.bf16.gmra.mxu0 %v3645
    %v4750 = vpop.f32.mrf.mxu0
    %v4751 = vadd.f32 %v1951, %v4750
    %v4752 = vpop.f32.mrf.mxu0
    %v4753 = vadd.f32 %v1956, %v4752
    %4754 = vmatmul.bf16.gmra.mxu0 %v3648
    %v4755 = vpop.f32.mrf.mxu0
    %v4756 = vadd.f32 %v1961, %v4755
    %v4757 = vpop.f32.mrf.mxu0
    %v4758 = vadd.f32 %v1966, %v4757
    %4759 = vmatmul.bf16.gmra.mxu0 %v3651
    %v4760 = vpop.f32.mrf.mxu0
    %v4761 = vadd.f32 %v1971, %v4760
    %v4762 = vpop.f32.mrf.mxu0
    %v4763 = vadd.f32 %v1976, %v4762
    %4764 = vmatmul.bf16.gmra.mxu0 %v3654
    %v4765 = vpop.f32.mrf.mxu0
    %v4766 = vadd.f32 %v1981, %v4765
    %v4767 = vpop.f32.mrf.mxu0
    %v4768 = vadd.f32 %v1986, %v4767
    %4769 = vmatmul.bf16.gmra.mxu0 %v3657
    %v4770 = vpop.f32.mrf.mxu0
    %v4771 = vadd.f32 %v1991, %v4770
    %v4772 = vpop.f32.mrf.mxu0
    %v4773 = vadd.f32 %v1996, %v4772
    %4774 = vmatmul.bf16.gmra.mxu0 %v3660
    %v4775 = vpop.f32.mrf.mxu0
    %v4776 = vadd.f32 %v2001, %v4775
    %v4777 = vpop.f32.mrf.mxu0
    %v4778 = vadd.f32 %v2006, %v4777
    %4779 = vmatmul.bf16.gmra.mxu0 %v3663
    %v4780 = vpop.f32.mrf.mxu0
    %v4781 = vadd.f32 %v2011, %v4780
    %v4782 = vpop.f32.mrf.mxu0
    %v4783 = vadd.f32 %v2016, %v4782
    %4784 = vmatmul.bf16.gmra.mxu0 %v3666
    %v4785 = vpop.f32.mrf.mxu0
    %v4786 = vadd.f32 %v2021, %v4785
    %v4787 = vpop.f32.mrf.mxu0
    %v4788 = vadd.f32 %v2026, %v4787
    %4789 = vmatmul.bf16.gmra.mxu0 %v3669
    %v4790 = vpop.f32.mrf.mxu0
    %v4791 = vadd.f32 %v2031, %v4790
    %v4792 = vpop.f32.mrf.mxu0
    %v4793 = vadd.f32 %v2036, %v4792
    %4794 = vmatmul.bf16.gmra.mxu0 %v3672
    %v4795 = vpop.f32.mrf.mxu0
    %v4796 = vadd.f32 %v2041, %v4795
    %v4797 = vpop.f32.mrf.mxu0
    %v4798 = vadd.f32 %v2046, %v4797
    %4799 = vmatmul.bf16.gmra.mxu0 %v3675
    %v4800 = vpop.f32.mrf.mxu0
    %v4801 = vadd.f32 %v2051, %v4800
    %v4802 = vpop.f32.mrf.mxu0
    %v4803 = vadd.f32 %v2056, %v4802
    %4804 = vmatmul.bf16.gmra.mxu0 %v3678
    %v4805 = vpop.f32.mrf.mxu0
    %v4806 = vadd.f32 %v2061, %v4805
    %v4807 = vpop.f32.mrf.mxu0
    %v4808 = vadd.f32 %v2066, %v4807
    %4809 = vmatmul.bf16.gmra.mxu0 %v3681
    %v4810 = vpop.f32.mrf.mxu0
    %v4811 = vadd.f32 %v2071, %v4810
    %v4812 = vpop.f32.mrf.mxu0
    %v4813 = vadd.f32 %v2076, %v4812
    %4814 = vmatmul.bf16.gmra.mxu0 %v3684
    %v4815 = vpop.f32.mrf.mxu0
    %v4816 = vadd.f32 %v2081, %v4815
    %v4817 = vpop.f32.mrf.mxu0
    %v4818 = vadd.f32 %v2086, %v4817
    %4819 = vmatmul.bf16.gmra.mxu0 %v3687
    %v4820 = vpop.f32.mrf.mxu0
    %v4821 = vadd.f32 %v2091, %v4820
    %v4822 = vpop.f32.mrf.mxu0
    %v4823 = vadd.f32 %v2096, %v4822
    %4824 = vmatmul.bf16.gmra.mxu0 %v3690
    %v4825 = vpop.f32.mrf.mxu0
    %v4826 = vadd.f32 %v2101, %v4825
    %v4827 = vpop.f32.mrf.mxu0
    %v4828 = vadd.f32 %v2106, %v4827
    %4829 = vmatmul.bf16.gmra.mxu0 %v3693
    %v4830 = vpop.f32.mrf.mxu0
    %v4831 = vadd.f32 %v2111, %v4830
    %v4832 = vpop.f32.mrf.mxu0
    %v4833 = vadd.f32 %v2116, %v4832
    %4834 = vmatmul.bf16.gmra.mxu0 %v3696
    %v4835 = vpop.f32.mrf.mxu0
    %v4836 = vadd.f32 %v2121, %v4835
    %v4837 = vpop.f32.mrf.mxu0
    %v4838 = vadd.f32 %v2126, %v4837
    %4839 = vmatmul.bf16.gmra.mxu0 %v3699
    %v4840 = vpop.f32.mrf.mxu0
    %v4841 = vadd.f32 %v2131, %v4840
    %v4842 = vpop.f32.mrf.mxu0
    %v4843 = vadd.f32 %v2136, %v4842
    %4844 = vmatmul.bf16.gmra.mxu0 %v3702
    %v4845 = vpop.f32.mrf.mxu0
    %v4846 = vadd.f32 %v2141, %v4845
    %v4847 = vpop.f32.mrf.mxu0
    %v4848 = vadd.f32 %v2146, %v4847
    %4849 = vmatmul.bf16.gmra.mxu0 %v3705
    %v4850 = vpop.f32.mrf.mxu0
    %v4851 = vadd.f32 %v2151, %v4850
    %v4852 = vpop.f32.mrf.mxu0
    %v4853 = vadd.f32 %v2156, %v4852
    %4854 = vmatmul.bf16.gmra.mxu0 %v3708
    %v4855 = vpop.f32.mrf.mxu0
    %v4856 = vadd.f32 %v2161, %v4855
    %v4857 = vpop.f32.mrf.mxu0
    %v4858 = vadd.f32 %v2166, %v4857
    %4859 = vmatmul.bf16.gmra.mxu0 %v3711
    %v4860 = vpop.f32.mrf.mxu0
    %v4861 = vadd.f32 %v2171, %v4860
    %v4862 = vpop.f32.mrf.mxu0
    %v4863 = vadd.f32 %v2176, %v4862
    %4864 = vmatmul.bf16.gmra.mxu0 %v3714
    %v4865 = vpop.f32.mrf.mxu0
    %v4866 = vadd.f32 %v2181, %v4865
    %v4867 = vpop.f32.mrf.mxu0
    %v4868 = vadd.f32 %v2186, %v4867
    %4869 = vmatmul.bf16.gmra.mxu0 %v3717
    %v4870 = vpop.f32.mrf.mxu0
    %v4871 = vadd.f32 %v2191, %v4870
    %v4872 = vpop.f32.mrf.mxu0
    %v4873 = vadd.f32 %v2196, %v4872
    %4874 = vmatmul.bf16.gmra.mxu0 %v3720
    %v4875 = vpop.f32.mrf.mxu0
    %v4876 = vadd.f32 %v2201, %v4875
    %v4877 = vpop.f32.mrf.mxu0
    %v4878 = vadd.f32 %v2206, %v4877
    %4879 = vmatmul.bf16.gmra.mxu0 %v3723
    %v4880 = vpop.f32.mrf.mxu0
    %v4881 = vadd.f32 %v2211, %v4880
    %v4882 = vpop.f32.mrf.mxu0
    %v4883 = vadd.f32 %v2216, %v4882
    %4884 = vmatmul.bf16.gmra.mxu0 %v3726
    %v4885 = vpop.f32.mrf.mxu0
    %v4886 = vadd.f32 %v2221, %v4885
    %v4887 = vpop.f32.mrf.mxu0
    %v4888 = vadd.f32 %v2226, %v4887
    %4889 = vmatmul.bf16.gmra.mxu0 %v3729
    %v4890 = vpop.f32.mrf.mxu0
    %v4891 = vadd.f32 %v2231, %v4890
    %v4892 = vpop.f32.mrf.mxu0
    %v4893 = vadd.f32 %v2236, %v4892
    %4894 = vmatmul.bf16.gmra.mxu0 %v3732
    %v4895 = vpop.f32.mrf.mxu0
    %v4896 = vadd.f32 %v2241, %v4895
    %v4897 = vpop.f32.mrf.mxu0
    %v4898 = vadd.f32 %v2246, %v4897
    %4899 = vmatmul.bf16.gmra.mxu0 %v3735
    %v4900 = vpop.f32.mrf.mxu0
    %v4901 = vadd.f32 %v2251, %v4900
    %v4902 = vpop.f32.mrf.mxu0
    %v4903 = vadd.f32 %v2256, %v4902
    %4904 = vmatmul.bf16.gmra.mxu0 %v3738
    %v4905 = vpop.f32.mrf.mxu0
    %v4906 = vadd.f32 %v2261, %v4905
    %v4907 = vpop.f32.mrf.mxu0
    %v4908 = vadd.f32 %v2266, %v4907
    %4909 = vmatmul.bf16.gmra.mxu0 %v3741
    %v4910 = vpop.f32.mrf.mxu0
    %v4911 = vadd.f32 %v2271, %v4910
    %v4912 = vpop.f32.mrf.mxu0
    %v4913 = vadd.f32 %v2276, %v4912
    %4914 = vmatmul.bf16.gmra.mxu0 %v3744
    %v4915 = vpop.f32.mrf.mxu0
    %v4916 = vadd.f32 %v2281, %v4915
    %v4917 = vpop.f32.mrf.mxu0
    %v4918 = vadd.f32 %v2286, %v4917
    %4919 = vmatmul.bf16.gmra.mxu0 %v3747
    %v4920 = vpop.f32.mrf.mxu0
    %v4921 = vadd.f32 %v2291, %v4920
    %v4922 = vpop.f32.mrf.mxu0
    %v4923 = vadd.f32 %v2296, %v4922
    %4924 = vmatmul.bf16.gmra.mxu0 %v3750
    %v4925 = vpop.f32.mrf.mxu0
    %v4926 = vadd.f32 %v2301, %v4925
    %v4927 = vpop.f32.mrf.mxu0
    %v4928 = vadd.f32 %v2306, %v4927
    %4929 = vmatmul.bf16.gmra.mxu0 %v3753
    %v4930 = vpop.f32.mrf.mxu0
    %v4931 = vadd.f32 %v2311, %v4930
    %v4932 = vpop.f32.mrf.mxu0
    %v4933 = vadd.f32 %v2316, %v4932
    %4934 = vmatmul.bf16.gmra.mxu0 %v3756
    %v4935 = vpop.f32.mrf.mxu0
    %v4936 = vadd.f32 %v2321, %v4935
    %v4937 = vpop.f32.mrf.mxu0
    %v4938 = vadd.f32 %v2326, %v4937
    %4939 = vmatmul.bf16.gmra.mxu0 %v3759
    %v4940 = vpop.f32.mrf.mxu0
    %v4941 = vadd.f32 %v2331, %v4940
    %v4942 = vpop.f32.mrf.mxu0
    %v4943 = vadd.f32 %v2336, %v4942
    %4944 = vmatmul.bf16.gmra.mxu0 %v3762
    %v4945 = vpop.f32.mrf.mxu0
    %v4946 = vadd.f32 %v2341, %v4945
    %v4947 = vpop.f32.mrf.mxu0
    %v4948 = vadd.f32 %v2346, %v4947
    %4949 = vmatmul.bf16.gmra.mxu0 %v3765
    %v4950 = vpop.f32.mrf.mxu0
    %v4951 = vadd.f32 %v2351, %v4950
    %v4952 = vpop.f32.mrf.mxu0
    %v4953 = vadd.f32 %v2356, %v4952
    %4954 = vmatmul.bf16.gmra.mxu0 %v3768
    %v4955 = vpop.f32.mrf.mxu0
    %v4956 = vadd.f32 %v2361, %v4955
    %v4957 = vpop.f32.mrf.mxu0
    %v4958 = vadd.f32 %v2366, %v4957
    %4959 = vmatmul.bf16.gmra.mxu0 %v3771
    %v4960 = vpop.f32.mrf.mxu0
    %v4961 = vadd.f32 %v2371, %v4960
    %v4962 = vpop.f32.mrf.mxu0
    %v4963 = vadd.f32 %v2376, %v4962
    %4964 = vmatmul.bf16.gmra.mxu0 %v3774
    %v4965 = vpop.f32.mrf.mxu0
    %v4966 = vadd.f32 %v2381, %v4965
    %v4967 = vpop.f32.mrf.mxu0
    %v4968 = vadd.f32 %v2386, %v4967
    %4969 = vmatmul.bf16.gmra.mxu0 %v3777
    %v4970 = vpop.f32.mrf.mxu0
    %v4971 = vadd.f32 %v2391, %v4970
    %v4972 = vpop.f32.mrf.mxu0
    %v4973 = vadd.f32 %v2396, %v4972
    %4974 = vmatmul.bf16.gmra.mxu0 %v3780
    %v4975 = vpop.f32.mrf.mxu0
    %v4976 = vadd.f32 %v2401, %v4975
    %v4977 = vpop.f32.mrf.mxu0
    %v4978 = vadd.f32 %v2406, %v4977
    %4979 = vmatmul.bf16.gmra.mxu0 %v3783
    %v4980 = vpop.f32.mrf.mxu0
    %v4981 = vadd.f32 %v2411, %v4980
    %v4982 = vpop.f32.mrf.mxu0
    %v4983 = vadd.f32 %v2416, %v4982
    %4984 = vmatmul.bf16.gmra.mxu0 %v3786
    %v4985 = vpop.f32.mrf.mxu0
    %v4986 = vadd.f32 %v2421, %v4985
    %v4987 = vpop.f32.mrf.mxu0
    %v4988 = vadd.f32 %v2426, %v4987
    %4989 = vmatmul.bf16.gmra.mxu0 %v3789
    %v4990 = vpop.f32.mrf.mxu0
    %v4991 = vadd.f32 %v2431, %v4990
    %v4992 = vpop.f32.mrf.mxu0
    %v4993 = vadd.f32 %v2436, %v4992
    %4994 = vmatmul.bf16.gmra.mxu0 %v3792
    %v4995 = vpop.f32.mrf.mxu0
    %v4996 = vadd.f32 %v2441, %v4995
    %v4997 = vpop.f32.mrf.mxu0
    %v4998 = vadd.f32 %v2446, %v4997
    %4999 = vmatmul.bf16.gmra.mxu0 %v3795
    %v5000 = vpop.f32.mrf.mxu0
    %v5001 = vadd.f32 %v2451, %v5000
    %v5002 = vpop.f32.mrf.mxu0
    %v5003 = vadd.f32 %v2456, %v5002
    %5004 = vmatmul.bf16.gmra.mxu0 %v3798
    %v5005 = vpop.f32.mrf.mxu0
    %v5006 = vadd.f32 %v2461, %v5005
    %v5007 = vpop.f32.mrf.mxu0
    %v5008 = vadd.f32 %v2466, %v5007
    %5009 = vmatmul.bf16.gmra.mxu0 %v3801
    %v5010 = vpop.f32.mrf.mxu0
    %v5011 = vadd.f32 %v2471, %v5010
    %v5012 = vpop.f32.mrf.mxu0
    %v5013 = vadd.f32 %v2476, %v5012
    %5014 = vmatmul.bf16.gmra.mxu0 %v3804
    %v5015 = vpop.f32.mrf.mxu0
    %v5016 = vadd.f32 %v2481, %v5015
    %v5017 = vpop.f32.mrf.mxu0
    %v5018 = vadd.f32 %v2486, %v5017
    %5019 = vmatmul.bf16.gmra.mxu0 %v3807
    %v5020 = vpop.f32.mrf.mxu0
    %v5021 = vadd.f32 %v2491, %v5020
    %v5022 = vpop.f32.mrf.mxu0
    %v5023 = vadd.f32 %v2496, %v5022
    %5024 = vmatmul.bf16.gmra.mxu0 %v3810
    %v5025 = vpop.f32.mrf.mxu0
    %v5026 = vadd.f32 %v2501, %v5025
    %v5027 = vpop.f32.mrf.mxu0
    %v5028 = vadd.f32 %v2506, %v5027
    %5029 = vmatmul.bf16.gmra.mxu0 %v3813
    %v5030 = vpop.f32.mrf.mxu0
    %v5031 = vadd.f32 %v2511, %v5030
    %v5032 = vpop.f32.mrf.mxu0
    %v5033 = vadd.f32 %v2516, %v5032
    %5034 = vmatmul.bf16.gmra.mxu0 %v3816
    %v5035 = vpop.f32.mrf.mxu0
    %v5036 = vadd.f32 %v2521, %v5035
    %v5037 = vpop.f32.mrf.mxu0
    %v5038 = vadd.f32 %v2526, %v5037
    %5039 = vmatmul.bf16.gmra.mxu0 %v3819
    %v5040 = vpop.f32.mrf.mxu0
    %v5041 = vadd.f32 %v2531, %v5040
    %v5042 = vpop.f32.mrf.mxu0
    %v5043 = vadd.f32 %v2536, %v5042
    %5044 = vmatmul.bf16.gmra.mxu0 %v3822
    %v5045 = vpop.f32.mrf.mxu0
    %v5046 = vadd.f32 %v2541, %v5045
    %v5047 = vpop.f32.mrf.mxu0
    %v5048 = vadd.f32 %v2546, %v5047
    %5049 = vmatmul.bf16.gmra.mxu0 %v3825
    %v5050 = vpop.f32.mrf.mxu0
    %v5051 = vadd.f32 %v2551, %v5050
    %v5052 = vpop.f32.mrf.mxu0
    %v5053 = vadd.f32 %v2556, %v5052
    %5054 = vmatmul.bf16.gmra.mxu0 %v3828
    %v5055 = vpop.f32.mrf.mxu0
    %v5056 = vadd.f32 %v2561, %v5055
    %v5057 = vpop.f32.mrf.mxu0
    %v5058 = vadd.f32 %v2566, %v5057
    %5059 = vmatmul.bf16.gmra.mxu0 %v3831
    %v5060 = vpop.f32.mrf.mxu0
    %v5061 = vadd.f32 %v2571, %v5060
    %v5062 = vpop.f32.mrf.mxu0
    %v5063 = vadd.f32 %v2576, %v5062
    %5064 = vmatmul.bf16.gmra.mxu0 %v3834
    %v5065 = vpop.f32.mrf.mxu0
    %v5066 = vadd.f32 %v2581, %v5065
    %v5067 = vpop.f32.mrf.mxu0
    %v5068 = vadd.f32 %v2586, %v5067
    %5069 = vmatmul.bf16.gmra.mxu0 %v3837
    %v5070 = vpop.f32.mrf.mxu0
    %v5071 = vadd.f32 %v2591, %v5070
    %v5072 = vpop.f32.mrf.mxu0
    %v5073 = vadd.f32 %v2596, %v5072
    %5074 = vmatmul.bf16.gmra.mxu0 %v3840
    %v5075 = vpop.f32.mrf.mxu0
    %v5076 = vadd.f32 %v2601, %v5075
    %v5077 = vpop.f32.mrf.mxu0
    %v5078 = vadd.f32 %v2606, %v5077
    %5079 = vmatmul.bf16.gmra.mxu0 %v3843
    %v5080 = vpop.f32.mrf.mxu0
    %v5081 = vadd.f32 %v2611, %v5080
    %v5082 = vpop.f32.mrf.mxu0
    %v5083 = vadd.f32 %v2616, %v5082
    %5084 = vmatmul.bf16.gmra.mxu0 %v3846
    %v5085 = vpop.f32.mrf.mxu0
    %v5086 = vadd.f32 %v2621, %v5085
    %v5087 = vpop.f32.mrf.mxu0
    %v5088 = vadd.f32 %v2626, %v5087
    %5089 = vmatmul.bf16.gmra.mxu0 %v3849
    %v5090 = vpop.f32.mrf.mxu0
    %v5091 = vadd.f32 %v2631, %v5090
    %v5092 = vpop.f32.mrf.mxu0
    %v5093 = vadd.f32 %v2636, %v5092
    %5094 = vmatmul.bf16.gmra.mxu0 %v3852
    %v5095 = vpop.f32.mrf.mxu0
    %v5096 = vadd.f32 %v2641, %v5095
    %v5097 = vpop.f32.mrf.mxu0
    %v5098 = vadd.f32 %v2646, %v5097
    %5099 = vmatmul.bf16.gmra.mxu0 %v3855
    %v5100 = vpop.f32.mrf.mxu0
    %v5101 = vadd.f32 %v2651, %v5100
    %v5102 = vpop.f32.mrf.mxu0
    %v5103 = vadd.f32 %v2656, %v5102
    %5104 = vmatmul.bf16.gmra.mxu0 %v3858
    %v5105 = vpop.f32.mrf.mxu0
    %v5106 = vadd.f32 %v2661, %v5105
    %v5107 = vpop.f32.mrf.mxu0
    %v5108 = vadd.f32 %v2666, %v5107
    %5109 = vmatmul.bf16.gmra.mxu0 %v3861
    %v5110 = vpop.f32.mrf.mxu0
    %v5111 = vadd.f32 %v2671, %v5110
    %v5112 = vpop.f32.mrf.mxu0
    %v5113 = vadd.f32 %v2676, %v5112
    %5114 = vmatmul.bf16.gmra.mxu0 %v3864
    %v5115 = vpop.f32.mrf.mxu0
    %v5116 = vadd.f32 %v2681, %v5115
    %v5117 = vpop.f32.mrf.mxu0
    %v5118 = vadd.f32 %v2686, %v5117
    %5119 = vmatmul.bf16.gmra.mxu0 %v3867
    %v5120 = vpop.f32.mrf.mxu0
    %v5121 = vadd.f32 %v2691, %v5120
    %v5122 = vpop.f32.mrf.mxu0
    %v5123 = vadd.f32 %v2696, %v5122
    %5124 = vmatmul.bf16.gmra.mxu0 %v3870
    %v5125 = vpop.f32.mrf.mxu0
    %v5126 = vadd.f32 %v2701, %v5125
    %v5127 = vpop.f32.mrf.mxu0
    %v5128 = vadd.f32 %v2706, %v5127
    %5129 = vmatmul.bf16.gmra.mxu0 %v3873
    %v5130 = vpop.f32.mrf.mxu0
    %v5131 = vadd.f32 %v2711, %v5130
    %v5132 = vpop.f32.mrf.mxu0
    %v5133 = vadd.f32 %v2716, %v5132
    %5134 = vmatmul.bf16.gmra.mxu0 %v3876
    %v5135 = vpop.f32.mrf.mxu0
    %v5136 = vadd.f32 %v2721, %v5135
    %v5137 = vpop.f32.mrf.mxu0
    %v5138 = vadd.f32 %v2726, %v5137
    %5139 = vmatmul.bf16.gmra.mxu0 %v3879
    %v5140 = vpop.f32.mrf.mxu0
    %v5141 = vadd.f32 %v2731, %v5140
    %v5142 = vpop.f32.mrf.mxu0
    %v5143 = vadd.f32 %v2736, %v5142
    %5144 = vmatmul.bf16.gmra.mxu0 %v3882
    %v5145 = vpop.f32.mrf.mxu0
    %v5146 = vadd.f32 %v2741, %v5145
    %v5147 = vpop.f32.mrf.mxu0
    %v5148 = vadd.f32 %v2746, %v5147
    %5149 = vmatmul.bf16.gmra.mxu0 %v3885
    %v5150 = vpop.f32.mrf.mxu0
    %v5151 = vadd.f32 %v2751, %v5150
    %v5152 = vpop.f32.mrf.mxu0
    %v5153 = vadd.f32 %v2756, %v5152
    %5154 = vmatmul.bf16.gmra.mxu0 %v3888
    %v5155 = vpop.f32.mrf.mxu0
    %v5156 = vadd.f32 %v2761, %v5155
    %v5157 = vpop.f32.mrf.mxu0
    %v5158 = vadd.f32 %v2766, %v5157
    %5159 = vmatmul.bf16.gmra.mxu0 %v3891
    %v5160 = vpop.f32.mrf.mxu0
    %v5161 = vadd.f32 %v2771, %v5160
    %v5162 = vpop.f32.mrf.mxu0
    %v5163 = vadd.f32 %v2776, %v5162
    %5164 = vmatmul.bf16.gmra.mxu0 %v3894
    %v5165 = vpop.f32.mrf.mxu0
    %v5166 = vadd.f32 %v2781, %v5165
    %v5167 = vpop.f32.mrf.mxu0
    %v5168 = vadd.f32 %v2786, %v5167
    %5169 = vmatmul.bf16.gmra.mxu0 %v3897
    %v5170 = vpop.f32.mrf.mxu0
    %v5171 = vadd.f32 %v2791, %v5170
    %v5172 = vpop.f32.mrf.mxu0
    %v5173 = vadd.f32 %v2796, %v5172
    %5174 = vmatmul.bf16.gmra.mxu0 %v3900
    %v5175 = vpop.f32.mrf.mxu0
    %v5176 = vadd.f32 %v2801, %v5175
    %v5177 = vpop.f32.mrf.mxu0
    %v5178 = vadd.f32 %v2806, %v5177
    %5179 = vmatmul.bf16.gmra.mxu0 %v3903
    %v5180 = vpop.f32.mrf.mxu0
    %v5181 = vadd.f32 %v2811, %v5180
    %v5182 = vpop.f32.mrf.mxu0
    %v5183 = vadd.f32 %v2816, %v5182
    %5184 = vmatmul.bf16.gmra.mxu0 %v3906
    %v5185 = vpop.f32.mrf.mxu0
    %v5186 = vadd.f32 %v2821, %v5185
    %v5187 = vpop.f32.mrf.mxu0
    %v5188 = vadd.f32 %v2826, %v5187
    %5189 = vmatmul.bf16.gmra.mxu0 %v3909
    %v5190 = vpop.f32.mrf.mxu0
    %v5191 = vadd.f32 %v2831, %v5190
    %v5192 = vpop.f32.mrf.mxu0
    %v5193 = vadd.f32 %v2836, %v5192
    %5194 = vmatmul.bf16.gmra.mxu0 %v3912
    %v5195 = vpop.f32.mrf.mxu0
    %v5196 = vadd.f32 %v2841, %v5195
    %v5197 = vpop.f32.mrf.mxu0
    %v5198 = vadd.f32 %v2846, %v5197
    %5199 = vmatmul.bf16.gmra.mxu0 %v3915
    %v5200 = vpop.f32.mrf.mxu0
    %v5201 = vadd.f32 %v2851, %v5200
    %v5202 = vpop.f32.mrf.mxu0
    %v5203 = vadd.f32 %v2856, %v5202
    %5204 = vmatmul.bf16.gmra.mxu0 %v3918
    %v5205 = vpop.f32.mrf.mxu0
    %v5206 = vadd.f32 %v2861, %v5205
    %v5207 = vpop.f32.mrf.mxu0
    %v5208 = vadd.f32 %v2866, %v5207
    %5209 = vmatmul.bf16.gmra.mxu0 %v3921
    %v5210 = vpop.f32.mrf.mxu0
    %v5211 = vadd.f32 %v2871, %v5210
    %v5212 = vpop.f32.mrf.mxu0
    %v5213 = vadd.f32 %v2876, %v5212
    %5214 = vmatmul.bf16.gmra.mxu0 %v3924
    %v5215 = vpop.f32.mrf.mxu0
    %v5216 = vadd.f32 %v2881, %v5215
    %v5217 = vpop.f32.mrf.mxu0
    %v5218 = vadd.f32 %v2886, %v5217
    %5219 = vmatmul.bf16.gmra.mxu0 %v3927
    %v5220 = vpop.f32.mrf.mxu0
    %v5221 = vadd.f32 %v2891, %v5220
    %v5222 = vpop.f32.mrf.mxu0
    %v5223 = vadd.f32 %v2896, %v5222
    %5224 = vmatmul.bf16.gmra.mxu0 %v3930
    %v5225 = vpop.f32.mrf.mxu0
    %v5226 = vadd.f32 %v2901, %v5225
    %v5227 = vpop.f32.mrf.mxu0
    %v5228 = vadd.f32 %v2906, %v5227
    %5229 = vdwg.mxu0
    %5230 = vmatpush.bf16.msra.mxu0 0
    %5231 = vmatpush.bf16.msra.mxu0 0
    %5232 = vmatpush.bf16.msra.mxu0 0
    %5233 = vmatpush.bf16.msra.mxu0 0
    %5234 = vmatpush.bf16.msra.mxu0 0
    %5235 = vmatpush.bf16.msra.mxu0 0
    %5236 = vmatpush.bf16.msra.mxu0 0
    %5237 = vmatpush.bf16.msra.mxu0 %v1370
    %5238 = vmatmul.bf16.gmra.mxu0 %v3549
    %v5239 = vpop.f32.mrf.mxu0
    %v5240 = vadd.f32 %v1631, %v5239
    %v5241 = vpop.f32.mrf.mxu0
    %v5242 = vadd.f32 %v1636, %v5241
    %5243 = vmatmul.bf16.gmra.mxu0 %v3552
    %v5244 = vpop.f32.mrf.mxu0
    %v5245 = vadd.f32 %v1641, %v5244
    %v5246 = vpop.f32.mrf.mxu0
    %v5247 = vadd.f32 %v1646, %v5246
    %5248 = vmatmul.bf16.gmra.mxu0 %v3555
    %v5249 = vpop.f32.mrf.mxu0
    %v5250 = vadd.f32 %v1651, %v5249
    %v5251 = vpop.f32.mrf.mxu0
    %v5252 = vadd.f32 %v1656, %v5251
    %5253 = vmatmul.bf16.gmra.mxu0 %v3558
    %v5254 = vpop.f32.mrf.mxu0
    %v5255 = vadd.f32 %v1661, %v5254
    %v5256 = vpop.f32.mrf.mxu0
    %v5257 = vadd.f32 %v1666, %v5256
    %5258 = vmatmul.bf16.gmra.mxu0 %v3561
    %v5259 = vpop.f32.mrf.mxu0
    %v5260 = vadd.f32 %v1671, %v5259
    %v5261 = vpop.f32.mrf.mxu0
    %v5262 = vadd.f32 %v1676, %v5261
    %5263 = vmatmul.bf16.gmra.mxu0 %v3564
    %v5264 = vpop.f32.mrf.mxu0
    %v5265 = vadd.f32 %v1681, %v5264
    %v5266 = vpop.f32.mrf.mxu0
    %v5267 = vadd.f32 %v1686, %v5266
    %5268 = vmatmul.bf16.gmra.mxu0 %v3567
    %v5269 = vpop.f32.mrf.mxu0
    %v5270 = vadd.f32 %v1691, %v5269
    %v5271 = vpop.f32.mrf.mxu0
    %v5272 = vadd.f32 %v1696, %v5271
    %5273 = vmatmul.bf16.gmra.mxu0 %v3570
    %v5274 = vpop.f32.mrf.mxu0
    %v5275 = vadd.f32 %v1701, %v5274
    %v5276 = vpop.f32.mrf.mxu0
    %v5277 = vadd.f32 %v1706, %v5276
    %5278 = vmatmul.bf16.gmra.mxu0 %v3573
    %v5279 = vpop.f32.mrf.mxu0
    %v5280 = vadd.f32 %v1711, %v5279
    %v5281 = vpop.f32.mrf.mxu0
    %v5282 = vadd.f32 %v1716, %v5281
    %5283 = vmatmul.bf16.gmra.mxu0 %v3576
    %v5284 = vpop.f32.mrf.mxu0
    %v5285 = vadd.f32 %v1721, %v5284
    %v5286 = vpop.f32.mrf.mxu0
    %v5287 = vadd.f32 %v1726, %v5286
    %5288 = vmatmul.bf16.gmra.mxu0 %v3579
    %v5289 = vpop.f32.mrf.mxu0
    %v5290 = vadd.f32 %v1731, %v5289
    %v5291 = vpop.f32.mrf.mxu0
    %v5292 = vadd.f32 %v1736, %v5291
    %5293 = vmatmul.bf16.gmra.mxu0 %v3582
    %v5294 = vpop.f32.mrf.mxu0
    %v5295 = vadd.f32 %v1741, %v5294
    %v5296 = vpop.f32.mrf.mxu0
    %v5297 = vadd.f32 %v1746, %v5296
    %5298 = vmatmul.bf16.gmra.mxu0 %v3585
    %v5299 = vpop.f32.mrf.mxu0
    %v5300 = vadd.f32 %v1751, %v5299
    %v5301 = vpop.f32.mrf.mxu0
    %v5302 = vadd.f32 %v1756, %v5301
    %5303 = vmatmul.bf16.gmra.mxu0 %v3588
    %v5304 = vpop.f32.mrf.mxu0
    %v5305 = vadd.f32 %v1761, %v5304
    %v5306 = vpop.f32.mrf.mxu0
    %v5307 = vadd.f32 %v1766, %v5306
    %5308 = vmatmul.bf16.gmra.mxu0 %v3591
    %v5309 = vpop.f32.mrf.mxu0
    %v5310 = vadd.f32 %v1771, %v5309
    %v5311 = vpop.f32.mrf.mxu0
    %v5312 = vadd.f32 %v1776, %v5311
    %5313 = vmatmul.bf16.gmra.mxu0 %v3594
    %v5314 = vpop.f32.mrf.mxu0
    %v5315 = vadd.f32 %v1781, %v5314
    %v5316 = vpop.f32.mrf.mxu0
    %v5317 = vadd.f32 %v1786, %v5316
    %5318 = vmatmul.bf16.gmra.mxu0 %v3597
    %v5319 = vpop.f32.mrf.mxu0
    %v5320 = vadd.f32 %v1791, %v5319
    %v5321 = vpop.f32.mrf.mxu0
    %v5322 = vadd.f32 %v1796, %v5321
    %5323 = vmatmul.bf16.gmra.mxu0 %v3600
    %v5324 = vpop.f32.mrf.mxu0
    %v5325 = vadd.f32 %v1801, %v5324
    %v5326 = vpop.f32.mrf.mxu0
    %v5327 = vadd.f32 %v1806, %v5326
    %5328 = vmatmul.bf16.gmra.mxu0 %v3603
    %v5329 = vpop.f32.mrf.mxu0
    %v5330 = vadd.f32 %v1811, %v5329
    %v5331 = vpop.f32.mrf.mxu0
    %v5332 = vadd.f32 %v1816, %v5331
    %5333 = vmatmul.bf16.gmra.mxu0 %v3606
    %v5334 = vpop.f32.mrf.mxu0
    %v5335 = vadd.f32 %v1821, %v5334
    %v5336 = vpop.f32.mrf.mxu0
    %v5337 = vadd.f32 %v1826, %v5336
    %5338 = vmatmul.bf16.gmra.mxu0 %v3609
    %v5339 = vpop.f32.mrf.mxu0
    %v5340 = vadd.f32 %v1831, %v5339
    %v5341 = vpop.f32.mrf.mxu0
    %v5342 = vadd.f32 %v1836, %v5341
    %5343 = vmatmul.bf16.gmra.mxu0 %v3612
    %v5344 = vpop.f32.mrf.mxu0
    %v5345 = vadd.f32 %v1841, %v5344
    %v5346 = vpop.f32.mrf.mxu0
    %v5347 = vadd.f32 %v1846, %v5346
    %5348 = vmatmul.bf16.gmra.mxu0 %v3615
    %v5349 = vpop.f32.mrf.mxu0
    %v5350 = vadd.f32 %v1851, %v5349
    %v5351 = vpop.f32.mrf.mxu0
    %v5352 = vadd.f32 %v1856, %v5351
    %5353 = vmatmul.bf16.gmra.mxu0 %v3618
    %v5354 = vpop.f32.mrf.mxu0
    %v5355 = vadd.f32 %v1861, %v5354
    %v5356 = vpop.f32.mrf.mxu0
    %v5357 = vadd.f32 %v1866, %v5356
    %5358 = vmatmul.bf16.gmra.mxu0 %v3621
    %v5359 = vpop.f32.mrf.mxu0
    %v5360 = vadd.f32 %v1871, %v5359
    %v5361 = vpop.f32.mrf.mxu0
    %v5362 = vadd.f32 %v1876, %v5361
    %5363 = vmatmul.bf16.gmra.mxu0 %v3624
    %v5364 = vpop.f32.mrf.mxu0
    %v5365 = vadd.f32 %v1881, %v5364
    %v5366 = vpop.f32.mrf.mxu0
    %v5367 = vadd.f32 %v1886, %v5366
    %5368 = vmatmul.bf16.gmra.mxu0 %v3627
    %v5369 = vpop.f32.mrf.mxu0
    %v5370 = vadd.f32 %v1891, %v5369
    %v5371 = vpop.f32.mrf.mxu0
    %v5372 = vadd.f32 %v1896, %v5371
    %5373 = vmatmul.bf16.gmra.mxu0 %v3630
    %v5374 = vpop.f32.mrf.mxu0
    %v5375 = vadd.f32 %v1901, %v5374
    %v5376 = vpop.f32.mrf.mxu0
    %v5377 = vadd.f32 %v1906, %v5376
    %5378 = vmatmul.bf16.gmra.mxu0 %v3633
    %v5379 = vpop.f32.mrf.mxu0
    %v5380 = vadd.f32 %v1911, %v5379
    %v5381 = vpop.f32.mrf.mxu0
    %v5382 = vadd.f32 %v1916, %v5381
    %5383 = vmatmul.bf16.gmra.mxu0 %v3636
    %v5384 = vpop.f32.mrf.mxu0
    %v5385 = vadd.f32 %v1921, %v5384
    %v5386 = vpop.f32.mrf.mxu0
    %v5387 = vadd.f32 %v1926, %v5386
    %5388 = vmatmul.bf16.gmra.mxu0 %v3639
    %v5389 = vpop.f32.mrf.mxu0
    %v5390 = vadd.f32 %v1931, %v5389
    %v5391 = vpop.f32.mrf.mxu0
    %v5392 = vadd.f32 %v1936, %v5391
    %5393 = vmatmul.bf16.gmra.mxu0 %v3642
    %v5394 = vpop.f32.mrf.mxu0
    %v5395 = vadd.f32 %v1941, %v5394
    %v5396 = vpop.f32.mrf.mxu0
    %v5397 = vadd.f32 %v1946, %v5396
    %5398 = vmatmul.bf16.gmra.mxu0 %v3645
    %v5399 = vpop.f32.mrf.mxu0
    %v5400 = vadd.f32 %v1951, %v5399
    %v5401 = vpop.f32.mrf.mxu0
    %v5402 = vadd.f32 %v1956, %v5401
    %5403 = vmatmul.bf16.gmra.mxu0 %v3648
    %v5404 = vpop.f32.mrf.mxu0
    %v5405 = vadd.f32 %v1961, %v5404
    %v5406 = vpop.f32.mrf.mxu0
    %v5407 = vadd.f32 %v1966, %v5406
    %5408 = vmatmul.bf16.gmra.mxu0 %v3651
    %v5409 = vpop.f32.mrf.mxu0
    %v5410 = vadd.f32 %v1971, %v5409
    %v5411 = vpop.f32.mrf.mxu0
    %v5412 = vadd.f32 %v1976, %v5411
    %5413 = vmatmul.bf16.gmra.mxu0 %v3654
    %v5414 = vpop.f32.mrf.mxu0
    %v5415 = vadd.f32 %v1981, %v5414
    %v5416 = vpop.f32.mrf.mxu0
    %v5417 = vadd.f32 %v1986, %v5416
    %5418 = vmatmul.bf16.gmra.mxu0 %v3657
    %v5419 = vpop.f32.mrf.mxu0
    %v5420 = vadd.f32 %v1991, %v5419
    %v5421 = vpop.f32.mrf.mxu0
    %v5422 = vadd.f32 %v1996, %v5421
    %5423 = vmatmul.bf16.gmra.mxu0 %v3660
    %v5424 = vpop.f32.mrf.mxu0
    %v5425 = vadd.f32 %v2001, %v5424
    %v5426 = vpop.f32.mrf.mxu0
    %v5427 = vadd.f32 %v2006, %v5426
    %5428 = vmatmul.bf16.gmra.mxu0 %v3663
    %v5429 = vpop.f32.mrf.mxu0
    %v5430 = vadd.f32 %v2011, %v5429
    %v5431 = vpop.f32.mrf.mxu0
    %v5432 = vadd.f32 %v2016, %v5431
    %5433 = vmatmul.bf16.gmra.mxu0 %v3666
    %v5434 = vpop.f32.mrf.mxu0
    %v5435 = vadd.f32 %v2021, %v5434
    %v5436 = vpop.f32.mrf.mxu0
    %v5437 = vadd.f32 %v2026, %v5436
    %5438 = vmatmul.bf16.gmra.mxu0 %v3669
    %v5439 = vpop.f32.mrf.mxu0
    %v5440 = vadd.f32 %v2031, %v5439
    %v5441 = vpop.f32.mrf.mxu0
    %v5442 = vadd.f32 %v2036, %v5441
    %5443 = vmatmul.bf16.gmra.mxu0 %v3672
    %v5444 = vpop.f32.mrf.mxu0
    %v5445 = vadd.f32 %v2041, %v5444
    %v5446 = vpop.f32.mrf.mxu0
    %v5447 = vadd.f32 %v2046, %v5446
    %5448 = vmatmul.bf16.gmra.mxu0 %v3675
    %v5449 = vpop.f32.mrf.mxu0
    %v5450 = vadd.f32 %v2051, %v5449
    %v5451 = vpop.f32.mrf.mxu0
    %v5452 = vadd.f32 %v2056, %v5451
    %5453 = vmatmul.bf16.gmra.mxu0 %v3678
    %v5454 = vpop.f32.mrf.mxu0
    %v5455 = vadd.f32 %v2061, %v5454
    %v5456 = vpop.f32.mrf.mxu0
    %v5457 = vadd.f32 %v2066, %v5456
    %5458 = vmatmul.bf16.gmra.mxu0 %v3681
    %v5459 = vpop.f32.mrf.mxu0
    %v5460 = vadd.f32 %v2071, %v5459
    %v5461 = vpop.f32.mrf.mxu0
    %v5462 = vadd.f32 %v2076, %v5461
    %5463 = vmatmul.bf16.gmra.mxu0 %v3684
    %v5464 = vpop.f32.mrf.mxu0
    %v5465 = vadd.f32 %v2081, %v5464
    %v5466 = vpop.f32.mrf.mxu0
    %v5467 = vadd.f32 %v2086, %v5466
    %5468 = vmatmul.bf16.gmra.mxu0 %v3687
    %v5469 = vpop.f32.mrf.mxu0
    %v5470 = vadd.f32 %v2091, %v5469
    %v5471 = vpop.f32.mrf.mxu0
    %v5472 = vadd.f32 %v2096, %v5471
    %5473 = vmatmul.bf16.gmra.mxu0 %v3690
    %v5474 = vpop.f32.mrf.mxu0
    %v5475 = vadd.f32 %v2101, %v5474
    %v5476 = vpop.f32.mrf.mxu0
    %v5477 = vadd.f32 %v2106, %v5476
    %5478 = vmatmul.bf16.gmra.mxu0 %v3693
    %v5479 = vpop.f32.mrf.mxu0
    %v5480 = vadd.f32 %v2111, %v5479
    %v5481 = vpop.f32.mrf.mxu0
    %v5482 = vadd.f32 %v2116, %v5481
    %5483 = vmatmul.bf16.gmra.mxu0 %v3696
    %v5484 = vpop.f32.mrf.mxu0
    %v5485 = vadd.f32 %v2121, %v5484
    %v5486 = vpop.f32.mrf.mxu0
    %v5487 = vadd.f32 %v2126, %v5486
    %5488 = vmatmul.bf16.gmra.mxu0 %v3699
    %v5489 = vpop.f32.mrf.mxu0
    %v5490 = vadd.f32 %v2131, %v5489
    %v5491 = vpop.f32.mrf.mxu0
    %v5492 = vadd.f32 %v2136, %v5491
    %5493 = vmatmul.bf16.gmra.mxu0 %v3702
    %v5494 = vpop.f32.mrf.mxu0
    %v5495 = vadd.f32 %v2141, %v5494
    %v5496 = vpop.f32.mrf.mxu0
    %v5497 = vadd.f32 %v2146, %v5496
    %5498 = vmatmul.bf16.gmra.mxu0 %v3705
    %v5499 = vpop.f32.mrf.mxu0
    %v5500 = vadd.f32 %v2151, %v5499
    %v5501 = vpop.f32.mrf.mxu0
    %v5502 = vadd.f32 %v2156, %v5501
    %5503 = vmatmul.bf16.gmra.mxu0 %v3708
    %v5504 = vpop.f32.mrf.mxu0
    %v5505 = vadd.f32 %v2161, %v5504
    %v5506 = vpop.f32.mrf.mxu0
    %v5507 = vadd.f32 %v2166, %v5506
    %5508 = vmatmul.bf16.gmra.mxu0 %v3711
    %v5509 = vpop.f32.mrf.mxu0
    %v5510 = vadd.f32 %v2171, %v5509
    %v5511 = vpop.f32.mrf.mxu0
    %v5512 = vadd.f32 %v2176, %v5511
    %5513 = vmatmul.bf16.gmra.mxu0 %v3714
    %v5514 = vpop.f32.mrf.mxu0
    %v5515 = vadd.f32 %v2181, %v5514
    %v5516 = vpop.f32.mrf.mxu0
    %v5517 = vadd.f32 %v2186, %v5516
    %5518 = vmatmul.bf16.gmra.mxu0 %v3717
    %v5519 = vpop.f32.mrf.mxu0
    %v5520 = vadd.f32 %v2191, %v5519
    %v5521 = vpop.f32.mrf.mxu0
    %v5522 = vadd.f32 %v2196, %v5521
    %5523 = vmatmul.bf16.gmra.mxu0 %v3720
    %v5524 = vpop.f32.mrf.mxu0
    %v5525 = vadd.f32 %v2201, %v5524
    %v5526 = vpop.f32.mrf.mxu0
    %v5527 = vadd.f32 %v2206, %v5526
    %5528 = vmatmul.bf16.gmra.mxu0 %v3723
    %v5529 = vpop.f32.mrf.mxu0
    %v5530 = vadd.f32 %v2211, %v5529
    %v5531 = vpop.f32.mrf.mxu0
    %v5532 = vadd.f32 %v2216, %v5531
    %5533 = vmatmul.bf16.gmra.mxu0 %v3726
    %v5534 = vpop.f32.mrf.mxu0
    %v5535 = vadd.f32 %v2221, %v5534
    %v5536 = vpop.f32.mrf.mxu0
    %v5537 = vadd.f32 %v2226, %v5536
    %5538 = vmatmul.bf16.gmra.mxu0 %v3729
    %v5539 = vpop.f32.mrf.mxu0
    %v5540 = vadd.f32 %v2231, %v5539
    %v5541 = vpop.f32.mrf.mxu0
    %v5542 = vadd.f32 %v2236, %v5541
    %5543 = vmatmul.bf16.gmra.mxu0 %v3732
    %v5544 = vpop.f32.mrf.mxu0
    %v5545 = vadd.f32 %v2241, %v5544
    %v5546 = vpop.f32.mrf.mxu0
    %v5547 = vadd.f32 %v2246, %v5546
    %5548 = vmatmul.bf16.gmra.mxu0 %v3735
    %v5549 = vpop.f32.mrf.mxu0
    %v5550 = vadd.f32 %v2251, %v5549
    %v5551 = vpop.f32.mrf.mxu0
    %v5552 = vadd.f32 %v2256, %v5551
    %5553 = vmatmul.bf16.gmra.mxu0 %v3738
    %v5554 = vpop.f32.mrf.mxu0
    %v5555 = vadd.f32 %v2261, %v5554
    %v5556 = vpop.f32.mrf.mxu0
    %v5557 = vadd.f32 %v2266, %v5556
    %5558 = vmatmul.bf16.gmra.mxu0 %v3741
    %v5559 = vpop.f32.mrf.mxu0
    %v5560 = vadd.f32 %v2271, %v5559
    %v5561 = vpop.f32.mrf.mxu0
    %v5562 = vadd.f32 %v2276, %v5561
    %5563 = vmatmul.bf16.gmra.mxu0 %v3744
    %v5564 = vpop.f32.mrf.mxu0
    %v5565 = vadd.f32 %v2281, %v5564
    %v5566 = vpop.f32.mrf.mxu0
    %v5567 = vadd.f32 %v2286, %v5566
    %5568 = vmatmul.bf16.gmra.mxu0 %v3747
    %v5569 = vpop.f32.mrf.mxu0
    %v5570 = vadd.f32 %v2291, %v5569
    %v5571 = vpop.f32.mrf.mxu0
    %v5572 = vadd.f32 %v2296, %v5571
    %5573 = vmatmul.bf16.gmra.mxu0 %v3750
    %v5574 = vpop.f32.mrf.mxu0
    %v5575 = vadd.f32 %v2301, %v5574
    %v5576 = vpop.f32.mrf.mxu0
    %v5577 = vadd.f32 %v2306, %v5576
    %5578 = vmatmul.bf16.gmra.mxu0 %v3753
    %v5579 = vpop.f32.mrf.mxu0
    %v5580 = vadd.f32 %v2311, %v5579
    %v5581 = vpop.f32.mrf.mxu0
    %v5582 = vadd.f32 %v2316, %v5581
    %5583 = vmatmul.bf16.gmra.mxu0 %v3756
    %v5584 = vpop.f32.mrf.mxu0
    %v5585 = vadd.f32 %v2321, %v5584
    %v5586 = vpop.f32.mrf.mxu0
    %v5587 = vadd.f32 %v2326, %v5586
    %5588 = vmatmul.bf16.gmra.mxu0 %v3759
    %v5589 = vpop.f32.mrf.mxu0
    %v5590 = vadd.f32 %v2331, %v5589
    %v5591 = vpop.f32.mrf.mxu0
    %v5592 = vadd.f32 %v2336, %v5591
    %5593 = vmatmul.bf16.gmra.mxu0 %v3762
    %v5594 = vpop.f32.mrf.mxu0
    %v5595 = vadd.f32 %v2341, %v5594
    %v5596 = vpop.f32.mrf.mxu0
    %v5597 = vadd.f32 %v2346, %v5596
    %5598 = vmatmul.bf16.gmra.mxu0 %v3765
    %v5599 = vpop.f32.mrf.mxu0
    %v5600 = vadd.f32 %v2351, %v5599
    %v5601 = vpop.f32.mrf.mxu0
    %v5602 = vadd.f32 %v2356, %v5601
    %5603 = vmatmul.bf16.gmra.mxu0 %v3768
    %v5604 = vpop.f32.mrf.mxu0
    %v5605 = vadd.f32 %v2361, %v5604
    %v5606 = vpop.f32.mrf.mxu0
    %v5607 = vadd.f32 %v2366, %v5606
    %5608 = vmatmul.bf16.gmra.mxu0 %v3771
    %v5609 = vpop.f32.mrf.mxu0
    %v5610 = vadd.f32 %v2371, %v5609
    %v5611 = vpop.f32.mrf.mxu0
    %v5612 = vadd.f32 %v2376, %v5611
    %5613 = vmatmul.bf16.gmra.mxu0 %v3774
    %v5614 = vpop.f32.mrf.mxu0
    %v5615 = vadd.f32 %v2381, %v5614
    %v5616 = vpop.f32.mrf.mxu0
    %v5617 = vadd.f32 %v2386, %v5616
    %5618 = vmatmul.bf16.gmra.mxu0 %v3777
    %v5619 = vpop.f32.mrf.mxu0
    %v5620 = vadd.f32 %v2391, %v5619
    %v5621 = vpop.f32.mrf.mxu0
    %v5622 = vadd.f32 %v2396, %v5621
    %5623 = vmatmul.bf16.gmra.mxu0 %v3780
    %v5624 = vpop.f32.mrf.mxu0
    %v5625 = vadd.f32 %v2401, %v5624
    %v5626 = vpop.f32.mrf.mxu0
    %v5627 = vadd.f32 %v2406, %v5626
    %5628 = vmatmul.bf16.gmra.mxu0 %v3783
    %v5629 = vpop.f32.mrf.mxu0
    %v5630 = vadd.f32 %v2411, %v5629
    %v5631 = vpop.f32.mrf.mxu0
    %v5632 = vadd.f32 %v2416, %v5631
    %5633 = vmatmul.bf16.gmra.mxu0 %v3786
    %v5634 = vpop.f32.mrf.mxu0
    %v5635 = vadd.f32 %v2421, %v5634
    %v5636 = vpop.f32.mrf.mxu0
    %v5637 = vadd.f32 %v2426, %v5636
    %5638 = vmatmul.bf16.gmra.mxu0 %v3789
    %v5639 = vpop.f32.mrf.mxu0
    %v5640 = vadd.f32 %v2431, %v5639
    %v5641 = vpop.f32.mrf.mxu0
    %v5642 = vadd.f32 %v2436, %v5641
    %5643 = vmatmul.bf16.gmra.mxu0 %v3792
    %v5644 = vpop.f32.mrf.mxu0
    %v5645 = vadd.f32 %v2441, %v5644
    %v5646 = vpop.f32.mrf.mxu0
    %v5647 = vadd.f32 %v2446, %v5646
    %5648 = vmatmul.bf16.gmra.mxu0 %v3795
    %v5649 = vpop.f32.mrf.mxu0
    %v5650 = vadd.f32 %v2451, %v5649
    %v5651 = vpop.f32.mrf.mxu0
    %v5652 = vadd.f32 %v2456, %v5651
    %5653 = vmatmul.bf16.gmra.mxu0 %v3798
    %v5654 = vpop.f32.mrf.mxu0
    %v5655 = vadd.f32 %v2461, %v5654
    %v5656 = vpop.f32.mrf.mxu0
    %v5657 = vadd.f32 %v2466, %v5656
    %5658 = vmatmul.bf16.gmra.mxu0 %v3801
    %v5659 = vpop.f32.mrf.mxu0
    %v5660 = vadd.f32 %v2471, %v5659
    %v5661 = vpop.f32.mrf.mxu0
    %v5662 = vadd.f32 %v2476, %v5661
    %5663 = vmatmul.bf16.gmra.mxu0 %v3804
    %v5664 = vpop.f32.mrf.mxu0
    %v5665 = vadd.f32 %v2481, %v5664
    %v5666 = vpop.f32.mrf.mxu0
    %v5667 = vadd.f32 %v2486, %v5666
    %5668 = vmatmul.bf16.gmra.mxu0 %v3807
    %v5669 = vpop.f32.mrf.mxu0
    %v5670 = vadd.f32 %v2491, %v5669
    %v5671 = vpop.f32.mrf.mxu0
    %v5672 = vadd.f32 %v2496, %v5671
    %5673 = vmatmul.bf16.gmra.mxu0 %v3810
    %v5674 = vpop.f32.mrf.mxu0
    %v5675 = vadd.f32 %v2501, %v5674
    %v5676 = vpop.f32.mrf.mxu0
    %v5677 = vadd.f32 %v2506, %v5676
    %5678 = vmatmul.bf16.gmra.mxu0 %v3813
    %v5679 = vpop.f32.mrf.mxu0
    %v5680 = vadd.f32 %v2511, %v5679
    %v5681 = vpop.f32.mrf.mxu0
    %v5682 = vadd.f32 %v2516, %v5681
    %5683 = vmatmul.bf16.gmra.mxu0 %v3816
    %v5684 = vpop.f32.mrf.mxu0
    %v5685 = vadd.f32 %v2521, %v5684
    %v5686 = vpop.f32.mrf.mxu0
    %v5687 = vadd.f32 %v2526, %v5686
    %5688 = vmatmul.bf16.gmra.mxu0 %v3819
    %v5689 = vpop.f32.mrf.mxu0
    %v5690 = vadd.f32 %v2531, %v5689
    %v5691 = vpop.f32.mrf.mxu0
    %v5692 = vadd.f32 %v2536, %v5691
    %5693 = vmatmul.bf16.gmra.mxu0 %v3822
    %v5694 = vpop.f32.mrf.mxu0
    %v5695 = vadd.f32 %v2541, %v5694
    %v5696 = vpop.f32.mrf.mxu0
    %v5697 = vadd.f32 %v2546, %v5696
    %5698 = vmatmul.bf16.gmra.mxu0 %v3825
    %v5699 = vpop.f32.mrf.mxu0
    %v5700 = vadd.f32 %v2551, %v5699
    %v5701 = vpop.f32.mrf.mxu0
    %v5702 = vadd.f32 %v2556, %v5701
    %5703 = vmatmul.bf16.gmra.mxu0 %v3828
    %v5704 = vpop.f32.mrf.mxu0
    %v5705 = vadd.f32 %v2561, %v5704
    %v5706 = vpop.f32.mrf.mxu0
    %v5707 = vadd.f32 %v2566, %v5706
    %5708 = vmatmul.bf16.gmra.mxu0 %v3831
    %v5709 = vpop.f32.mrf.mxu0
    %v5710 = vadd.f32 %v2571, %v5709
    %v5711 = vpop.f32.mrf.mxu0
    %v5712 = vadd.f32 %v2576, %v5711
    %5713 = vmatmul.bf16.gmra.mxu0 %v3834
    %v5714 = vpop.f32.mrf.mxu0
    %v5715 = vadd.f32 %v2581, %v5714
    %v5716 = vpop.f32.mrf.mxu0
    %v5717 = vadd.f32 %v2586, %v5716
    %5718 = vmatmul.bf16.gmra.mxu0 %v3837
    %v5719 = vpop.f32.mrf.mxu0
    %v5720 = vadd.f32 %v2591, %v5719
    %v5721 = vpop.f32.mrf.mxu0
    %v5722 = vadd.f32 %v2596, %v5721
    %5723 = vmatmul.bf16.gmra.mxu0 %v3840
    %v5724 = vpop.f32.mrf.mxu0
    %v5725 = vadd.f32 %v2601, %v5724
    %v5726 = vpop.f32.mrf.mxu0
    %v5727 = vadd.f32 %v2606, %v5726
    %5728 = vmatmul.bf16.gmra.mxu0 %v3843
    %v5729 = vpop.f32.mrf.mxu0
    %v5730 = vadd.f32 %v2611, %v5729
    %v5731 = vpop.f32.mrf.mxu0
    %v5732 = vadd.f32 %v2616, %v5731
    %5733 = vmatmul.bf16.gmra.mxu0 %v3846
    %v5734 = vpop.f32.mrf.mxu0
    %v5735 = vadd.f32 %v2621, %v5734
    %v5736 = vpop.f32.mrf.mxu0
    %v5737 = vadd.f32 %v2626, %v5736
    %5738 = vmatmul.bf16.gmra.mxu0 %v3849
    %v5739 = vpop.f32.mrf.mxu0
    %v5740 = vadd.f32 %v2631, %v5739
    %v5741 = vpop.f32.mrf.mxu0
    %v5742 = vadd.f32 %v2636, %v5741
    %5743 = vmatmul.bf16.gmra.mxu0 %v3852
    %v5744 = vpop.f32.mrf.mxu0
    %v5745 = vadd.f32 %v2641, %v5744
    %v5746 = vpop.f32.mrf.mxu0
    %v5747 = vadd.f32 %v2646, %v5746
    %5748 = vmatmul.bf16.gmra.mxu0 %v3855
    %v5749 = vpop.f32.mrf.mxu0
    %v5750 = vadd.f32 %v2651, %v5749
    %v5751 = vpop.f32.mrf.mxu0
    %v5752 = vadd.f32 %v2656, %v5751
    %5753 = vmatmul.bf16.gmra.mxu0 %v3858
    %v5754 = vpop.f32.mrf.mxu0
    %v5755 = vadd.f32 %v2661, %v5754
    %v5756 = vpop.f32.mrf.mxu0
    %v5757 = vadd.f32 %v2666, %v5756
    %5758 = vmatmul.bf16.gmra.mxu0 %v3861
    %v5759 = vpop.f32.mrf.mxu0
    %v5760 = vadd.f32 %v2671, %v5759
    %v5761 = vpop.f32.mrf.mxu0
    %v5762 = vadd.f32 %v2676, %v5761
    %5763 = vmatmul.bf16.gmra.mxu0 %v3864
    %v5764 = vpop.f32.mrf.mxu0
    %v5765 = vadd.f32 %v2681, %v5764
    %v5766 = vpop.f32.mrf.mxu0
    %v5767 = vadd.f32 %v2686, %v5766
    %5768 = vmatmul.bf16.gmra.mxu0 %v3867
    %v5769 = vpop.f32.mrf.mxu0
    %v5770 = vadd.f32 %v2691, %v5769
    %v5771 = vpop.f32.mrf.mxu0
    %v5772 = vadd.f32 %v2696, %v5771
    %5773 = vmatmul.bf16.gmra.mxu0 %v3870
    %v5774 = vpop.f32.mrf.mxu0
    %v5775 = vadd.f32 %v2701, %v5774
    %v5776 = vpop.f32.mrf.mxu0
    %v5777 = vadd.f32 %v2706, %v5776
    %5778 = vmatmul.bf16.gmra.mxu0 %v3873
    %v5779 = vpop.f32.mrf.mxu0
    %v5780 = vadd.f32 %v2711, %v5779
    %v5781 = vpop.f32.mrf.mxu0
    %v5782 = vadd.f32 %v2716, %v5781
    %5783 = vmatmul.bf16.gmra.mxu0 %v3876
    %v5784 = vpop.f32.mrf.mxu0
    %v5785 = vadd.f32 %v2721, %v5784
    %v5786 = vpop.f32.mrf.mxu0
    %v5787 = vadd.f32 %v2726, %v5786
    %5788 = vmatmul.bf16.gmra.mxu0 %v3879
    %v5789 = vpop.f32.mrf.mxu0
    %v5790 = vadd.f32 %v2731, %v5789
    %v5791 = vpop.f32.mrf.mxu0
    %v5792 = vadd.f32 %v2736, %v5791
    %5793 = vmatmul.bf16.gmra.mxu0 %v3882
    %v5794 = vpop.f32.mrf.mxu0
    %v5795 = vadd.f32 %v2741, %v5794
    %v5796 = vpop.f32.mrf.mxu0
    %v5797 = vadd.f32 %v2746, %v5796
    %5798 = vmatmul.bf16.gmra.mxu0 %v3885
    %v5799 = vpop.f32.mrf.mxu0
    %v5800 = vadd.f32 %v2751, %v5799
    %v5801 = vpop.f32.mrf.mxu0
    %v5802 = vadd.f32 %v2756, %v5801
    %5803 = vmatmul.bf16.gmra.mxu0 %v3888
    %v5804 = vpop.f32.mrf.mxu0
    %v5805 = vadd.f32 %v2761, %v5804
    %v5806 = vpop.f32.mrf.mxu0
    %v5807 = vadd.f32 %v2766, %v5806
    %5808 = vmatmul.bf16.gmra.mxu0 %v3891
    %v5809 = vpop.f32.mrf.mxu0
    %v5810 = vadd.f32 %v2771, %v5809
    %v5811 = vpop.f32.mrf.mxu0
    %v5812 = vadd.f32 %v2776, %v5811
    %5813 = vmatmul.bf16.gmra.mxu0 %v3894
    %v5814 = vpop.f32.mrf.mxu0
    %v5815 = vadd.f32 %v2781, %v5814
    %v5816 = vpop.f32.mrf.mxu0
    %v5817 = vadd.f32 %v2786, %v5816
    %5818 = vmatmul.bf16.gmra.mxu0 %v3897
    %v5819 = vpop.f32.mrf.mxu0
    %v5820 = vadd.f32 %v2791, %v5819
    %v5821 = vpop.f32.mrf.mxu0
    %v5822 = vadd.f32 %v2796, %v5821
    %5823 = vmatmul.bf16.gmra.mxu0 %v3900
    %v5824 = vpop.f32.mrf.mxu0
    %v5825 = vadd.f32 %v2801, %v5824
    %v5826 = vpop.f32.mrf.mxu0
    %v5827 = vadd.f32 %v2806, %v5826
    %5828 = vmatmul.bf16.gmra.mxu0 %v3903
    %v5829 = vpop.f32.mrf.mxu0
    %v5830 = vadd.f32 %v2811, %v5829
    %v5831 = vpop.f32.mrf.mxu0
    %v5832 = vadd.f32 %v2816, %v5831
    %5833 = vmatmul.bf16.gmra.mxu0 %v3906
    %v5834 = vpop.f32.mrf.mxu0
    %v5835 = vadd.f32 %v2821, %v5834
    %v5836 = vpop.f32.mrf.mxu0
    %v5837 = vadd.f32 %v2826, %v5836
    %5838 = vmatmul.bf16.gmra.mxu0 %v3909
    %v5839 = vpop.f32.mrf.mxu0
    %v5840 = vadd.f32 %v2831, %v5839
    %v5841 = vpop.f32.mrf.mxu0
    %v5842 = vadd.f32 %v2836, %v5841
    %5843 = vmatmul.bf16.gmra.mxu0 %v3912
    %v5844 = vpop.f32.mrf.mxu0
    %v5845 = vadd.f32 %v2841, %v5844
    %v5846 = vpop.f32.mrf.mxu0
    %v5847 = vadd.f32 %v2846, %v5846
    %5848 = vmatmul.bf16.gmra.mxu0 %v3915
    %v5849 = vpop.f32.mrf.mxu0
    %v5850 = vadd.f32 %v2851, %v5849
    %v5851 = vpop.f32.mrf.mxu0
    %v5852 = vadd.f32 %v2856, %v5851
    %5853 = vmatmul.bf16.gmra.mxu0 %v3918
    %v5854 = vpop.f32.mrf.mxu0
    %v5855 = vadd.f32 %v2861, %v5854
    %v5856 = vpop.f32.mrf.mxu0
    %v5857 = vadd.f32 %v2866, %v5856
    %5858 = vmatmul.bf16.gmra.mxu0 %v3921
    %v5859 = vpop.f32.mrf.mxu0
    %v5860 = vadd.f32 %v2871, %v5859
    %v5861 = vpop.f32.mrf.mxu0
    %v5862 = vadd.f32 %v2876, %v5861
    %5863 = vmatmul.bf16.gmra.mxu0 %v3924
    %v5864 = vpop.f32.mrf.mxu0
    %v5865 = vadd.f32 %v2881, %v5864
    %v5866 = vpop.f32.mrf.mxu0
    %v5867 = vadd.f32 %v2886, %v5866
    %5868 = vmatmul.bf16.gmra.mxu0 %v3927
    %v5869 = vpop.f32.mrf.mxu0
    %v5870 = vadd.f32 %v2891, %v5869
    %v5871 = vpop.f32.mrf.mxu0
    %v5872 = vadd.f32 %v2896, %v5871
    %5873 = vmatmul.bf16.gmra.mxu0 %v3930
    %v5874 = vpop.f32.mrf.mxu0
    %v5875 = vadd.f32 %v2901, %v5874
    %v5876 = vpop.f32.mrf.mxu0
    %v5877 = vadd.f32 %v2906, %v5876
    %5878 = vdwg.mxu0
    %5879 = vmatpush.bf16.msra.mxu0 0
    %5880 = vmatpush.bf16.msra.mxu0 0
    %5881 = vmatpush.bf16.msra.mxu0 0
    %5882 = vmatpush.bf16.msra.mxu0 0
    %5883 = vmatpush.bf16.msra.mxu0 0
    %5884 = vmatpush.bf16.msra.mxu0 0
    %5885 = vmatpush.bf16.msra.mxu0 0
    %5886 = vmatpush.bf16.msra.mxu0 %v1371
    %5887 = vmatmul.bf16.gmra.mxu0 %v3549
    %v5888 = vpop.f32.mrf.mxu0
    %v5889 = vadd.f32 %v1631, %v5888
    %v5890 = vpop.f32.mrf.mxu0
    %v5891 = vadd.f32 %v1636, %v5890
    %5892 = vmatmul.bf16.gmra.mxu0 %v3552
    %v5893 = vpop.f32.mrf.mxu0
    %v5894 = vadd.f32 %v1641, %v5893
    %v5895 = vpop.f32.mrf.mxu0
    %v5896 = vadd.f32 %v1646, %v5895
    %5897 = vmatmul.bf16.gmra.mxu0 %v3555
    %v5898 = vpop.f32.mrf.mxu0
    %v5899 = vadd.f32 %v1651, %v5898
    %v5900 = vpop.f32.mrf.mxu0
    %v5901 = vadd.f32 %v1656, %v5900
    %5902 = vmatmul.bf16.gmra.mxu0 %v3558
    %v5903 = vpop.f32.mrf.mxu0
    %v5904 = vadd.f32 %v1661, %v5903
    %v5905 = vpop.f32.mrf.mxu0
    %v5906 = vadd.f32 %v1666, %v5905
    %5907 = vmatmul.bf16.gmra.mxu0 %v3561
    %v5908 = vpop.f32.mrf.mxu0
    %v5909 = vadd.f32 %v1671, %v5908
    %v5910 = vpop.f32.mrf.mxu0
    %v5911 = vadd.f32 %v1676, %v5910
    %5912 = vmatmul.bf16.gmra.mxu0 %v3564
    %v5913 = vpop.f32.mrf.mxu0
    %v5914 = vadd.f32 %v1681, %v5913
    %v5915 = vpop.f32.mrf.mxu0
    %v5916 = vadd.f32 %v1686, %v5915
    %5917 = vmatmul.bf16.gmra.mxu0 %v3567
    %v5918 = vpop.f32.mrf.mxu0
    %v5919 = vadd.f32 %v1691, %v5918
    %v5920 = vpop.f32.mrf.mxu0
    %v5921 = vadd.f32 %v1696, %v5920
    %5922 = vmatmul.bf16.gmra.mxu0 %v3570
    %v5923 = vpop.f32.mrf.mxu0
    %v5924 = vadd.f32 %v1701, %v5923
    %v5925 = vpop.f32.mrf.mxu0
    %v5926 = vadd.f32 %v1706, %v5925
    %5927 = vmatmul.bf16.gmra.mxu0 %v3573
    %v5928 = vpop.f32.mrf.mxu0
    %v5929 = vadd.f32 %v1711, %v5928
    %v5930 = vpop.f32.mrf.mxu0
    %v5931 = vadd.f32 %v1716, %v5930
    %5932 = vmatmul.bf16.gmra.mxu0 %v3576
    %v5933 = vpop.f32.mrf.mxu0
    %v5934 = vadd.f32 %v1721, %v5933
    %v5935 = vpop.f32.mrf.mxu0
    %v5936 = vadd.f32 %v1726, %v5935
    %5937 = vmatmul.bf16.gmra.mxu0 %v3579
    %v5938 = vpop.f32.mrf.mxu0
    %v5939 = vadd.f32 %v1731, %v5938
    %v5940 = vpop.f32.mrf.mxu0
    %v5941 = vadd.f32 %v1736, %v5940
    %5942 = vmatmul.bf16.gmra.mxu0 %v3582
    %v5943 = vpop.f32.mrf.mxu0
    %v5944 = vadd.f32 %v1741, %v5943
    %v5945 = vpop.f32.mrf.mxu0
    %v5946 = vadd.f32 %v1746, %v5945
    %5947 = vmatmul.bf16.gmra.mxu0 %v3585
    %v5948 = vpop.f32.mrf.mxu0
    %v5949 = vadd.f32 %v1751, %v5948
    %v5950 = vpop.f32.mrf.mxu0
    %v5951 = vadd.f32 %v1756, %v5950
    %5952 = vmatmul.bf16.gmra.mxu0 %v3588
    %v5953 = vpop.f32.mrf.mxu0
    %v5954 = vadd.f32 %v1761, %v5953
    %v5955 = vpop.f32.mrf.mxu0
    %v5956 = vadd.f32 %v1766, %v5955
    %5957 = vmatmul.bf16.gmra.mxu0 %v3591
    %v5958 = vpop.f32.mrf.mxu0
    %v5959 = vadd.f32 %v1771, %v5958
    %v5960 = vpop.f32.mrf.mxu0
    %v5961 = vadd.f32 %v1776, %v5960
    %5962 = vmatmul.bf16.gmra.mxu0 %v3594
    %v5963 = vpop.f32.mrf.mxu0
    %v5964 = vadd.f32 %v1781, %v5963
    %v5965 = vpop.f32.mrf.mxu0
    %v5966 = vadd.f32 %v1786, %v5965
    %5967 = vmatmul.bf16.gmra.mxu0 %v3597
    %v5968 = vpop.f32.mrf.mxu0
    %v5969 = vadd.f32 %v1791, %v5968
    %v5970 = vpop.f32.mrf.mxu0
    %v5971 = vadd.f32 %v1796, %v5970
    %5972 = vmatmul.bf16.gmra.mxu0 %v3600
    %v5973 = vpop.f32.mrf.mxu0
    %v5974 = vadd.f32 %v1801, %v5973
    %v5975 = vpop.f32.mrf.mxu0
    %v5976 = vadd.f32 %v1806, %v5975
    %5977 = vmatmul.bf16.gmra.mxu0 %v3603
    %v5978 = vpop.f32.mrf.mxu0
    %v5979 = vadd.f32 %v1811, %v5978
    %v5980 = vpop.f32.mrf.mxu0
    %v5981 = vadd.f32 %v1816, %v5980
    %5982 = vmatmul.bf16.gmra.mxu0 %v3606
    %v5983 = vpop.f32.mrf.mxu0
    %v5984 = vadd.f32 %v1821, %v5983
    %v5985 = vpop.f32.mrf.mxu0
    %v5986 = vadd.f32 %v1826, %v5985
    %5987 = vmatmul.bf16.gmra.mxu0 %v3609
    %v5988 = vpop.f32.mrf.mxu0
    %v5989 = vadd.f32 %v1831, %v5988
    %v5990 = vpop.f32.mrf.mxu0
    %v5991 = vadd.f32 %v1836, %v5990
    %5992 = vmatmul.bf16.gmra.mxu0 %v3612
    %v5993 = vpop.f32.mrf.mxu0
    %v5994 = vadd.f32 %v1841, %v5993
    %v5995 = vpop.f32.mrf.mxu0
    %v5996 = vadd.f32 %v1846, %v5995
    %5997 = vmatmul.bf16.gmra.mxu0 %v3615
    %v5998 = vpop.f32.mrf.mxu0
    %v5999 = vadd.f32 %v1851, %v5998
    %v6000 = vpop.f32.mrf.mxu0
    %v6001 = vadd.f32 %v1856, %v6000
    %6002 = vmatmul.bf16.gmra.mxu0 %v3618
    %v6003 = vpop.f32.mrf.mxu0
    %v6004 = vadd.f32 %v1861, %v6003
    %v6005 = vpop.f32.mrf.mxu0
    %v6006 = vadd.f32 %v1866, %v6005
    %6007 = vmatmul.bf16.gmra.mxu0 %v3621
    %v6008 = vpop.f32.mrf.mxu0
    %v6009 = vadd.f32 %v1871, %v6008
    %v6010 = vpop.f32.mrf.mxu0
    %v6011 = vadd.f32 %v1876, %v6010
    %6012 = vmatmul.bf16.gmra.mxu0 %v3624
    %v6013 = vpop.f32.mrf.mxu0
    %v6014 = vadd.f32 %v1881, %v6013
    %v6015 = vpop.f32.mrf.mxu0
    %v6016 = vadd.f32 %v1886, %v6015
    %6017 = vmatmul.bf16.gmra.mxu0 %v3627
    %v6018 = vpop.f32.mrf.mxu0
    %v6019 = vadd.f32 %v1891, %v6018
    %v6020 = vpop.f32.mrf.mxu0
    %v6021 = vadd.f32 %v1896, %v6020
    %6022 = vmatmul.bf16.gmra.mxu0 %v3630
    %v6023 = vpop.f32.mrf.mxu0
    %v6024 = vadd.f32 %v1901, %v6023
    %v6025 = vpop.f32.mrf.mxu0
    %v6026 = vadd.f32 %v1906, %v6025
    %6027 = vmatmul.bf16.gmra.mxu0 %v3633
    %v6028 = vpop.f32.mrf.mxu0
    %v6029 = vadd.f32 %v1911, %v6028
    %v6030 = vpop.f32.mrf.mxu0
    %v6031 = vadd.f32 %v1916, %v6030
    %6032 = vmatmul.bf16.gmra.mxu0 %v3636
    %v6033 = vpop.f32.mrf.mxu0
    %v6034 = vadd.f32 %v1921, %v6033
    %v6035 = vpop.f32.mrf.mxu0
    %v6036 = vadd.f32 %v1926, %v6035
    %6037 = vmatmul.bf16.gmra.mxu0 %v3639
    %v6038 = vpop.f32.mrf.mxu0
    %v6039 = vadd.f32 %v1931, %v6038
    %v6040 = vpop.f32.mrf.mxu0
    %v6041 = vadd.f32 %v1936, %v6040
    %6042 = vmatmul.bf16.gmra.mxu0 %v3642
    %v6043 = vpop.f32.mrf.mxu0
    %v6044 = vadd.f32 %v1941, %v6043
    %v6045 = vpop.f32.mrf.mxu0
    %v6046 = vadd.f32 %v1946, %v6045
    %6047 = vmatmul.bf16.gmra.mxu0 %v3645
    %v6048 = vpop.f32.mrf.mxu0
    %v6049 = vadd.f32 %v1951, %v6048
    %v6050 = vpop.f32.mrf.mxu0
    %v6051 = vadd.f32 %v1956, %v6050
    %6052 = vmatmul.bf16.gmra.mxu0 %v3648
    %v6053 = vpop.f32.mrf.mxu0
    %v6054 = vadd.f32 %v1961, %v6053
    %v6055 = vpop.f32.mrf.mxu0
    %v6056 = vadd.f32 %v1966, %v6055
    %6057 = vmatmul.bf16.gmra.mxu0 %v3651
    %v6058 = vpop.f32.mrf.mxu0
    %v6059 = vadd.f32 %v1971, %v6058
    %v6060 = vpop.f32.mrf.mxu0
    %v6061 = vadd.f32 %v1976, %v6060
    %6062 = vmatmul.bf16.gmra.mxu0 %v3654
    %v6063 = vpop.f32.mrf.mxu0
    %v6064 = vadd.f32 %v1981, %v6063
    %v6065 = vpop.f32.mrf.mxu0
    %v6066 = vadd.f32 %v1986, %v6065
    %6067 = vmatmul.bf16.gmra.mxu0 %v3657
    %v6068 = vpop.f32.mrf.mxu0
    %v6069 = vadd.f32 %v1991, %v6068
    %v6070 = vpop.f32.mrf.mxu0
    %v6071 = vadd.f32 %v1996, %v6070
    %6072 = vmatmul.bf16.gmra.mxu0 %v3660
    %v6073 = vpop.f32.mrf.mxu0
    %v6074 = vadd.f32 %v2001, %v6073
    %v6075 = vpop.f32.mrf.mxu0
    %v6076 = vadd.f32 %v2006, %v6075
    %6077 = vmatmul.bf16.gmra.mxu0 %v3663
    %v6078 = vpop.f32.mrf.mxu0
    %v6079 = vadd.f32 %v2011, %v6078
    %v6080 = vpop.f32.mrf.mxu0
    %v6081 = vadd.f32 %v2016, %v6080
    %6082 = vmatmul.bf16.gmra.mxu0 %v3666
    %v6083 = vpop.f32.mrf.mxu0
    %v6084 = vadd.f32 %v2021, %v6083
    %v6085 = vpop.f32.mrf.mxu0
    %v6086 = vadd.f32 %v2026, %v6085
    %6087 = vmatmul.bf16.gmra.mxu0 %v3669
    %v6088 = vpop.f32.mrf.mxu0
    %v6089 = vadd.f32 %v2031, %v6088
    %v6090 = vpop.f32.mrf.mxu0
    %v6091 = vadd.f32 %v2036, %v6090
    %6092 = vmatmul.bf16.gmra.mxu0 %v3672
    %v6093 = vpop.f32.mrf.mxu0
    %v6094 = vadd.f32 %v2041, %v6093
    %v6095 = vpop.f32.mrf.mxu0
    %v6096 = vadd.f32 %v2046, %v6095
    %6097 = vmatmul.bf16.gmra.mxu0 %v3675
    %v6098 = vpop.f32.mrf.mxu0
    %v6099 = vadd.f32 %v2051, %v6098
    %v6100 = vpop.f32.mrf.mxu0
    %v6101 = vadd.f32 %v2056, %v6100
    %6102 = vmatmul.bf16.gmra.mxu0 %v3678
    %v6103 = vpop.f32.mrf.mxu0
    %v6104 = vadd.f32 %v2061, %v6103
    %v6105 = vpop.f32.mrf.mxu0
    %v6106 = vadd.f32 %v2066, %v6105
    %6107 = vmatmul.bf16.gmra.mxu0 %v3681
    %v6108 = vpop.f32.mrf.mxu0
    %v6109 = vadd.f32 %v2071, %v6108
    %v6110 = vpop.f32.mrf.mxu0
    %v6111 = vadd.f32 %v2076, %v6110
    %6112 = vmatmul.bf16.gmra.mxu0 %v3684
    %v6113 = vpop.f32.mrf.mxu0
    %v6114 = vadd.f32 %v2081, %v6113
    %v6115 = vpop.f32.mrf.mxu0
    %v6116 = vadd.f32 %v2086, %v6115
    %6117 = vmatmul.bf16.gmra.mxu0 %v3687
    %v6118 = vpop.f32.mrf.mxu0
    %v6119 = vadd.f32 %v2091, %v6118
    %v6120 = vpop.f32.mrf.mxu0
    %v6121 = vadd.f32 %v2096, %v6120
    %6122 = vmatmul.bf16.gmra.mxu0 %v3690
    %v6123 = vpop.f32.mrf.mxu0
    %v6124 = vadd.f32 %v2101, %v6123
    %v6125 = vpop.f32.mrf.mxu0
    %v6126 = vadd.f32 %v2106, %v6125
    %6127 = vmatmul.bf16.gmra.mxu0 %v3693
    %v6128 = vpop.f32.mrf.mxu0
    %v6129 = vadd.f32 %v2111, %v6128
    %v6130 = vpop.f32.mrf.mxu0
    %v6131 = vadd.f32 %v2116, %v6130
    %6132 = vmatmul.bf16.gmra.mxu0 %v3696
    %v6133 = vpop.f32.mrf.mxu0
    %v6134 = vadd.f32 %v2121, %v6133
    %v6135 = vpop.f32.mrf.mxu0
    %v6136 = vadd.f32 %v2126, %v6135
    %6137 = vmatmul.bf16.gmra.mxu0 %v3699
    %v6138 = vpop.f32.mrf.mxu0
    %v6139 = vadd.f32 %v2131, %v6138
    %v6140 = vpop.f32.mrf.mxu0
    %v6141 = vadd.f32 %v2136, %v6140
    %6142 = vmatmul.bf16.gmra.mxu0 %v3702
    %v6143 = vpop.f32.mrf.mxu0
    %v6144 = vadd.f32 %v2141, %v6143
    %v6145 = vpop.f32.mrf.mxu0
    %v6146 = vadd.f32 %v2146, %v6145
    %6147 = vmatmul.bf16.gmra.mxu0 %v3705
    %v6148 = vpop.f32.mrf.mxu0
    %v6149 = vadd.f32 %v2151, %v6148
    %v6150 = vpop.f32.mrf.mxu0
    %v6151 = vadd.f32 %v2156, %v6150
    %6152 = vmatmul.bf16.gmra.mxu0 %v3708
    %v6153 = vpop.f32.mrf.mxu0
    %v6154 = vadd.f32 %v2161, %v6153
    %v6155 = vpop.f32.mrf.mxu0
    %v6156 = vadd.f32 %v2166, %v6155
    %6157 = vmatmul.bf16.gmra.mxu0 %v3711
    %v6158 = vpop.f32.mrf.mxu0
    %v6159 = vadd.f32 %v2171, %v6158
    %v6160 = vpop.f32.mrf.mxu0
    %v6161 = vadd.f32 %v2176, %v6160
    %6162 = vmatmul.bf16.gmra.mxu0 %v3714
    %v6163 = vpop.f32.mrf.mxu0
    %v6164 = vadd.f32 %v2181, %v6163
    %v6165 = vpop.f32.mrf.mxu0
    %v6166 = vadd.f32 %v2186, %v6165
    %6167 = vmatmul.bf16.gmra.mxu0 %v3717
    %v6168 = vpop.f32.mrf.mxu0
    %v6169 = vadd.f32 %v2191, %v6168
    %v6170 = vpop.f32.mrf.mxu0
    %v6171 = vadd.f32 %v2196, %v6170
    %6172 = vmatmul.bf16.gmra.mxu0 %v3720
    %v6173 = vpop.f32.mrf.mxu0
    %v6174 = vadd.f32 %v2201, %v6173
    %v6175 = vpop.f32.mrf.mxu0
    %v6176 = vadd.f32 %v2206, %v6175
    %6177 = vmatmul.bf16.gmra.mxu0 %v3723
    %v6178 = vpop.f32.mrf.mxu0
    %v6179 = vadd.f32 %v2211, %v6178
    %v6180 = vpop.f32.mrf.mxu0
    %v6181 = vadd.f32 %v2216, %v6180
    %6182 = vmatmul.bf16.gmra.mxu0 %v3726
    %v6183 = vpop.f32.mrf.mxu0
    %v6184 = vadd.f32 %v2221, %v6183
    %v6185 = vpop.f32.mrf.mxu0
    %v6186 = vadd.f32 %v2226, %v6185
    %6187 = vmatmul.bf16.gmra.mxu0 %v3729
    %v6188 = vpop.f32.mrf.mxu0
    %v6189 = vadd.f32 %v2231, %v6188
    %v6190 = vpop.f32.mrf.mxu0
    %v6191 = vadd.f32 %v2236, %v6190
    %6192 = vmatmul.bf16.gmra.mxu0 %v3732
    %v6193 = vpop.f32.mrf.mxu0
    %v6194 = vadd.f32 %v2241, %v6193
    %v6195 = vpop.f32.mrf.mxu0
    %v6196 = vadd.f32 %v2246, %v6195
    %6197 = vmatmul.bf16.gmra.mxu0 %v3735
    %v6198 = vpop.f32.mrf.mxu0
    %v6199 = vadd.f32 %v2251, %v6198
    %v6200 = vpop.f32.mrf.mxu0
    %v6201 = vadd.f32 %v2256, %v6200
    %6202 = vmatmul.bf16.gmra.mxu0 %v3738
    %v6203 = vpop.f32.mrf.mxu0
    %v6204 = vadd.f32 %v2261, %v6203
    %v6205 = vpop.f32.mrf.mxu0
    %v6206 = vadd.f32 %v2266, %v6205
    %6207 = vmatmul.bf16.gmra.mxu0 %v3741
    %v6208 = vpop.f32.mrf.mxu0
    %v6209 = vadd.f32 %v2271, %v6208
    %v6210 = vpop.f32.mrf.mxu0
    %v6211 = vadd.f32 %v2276, %v6210
    %6212 = vmatmul.bf16.gmra.mxu0 %v3744
    %v6213 = vpop.f32.mrf.mxu0
    %v6214 = vadd.f32 %v2281, %v6213
    %v6215 = vpop.f32.mrf.mxu0
    %v6216 = vadd.f32 %v2286, %v6215
    %6217 = vmatmul.bf16.gmra.mxu0 %v3747
    %v6218 = vpop.f32.mrf.mxu0
    %v6219 = vadd.f32 %v2291, %v6218
    %v6220 = vpop.f32.mrf.mxu0
    %v6221 = vadd.f32 %v2296, %v6220
    %6222 = vmatmul.bf16.gmra.mxu0 %v3750
    %v6223 = vpop.f32.mrf.mxu0
    %v6224 = vadd.f32 %v2301, %v6223
    %v6225 = vpop.f32.mrf.mxu0
    %v6226 = vadd.f32 %v2306, %v6225
    %6227 = vmatmul.bf16.gmra.mxu0 %v3753
    %v6228 = vpop.f32.mrf.mxu0
    %v6229 = vadd.f32 %v2311, %v6228
    %v6230 = vpop.f32.mrf.mxu0
    %v6231 = vadd.f32 %v2316, %v6230
    %6232 = vmatmul.bf16.gmra.mxu0 %v3756
    %v6233 = vpop.f32.mrf.mxu0
    %v6234 = vadd.f32 %v2321, %v6233
    %v6235 = vpop.f32.mrf.mxu0
    %v6236 = vadd.f32 %v2326, %v6235
    %6237 = vmatmul.bf16.gmra.mxu0 %v3759
    %v6238 = vpop.f32.mrf.mxu0
    %v6239 = vadd.f32 %v2331, %v6238
    %v6240 = vpop.f32.mrf.mxu0
    %v6241 = vadd.f32 %v2336, %v6240
    %6242 = vmatmul.bf16.gmra.mxu0 %v3762
    %v6243 = vpop.f32.mrf.mxu0
    %v6244 = vadd.f32 %v2341, %v6243
    %v6245 = vpop.f32.mrf.mxu0
    %v6246 = vadd.f32 %v2346, %v6245
    %6247 = vmatmul.bf16.gmra.mxu0 %v3765
    %v6248 = vpop.f32.mrf.mxu0
    %v6249 = vadd.f32 %v2351, %v6248
    %v6250 = vpop.f32.mrf.mxu0
    %v6251 = vadd.f32 %v2356, %v6250
    %6252 = vmatmul.bf16.gmra.mxu0 %v3768
    %v6253 = vpop.f32.mrf.mxu0
    %v6254 = vadd.f32 %v2361, %v6253
    %v6255 = vpop.f32.mrf.mxu0
    %v6256 = vadd.f32 %v2366, %v6255
    %6257 = vmatmul.bf16.gmra.mxu0 %v3771
    %v6258 = vpop.f32.mrf.mxu0
    %v6259 = vadd.f32 %v2371, %v6258
    %v6260 = vpop.f32.mrf.mxu0
    %v6261 = vadd.f32 %v2376, %v6260
    %6262 = vmatmul.bf16.gmra.mxu0 %v3774
    %v6263 = vpop.f32.mrf.mxu0
    %v6264 = vadd.f32 %v2381, %v6263
    %v6265 = vpop.f32.mrf.mxu0
    %v6266 = vadd.f32 %v2386, %v6265
    %6267 = vmatmul.bf16.gmra.mxu0 %v3777
    %v6268 = vpop.f32.mrf.mxu0
    %v6269 = vadd.f32 %v2391, %v6268
    %v6270 = vpop.f32.mrf.mxu0
    %v6271 = vadd.f32 %v2396, %v6270
    %6272 = vmatmul.bf16.gmra.mxu0 %v3780
    %v6273 = vpop.f32.mrf.mxu0
    %v6274 = vadd.f32 %v2401, %v6273
    %v6275 = vpop.f32.mrf.mxu0
    %v6276 = vadd.f32 %v2406, %v6275
    %6277 = vmatmul.bf16.gmra.mxu0 %v3783
    %v6278 = vpop.f32.mrf.mxu0
    %v6279 = vadd.f32 %v2411, %v6278
    %v6280 = vpop.f32.mrf.mxu0
    %v6281 = vadd.f32 %v2416, %v6280
    %6282 = vmatmul.bf16.gmra.mxu0 %v3786
    %v6283 = vpop.f32.mrf.mxu0
    %v6284 = vadd.f32 %v2421, %v6283
    %v6285 = vpop.f32.mrf.mxu0
    %v6286 = vadd.f32 %v2426, %v6285
    %6287 = vmatmul.bf16.gmra.mxu0 %v3789
    %v6288 = vpop.f32.mrf.mxu0
    %v6289 = vadd.f32 %v2431, %v6288
    %v6290 = vpop.f32.mrf.mxu0
    %v6291 = vadd.f32 %v2436, %v6290
    %6292 = vmatmul.bf16.gmra.mxu0 %v3792
    %v6293 = vpop.f32.mrf.mxu0
    %v6294 = vadd.f32 %v2441, %v6293
    %v6295 = vpop.f32.mrf.mxu0
    %v6296 = vadd.f32 %v2446, %v6295
    %6297 = vmatmul.bf16.gmra.mxu0 %v3795
    %v6298 = vpop.f32.mrf.mxu0
    %v6299 = vadd.f32 %v2451, %v6298
    %v6300 = vpop.f32.mrf.mxu0
    %v6301 = vadd.f32 %v2456, %v6300
    %6302 = vmatmul.bf16.gmra.mxu0 %v3798
    %v6303 = vpop.f32.mrf.mxu0
    %v6304 = vadd.f32 %v2461, %v6303
    %v6305 = vpop.f32.mrf.mxu0
    %v6306 = vadd.f32 %v2466, %v6305
    %6307 = vmatmul.bf16.gmra.mxu0 %v3801
    %v6308 = vpop.f32.mrf.mxu0
    %v6309 = vadd.f32 %v2471, %v6308
    %v6310 = vpop.f32.mrf.mxu0
    %v6311 = vadd.f32 %v2476, %v6310
    %6312 = vmatmul.bf16.gmra.mxu0 %v3804
    %v6313 = vpop.f32.mrf.mxu0
    %v6314 = vadd.f32 %v2481, %v6313
    %v6315 = vpop.f32.mrf.mxu0
    %v6316 = vadd.f32 %v2486, %v6315
    %6317 = vmatmul.bf16.gmra.mxu0 %v3807
    %v6318 = vpop.f32.mrf.mxu0
    %v6319 = vadd.f32 %v2491, %v6318
    %v6320 = vpop.f32.mrf.mxu0
    %v6321 = vadd.f32 %v2496, %v6320
    %6322 = vmatmul.bf16.gmra.mxu0 %v3810
    %v6323 = vpop.f32.mrf.mxu0
    %v6324 = vadd.f32 %v2501, %v6323
    %v6325 = vpop.f32.mrf.mxu0
    %v6326 = vadd.f32 %v2506, %v6325
    %6327 = vmatmul.bf16.gmra.mxu0 %v3813
    %v6328 = vpop.f32.mrf.mxu0
    %v6329 = vadd.f32 %v2511, %v6328
    %v6330 = vpop.f32.mrf.mxu0
    %v6331 = vadd.f32 %v2516, %v6330
    %6332 = vmatmul.bf16.gmra.mxu0 %v3816
    %v6333 = vpop.f32.mrf.mxu0
    %v6334 = vadd.f32 %v2521, %v6333
    %v6335 = vpop.f32.mrf.mxu0
    %v6336 = vadd.f32 %v2526, %v6335
    %6337 = vmatmul.bf16.gmra.mxu0 %v3819
    %v6338 = vpop.f32.mrf.mxu0
    %v6339 = vadd.f32 %v2531, %v6338
    %v6340 = vpop.f32.mrf.mxu0
    %v6341 = vadd.f32 %v2536, %v6340
    %6342 = vmatmul.bf16.gmra.mxu0 %v3822
    %v6343 = vpop.f32.mrf.mxu0
    %v6344 = vadd.f32 %v2541, %v6343
    %v6345 = vpop.f32.mrf.mxu0
    %v6346 = vadd.f32 %v2546, %v6345
    %6347 = vmatmul.bf16.gmra.mxu0 %v3825
    %v6348 = vpop.f32.mrf.mxu0
    %v6349 = vadd.f32 %v2551, %v6348
    %v6350 = vpop.f32.mrf.mxu0
    %v6351 = vadd.f32 %v2556, %v6350
    %6352 = vmatmul.bf16.gmra.mxu0 %v3828
    %v6353 = vpop.f32.mrf.mxu0
    %v6354 = vadd.f32 %v2561, %v6353
    %v6355 = vpop.f32.mrf.mxu0
    %v6356 = vadd.f32 %v2566, %v6355
    %6357 = vmatmul.bf16.gmra.mxu0 %v3831
    %v6358 = vpop.f32.mrf.mxu0
    %v6359 = vadd.f32 %v2571, %v6358
    %v6360 = vpop.f32.mrf.mxu0
    %v6361 = vadd.f32 %v2576, %v6360
    %6362 = vmatmul.bf16.gmra.mxu0 %v3834
    %v6363 = vpop.f32.mrf.mxu0
    %v6364 = vadd.f32 %v2581, %v6363
    %v6365 = vpop.f32.mrf.mxu0
    %v6366 = vadd.f32 %v2586, %v6365
    %6367 = vmatmul.bf16.gmra.mxu0 %v3837
    %v6368 = vpop.f32.mrf.mxu0
    %v6369 = vadd.f32 %v2591, %v6368
    %v6370 = vpop.f32.mrf.mxu0
    %v6371 = vadd.f32 %v2596, %v6370
    %6372 = vmatmul.bf16.gmra.mxu0 %v3840
    %v6373 = vpop.f32.mrf.mxu0
    %v6374 = vadd.f32 %v2601, %v6373
    %v6375 = vpop.f32.mrf.mxu0
    %v6376 = vadd.f32 %v2606, %v6375
    %6377 = vmatmul.bf16.gmra.mxu0 %v3843
    %v6378 = vpop.f32.mrf.mxu0
    %v6379 = vadd.f32 %v2611, %v6378
    %v6380 = vpop.f32.mrf.mxu0
    %v6381 = vadd.f32 %v2616, %v6380
    %6382 = vmatmul.bf16.gmra.mxu0 %v3846
    %v6383 = vpop.f32.mrf.mxu0
    %v6384 = vadd.f32 %v2621, %v6383
    %v6385 = vpop.f32.mrf.mxu0
    %v6386 = vadd.f32 %v2626, %v6385
    %6387 = vmatmul.bf16.gmra.mxu0 %v3849
    %v6388 = vpop.f32.mrf.mxu0
    %v6389 = vadd.f32 %v2631, %v6388
    %v6390 = vpop.f32.mrf.mxu0
    %v6391 = vadd.f32 %v2636, %v6390
    %6392 = vmatmul.bf16.gmra.mxu0 %v3852
    %v6393 = vpop.f32.mrf.mxu0
    %v6394 = vadd.f32 %v2641, %v6393
    %v6395 = vpop.f32.mrf.mxu0
    %v6396 = vadd.f32 %v2646, %v6395
    %6397 = vmatmul.bf16.gmra.mxu0 %v3855
    %v6398 = vpop.f32.mrf.mxu0
    %v6399 = vadd.f32 %v2651, %v6398
    %v6400 = vpop.f32.mrf.mxu0
    %v6401 = vadd.f32 %v2656, %v6400
    %6402 = vmatmul.bf16.gmra.mxu0 %v3858
    %v6403 = vpop.f32.mrf.mxu0
    %v6404 = vadd.f32 %v2661, %v6403
    %v6405 = vpop.f32.mrf.mxu0
    %v6406 = vadd.f32 %v2666, %v6405
    %6407 = vmatmul.bf16.gmra.mxu0 %v3861
    %v6408 = vpop.f32.mrf.mxu0
    %v6409 = vadd.f32 %v2671, %v6408
    %v6410 = vpop.f32.mrf.mxu0
    %v6411 = vadd.f32 %v2676, %v6410
    %6412 = vmatmul.bf16.gmra.mxu0 %v3864
    %v6413 = vpop.f32.mrf.mxu0
    %v6414 = vadd.f32 %v2681, %v6413
    %v6415 = vpop.f32.mrf.mxu0
    %v6416 = vadd.f32 %v2686, %v6415
    %6417 = vmatmul.bf16.gmra.mxu0 %v3867
    %v6418 = vpop.f32.mrf.mxu0
    %v6419 = vadd.f32 %v2691, %v6418
    %v6420 = vpop.f32.mrf.mxu0
    %v6421 = vadd.f32 %v2696, %v6420
    %6422 = vmatmul.bf16.gmra.mxu0 %v3870
    %v6423 = vpop.f32.mrf.mxu0
    %v6424 = vadd.f32 %v2701, %v6423
    %v6425 = vpop.f32.mrf.mxu0
    %v6426 = vadd.f32 %v2706, %v6425
    %6427 = vmatmul.bf16.gmra.mxu0 %v3873
    %v6428 = vpop.f32.mrf.mxu0
    %v6429 = vadd.f32 %v2711, %v6428
    %v6430 = vpop.f32.mrf.mxu0
    %v6431 = vadd.f32 %v2716, %v6430
    %6432 = vmatmul.bf16.gmra.mxu0 %v3876
    %v6433 = vpop.f32.mrf.mxu0
    %v6434 = vadd.f32 %v2721, %v6433
    %v6435 = vpop.f32.mrf.mxu0
    %v6436 = vadd.f32 %v2726, %v6435
    %6437 = vmatmul.bf16.gmra.mxu0 %v3879
    %v6438 = vpop.f32.mrf.mxu0
    %v6439 = vadd.f32 %v2731, %v6438
    %v6440 = vpop.f32.mrf.mxu0
    %v6441 = vadd.f32 %v2736, %v6440
    %6442 = vmatmul.bf16.gmra.mxu0 %v3882
    %v6443 = vpop.f32.mrf.mxu0
    %v6444 = vadd.f32 %v2741, %v6443
    %v6445 = vpop.f32.mrf.mxu0
    %v6446 = vadd.f32 %v2746, %v6445
    %6447 = vmatmul.bf16.gmra.mxu0 %v3885
    %v6448 = vpop.f32.mrf.mxu0
    %v6449 = vadd.f32 %v2751, %v6448
    %v6450 = vpop.f32.mrf.mxu0
    %v6451 = vadd.f32 %v2756, %v6450
    %6452 = vmatmul.bf16.gmra.mxu0 %v3888
    %v6453 = vpop.f32.mrf.mxu0
    %v6454 = vadd.f32 %v2761, %v6453
    %v6455 = vpop.f32.mrf.mxu0
    %v6456 = vadd.f32 %v2766, %v6455
    %6457 = vmatmul.bf16.gmra.mxu0 %v3891
    %v6458 = vpop.f32.mrf.mxu0
    %v6459 = vadd.f32 %v2771, %v6458
    %v6460 = vpop.f32.mrf.mxu0
    %v6461 = vadd.f32 %v2776, %v6460
    %6462 = vmatmul.bf16.gmra.mxu0 %v3894
    %v6463 = vpop.f32.mrf.mxu0
    %v6464 = vadd.f32 %v2781, %v6463
    %v6465 = vpop.f32.mrf.mxu0
    %v6466 = vadd.f32 %v2786, %v6465
    %6467 = vmatmul.bf16.gmra.mxu0 %v3897
    %v6468 = vpop.f32.mrf.mxu0
    %v6469 = vadd.f32 %v2791, %v6468
    %v6470 = vpop.f32.mrf.mxu0
    %v6471 = vadd.f32 %v2796, %v6470
    %6472 = vmatmul.bf16.gmra.mxu0 %v3900
    %v6473 = vpop.f32.mrf.mxu0
    %v6474 = vadd.f32 %v2801, %v6473
    %v6475 = vpop.f32.mrf.mxu0
    %v6476 = vadd.f32 %v2806, %v6475
    %6477 = vmatmul.bf16.gmra.mxu0 %v3903
    %v6478 = vpop.f32.mrf.mxu0
    %v6479 = vadd.f32 %v2811, %v6478
    %v6480 = vpop.f32.mrf.mxu0
    %v6481 = vadd.f32 %v2816, %v6480
    %6482 = vmatmul.bf16.gmra.mxu0 %v3906
    %v6483 = vpop.f32.mrf.mxu0
    %v6484 = vadd.f32 %v2821, %v6483
    %v6485 = vpop.f32.mrf.mxu0
    %v6486 = vadd.f32 %v2826, %v6485
    %6487 = vmatmul.bf16.gmra.mxu0 %v3909
    %v6488 = vpop.f32.mrf.mxu0
    %v6489 = vadd.f32 %v2831, %v6488
    %v6490 = vpop.f32.mrf.mxu0
    %v6491 = vadd.f32 %v2836, %v6490
    %6492 = vmatmul.bf16.gmra.mxu0 %v3912
    %v6493 = vpop.f32.mrf.mxu0
    %v6494 = vadd.f32 %v2841, %v6493
    %v6495 = vpop.f32.mrf.mxu0
    %v6496 = vadd.f32 %v2846, %v6495
    %6497 = vmatmul.bf16.gmra.mxu0 %v3915
    %v6498 = vpop.f32.mrf.mxu0
    %v6499 = vadd.f32 %v2851, %v6498
    %v6500 = vpop.f32.mrf.mxu0
    %v6501 = vadd.f32 %v2856, %v6500
    %6502 = vmatmul.bf16.gmra.mxu0 %v3918
    %v6503 = vpop.f32.mrf.mxu0
    %v6504 = vadd.f32 %v2861, %v6503
    %v6505 = vpop.f32.mrf.mxu0
    %v6506 = vadd.f32 %v2866, %v6505
    %6507 = vmatmul.bf16.gmra.mxu0 %v3921
    %v6508 = vpop.f32.mrf.mxu0
    %v6509 = vadd.f32 %v2871, %v6508
    %v6510 = vpop.f32.mrf.mxu0
    %v6511 = vadd.f32 %v2876, %v6510
    %6512 = vmatmul.bf16.gmra.mxu0 %v3924
    %v6513 = vpop.f32.mrf.mxu0
    %v6514 = vadd.f32 %v2881, %v6513
    %v6515 = vpop.f32.mrf.mxu0
    %v6516 = vadd.f32 %v2886, %v6515
    %6517 = vmatmul.bf16.gmra.mxu0 %v3927
    %v6518 = vpop.f32.mrf.mxu0
    %v6519 = vadd.f32 %v2891, %v6518
    %v6520 = vpop.f32.mrf.mxu0
    %v6521 = vadd.f32 %v2896, %v6520
    %6522 = vmatmul.bf16.gmra.mxu0 %v3930
    %v6523 = vpop.f32.mrf.mxu0
    %v6524 = vadd.f32 %v2901, %v6523
    %v6525 = vpop.f32.mrf.mxu0
    %v6526 = vadd.f32 %v2906, %v6525
    %6527 = vdwg.mxu0
    %v6528 = vmax.f32 %v3942, 0.0
    %v6529 = vmax.f32 %v4591, 0.0
    %v6530 = vmax.f32 %v5240, 0.0
    %v6531 = vmax.f32 %v5889, 0.0
    %v6532 = vmax.f32 %v3944, 0.0
    %v6533 = vmax.f32 %v4593, 0.0
    %v6534 = vmax.f32 %v5242, 0.0
    %v6535 = vmax.f32 %v5891, 0.0
    %v6536 = vmax.f32 %v3947, 0.0
    %v6537 = vmax.f32 %v4596, 0.0
    %v6538 = vmax.f32 %v5245, 0.0
    %v6539 = vmax.f32 %v5894, 0.0
    %v6540 = vmax.f32 %v3949, 0.0
    %v6541 = vmax.f32 %v4598, 0.0
    %v6542 = vmax.f32 %v5247, 0.0
    %v6543 = vmax.f32 %v5896, 0.0
    %v6544 = vmax.f32 %v3952, 0.0
    %v6545 = vmax.f32 %v4601, 0.0
    %v6546 = vmax.f32 %v5250, 0.0
    %v6547 = vmax.f32 %v5899, 0.0
    %v6548 = vmax.f32 %v3954, 0.0
    %v6549 = vmax.f32 %v4603, 0.0
    %v6550 = vmax.f32 %v5252, 0.0
    %v6551 = vmax.f32 %v5901, 0.0
    %v6552 = vmax.f32 %v3957, 0.0
    %v6553 = vmax.f32 %v4606, 0.0
    %v6554 = vmax.f32 %v5255, 0.0
    %v6555 = vmax.f32 %v5904, 0.0
    %v6556 = vmax.f32 %v3959, 0.0
    %v6557 = vmax.f32 %v4608, 0.0
    %v6558 = vmax.f32 %v5257, 0.0
    %v6559 = vmax.f32 %v5906, 0.0
    %v6560 = vmax.f32 %v3962, 0.0
    %v6561 = vmax.f32 %v4611, 0.0
    %v6562 = vmax.f32 %v5260, 0.0
    %v6563 = vmax.f32 %v5909, 0.0
    %v6564 = vmax.f32 %v3964, 0.0
    %v6565 = vmax.f32 %v4613, 0.0
    %v6566 = vmax.f32 %v5262, 0.0
    %v6567 = vmax.f32 %v5911, 0.0
    %v6568 = vmax.f32 %v3967, 0.0
    %v6569 = vmax.f32 %v4616, 0.0
    %v6570 = vmax.f32 %v5265, 0.0
    %v6571 = vmax.f32 %v5914, 0.0
    %v6572 = vmax.f32 %v3969, 0.0
    %v6573 = vmax.f32 %v4618, 0.0
    %v6574 = vmax.f32 %v5267, 0.0
    %v6575 = vmax.f32 %v5916, 0.0
    %v6576 = vmax.f32 %v3972, 0.0
    %v6577 = vmax.f32 %v4621, 0.0
    %v6578 = vmax.f32 %v5270, 0.0
    %v6579 = vmax.f32 %v5919, 0.0
    %v6580 = vmax.f32 %v3974, 0.0
    %v6581 = vmax.f32 %v4623, 0.0
    %v6582 = vmax.f32 %v5272, 0.0
    %v6583 = vmax.f32 %v5921, 0.0
    %v6584 = vmax.f32 %v3977, 0.0
    %v6585 = vmax.f32 %v4626, 0.0
    %v6586 = vmax.f32 %v5275, 0.0
    %v6587 = vmax.f32 %v5924, 0.0
    %v6588 = vmax.f32 %v3979, 0.0
    %v6589 = vmax.f32 %v4628, 0.0
    %v6590 = vmax.f32 %v5277, 0.0
    %v6591 = vmax.f32 %v5926, 0.0
    %v6592 = vmax.f32 %v3982, 0.0
    %v6593 = vmax.f32 %v4631, 0.0
    %v6594 = vmax.f32 %v5280, 0.0
    %v6595 = vmax.f32 %v5929, 0.0
    %v6596 = vmax.f32 %v3984, 0.0
    %v6597 = vmax.f32 %v4633, 0.0
    %v6598 = vmax.f32 %v5282, 0.0
    %v6599 = vmax.f32 %v5931, 0.0
    %v6600 = vmax.f32 %v3987, 0.0
    %v6601 = vmax.f32 %v4636, 0.0
    %v6602 = vmax.f32 %v5285, 0.0
    %v6603 = vmax.f32 %v5934, 0.0
    %v6604 = vmax.f32 %v3989, 0.0
    %v6605 = vmax.f32 %v4638, 0.0
    %v6606 = vmax.f32 %v5287, 0.0
    %v6607 = vmax.f32 %v5936, 0.0
    %v6608 = vmax.f32 %v3992, 0.0
    %v6609 = vmax.f32 %v4641, 0.0
    %v6610 = vmax.f32 %v5290, 0.0
    %v6611 = vmax.f32 %v5939, 0.0
    %v6612 = vmax.f32 %v3994, 0.0
    %v6613 = vmax.f32 %v4643, 0.0
    %v6614 = vmax.f32 %v5292, 0.0
    %v6615 = vmax.f32 %v5941, 0.0
    %v6616 = vmax.f32 %v3997, 0.0
    %v6617 = vmax.f32 %v4646, 0.0
    %v6618 = vmax.f32 %v5295, 0.0
    %v6619 = vmax.f32 %v5944, 0.0
    %v6620 = vmax.f32 %v3999, 0.0
    %v6621 = vmax.f32 %v4648, 0.0
    %v6622 = vmax.f32 %v5297, 0.0
    %v6623 = vmax.f32 %v5946, 0.0
    %v6624 = vmax.f32 %v4002, 0.0
    %v6625 = vmax.f32 %v4651, 0.0
    %v6626 = vmax.f32 %v5300, 0.0
    %v6627 = vmax.f32 %v5949, 0.0
    %v6628 = vmax.f32 %v4004, 0.0
    %v6629 = vmax.f32 %v4653, 0.0
    %v6630 = vmax.f32 %v5302, 0.0
    %v6631 = vmax.f32 %v5951, 0.0
    %v6632 = vmax.f32 %v4007, 0.0
    %v6633 = vmax.f32 %v4656, 0.0
    %v6634 = vmax.f32 %v5305, 0.0
    %v6635 = vmax.f32 %v5954, 0.0
    %v6636 = vmax.f32 %v4009, 0.0
    %v6637 = vmax.f32 %v4658, 0.0
    %v6638 = vmax.f32 %v5307, 0.0
    %v6639 = vmax.f32 %v5956, 0.0
    %v6640 = vmax.f32 %v4012, 0.0
    %v6641 = vmax.f32 %v4661, 0.0
    %v6642 = vmax.f32 %v5310, 0.0
    %v6643 = vmax.f32 %v5959, 0.0
    %v6644 = vmax.f32 %v4014, 0.0
    %v6645 = vmax.f32 %v4663, 0.0
    %v6646 = vmax.f32 %v5312, 0.0
    %v6647 = vmax.f32 %v5961, 0.0
    %v6648 = vmax.f32 %v4017, 0.0
    %v6649 = vmax.f32 %v4666, 0.0
    %v6650 = vmax.f32 %v5315, 0.0
    %v6651 = vmax.f32 %v5964, 0.0
    %v6652 = vmax.f32 %v4019, 0.0
    %v6653 = vmax.f32 %v4668, 0.0
    %v6654 = vmax.f32 %v5317, 0.0
    %v6655 = vmax.f32 %v5966, 0.0
    %v6656 = vmax.f32 %v4022, 0.0
    %v6657 = vmax.f32 %v4671, 0.0
    %v6658 = vmax.f32 %v5320, 0.0
    %v6659 = vmax.f32 %v5969, 0.0
    %v6660 = vmax.f32 %v4024, 0.0
    %v6661 = vmax.f32 %v4673, 0.0
    %v6662 = vmax.f32 %v5322, 0.0
    %v6663 = vmax.f32 %v5971, 0.0
    %v6664 = vmax.f32 %v4027, 0.0
    %v6665 = vmax.f32 %v4676, 0.0
    %v6666 = vmax.f32 %v5325, 0.0
    %v6667 = vmax.f32 %v5974, 0.0
    %v6668 = vmax.f32 %v4029, 0.0
    %v6669 = vmax.f32 %v4678, 0.0
    %v6670 = vmax.f32 %v5327, 0.0
    %v6671 = vmax.f32 %v5976, 0.0
    %v6672 = vmax.f32 %v4032, 0.0
    %v6673 = vmax.f32 %v4681, 0.0
    %v6674 = vmax.f32 %v5330, 0.0
    %v6675 = vmax.f32 %v5979, 0.0
    %v6676 = vmax.f32 %v4034, 0.0
    %v6677 = vmax.f32 %v4683, 0.0
    %v6678 = vmax.f32 %v5332, 0.0
    %v6679 = vmax.f32 %v5981, 0.0
    %v6680 = vmax.f32 %v4037, 0.0
    %v6681 = vmax.f32 %v4686, 0.0
    %v6682 = vmax.f32 %v5335, 0.0
    %v6683 = vmax.f32 %v5984, 0.0
    %v6684 = vmax.f32 %v4039, 0.0
    %v6685 = vmax.f32 %v4688, 0.0
    %v6686 = vmax.f32 %v5337, 0.0
    %v6687 = vmax.f32 %v5986, 0.0
    %v6688 = vmax.f32 %v4042, 0.0
    %v6689 = vmax.f32 %v4691, 0.0
    %v6690 = vmax.f32 %v5340, 0.0
    %v6691 = vmax.f32 %v5989, 0.0
    %v6692 = vmax.f32 %v4044, 0.0
    %v6693 = vmax.f32 %v4693, 0.0
    %v6694 = vmax.f32 %v5342, 0.0
    %v6695 = vmax.f32 %v5991, 0.0
    %v6696 = vmax.f32 %v4047, 0.0
    %v6697 = vmax.f32 %v4696, 0.0
    %v6698 = vmax.f32 %v5345, 0.0
    %v6699 = vmax.f32 %v5994, 0.0
    %v6700 = vmax.f32 %v4049, 0.0
    %v6701 = vmax.f32 %v4698, 0.0
    %v6702 = vmax.f32 %v5347, 0.0
    %v6703 = vmax.f32 %v5996, 0.0
    %v6704 = vmax.f32 %v4052, 0.0
    %v6705 = vmax.f32 %v4701, 0.0
    %v6706 = vmax.f32 %v5350, 0.0
    %v6707 = vmax.f32 %v5999, 0.0
    %v6708 = vmax.f32 %v4054, 0.0
    %v6709 = vmax.f32 %v4703, 0.0
    %v6710 = vmax.f32 %v5352, 0.0
    %v6711 = vmax.f32 %v6001, 0.0
    %v6712 = vmax.f32 %v4057, 0.0
    %v6713 = vmax.f32 %v4706, 0.0
    %v6714 = vmax.f32 %v5355, 0.0
    %v6715 = vmax.f32 %v6004, 0.0
    %v6716 = vmax.f32 %v4059, 0.0
    %v6717 = vmax.f32 %v4708, 0.0
    %v6718 = vmax.f32 %v5357, 0.0
    %v6719 = vmax.f32 %v6006, 0.0
    %v6720 = vmax.f32 %v4062, 0.0
    %v6721 = vmax.f32 %v4711, 0.0
    %v6722 = vmax.f32 %v5360, 0.0
    %v6723 = vmax.f32 %v6009, 0.0
    %v6724 = vmax.f32 %v4064, 0.0
    %v6725 = vmax.f32 %v4713, 0.0
    %v6726 = vmax.f32 %v5362, 0.0
    %v6727 = vmax.f32 %v6011, 0.0
    %v6728 = vmax.f32 %v4067, 0.0
    %v6729 = vmax.f32 %v4716, 0.0
    %v6730 = vmax.f32 %v5365, 0.0
    %v6731 = vmax.f32 %v6014, 0.0
    %v6732 = vmax.f32 %v4069, 0.0
    %v6733 = vmax.f32 %v4718, 0.0
    %v6734 = vmax.f32 %v5367, 0.0
    %v6735 = vmax.f32 %v6016, 0.0
    %v6736 = vmax.f32 %v4072, 0.0
    %v6737 = vmax.f32 %v4721, 0.0
    %v6738 = vmax.f32 %v5370, 0.0
    %v6739 = vmax.f32 %v6019, 0.0
    %v6740 = vmax.f32 %v4074, 0.0
    %v6741 = vmax.f32 %v4723, 0.0
    %v6742 = vmax.f32 %v5372, 0.0
    %v6743 = vmax.f32 %v6021, 0.0
    %v6744 = vmax.f32 %v4077, 0.0
    %v6745 = vmax.f32 %v4726, 0.0
    %v6746 = vmax.f32 %v5375, 0.0
    %v6747 = vmax.f32 %v6024, 0.0
    %v6748 = vmax.f32 %v4079, 0.0
    %v6749 = vmax.f32 %v4728, 0.0
    %v6750 = vmax.f32 %v5377, 0.0
    %v6751 = vmax.f32 %v6026, 0.0
    %v6752 = vmax.f32 %v4082, 0.0
    %v6753 = vmax.f32 %v4731, 0.0
    %v6754 = vmax.f32 %v5380, 0.0
    %v6755 = vmax.f32 %v6029, 0.0
    %v6756 = vmax.f32 %v4084, 0.0
    %v6757 = vmax.f32 %v4733, 0.0
    %v6758 = vmax.f32 %v5382, 0.0
    %v6759 = vmax.f32 %v6031, 0.0
    %v6760 = vmax.f32 %v4087, 0.0
    %v6761 = vmax.f32 %v4736, 0.0
    %v6762 = vmax.f32 %v5385, 0.0
    %v6763 = vmax.f32 %v6034, 0.0
    %v6764 = vmax.f32 %v4089, 0.0
    %v6765 = vmax.f32 %v4738, 0.0
    %v6766 = vmax.f32 %v5387, 0.0
    %v6767 = vmax.f32 %v6036, 0.0
    %v6768 = vmax.f32 %v4092, 0.0
    %v6769 = vmax.f32 %v4741, 0.0
    %v6770 = vmax.f32 %v5390, 0.0
    %v6771 = vmax.f32 %v6039, 0.0
    %v6772 = vmax.f32 %v4094, 0.0
    %v6773 = vmax.f32 %v4743, 0.0
    %v6774 = vmax.f32 %v5392, 0.0
    %v6775 = vmax.f32 %v6041, 0.0
    %v6776 = vmax.f32 %v4097, 0.0
    %v6777 = vmax.f32 %v4746, 0.0
    %v6778 = vmax.f32 %v5395, 0.0
    %v6779 = vmax.f32 %v6044, 0.0
    %v6780 = vmax.f32 %v4099, 0.0
    %v6781 = vmax.f32 %v4748, 0.0
    %v6782 = vmax.f32 %v5397, 0.0
    %v6783 = vmax.f32 %v6046, 0.0
    %v6784 = vmax.f32 %v4102, 0.0
    %v6785 = vmax.f32 %v4751, 0.0
    %v6786 = vmax.f32 %v5400, 0.0
    %v6787 = vmax.f32 %v6049, 0.0
    %v6788 = vmax.f32 %v4104, 0.0
    %v6789 = vmax.f32 %v4753, 0.0
    %v6790 = vmax.f32 %v5402, 0.0
    %v6791 = vmax.f32 %v6051, 0.0
    %v6792 = vmax.f32 %v4107, 0.0
    %v6793 = vmax.f32 %v4756, 0.0
    %v6794 = vmax.f32 %v5405, 0.0
    %v6795 = vmax.f32 %v6054, 0.0
    %v6796 = vmax.f32 %v4109, 0.0
    %v6797 = vmax.f32 %v4758, 0.0
    %v6798 = vmax.f32 %v5407, 0.0
    %v6799 = vmax.f32 %v6056, 0.0
    %v6800 = vmax.f32 %v4112, 0.0
    %v6801 = vmax.f32 %v4761, 0.0
    %v6802 = vmax.f32 %v5410, 0.0
    %v6803 = vmax.f32 %v6059, 0.0
    %v6804 = vmax.f32 %v4114, 0.0
    %v6805 = vmax.f32 %v4763, 0.0
    %v6806 = vmax.f32 %v5412, 0.0
    %v6807 = vmax.f32 %v6061, 0.0
    %v6808 = vmax.f32 %v4117, 0.0
    %v6809 = vmax.f32 %v4766, 0.0
    %v6810 = vmax.f32 %v5415, 0.0
    %v6811 = vmax.f32 %v6064, 0.0
    %v6812 = vmax.f32 %v4119, 0.0
    %v6813 = vmax.f32 %v4768, 0.0
    %v6814 = vmax.f32 %v5417, 0.0
    %v6815 = vmax.f32 %v6066, 0.0
    %v6816 = vmax.f32 %v4122, 0.0
    %v6817 = vmax.f32 %v4771, 0.0
    %v6818 = vmax.f32 %v5420, 0.0
    %v6819 = vmax.f32 %v6069, 0.0
    %v6820 = vmax.f32 %v4124, 0.0
    %v6821 = vmax.f32 %v4773, 0.0
    %v6822 = vmax.f32 %v5422, 0.0
    %v6823 = vmax.f32 %v6071, 0.0
    %v6824 = vmax.f32 %v4127, 0.0
    %v6825 = vmax.f32 %v4776, 0.0
    %v6826 = vmax.f32 %v5425, 0.0
    %v6827 = vmax.f32 %v6074, 0.0
    %v6828 = vmax.f32 %v4129, 0.0
    %v6829 = vmax.f32 %v4778, 0.0
    %v6830 = vmax.f32 %v5427, 0.0
    %v6831 = vmax.f32 %v6076, 0.0
    %v6832 = vmax.f32 %v4132, 0.0
    %v6833 = vmax.f32 %v4781, 0.0
    %v6834 = vmax.f32 %v5430, 0.0
    %v6835 = vmax.f32 %v6079, 0.0
    %v6836 = vmax.f32 %v4134, 0.0
    %v6837 = vmax.f32 %v4783, 0.0
    %v6838 = vmax.f32 %v5432, 0.0
    %v6839 = vmax.f32 %v6081, 0.0
    %v6840 = vmax.f32 %v4137, 0.0
    %v6841 = vmax.f32 %v4786, 0.0
    %v6842 = vmax.f32 %v5435, 0.0
    %v6843 = vmax.f32 %v6084, 0.0
    %v6844 = vmax.f32 %v4139, 0.0
    %v6845 = vmax.f32 %v4788, 0.0
    %v6846 = vmax.f32 %v5437, 0.0
    %v6847 = vmax.f32 %v6086, 0.0
    %v6848 = vmax.f32 %v4142, 0.0
    %v6849 = vmax.f32 %v4791, 0.0
    %v6850 = vmax.f32 %v5440, 0.0
    %v6851 = vmax.f32 %v6089, 0.0
    %v6852 = vmax.f32 %v4144, 0.0
    %v6853 = vmax.f32 %v4793, 0.0
    %v6854 = vmax.f32 %v5442, 0.0
    %v6855 = vmax.f32 %v6091, 0.0
    %v6856 = vmax.f32 %v4147, 0.0
    %v6857 = vmax.f32 %v4796, 0.0
    %v6858 = vmax.f32 %v5445, 0.0
    %v6859 = vmax.f32 %v6094, 0.0
    %v6860 = vmax.f32 %v4149, 0.0
    %v6861 = vmax.f32 %v4798, 0.0
    %v6862 = vmax.f32 %v5447, 0.0
    %v6863 = vmax.f32 %v6096, 0.0
    %v6864 = vmax.f32 %v4152, 0.0
    %v6865 = vmax.f32 %v4801, 0.0
    %v6866 = vmax.f32 %v5450, 0.0
    %v6867 = vmax.f32 %v6099, 0.0
    %v6868 = vmax.f32 %v4154, 0.0
    %v6869 = vmax.f32 %v4803, 0.0
    %v6870 = vmax.f32 %v5452, 0.0
    %v6871 = vmax.f32 %v6101, 0.0
    %v6872 = vmax.f32 %v4157, 0.0
    %v6873 = vmax.f32 %v4806, 0.0
    %v6874 = vmax.f32 %v5455, 0.0
    %v6875 = vmax.f32 %v6104, 0.0
    %v6876 = vmax.f32 %v4159, 0.0
    %v6877 = vmax.f32 %v4808, 0.0
    %v6878 = vmax.f32 %v5457, 0.0
    %v6879 = vmax.f32 %v6106, 0.0
    %v6880 = vmax.f32 %v4162, 0.0
    %v6881 = vmax.f32 %v4811, 0.0
    %v6882 = vmax.f32 %v5460, 0.0
    %v6883 = vmax.f32 %v6109, 0.0
    %v6884 = vmax.f32 %v4164, 0.0
    %v6885 = vmax.f32 %v4813, 0.0
    %v6886 = vmax.f32 %v5462, 0.0
    %v6887 = vmax.f32 %v6111, 0.0
    %v6888 = vmax.f32 %v4167, 0.0
    %v6889 = vmax.f32 %v4816, 0.0
    %v6890 = vmax.f32 %v5465, 0.0
    %v6891 = vmax.f32 %v6114, 0.0
    %v6892 = vmax.f32 %v4169, 0.0
    %v6893 = vmax.f32 %v4818, 0.0
    %v6894 = vmax.f32 %v5467, 0.0
    %v6895 = vmax.f32 %v6116, 0.0
    %v6896 = vmax.f32 %v4172, 0.0
    %v6897 = vmax.f32 %v4821, 0.0
    %v6898 = vmax.f32 %v5470, 0.0
    %v6899 = vmax.f32 %v6119, 0.0
    %v6900 = vmax.f32 %v4174, 0.0
    %v6901 = vmax.f32 %v4823, 0.0
    %v6902 = vmax.f32 %v5472, 0.0
    %v6903 = vmax.f32 %v6121, 0.0
    %v6904 = vmax.f32 %v4177, 0.0
    %v6905 = vmax.f32 %v4826, 0.0
    %v6906 = vmax.f32 %v5475, 0.0
    %v6907 = vmax.f32 %v6124, 0.0
    %v6908 = vmax.f32 %v4179, 0.0
    %v6909 = vmax.f32 %v4828, 0.0
    %v6910 = vmax.f32 %v5477, 0.0
    %v6911 = vmax.f32 %v6126, 0.0
    %v6912 = vmax.f32 %v4182, 0.0
    %v6913 = vmax.f32 %v4831, 0.0
    %v6914 = vmax.f32 %v5480, 0.0
    %v6915 = vmax.f32 %v6129, 0.0
    %v6916 = vmax.f32 %v4184, 0.0
    %v6917 = vmax.f32 %v4833, 0.0
    %v6918 = vmax.f32 %v5482, 0.0
    %v6919 = vmax.f32 %v6131, 0.0
    %v6920 = vmax.f32 %v4187, 0.0
    %v6921 = vmax.f32 %v4836, 0.0
    %v6922 = vmax.f32 %v5485, 0.0
    %v6923 = vmax.f32 %v6134, 0.0
    %v6924 = vmax.f32 %v4189, 0.0
    %v6925 = vmax.f32 %v4838, 0.0
    %v6926 = vmax.f32 %v5487, 0.0
    %v6927 = vmax.f32 %v6136, 0.0
    %v6928 = vmax.f32 %v4192, 0.0
    %v6929 = vmax.f32 %v4841, 0.0
    %v6930 = vmax.f32 %v5490, 0.0
    %v6931 = vmax.f32 %v6139, 0.0
    %v6932 = vmax.f32 %v4194, 0.0
    %v6933 = vmax.f32 %v4843, 0.0
    %v6934 = vmax.f32 %v5492, 0.0
    %v6935 = vmax.f32 %v6141, 0.0
    %v6936 = vmax.f32 %v4197, 0.0
    %v6937 = vmax.f32 %v4846, 0.0
    %v6938 = vmax.f32 %v5495, 0.0
    %v6939 = vmax.f32 %v6144, 0.0
    %v6940 = vmax.f32 %v4199, 0.0
    %v6941 = vmax.f32 %v4848, 0.0
    %v6942 = vmax.f32 %v5497, 0.0
    %v6943 = vmax.f32 %v6146, 0.0
    %v6944 = vmax.f32 %v4202, 0.0
    %v6945 = vmax.f32 %v4851, 0.0
    %v6946 = vmax.f32 %v5500, 0.0
    %v6947 = vmax.f32 %v6149, 0.0
    %v6948 = vmax.f32 %v4204, 0.0
    %v6949 = vmax.f32 %v4853, 0.0
    %v6950 = vmax.f32 %v5502, 0.0
    %v6951 = vmax.f32 %v6151, 0.0
    %v6952 = vmax.f32 %v4207, 0.0
    %v6953 = vmax.f32 %v4856, 0.0
    %v6954 = vmax.f32 %v5505, 0.0
    %v6955 = vmax.f32 %v6154, 0.0
    %v6956 = vmax.f32 %v4209, 0.0
    %v6957 = vmax.f32 %v4858, 0.0
    %v6958 = vmax.f32 %v5507, 0.0
    %v6959 = vmax.f32 %v6156, 0.0
    %v6960 = vmax.f32 %v4212, 0.0
    %v6961 = vmax.f32 %v4861, 0.0
    %v6962 = vmax.f32 %v5510, 0.0
    %v6963 = vmax.f32 %v6159, 0.0
    %v6964 = vmax.f32 %v4214, 0.0
    %v6965 = vmax.f32 %v4863, 0.0
    %v6966 = vmax.f32 %v5512, 0.0
    %v6967 = vmax.f32 %v6161, 0.0
    %v6968 = vmax.f32 %v4217, 0.0
    %v6969 = vmax.f32 %v4866, 0.0
    %v6970 = vmax.f32 %v5515, 0.0
    %v6971 = vmax.f32 %v6164, 0.0
    %v6972 = vmax.f32 %v4219, 0.0
    %v6973 = vmax.f32 %v4868, 0.0
    %v6974 = vmax.f32 %v5517, 0.0
    %v6975 = vmax.f32 %v6166, 0.0
    %v6976 = vmax.f32 %v4222, 0.0
    %v6977 = vmax.f32 %v4871, 0.0
    %v6978 = vmax.f32 %v5520, 0.0
    %v6979 = vmax.f32 %v6169, 0.0
    %v6980 = vmax.f32 %v4224, 0.0
    %v6981 = vmax.f32 %v4873, 0.0
    %v6982 = vmax.f32 %v5522, 0.0
    %v6983 = vmax.f32 %v6171, 0.0
    %v6984 = vmax.f32 %v4227, 0.0
    %v6985 = vmax.f32 %v4876, 0.0
    %v6986 = vmax.f32 %v5525, 0.0
    %v6987 = vmax.f32 %v6174, 0.0
    %v6988 = vmax.f32 %v4229, 0.0
    %v6989 = vmax.f32 %v4878, 0.0
    %v6990 = vmax.f32 %v5527, 0.0
    %v6991 = vmax.f32 %v6176, 0.0
    %v6992 = vmax.f32 %v4232, 0.0
    %v6993 = vmax.f32 %v4881, 0.0
    %v6994 = vmax.f32 %v5530, 0.0
    %v6995 = vmax.f32 %v6179, 0.0
    %v6996 = vmax.f32 %v4234, 0.0
    %v6997 = vmax.f32 %v4883, 0.0
    %v6998 = vmax.f32 %v5532, 0.0
    %v6999 = vmax.f32 %v6181, 0.0
    %v7000 = vmax.f32 %v4237, 0.0
    %v7001 = vmax.f32 %v4886, 0.0
    %v7002 = vmax.f32 %v5535, 0.0
    %v7003 = vmax.f32 %v6184, 0.0
    %v7004 = vmax.f32 %v4239, 0.0
    %v7005 = vmax.f32 %v4888, 0.0
    %v7006 = vmax.f32 %v5537, 0.0
    %v7007 = vmax.f32 %v6186, 0.0
    %v7008 = vmax.f32 %v4242, 0.0
    %v7009 = vmax.f32 %v4891, 0.0
    %v7010 = vmax.f32 %v5540, 0.0
    %v7011 = vmax.f32 %v6189, 0.0
    %v7012 = vmax.f32 %v4244, 0.0
    %v7013 = vmax.f32 %v4893, 0.0
    %v7014 = vmax.f32 %v5542, 0.0
    %v7015 = vmax.f32 %v6191, 0.0
    %v7016 = vmax.f32 %v4247, 0.0
    %v7017 = vmax.f32 %v4896, 0.0
    %v7018 = vmax.f32 %v5545, 0.0
    %v7019 = vmax.f32 %v6194, 0.0
    %v7020 = vmax.f32 %v4249, 0.0
    %v7021 = vmax.f32 %v4898, 0.0
    %v7022 = vmax.f32 %v5547, 0.0
    %v7023 = vmax.f32 %v6196, 0.0
    %v7024 = vmax.f32 %v4252, 0.0
    %v7025 = vmax.f32 %v4901, 0.0
    %v7026 = vmax.f32 %v5550, 0.0
    %v7027 = vmax.f32 %v6199, 0.0
    %v7028 = vmax.f32 %v4254, 0.0
    %v7029 = vmax.f32 %v4903, 0.0
    %v7030 = vmax.f32 %v5552, 0.0
    %v7031 = vmax.f32 %v6201, 0.0
    %v7032 = vmax.f32 %v4257, 0.0
    %v7033 = vmax.f32 %v4906, 0.0
    %v7034 = vmax.f32 %v5555, 0.0
    %v7035 = vmax.f32 %v6204, 0.0
    %v7036 = vmax.f32 %v4259, 0.0
    %v7037 = vmax.f32 %v4908, 0.0
    %v7038 = vmax.f32 %v5557, 0.0
    %v7039 = vmax.f32 %v6206, 0.0
    %v7040 = vmax.f32 %v4262, 0.0
    %v7041 = vmax.f32 %v4911, 0.0
    %v7042 = vmax.f32 %v5560, 0.0
    %v7043 = vmax.f32 %v6209, 0.0
    %v7044 = vmax.f32 %v4264, 0.0
    %v7045 = vmax.f32 %v4913, 0.0
    %v7046 = vmax.f32 %v5562, 0.0
    %v7047 = vmax.f32 %v6211, 0.0
    %v7048 = vmax.f32 %v4267, 0.0
    %v7049 = vmax.f32 %v4916, 0.0
    %v7050 = vmax.f32 %v5565, 0.0
    %v7051 = vmax.f32 %v6214, 0.0
    %v7052 = vmax.f32 %v4269, 0.0
    %v7053 = vmax.f32 %v4918, 0.0
    %v7054 = vmax.f32 %v5567, 0.0
    %v7055 = vmax.f32 %v6216, 0.0
    %v7056 = vmax.f32 %v4272, 0.0
    %v7057 = vmax.f32 %v4921, 0.0
    %v7058 = vmax.f32 %v5570, 0.0
    %v7059 = vmax.f32 %v6219, 0.0
    %v7060 = vmax.f32 %v4274, 0.0
    %v7061 = vmax.f32 %v4923, 0.0
    %v7062 = vmax.f32 %v5572, 0.0
    %v7063 = vmax.f32 %v6221, 0.0
    %v7064 = vmax.f32 %v4277, 0.0
    %v7065 = vmax.f32 %v4926, 0.0
    %v7066 = vmax.f32 %v5575, 0.0
    %v7067 = vmax.f32 %v6224, 0.0
    %v7068 = vmax.f32 %v4279, 0.0
    %v7069 = vmax.f32 %v4928, 0.0
    %v7070 = vmax.f32 %v5577, 0.0
    %v7071 = vmax.f32 %v6226, 0.0
    %v7072 = vmax.f32 %v4282, 0.0
    %v7073 = vmax.f32 %v4931, 0.0
    %v7074 = vmax.f32 %v5580, 0.0
    %v7075 = vmax.f32 %v6229, 0.0
    %v7076 = vmax.f32 %v4284, 0.0
    %v7077 = vmax.f32 %v4933, 0.0
    %v7078 = vmax.f32 %v5582, 0.0
    %v7079 = vmax.f32 %v6231, 0.0
    %v7080 = vmax.f32 %v4287, 0.0
    %v7081 = vmax.f32 %v4936, 0.0
    %v7082 = vmax.f32 %v5585, 0.0
    %v7083 = vmax.f32 %v6234, 0.0
    %v7084 = vmax.f32 %v4289, 0.0
    %v7085 = vmax.f32 %v4938, 0.0
    %v7086 = vmax.f32 %v5587, 0.0
    %v7087 = vmax.f32 %v6236, 0.0
    %v7088 = vmax.f32 %v4292, 0.0
    %v7089 = vmax.f32 %v4941, 0.0
    %v7090 = vmax.f32 %v5590, 0.0
    %v7091 = vmax.f32 %v6239, 0.0
    %v7092 = vmax.f32 %v4294, 0.0
    %v7093 = vmax.f32 %v4943, 0.0
    %v7094 = vmax.f32 %v5592, 0.0
    %v7095 = vmax.f32 %v6241, 0.0
    %v7096 = vmax.f32 %v4297, 0.0
    %v7097 = vmax.f32 %v4946, 0.0
    %v7098 = vmax.f32 %v5595, 0.0
    %v7099 = vmax.f32 %v6244, 0.0
    %v7100 = vmax.f32 %v4299, 0.0
    %v7101 = vmax.f32 %v4948, 0.0
    %v7102 = vmax.f32 %v5597, 0.0
    %v7103 = vmax.f32 %v6246, 0.0
    %v7104 = vmax.f32 %v4302, 0.0
    %v7105 = vmax.f32 %v4951, 0.0
    %v7106 = vmax.f32 %v5600, 0.0
    %v7107 = vmax.f32 %v6249, 0.0
    %v7108 = vmax.f32 %v4304, 0.0
    %v7109 = vmax.f32 %v4953, 0.0
    %v7110 = vmax.f32 %v5602, 0.0
    %v7111 = vmax.f32 %v6251, 0.0
    %v7112 = vmax.f32 %v4307, 0.0
    %v7113 = vmax.f32 %v4956, 0.0
    %v7114 = vmax.f32 %v5605, 0.0
    %v7115 = vmax.f32 %v6254, 0.0
    %v7116 = vmax.f32 %v4309, 0.0
    %v7117 = vmax.f32 %v4958, 0.0
    %v7118 = vmax.f32 %v5607, 0.0
    %v7119 = vmax.f32 %v6256, 0.0
    %v7120 = vmax.f32 %v4312, 0.0
    %v7121 = vmax.f32 %v4961, 0.0
    %v7122 = vmax.f32 %v5610, 0.0
    %v7123 = vmax.f32 %v6259, 0.0
    %v7124 = vmax.f32 %v4314, 0.0
    %v7125 = vmax.f32 %v4963, 0.0
    %v7126 = vmax.f32 %v5612, 0.0
    %v7127 = vmax.f32 %v6261, 0.0
    %v7128 = vmax.f32 %v4317, 0.0
    %v7129 = vmax.f32 %v4966, 0.0
    %v7130 = vmax.f32 %v5615, 0.0
    %v7131 = vmax.f32 %v6264, 0.0
    %v7132 = vmax.f32 %v4319, 0.0
    %v7133 = vmax.f32 %v4968, 0.0
    %v7134 = vmax.f32 %v5617, 0.0
    %v7135 = vmax.f32 %v6266, 0.0
    %v7136 = vmax.f32 %v4322, 0.0
    %v7137 = vmax.f32 %v4971, 0.0
    %v7138 = vmax.f32 %v5620, 0.0
    %v7139 = vmax.f32 %v6269, 0.0
    %v7140 = vmax.f32 %v4324, 0.0
    %v7141 = vmax.f32 %v4973, 0.0
    %v7142 = vmax.f32 %v5622, 0.0
    %v7143 = vmax.f32 %v6271, 0.0
    %v7144 = vmax.f32 %v4327, 0.0
    %v7145 = vmax.f32 %v4976, 0.0
    %v7146 = vmax.f32 %v5625, 0.0
    %v7147 = vmax.f32 %v6274, 0.0
    %v7148 = vmax.f32 %v4329, 0.0
    %v7149 = vmax.f32 %v4978, 0.0
    %v7150 = vmax.f32 %v5627, 0.0
    %v7151 = vmax.f32 %v6276, 0.0
    %v7152 = vmax.f32 %v4332, 0.0
    %v7153 = vmax.f32 %v4981, 0.0
    %v7154 = vmax.f32 %v5630, 0.0
    %v7155 = vmax.f32 %v6279, 0.0
    %v7156 = vmax.f32 %v4334, 0.0
    %v7157 = vmax.f32 %v4983, 0.0
    %v7158 = vmax.f32 %v5632, 0.0
    %v7159 = vmax.f32 %v6281, 0.0
    %v7160 = vmax.f32 %v4337, 0.0
    %v7161 = vmax.f32 %v4986, 0.0
    %v7162 = vmax.f32 %v5635, 0.0
    %v7163 = vmax.f32 %v6284, 0.0
    %v7164 = vmax.f32 %v4339, 0.0
    %v7165 = vmax.f32 %v4988, 0.0
    %v7166 = vmax.f32 %v5637, 0.0
    %v7167 = vmax.f32 %v6286, 0.0
    %v7168 = vmax.f32 %v4342, 0.0
    %v7169 = vmax.f32 %v4991, 0.0
    %v7170 = vmax.f32 %v5640, 0.0
    %v7171 = vmax.f32 %v6289, 0.0
    %v7172 = vmax.f32 %v4344, 0.0
    %v7173 = vmax.f32 %v4993, 0.0
    %v7174 = vmax.f32 %v5642, 0.0
    %v7175 = vmax.f32 %v6291, 0.0
    %v7176 = vmax.f32 %v4347, 0.0
    %v7177 = vmax.f32 %v4996, 0.0
    %v7178 = vmax.f32 %v5645, 0.0
    %v7179 = vmax.f32 %v6294, 0.0
    %v7180 = vmax.f32 %v4349, 0.0
    %v7181 = vmax.f32 %v4998, 0.0
    %v7182 = vmax.f32 %v5647, 0.0
    %v7183 = vmax.f32 %v6296, 0.0
    %v7184 = vmax.f32 %v4352, 0.0
    %v7185 = vmax.f32 %v5001, 0.0
    %v7186 = vmax.f32 %v5650, 0.0
    %v7187 = vmax.f32 %v6299, 0.0
    %v7188 = vmax.f32 %v4354, 0.0
    %v7189 = vmax.f32 %v5003, 0.0
    %v7190 = vmax.f32 %v5652, 0.0
    %v7191 = vmax.f32 %v6301, 0.0
    %v7192 = vmax.f32 %v4357, 0.0
    %v7193 = vmax.f32 %v5006, 0.0
    %v7194 = vmax.f32 %v5655, 0.0
    %v7195 = vmax.f32 %v6304, 0.0
    %v7196 = vmax.f32 %v4359, 0.0
    %v7197 = vmax.f32 %v5008, 0.0
    %v7198 = vmax.f32 %v5657, 0.0
    %v7199 = vmax.f32 %v6306, 0.0
    %v7200 = vmax.f32 %v4362, 0.0
    %v7201 = vmax.f32 %v5011, 0.0
    %v7202 = vmax.f32 %v5660, 0.0
    %v7203 = vmax.f32 %v6309, 0.0
    %v7204 = vmax.f32 %v4364, 0.0
    %v7205 = vmax.f32 %v5013, 0.0
    %v7206 = vmax.f32 %v5662, 0.0
    %v7207 = vmax.f32 %v6311, 0.0
    %v7208 = vmax.f32 %v4367, 0.0
    %v7209 = vmax.f32 %v5016, 0.0
    %v7210 = vmax.f32 %v5665, 0.0
    %v7211 = vmax.f32 %v6314, 0.0
    %v7212 = vmax.f32 %v4369, 0.0
    %v7213 = vmax.f32 %v5018, 0.0
    %v7214 = vmax.f32 %v5667, 0.0
    %v7215 = vmax.f32 %v6316, 0.0
    %v7216 = vmax.f32 %v4372, 0.0
    %v7217 = vmax.f32 %v5021, 0.0
    %v7218 = vmax.f32 %v5670, 0.0
    %v7219 = vmax.f32 %v6319, 0.0
    %v7220 = vmax.f32 %v4374, 0.0
    %v7221 = vmax.f32 %v5023, 0.0
    %v7222 = vmax.f32 %v5672, 0.0
    %v7223 = vmax.f32 %v6321, 0.0
    %v7224 = vmax.f32 %v4377, 0.0
    %v7225 = vmax.f32 %v5026, 0.0
    %v7226 = vmax.f32 %v5675, 0.0
    %v7227 = vmax.f32 %v6324, 0.0
    %v7228 = vmax.f32 %v4379, 0.0
    %v7229 = vmax.f32 %v5028, 0.0
    %v7230 = vmax.f32 %v5677, 0.0
    %v7231 = vmax.f32 %v6326, 0.0
    %v7232 = vmax.f32 %v4382, 0.0
    %v7233 = vmax.f32 %v5031, 0.0
    %v7234 = vmax.f32 %v5680, 0.0
    %v7235 = vmax.f32 %v6329, 0.0
    %v7236 = vmax.f32 %v4384, 0.0
    %v7237 = vmax.f32 %v5033, 0.0
    %v7238 = vmax.f32 %v5682, 0.0
    %v7239 = vmax.f32 %v6331, 0.0
    %v7240 = vmax.f32 %v4387, 0.0
    %v7241 = vmax.f32 %v5036, 0.0
    %v7242 = vmax.f32 %v5685, 0.0
    %v7243 = vmax.f32 %v6334, 0.0
    %v7244 = vmax.f32 %v4389, 0.0
    %v7245 = vmax.f32 %v5038, 0.0
    %v7246 = vmax.f32 %v5687, 0.0
    %v7247 = vmax.f32 %v6336, 0.0
    %v7248 = vmax.f32 %v4392, 0.0
    %v7249 = vmax.f32 %v5041, 0.0
    %v7250 = vmax.f32 %v5690, 0.0
    %v7251 = vmax.f32 %v6339, 0.0
    %v7252 = vmax.f32 %v4394, 0.0
    %v7253 = vmax.f32 %v5043, 0.0
    %v7254 = vmax.f32 %v5692, 0.0
    %v7255 = vmax.f32 %v6341, 0.0
    %v7256 = vmax.f32 %v4397, 0.0
    %v7257 = vmax.f32 %v5046, 0.0
    %v7258 = vmax.f32 %v5695, 0.0
    %v7259 = vmax.f32 %v6344, 0.0
    %v7260 = vmax.f32 %v4399, 0.0
    %v7261 = vmax.f32 %v5048, 0.0
    %v7262 = vmax.f32 %v5697, 0.0
    %v7263 = vmax.f32 %v6346, 0.0
    %v7264 = vmax.f32 %v4402, 0.0
    %v7265 = vmax.f32 %v5051, 0.0
    %v7266 = vmax.f32 %v5700, 0.0
    %v7267 = vmax.f32 %v6349, 0.0
    %v7268 = vmax.f32 %v4404, 0.0
    %v7269 = vmax.f32 %v5053, 0.0
    %v7270 = vmax.f32 %v5702, 0.0
    %v7271 = vmax.f32 %v6351, 0.0
    %v7272 = vmax.f32 %v4407, 0.0
    %v7273 = vmax.f32 %v5056, 0.0
    %v7274 = vmax.f32 %v5705, 0.0
    %v7275 = vmax.f32 %v6354, 0.0
    %v7276 = vmax.f32 %v4409, 0.0
    %v7277 = vmax.f32 %v5058, 0.0
    %v7278 = vmax.f32 %v5707, 0.0
    %v7279 = vmax.f32 %v6356, 0.0
    %v7280 = vmax.f32 %v4412, 0.0
    %v7281 = vmax.f32 %v5061, 0.0
    %v7282 = vmax.f32 %v5710, 0.0
    %v7283 = vmax.f32 %v6359, 0.0
    %v7284 = vmax.f32 %v4414, 0.0
    %v7285 = vmax.f32 %v5063, 0.0
    %v7286 = vmax.f32 %v5712, 0.0
    %v7287 = vmax.f32 %v6361, 0.0
    %v7288 = vmax.f32 %v4417, 0.0
    %v7289 = vmax.f32 %v5066, 0.0
    %v7290 = vmax.f32 %v5715, 0.0
    %v7291 = vmax.f32 %v6364, 0.0
    %v7292 = vmax.f32 %v4419, 0.0
    %v7293 = vmax.f32 %v5068, 0.0
    %v7294 = vmax.f32 %v5717, 0.0
    %v7295 = vmax.f32 %v6366, 0.0
    %v7296 = vmax.f32 %v4422, 0.0
    %v7297 = vmax.f32 %v5071, 0.0
    %v7298 = vmax.f32 %v5720, 0.0
    %v7299 = vmax.f32 %v6369, 0.0
    %v7300 = vmax.f32 %v4424, 0.0
    %v7301 = vmax.f32 %v5073, 0.0
    %v7302 = vmax.f32 %v5722, 0.0
    %v7303 = vmax.f32 %v6371, 0.0
    %v7304 = vmax.f32 %v4427, 0.0
    %v7305 = vmax.f32 %v5076, 0.0
    %v7306 = vmax.f32 %v5725, 0.0
    %v7307 = vmax.f32 %v6374, 0.0
    %v7308 = vmax.f32 %v4429, 0.0
    %v7309 = vmax.f32 %v5078, 0.0
    %v7310 = vmax.f32 %v5727, 0.0
    %v7311 = vmax.f32 %v6376, 0.0
    %v7312 = vmax.f32 %v4432, 0.0
    %v7313 = vmax.f32 %v5081, 0.0
    %v7314 = vmax.f32 %v5730, 0.0
    %v7315 = vmax.f32 %v6379, 0.0
    %v7316 = vmax.f32 %v4434, 0.0
    %v7317 = vmax.f32 %v5083, 0.0
    %v7318 = vmax.f32 %v5732, 0.0
    %v7319 = vmax.f32 %v6381, 0.0
    %v7320 = vmax.f32 %v4437, 0.0
    %v7321 = vmax.f32 %v5086, 0.0
    %v7322 = vmax.f32 %v5735, 0.0
    %v7323 = vmax.f32 %v6384, 0.0
    %v7324 = vmax.f32 %v4439, 0.0
    %v7325 = vmax.f32 %v5088, 0.0
    %v7326 = vmax.f32 %v5737, 0.0
    %v7327 = vmax.f32 %v6386, 0.0
    %v7328 = vmax.f32 %v4442, 0.0
    %v7329 = vmax.f32 %v5091, 0.0
    %v7330 = vmax.f32 %v5740, 0.0
    %v7331 = vmax.f32 %v6389, 0.0
    %v7332 = vmax.f32 %v4444, 0.0
    %v7333 = vmax.f32 %v5093, 0.0
    %v7334 = vmax.f32 %v5742, 0.0
    %v7335 = vmax.f32 %v6391, 0.0
    %v7336 = vmax.f32 %v4447, 0.0
    %v7337 = vmax.f32 %v5096, 0.0
    %v7338 = vmax.f32 %v5745, 0.0
    %v7339 = vmax.f32 %v6394, 0.0
    %v7340 = vmax.f32 %v4449, 0.0
    %v7341 = vmax.f32 %v5098, 0.0
    %v7342 = vmax.f32 %v5747, 0.0
    %v7343 = vmax.f32 %v6396, 0.0
    %v7344 = vmax.f32 %v4452, 0.0
    %v7345 = vmax.f32 %v5101, 0.0
    %v7346 = vmax.f32 %v5750, 0.0
    %v7347 = vmax.f32 %v6399, 0.0
    %v7348 = vmax.f32 %v4454, 0.0
    %v7349 = vmax.f32 %v5103, 0.0
    %v7350 = vmax.f32 %v5752, 0.0
    %v7351 = vmax.f32 %v6401, 0.0
    %v7352 = vmax.f32 %v4457, 0.0
    %v7353 = vmax.f32 %v5106, 0.0
    %v7354 = vmax.f32 %v5755, 0.0
    %v7355 = vmax.f32 %v6404, 0.0
    %v7356 = vmax.f32 %v4459, 0.0
    %v7357 = vmax.f32 %v5108, 0.0
    %v7358 = vmax.f32 %v5757, 0.0
    %v7359 = vmax.f32 %v6406, 0.0
    %v7360 = vmax.f32 %v4462, 0.0
    %v7361 = vmax.f32 %v5111, 0.0
    %v7362 = vmax.f32 %v5760, 0.0
    %v7363 = vmax.f32 %v6409, 0.0
    %v7364 = vmax.f32 %v4464, 0.0
    %v7365 = vmax.f32 %v5113, 0.0
    %v7366 = vmax.f32 %v5762, 0.0
    %v7367 = vmax.f32 %v6411, 0.0
    %v7368 = vmax.f32 %v4467, 0.0
    %v7369 = vmax.f32 %v5116, 0.0
    %v7370 = vmax.f32 %v5765, 0.0
    %v7371 = vmax.f32 %v6414, 0.0
    %v7372 = vmax.f32 %v4469, 0.0
    %v7373 = vmax.f32 %v5118, 0.0
    %v7374 = vmax.f32 %v5767, 0.0
    %v7375 = vmax.f32 %v6416, 0.0
    %v7376 = vmax.f32 %v4472, 0.0
    %v7377 = vmax.f32 %v5121, 0.0
    %v7378 = vmax.f32 %v5770, 0.0
    %v7379 = vmax.f32 %v6419, 0.0
    %v7380 = vmax.f32 %v4474, 0.0
    %v7381 = vmax.f32 %v5123, 0.0
    %v7382 = vmax.f32 %v5772, 0.0
    %v7383 = vmax.f32 %v6421, 0.0
    %v7384 = vmax.f32 %v4477, 0.0
    %v7385 = vmax.f32 %v5126, 0.0
    %v7386 = vmax.f32 %v5775, 0.0
    %v7387 = vmax.f32 %v6424, 0.0
    %v7388 = vmax.f32 %v4479, 0.0
    %v7389 = vmax.f32 %v5128, 0.0
    %v7390 = vmax.f32 %v5777, 0.0
    %v7391 = vmax.f32 %v6426, 0.0
    %v7392 = vmax.f32 %v4482, 0.0
    %v7393 = vmax.f32 %v5131, 0.0
    %v7394 = vmax.f32 %v5780, 0.0
    %v7395 = vmax.f32 %v6429, 0.0
    %v7396 = vmax.f32 %v4484, 0.0
    %v7397 = vmax.f32 %v5133, 0.0
    %v7398 = vmax.f32 %v5782, 0.0
    %v7399 = vmax.f32 %v6431, 0.0
    %v7400 = vmax.f32 %v4487, 0.0
    %v7401 = vmax.f32 %v5136, 0.0
    %v7402 = vmax.f32 %v5785, 0.0
    %v7403 = vmax.f32 %v6434, 0.0
    %v7404 = vmax.f32 %v4489, 0.0
    %v7405 = vmax.f32 %v5138, 0.0
    %v7406 = vmax.f32 %v5787, 0.0
    %v7407 = vmax.f32 %v6436, 0.0
    %v7408 = vmax.f32 %v4492, 0.0
    %v7409 = vmax.f32 %v5141, 0.0
    %v7410 = vmax.f32 %v5790, 0.0
    %v7411 = vmax.f32 %v6439, 0.0
    %v7412 = vmax.f32 %v4494, 0.0
    %v7413 = vmax.f32 %v5143, 0.0
    %v7414 = vmax.f32 %v5792, 0.0
    %v7415 = vmax.f32 %v6441, 0.0
    %v7416 = vmax.f32 %v4497, 0.0
    %v7417 = vmax.f32 %v5146, 0.0
    %v7418 = vmax.f32 %v5795, 0.0
    %v7419 = vmax.f32 %v6444, 0.0
    %v7420 = vmax.f32 %v4499, 0.0
    %v7421 = vmax.f32 %v5148, 0.0
    %v7422 = vmax.f32 %v5797, 0.0
    %v7423 = vmax.f32 %v6446, 0.0
    %v7424 = vmax.f32 %v4502, 0.0
    %v7425 = vmax.f32 %v5151, 0.0
    %v7426 = vmax.f32 %v5800, 0.0
    %v7427 = vmax.f32 %v6449, 0.0
    %v7428 = vmax.f32 %v4504, 0.0
    %v7429 = vmax.f32 %v5153, 0.0
    %v7430 = vmax.f32 %v5802, 0.0
    %v7431 = vmax.f32 %v6451, 0.0
    %v7432 = vmax.f32 %v4507, 0.0
    %v7433 = vmax.f32 %v5156, 0.0
    %v7434 = vmax.f32 %v5805, 0.0
    %v7435 = vmax.f32 %v6454, 0.0
    %v7436 = vmax.f32 %v4509, 0.0
    %v7437 = vmax.f32 %v5158, 0.0
    %v7438 = vmax.f32 %v5807, 0.0
    %v7439 = vmax.f32 %v6456, 0.0
    %v7440 = vmax.f32 %v4512, 0.0
    %v7441 = vmax.f32 %v5161, 0.0
    %v7442 = vmax.f32 %v5810, 0.0
    %v7443 = vmax.f32 %v6459, 0.0
    %v7444 = vmax.f32 %v4514, 0.0
    %v7445 = vmax.f32 %v5163, 0.0
    %v7446 = vmax.f32 %v5812, 0.0
    %v7447 = vmax.f32 %v6461, 0.0
    %v7448 = vmax.f32 %v4517, 0.0
    %v7449 = vmax.f32 %v5166, 0.0
    %v7450 = vmax.f32 %v5815, 0.0
    %v7451 = vmax.f32 %v6464, 0.0
    %v7452 = vmax.f32 %v4519, 0.0
    %v7453 = vmax.f32 %v5168, 0.0
    %v7454 = vmax.f32 %v5817, 0.0
    %v7455 = vmax.f32 %v6466, 0.0
    %v7456 = vmax.f32 %v4522, 0.0
    %v7457 = vmax.f32 %v5171, 0.0
    %v7458 = vmax.f32 %v5820, 0.0
    %v7459 = vmax.f32 %v6469, 0.0
    %v7460 = vmax.f32 %v4524, 0.0
    %v7461 = vmax.f32 %v5173, 0.0
    %v7462 = vmax.f32 %v5822, 0.0
    %v7463 = vmax.f32 %v6471, 0.0
    %v7464 = vmax.f32 %v4527, 0.0
    %v7465 = vmax.f32 %v5176, 0.0
    %v7466 = vmax.f32 %v5825, 0.0
    %v7467 = vmax.f32 %v6474, 0.0
    %v7468 = vmax.f32 %v4529, 0.0
    %v7469 = vmax.f32 %v5178, 0.0
    %v7470 = vmax.f32 %v5827, 0.0
    %v7471 = vmax.f32 %v6476, 0.0
    %v7472 = vmax.f32 %v4532, 0.0
    %v7473 = vmax.f32 %v5181, 0.0
    %v7474 = vmax.f32 %v5830, 0.0
    %v7475 = vmax.f32 %v6479, 0.0
    %v7476 = vmax.f32 %v4534, 0.0
    %v7477 = vmax.f32 %v5183, 0.0
    %v7478 = vmax.f32 %v5832, 0.0
    %v7479 = vmax.f32 %v6481, 0.0
    %v7480 = vmax.f32 %v4537, 0.0
    %v7481 = vmax.f32 %v5186, 0.0
    %v7482 = vmax.f32 %v5835, 0.0
    %v7483 = vmax.f32 %v6484, 0.0
    %v7484 = vmax.f32 %v4539, 0.0
    %v7485 = vmax.f32 %v5188, 0.0
    %v7486 = vmax.f32 %v5837, 0.0
    %v7487 = vmax.f32 %v6486, 0.0
    %v7488 = vmax.f32 %v4542, 0.0
    %v7489 = vmax.f32 %v5191, 0.0
    %v7490 = vmax.f32 %v5840, 0.0
    %v7491 = vmax.f32 %v6489, 0.0
    %v7492 = vmax.f32 %v4544, 0.0
    %v7493 = vmax.f32 %v5193, 0.0
    %v7494 = vmax.f32 %v5842, 0.0
    %v7495 = vmax.f32 %v6491, 0.0
    %v7496 = vmax.f32 %v4547, 0.0
    %v7497 = vmax.f32 %v5196, 0.0
    %v7498 = vmax.f32 %v5845, 0.0
    %v7499 = vmax.f32 %v6494, 0.0
    %v7500 = vmax.f32 %v4549, 0.0
    %v7501 = vmax.f32 %v5198, 0.0
    %v7502 = vmax.f32 %v5847, 0.0
    %v7503 = vmax.f32 %v6496, 0.0
    %v7504 = vmax.f32 %v4552, 0.0
    %v7505 = vmax.f32 %v5201, 0.0
    %v7506 = vmax.f32 %v5850, 0.0
    %v7507 = vmax.f32 %v6499, 0.0
    %v7508 = vmax.f32 %v4554, 0.0
    %v7509 = vmax.f32 %v5203, 0.0
    %v7510 = vmax.f32 %v5852, 0.0
    %v7511 = vmax.f32 %v6501, 0.0
    %v7512 = vmax.f32 %v4557, 0.0
    %v7513 = vmax.f32 %v5206, 0.0
    %v7514 = vmax.f32 %v5855, 0.0
    %v7515 = vmax.f32 %v6504, 0.0
    %v7516 = vmax.f32 %v4559, 0.0
    %v7517 = vmax.f32 %v5208, 0.0
    %v7518 = vmax.f32 %v5857, 0.0
    %v7519 = vmax.f32 %v6506, 0.0
    %v7520 = vmax.f32 %v4562, 0.0
    %v7521 = vmax.f32 %v5211, 0.0
    %v7522 = vmax.f32 %v5860, 0.0
    %v7523 = vmax.f32 %v6509, 0.0
    %v7524 = vmax.f32 %v4564, 0.0
    %v7525 = vmax.f32 %v5213, 0.0
    %v7526 = vmax.f32 %v5862, 0.0
    %v7527 = vmax.f32 %v6511, 0.0
    %v7528 = vmax.f32 %v4567, 0.0
    %v7529 = vmax.f32 %v5216, 0.0
    %v7530 = vmax.f32 %v5865, 0.0
    %v7531 = vmax.f32 %v6514, 0.0
    %v7532 = vmax.f32 %v4569, 0.0
    %v7533 = vmax.f32 %v5218, 0.0
    %v7534 = vmax.f32 %v5867, 0.0
    %v7535 = vmax.f32 %v6516, 0.0
    %v7536 = vmax.f32 %v4572, 0.0
    %v7537 = vmax.f32 %v5221, 0.0
    %v7538 = vmax.f32 %v5870, 0.0
    %v7539 = vmax.f32 %v6519, 0.0
    %v7540 = vmax.f32 %v4574, 0.0
    %v7541 = vmax.f32 %v5223, 0.0
    %v7542 = vmax.f32 %v5872, 0.0
    %v7543 = vmax.f32 %v6521, 0.0
    %v7544 = vmax.f32 %v4577, 0.0
    %v7545 = vmax.f32 %v5226, 0.0
    %v7546 = vmax.f32 %v5875, 0.0
    %v7547 = vmax.f32 %v6524, 0.0
    %v7548 = vmax.f32 %v4579, 0.0
    %v7549 = vmax.f32 %v5228, 0.0
    %v7550 = vmax.f32 %v5877, 0.0
    %v7551 = vmax.f32 %v6526, 0.0
    %v7552 = vpack.c.bf16 %v6532, %v6528
    %v7553 = vpack.c.bf16 %v6533, %v6529
    %v7554 = vpack.c.bf16 %v6534, %v6530
    %v7555 = vpack.c.bf16 %v6535, %v6531
    %v7556 = vpack.c.bf16 %v6540, %v6536
    %v7557 = vpack.c.bf16 %v6541, %v6537
    %v7558 = vpack.c.bf16 %v6542, %v6538
    %v7559 = vpack.c.bf16 %v6543, %v6539
    %v7560 = vpack.c.bf16 %v6548, %v6544
    %v7561 = vpack.c.bf16 %v6549, %v6545
    %v7562 = vpack.c.bf16 %v6550, %v6546
    %v7563 = vpack.c.bf16 %v6551, %v6547
    %v7564 = vpack.c.bf16 %v6556, %v6552
    %v7565 = vpack.c.bf16 %v6557, %v6553
    %v7566 = vpack.c.bf16 %v6558, %v6554
    %v7567 = vpack.c.bf16 %v6559, %v6555
    %v7568 = vpack.c.bf16 %v6564, %v6560
    %v7569 = vpack.c.bf16 %v6565, %v6561
    %v7570 = vpack.c.bf16 %v6566, %v6562
    %v7571 = vpack.c.bf16 %v6567, %v6563
    %v7572 = vpack.c.bf16 %v6572, %v6568
    %v7573 = vpack.c.bf16 %v6573, %v6569
    %v7574 = vpack.c.bf16 %v6574, %v6570
    %v7575 = vpack.c.bf16 %v6575, %v6571
    %v7576 = vpack.c.bf16 %v6580, %v6576
    %v7577 = vpack.c.bf16 %v6581, %v6577
    %v7578 = vpack.c.bf16 %v6582, %v6578
    %v7579 = vpack.c.bf16 %v6583, %v6579
    %v7580 = vpack.c.bf16 %v6588, %v6584
    %v7581 = vpack.c.bf16 %v6589, %v6585
    %v7582 = vpack.c.bf16 %v6590, %v6586
    %v7583 = vpack.c.bf16 %v6591, %v6587
    %v7584 = vpack.c.bf16 %v6596, %v6592
    %v7585 = vpack.c.bf16 %v6597, %v6593
    %v7586 = vpack.c.bf16 %v6598, %v6594
    %v7587 = vpack.c.bf16 %v6599, %v6595
    %v7588 = vpack.c.bf16 %v6604, %v6600
    %v7589 = vpack.c.bf16 %v6605, %v6601
    %v7590 = vpack.c.bf16 %v6606, %v6602
    %v7591 = vpack.c.bf16 %v6607, %v6603
    %v7592 = vpack.c.bf16 %v6612, %v6608
    %v7593 = vpack.c.bf16 %v6613, %v6609
    %v7594 = vpack.c.bf16 %v6614, %v6610
    %v7595 = vpack.c.bf16 %v6615, %v6611
    %v7596 = vpack.c.bf16 %v6620, %v6616
    %v7597 = vpack.c.bf16 %v6621, %v6617
    %v7598 = vpack.c.bf16 %v6622, %v6618
    %v7599 = vpack.c.bf16 %v6623, %v6619
    %v7600 = vpack.c.bf16 %v6628, %v6624
    %v7601 = vpack.c.bf16 %v6629, %v6625
    %v7602 = vpack.c.bf16 %v6630, %v6626
    %v7603 = vpack.c.bf16 %v6631, %v6627
    %v7604 = vpack.c.bf16 %v6636, %v6632
    %v7605 = vpack.c.bf16 %v6637, %v6633
    %v7606 = vpack.c.bf16 %v6638, %v6634
    %v7607 = vpack.c.bf16 %v6639, %v6635
    %v7608 = vpack.c.bf16 %v6644, %v6640
    %v7609 = vpack.c.bf16 %v6645, %v6641
    %v7610 = vpack.c.bf16 %v6646, %v6642
    %v7611 = vpack.c.bf16 %v6647, %v6643
    %v7612 = vpack.c.bf16 %v6652, %v6648
    %v7613 = vpack.c.bf16 %v6653, %v6649
    %v7614 = vpack.c.bf16 %v6654, %v6650
    %v7615 = vpack.c.bf16 %v6655, %v6651
    %v7616 = vpack.c.bf16 %v6660, %v6656
    %v7617 = vpack.c.bf16 %v6661, %v6657
    %v7618 = vpack.c.bf16 %v6662, %v6658
    %v7619 = vpack.c.bf16 %v6663, %v6659
    %v7620 = vpack.c.bf16 %v6668, %v6664
    %v7621 = vpack.c.bf16 %v6669, %v6665
    %v7622 = vpack.c.bf16 %v6670, %v6666
    %v7623 = vpack.c.bf16 %v6671, %v6667
    %v7624 = vpack.c.bf16 %v6676, %v6672
    %v7625 = vpack.c.bf16 %v6677, %v6673
    %v7626 = vpack.c.bf16 %v6678, %v6674
    %v7627 = vpack.c.bf16 %v6679, %v6675
    %v7628 = vpack.c.bf16 %v6684, %v6680
    %v7629 = vpack.c.bf16 %v6685, %v6681
    %v7630 = vpack.c.bf16 %v6686, %v6682
    %v7631 = vpack.c.bf16 %v6687, %v6683
    %v7632 = vpack.c.bf16 %v6692, %v6688
    %v7633 = vpack.c.bf16 %v6693, %v6689
    %v7634 = vpack.c.bf16 %v6694, %v6690
    %v7635 = vpack.c.bf16 %v6695, %v6691
    %v7636 = vpack.c.bf16 %v6700, %v6696
    %v7637 = vpack.c.bf16 %v6701, %v6697
    %v7638 = vpack.c.bf16 %v6702, %v6698
    %v7639 = vpack.c.bf16 %v6703, %v6699
    %v7640 = vpack.c.bf16 %v6708, %v6704
    %v7641 = vpack.c.bf16 %v6709, %v6705
    %v7642 = vpack.c.bf16 %v6710, %v6706
    %v7643 = vpack.c.bf16 %v6711, %v6707
    %v7644 = vpack.c.bf16 %v6716, %v6712
    %v7645 = vpack.c.bf16 %v6717, %v6713
    %v7646 = vpack.c.bf16 %v6718, %v6714
    %v7647 = vpack.c.bf16 %v6719, %v6715
    %v7648 = vpack.c.bf16 %v6724, %v6720
    %v7649 = vpack.c.bf16 %v6725, %v6721
    %v7650 = vpack.c.bf16 %v6726, %v6722
    %v7651 = vpack.c.bf16 %v6727, %v6723
    %v7652 = vpack.c.bf16 %v6732, %v6728
    %v7653 = vpack.c.bf16 %v6733, %v6729
    %v7654 = vpack.c.bf16 %v6734, %v6730
    %v7655 = vpack.c.bf16 %v6735, %v6731
    %v7656 = vpack.c.bf16 %v6740, %v6736
    %v7657 = vpack.c.bf16 %v6741, %v6737
    %v7658 = vpack.c.bf16 %v6742, %v6738
    %v7659 = vpack.c.bf16 %v6743, %v6739
    %v7660 = vpack.c.bf16 %v6748, %v6744
    %v7661 = vpack.c.bf16 %v6749, %v6745
    %v7662 = vpack.c.bf16 %v6750, %v6746
    %v7663 = vpack.c.bf16 %v6751, %v6747
    %v7664 = vpack.c.bf16 %v6756, %v6752
    %v7665 = vpack.c.bf16 %v6757, %v6753
    %v7666 = vpack.c.bf16 %v6758, %v6754
    %v7667 = vpack.c.bf16 %v6759, %v6755
    %v7668 = vpack.c.bf16 %v6764, %v6760
    %v7669 = vpack.c.bf16 %v6765, %v6761
    %v7670 = vpack.c.bf16 %v6766, %v6762
    %v7671 = vpack.c.bf16 %v6767, %v6763
    %v7672 = vpack.c.bf16 %v6772, %v6768
    %v7673 = vpack.c.bf16 %v6773, %v6769
    %v7674 = vpack.c.bf16 %v6774, %v6770
    %v7675 = vpack.c.bf16 %v6775, %v6771
    %v7676 = vpack.c.bf16 %v6780, %v6776
    %v7677 = vpack.c.bf16 %v6781, %v6777
    %v7678 = vpack.c.bf16 %v6782, %v6778
    %v7679 = vpack.c.bf16 %v6783, %v6779
    %v7680 = vpack.c.bf16 %v6788, %v6784
    %v7681 = vpack.c.bf16 %v6789, %v6785
    %v7682 = vpack.c.bf16 %v6790, %v6786
    %v7683 = vpack.c.bf16 %v6791, %v6787
    %v7684 = vpack.c.bf16 %v6796, %v6792
    %v7685 = vpack.c.bf16 %v6797, %v6793
    %v7686 = vpack.c.bf16 %v6798, %v6794
    %v7687 = vpack.c.bf16 %v6799, %v6795
    %v7688 = vpack.c.bf16 %v6804, %v6800
    %v7689 = vpack.c.bf16 %v6805, %v6801
    %v7690 = vpack.c.bf16 %v6806, %v6802
    %v7691 = vpack.c.bf16 %v6807, %v6803
    %v7692 = vpack.c.bf16 %v6812, %v6808
    %v7693 = vpack.c.bf16 %v6813, %v6809
    %v7694 = vpack.c.bf16 %v6814, %v6810
    %v7695 = vpack.c.bf16 %v6815, %v6811
    %v7696 = vpack.c.bf16 %v6820, %v6816
    %v7697 = vpack.c.bf16 %v6821, %v6817
    %v7698 = vpack.c.bf16 %v6822, %v6818
    %v7699 = vpack.c.bf16 %v6823, %v6819
    %v7700 = vpack.c.bf16 %v6828, %v6824
    %v7701 = vpack.c.bf16 %v6829, %v6825
    %v7702 = vpack.c.bf16 %v6830, %v6826
    %v7703 = vpack.c.bf16 %v6831, %v6827
    %v7704 = vpack.c.bf16 %v6836, %v6832
    %v7705 = vpack.c.bf16 %v6837, %v6833
    %v7706 = vpack.c.bf16 %v6838, %v6834
    %v7707 = vpack.c.bf16 %v6839, %v6835
    %v7708 = vpack.c.bf16 %v6844, %v6840
    %v7709 = vpack.c.bf16 %v6845, %v6841
    %v7710 = vpack.c.bf16 %v6846, %v6842
    %v7711 = vpack.c.bf16 %v6847, %v6843
    %v7712 = vpack.c.bf16 %v6852, %v6848
    %v7713 = vpack.c.bf16 %v6853, %v6849
    %v7714 = vpack.c.bf16 %v6854, %v6850
    %v7715 = vpack.c.bf16 %v6855, %v6851
    %v7716 = vpack.c.bf16 %v6860, %v6856
    %v7717 = vpack.c.bf16 %v6861, %v6857
    %v7718 = vpack.c.bf16 %v6862, %v6858
    %v7719 = vpack.c.bf16 %v6863, %v6859
    %v7720 = vpack.c.bf16 %v6868, %v6864
    %v7721 = vpack.c.bf16 %v6869, %v6865
    %v7722 = vpack.c.bf16 %v6870, %v6866
    %v7723 = vpack.c.bf16 %v6871, %v6867
    %v7724 = vpack.c.bf16 %v6876, %v6872
    %v7725 = vpack.c.bf16 %v6877, %v6873
    %v7726 = vpack.c.bf16 %v6878, %v6874
    %v7727 = vpack.c.bf16 %v6879, %v6875
    %v7728 = vpack.c.bf16 %v6884, %v6880
    %v7729 = vpack.c.bf16 %v6885, %v6881
    %v7730 = vpack.c.bf16 %v6886, %v6882
    %v7731 = vpack.c.bf16 %v6887, %v6883
    %v7732 = vpack.c.bf16 %v6892, %v6888
    %v7733 = vpack.c.bf16 %v6893, %v6889
    %v7734 = vpack.c.bf16 %v6894, %v6890
    %v7735 = vpack.c.bf16 %v6895, %v6891
    %v7736 = vpack.c.bf16 %v6900, %v6896
    %v7737 = vpack.c.bf16 %v6901, %v6897
    %v7738 = vpack.c.bf16 %v6902, %v6898
    %v7739 = vpack.c.bf16 %v6903, %v6899
    %v7740 = vpack.c.bf16 %v6908, %v6904
    %v7741 = vpack.c.bf16 %v6909, %v6905
    %v7742 = vpack.c.bf16 %v6910, %v6906
    %v7743 = vpack.c.bf16 %v6911, %v6907
    %v7744 = vpack.c.bf16 %v6916, %v6912
    %v7745 = vpack.c.bf16 %v6917, %v6913
    %v7746 = vpack.c.bf16 %v6918, %v6914
    %v7747 = vpack.c.bf16 %v6919, %v6915
    %v7748 = vpack.c.bf16 %v6924, %v6920
    %v7749 = vpack.c.bf16 %v6925, %v6921
    %v7750 = vpack.c.bf16 %v6926, %v6922
    %v7751 = vpack.c.bf16 %v6927, %v6923
    %v7752 = vpack.c.bf16 %v6932, %v6928
    %v7753 = vpack.c.bf16 %v6933, %v6929
    %v7754 = vpack.c.bf16 %v6934, %v6930
    %v7755 = vpack.c.bf16 %v6935, %v6931
    %v7756 = vpack.c.bf16 %v6940, %v6936
    %v7757 = vpack.c.bf16 %v6941, %v6937
    %v7758 = vpack.c.bf16 %v6942, %v6938
    %v7759 = vpack.c.bf16 %v6943, %v6939
    %v7760 = vpack.c.bf16 %v6948, %v6944
    %v7761 = vpack.c.bf16 %v6949, %v6945
    %v7762 = vpack.c.bf16 %v6950, %v6946
    %v7763 = vpack.c.bf16 %v6951, %v6947
    %v7764 = vpack.c.bf16 %v6956, %v6952
    %v7765 = vpack.c.bf16 %v6957, %v6953
    %v7766 = vpack.c.bf16 %v6958, %v6954
    %v7767 = vpack.c.bf16 %v6959, %v6955
    %v7768 = vpack.c.bf16 %v6964, %v6960
    %v7769 = vpack.c.bf16 %v6965, %v6961
    %v7770 = vpack.c.bf16 %v6966, %v6962
    %v7771 = vpack.c.bf16 %v6967, %v6963
    %v7772 = vpack.c.bf16 %v6972, %v6968
    %v7773 = vpack.c.bf16 %v6973, %v6969
    %v7774 = vpack.c.bf16 %v6974, %v6970
    %v7775 = vpack.c.bf16 %v6975, %v6971
    %v7776 = vpack.c.bf16 %v6980, %v6976
    %v7777 = vpack.c.bf16 %v6981, %v6977
    %v7778 = vpack.c.bf16 %v6982, %v6978
    %v7779 = vpack.c.bf16 %v6983, %v6979
    %v7780 = vpack.c.bf16 %v6988, %v6984
    %v7781 = vpack.c.bf16 %v6989, %v6985
    %v7782 = vpack.c.bf16 %v6990, %v6986
    %v7783 = vpack.c.bf16 %v6991, %v6987
    %v7784 = vpack.c.bf16 %v6996, %v6992
    %v7785 = vpack.c.bf16 %v6997, %v6993
    %v7786 = vpack.c.bf16 %v6998, %v6994
    %v7787 = vpack.c.bf16 %v6999, %v6995
    %v7788 = vpack.c.bf16 %v7004, %v7000
    %v7789 = vpack.c.bf16 %v7005, %v7001
    %v7790 = vpack.c.bf16 %v7006, %v7002
    %v7791 = vpack.c.bf16 %v7007, %v7003
    %v7792 = vpack.c.bf16 %v7012, %v7008
    %v7793 = vpack.c.bf16 %v7013, %v7009
    %v7794 = vpack.c.bf16 %v7014, %v7010
    %v7795 = vpack.c.bf16 %v7015, %v7011
    %v7796 = vpack.c.bf16 %v7020, %v7016
    %v7797 = vpack.c.bf16 %v7021, %v7017
    %v7798 = vpack.c.bf16 %v7022, %v7018
    %v7799 = vpack.c.bf16 %v7023, %v7019
    %v7800 = vpack.c.bf16 %v7028, %v7024
    %v7801 = vpack.c.bf16 %v7029, %v7025
    %v7802 = vpack.c.bf16 %v7030, %v7026
    %v7803 = vpack.c.bf16 %v7031, %v7027
    %v7804 = vpack.c.bf16 %v7036, %v7032
    %v7805 = vpack.c.bf16 %v7037, %v7033
    %v7806 = vpack.c.bf16 %v7038, %v7034
    %v7807 = vpack.c.bf16 %v7039, %v7035
    %v7808 = vpack.c.bf16 %v7044, %v7040
    %v7809 = vpack.c.bf16 %v7045, %v7041
    %v7810 = vpack.c.bf16 %v7046, %v7042
    %v7811 = vpack.c.bf16 %v7047, %v7043
    %v7812 = vpack.c.bf16 %v7052, %v7048
    %v7813 = vpack.c.bf16 %v7053, %v7049
    %v7814 = vpack.c.bf16 %v7054, %v7050
    %v7815 = vpack.c.bf16 %v7055, %v7051
    %v7816 = vpack.c.bf16 %v7060, %v7056
    %v7817 = vpack.c.bf16 %v7061, %v7057
    %v7818 = vpack.c.bf16 %v7062, %v7058
    %v7819 = vpack.c.bf16 %v7063, %v7059
    %v7820 = vpack.c.bf16 %v7068, %v7064
    %v7821 = vpack.c.bf16 %v7069, %v7065
    %v7822 = vpack.c.bf16 %v7070, %v7066
    %v7823 = vpack.c.bf16 %v7071, %v7067
    %v7824 = vpack.c.bf16 %v7076, %v7072
    %v7825 = vpack.c.bf16 %v7077, %v7073
    %v7826 = vpack.c.bf16 %v7078, %v7074
    %v7827 = vpack.c.bf16 %v7079, %v7075
    %v7828 = vpack.c.bf16 %v7084, %v7080
    %v7829 = vpack.c.bf16 %v7085, %v7081
    %v7830 = vpack.c.bf16 %v7086, %v7082
    %v7831 = vpack.c.bf16 %v7087, %v7083
    %v7832 = vpack.c.bf16 %v7092, %v7088
    %v7833 = vpack.c.bf16 %v7093, %v7089
    %v7834 = vpack.c.bf16 %v7094, %v7090
    %v7835 = vpack.c.bf16 %v7095, %v7091
    %v7836 = vpack.c.bf16 %v7100, %v7096
    %v7837 = vpack.c.bf16 %v7101, %v7097
    %v7838 = vpack.c.bf16 %v7102, %v7098
    %v7839 = vpack.c.bf16 %v7103, %v7099
    %v7840 = vpack.c.bf16 %v7108, %v7104
    %v7841 = vpack.c.bf16 %v7109, %v7105
    %v7842 = vpack.c.bf16 %v7110, %v7106
    %v7843 = vpack.c.bf16 %v7111, %v7107
    %v7844 = vpack.c.bf16 %v7116, %v7112
    %v7845 = vpack.c.bf16 %v7117, %v7113
    %v7846 = vpack.c.bf16 %v7118, %v7114
    %v7847 = vpack.c.bf16 %v7119, %v7115
    %v7848 = vpack.c.bf16 %v7124, %v7120
    %v7849 = vpack.c.bf16 %v7125, %v7121
    %v7850 = vpack.c.bf16 %v7126, %v7122
    %v7851 = vpack.c.bf16 %v7127, %v7123
    %v7852 = vpack.c.bf16 %v7132, %v7128
    %v7853 = vpack.c.bf16 %v7133, %v7129
    %v7854 = vpack.c.bf16 %v7134, %v7130
    %v7855 = vpack.c.bf16 %v7135, %v7131
    %v7856 = vpack.c.bf16 %v7140, %v7136
    %v7857 = vpack.c.bf16 %v7141, %v7137
    %v7858 = vpack.c.bf16 %v7142, %v7138
    %v7859 = vpack.c.bf16 %v7143, %v7139
    %v7860 = vpack.c.bf16 %v7148, %v7144
    %v7861 = vpack.c.bf16 %v7149, %v7145
    %v7862 = vpack.c.bf16 %v7150, %v7146
    %v7863 = vpack.c.bf16 %v7151, %v7147
    %v7864 = vpack.c.bf16 %v7156, %v7152
    %v7865 = vpack.c.bf16 %v7157, %v7153
    %v7866 = vpack.c.bf16 %v7158, %v7154
    %v7867 = vpack.c.bf16 %v7159, %v7155
    %v7868 = vpack.c.bf16 %v7164, %v7160
    %v7869 = vpack.c.bf16 %v7165, %v7161
    %v7870 = vpack.c.bf16 %v7166, %v7162
    %v7871 = vpack.c.bf16 %v7167, %v7163
    %v7872 = vpack.c.bf16 %v7172, %v7168
    %v7873 = vpack.c.bf16 %v7173, %v7169
    %v7874 = vpack.c.bf16 %v7174, %v7170
    %v7875 = vpack.c.bf16 %v7175, %v7171
    %v7876 = vpack.c.bf16 %v7180, %v7176
    %v7877 = vpack.c.bf16 %v7181, %v7177
    %v7878 = vpack.c.bf16 %v7182, %v7178
    %v7879 = vpack.c.bf16 %v7183, %v7179
    %v7880 = vpack.c.bf16 %v7188, %v7184
    %v7881 = vpack.c.bf16 %v7189, %v7185
    %v7882 = vpack.c.bf16 %v7190, %v7186
    %v7883 = vpack.c.bf16 %v7191, %v7187
    %v7884 = vpack.c.bf16 %v7196, %v7192
    %v7885 = vpack.c.bf16 %v7197, %v7193
    %v7886 = vpack.c.bf16 %v7198, %v7194
    %v7887 = vpack.c.bf16 %v7199, %v7195
    %v7888 = vpack.c.bf16 %v7204, %v7200
    %v7889 = vpack.c.bf16 %v7205, %v7201
    %v7890 = vpack.c.bf16 %v7206, %v7202
    %v7891 = vpack.c.bf16 %v7207, %v7203
    %v7892 = vpack.c.bf16 %v7212, %v7208
    %v7893 = vpack.c.bf16 %v7213, %v7209
    %v7894 = vpack.c.bf16 %v7214, %v7210
    %v7895 = vpack.c.bf16 %v7215, %v7211
    %v7896 = vpack.c.bf16 %v7220, %v7216
    %v7897 = vpack.c.bf16 %v7221, %v7217
    %v7898 = vpack.c.bf16 %v7222, %v7218
    %v7899 = vpack.c.bf16 %v7223, %v7219
    %v7900 = vpack.c.bf16 %v7228, %v7224
    %v7901 = vpack.c.bf16 %v7229, %v7225
    %v7902 = vpack.c.bf16 %v7230, %v7226
    %v7903 = vpack.c.bf16 %v7231, %v7227
    %v7904 = vpack.c.bf16 %v7236, %v7232
    %v7905 = vpack.c.bf16 %v7237, %v7233
    %v7906 = vpack.c.bf16 %v7238, %v7234
    %v7907 = vpack.c.bf16 %v7239, %v7235
    %v7908 = vpack.c.bf16 %v7244, %v7240
    %v7909 = vpack.c.bf16 %v7245, %v7241
    %v7910 = vpack.c.bf16 %v7246, %v7242
    %v7911 = vpack.c.bf16 %v7247, %v7243
    %v7912 = vpack.c.bf16 %v7252, %v7248
    %v7913 = vpack.c.bf16 %v7253, %v7249
    %v7914 = vpack.c.bf16 %v7254, %v7250
    %v7915 = vpack.c.bf16 %v7255, %v7251
    %v7916 = vpack.c.bf16 %v7260, %v7256
    %v7917 = vpack.c.bf16 %v7261, %v7257
    %v7918 = vpack.c.bf16 %v7262, %v7258
    %v7919 = vpack.c.bf16 %v7263, %v7259
    %v7920 = vpack.c.bf16 %v7268, %v7264
    %v7921 = vpack.c.bf16 %v7269, %v7265
    %v7922 = vpack.c.bf16 %v7270, %v7266
    %v7923 = vpack.c.bf16 %v7271, %v7267
    %v7924 = vpack.c.bf16 %v7276, %v7272
    %v7925 = vpack.c.bf16 %v7277, %v7273
    %v7926 = vpack.c.bf16 %v7278, %v7274
    %v7927 = vpack.c.bf16 %v7279, %v7275
    %v7928 = vpack.c.bf16 %v7284, %v7280
    %v7929 = vpack.c.bf16 %v7285, %v7281
    %v7930 = vpack.c.bf16 %v7286, %v7282
    %v7931 = vpack.c.bf16 %v7287, %v7283
    %v7932 = vpack.c.bf16 %v7292, %v7288
    %v7933 = vpack.c.bf16 %v7293, %v7289
    %v7934 = vpack.c.bf16 %v7294, %v7290
    %v7935 = vpack.c.bf16 %v7295, %v7291
    %v7936 = vpack.c.bf16 %v7300, %v7296
    %v7937 = vpack.c.bf16 %v7301, %v7297
    %v7938 = vpack.c.bf16 %v7302, %v7298
    %v7939 = vpack.c.bf16 %v7303, %v7299
    %v7940 = vpack.c.bf16 %v7308, %v7304
    %v7941 = vpack.c.bf16 %v7309, %v7305
    %v7942 = vpack.c.bf16 %v7310, %v7306
    %v7943 = vpack.c.bf16 %v7311, %v7307
    %v7944 = vpack.c.bf16 %v7316, %v7312
    %v7945 = vpack.c.bf16 %v7317, %v7313
    %v7946 = vpack.c.bf16 %v7318, %v7314
    %v7947 = vpack.c.bf16 %v7319, %v7315
    %v7948 = vpack.c.bf16 %v7324, %v7320
    %v7949 = vpack.c.bf16 %v7325, %v7321
    %v7950 = vpack.c.bf16 %v7326, %v7322
    %v7951 = vpack.c.bf16 %v7327, %v7323
    %v7952 = vpack.c.bf16 %v7332, %v7328
    %v7953 = vpack.c.bf16 %v7333, %v7329
    %v7954 = vpack.c.bf16 %v7334, %v7330
    %v7955 = vpack.c.bf16 %v7335, %v7331
    %v7956 = vpack.c.bf16 %v7340, %v7336
    %v7957 = vpack.c.bf16 %v7341, %v7337
    %v7958 = vpack.c.bf16 %v7342, %v7338
    %v7959 = vpack.c.bf16 %v7343, %v7339
    %v7960 = vpack.c.bf16 %v7348, %v7344
    %v7961 = vpack.c.bf16 %v7349, %v7345
    %v7962 = vpack.c.bf16 %v7350, %v7346
    %v7963 = vpack.c.bf16 %v7351, %v7347
    %v7964 = vpack.c.bf16 %v7356, %v7352
    %v7965 = vpack.c.bf16 %v7357, %v7353
    %v7966 = vpack.c.bf16 %v7358, %v7354
    %v7967 = vpack.c.bf16 %v7359, %v7355
    %v7968 = vpack.c.bf16 %v7364, %v7360
    %v7969 = vpack.c.bf16 %v7365, %v7361
    %v7970 = vpack.c.bf16 %v7366, %v7362
    %v7971 = vpack.c.bf16 %v7367, %v7363
    %v7972 = vpack.c.bf16 %v7372, %v7368
    %v7973 = vpack.c.bf16 %v7373, %v7369
    %v7974 = vpack.c.bf16 %v7374, %v7370
    %v7975 = vpack.c.bf16 %v7375, %v7371
    %v7976 = vpack.c.bf16 %v7380, %v7376
    %v7977 = vpack.c.bf16 %v7381, %v7377
    %v7978 = vpack.c.bf16 %v7382, %v7378
    %v7979 = vpack.c.bf16 %v7383, %v7379
    %v7980 = vpack.c.bf16 %v7388, %v7384
    %v7981 = vpack.c.bf16 %v7389, %v7385
    %v7982 = vpack.c.bf16 %v7390, %v7386
    %v7983 = vpack.c.bf16 %v7391, %v7387
    %v7984 = vpack.c.bf16 %v7396, %v7392
    %v7985 = vpack.c.bf16 %v7397, %v7393
    %v7986 = vpack.c.bf16 %v7398, %v7394
    %v7987 = vpack.c.bf16 %v7399, %v7395
    %v7988 = vpack.c.bf16 %v7404, %v7400
    %v7989 = vpack.c.bf16 %v7405, %v7401
    %v7990 = vpack.c.bf16 %v7406, %v7402
    %v7991 = vpack.c.bf16 %v7407, %v7403
    %v7992 = vpack.c.bf16 %v7412, %v7408
    %v7993 = vpack.c.bf16 %v7413, %v7409
    %v7994 = vpack.c.bf16 %v7414, %v7410
    %v7995 = vpack.c.bf16 %v7415, %v7411
    %v7996 = vpack.c.bf16 %v7420, %v7416
    %v7997 = vpack.c.bf16 %v7421, %v7417
    %v7998 = vpack.c.bf16 %v7422, %v7418
    %v7999 = vpack.c.bf16 %v7423, %v7419
    %v8000 = vpack.c.bf16 %v7428, %v7424
    %v8001 = vpack.c.bf16 %v7429, %v7425
    %v8002 = vpack.c.bf16 %v7430, %v7426
    %v8003 = vpack.c.bf16 %v7431, %v7427
    %v8004 = vpack.c.bf16 %v7436, %v7432
    %v8005 = vpack.c.bf16 %v7437, %v7433
    %v8006 = vpack.c.bf16 %v7438, %v7434
    %v8007 = vpack.c.bf16 %v7439, %v7435
    %v8008 = vpack.c.bf16 %v7444, %v7440
    %v8009 = vpack.c.bf16 %v7445, %v7441
    %v8010 = vpack.c.bf16 %v7446, %v7442
    %v8011 = vpack.c.bf16 %v7447, %v7443
    %v8012 = vpack.c.bf16 %v7452, %v7448
    %v8013 = vpack.c.bf16 %v7453, %v7449
    %v8014 = vpack.c.bf16 %v7454, %v7450
    %v8015 = vpack.c.bf16 %v7455, %v7451
    %v8016 = vpack.c.bf16 %v7460, %v7456
    %v8017 = vpack.c.bf16 %v7461, %v7457
    %v8018 = vpack.c.bf16 %v7462, %v7458
    %v8019 = vpack.c.bf16 %v7463, %v7459
    %v8020 = vpack.c.bf16 %v7468, %v7464
    %v8021 = vpack.c.bf16 %v7469, %v7465
    %v8022 = vpack.c.bf16 %v7470, %v7466
    %v8023 = vpack.c.bf16 %v7471, %v7467
    %v8024 = vpack.c.bf16 %v7476, %v7472
    %v8025 = vpack.c.bf16 %v7477, %v7473
    %v8026 = vpack.c.bf16 %v7478, %v7474
    %v8027 = vpack.c.bf16 %v7479, %v7475
    %v8028 = vpack.c.bf16 %v7484, %v7480
    %v8029 = vpack.c.bf16 %v7485, %v7481
    %v8030 = vpack.c.bf16 %v7486, %v7482
    %v8031 = vpack.c.bf16 %v7487, %v7483
    %v8032 = vpack.c.bf16 %v7492, %v7488
    %v8033 = vpack.c.bf16 %v7493, %v7489
    %v8034 = vpack.c.bf16 %v7494, %v7490
    %v8035 = vpack.c.bf16 %v7495, %v7491
    %v8036 = vpack.c.bf16 %v7500, %v7496
    %v8037 = vpack.c.bf16 %v7501, %v7497
    %v8038 = vpack.c.bf16 %v7502, %v7498
    %v8039 = vpack.c.bf16 %v7503, %v7499
    %v8040 = vpack.c.bf16 %v7508, %v7504
    %v8041 = vpack.c.bf16 %v7509, %v7505
    %v8042 = vpack.c.bf16 %v7510, %v7506
    %v8043 = vpack.c.bf16 %v7511, %v7507
    %v8044 = vpack.c.bf16 %v7516, %v7512
    %v8045 = vpack.c.bf16 %v7517, %v7513
    %v8046 = vpack.c.bf16 %v7518, %v7514
    %v8047 = vpack.c.bf16 %v7519, %v7515
    %v8048 = vpack.c.bf16 %v7524, %v7520
    %v8049 = vpack.c.bf16 %v7525, %v7521
    %v8050 = vpack.c.bf16 %v7526, %v7522
    %v8051 = vpack.c.bf16 %v7527, %v7523
    %v8052 = vpack.c.bf16 %v7532, %v7528
    %v8053 = vpack.c.bf16 %v7533, %v7529
    %v8054 = vpack.c.bf16 %v7534, %v7530
    %v8055 = vpack.c.bf16 %v7535, %v7531
    %v8056 = vpack.c.bf16 %v7540, %v7536
    %v8057 = vpack.c.bf16 %v7541, %v7537
    %v8058 = vpack.c.bf16 %v7542, %v7538
    %v8059 = vpack.c.bf16 %v7543, %v7539
    %v8060 = vpack.c.bf16 %v7548, %v7544
    %v8061 = vpack.c.bf16 %v7549, %v7545
    %v8062 = vpack.c.bf16 %v7550, %v7546
    %v8063 = vpack.c.bf16 %v7551, %v7547
    %v8064 = vld [vmem:[%s10] sm:$0xff]
    %v8065 = vld [vmem:[%s10 + $0x8] sm:$0xff]
    %v8066 = vld [vmem:[%s10 + $0x10] sm:$0xff]
    %v8067 = vld [vmem:[%s10 + $0x18] sm:$0xff]
    %v8068 = vld [vmem:[%s10 + $0x20] sm:$0xff]
    %v8069 = vld [vmem:[%s10 + $0x28] sm:$0xff]
    %v8070 = vld [vmem:[%s10 + $0x30] sm:$0xff]
    %v8071 = vld [vmem:[%s10 + $0x38] sm:$0xff]
    %v8072 = vld [vmem:[%s10 + $0x40] sm:$0xff]
    %v8073 = vld [vmem:[%s10 + $0x48] sm:$0xff]
    %v8074 = vld [vmem:[%s10 + $0x50] sm:$0xff]
    %v8075 = vld [vmem:[%s10 + $0x58] sm:$0xff]
    %v8076 = vld [vmem:[%s10 + $0x60] sm:$0xff]
    %v8077 = vld [vmem:[%s10 + $0x68] sm:$0xff]
    %v8078 = vld [vmem:[%s10 + $0x70] sm:$0xff]
    %v8079 = vld [vmem:[%s10 + $0x78] sm:$0xff]
    %v8080 = vld [vmem:[%s11] sm:$0xff]
    %v8081 = vld [vmem:[%s11 + $0x8] sm:$0xff]
    %8083 = vset.pattern.permute.xlu0 0
    %8084 = vperm.xlu0 %8083, %v8080
    %v8085 = vpop.permute.xlu0 %8084
    %8088 = vset.pattern.permute.xlu0 0
    %8089 = vperm.xlu0 %8088, %v8081
    %v8090 = vpop.permute.xlu0 %8089
    %v8108 = vunpack.c.l.b16 %v8064
    %v8109 = vunpack.c.h.b16 %v8064
    %v8110 = vunpack.c.l.b16 %v8065
    %v8111 = vunpack.c.h.b16 %v8065
    %v8112 = vunpack.c.l.b16 %v8066
    %v8113 = vunpack.c.h.b16 %v8066
    %v8114 = vunpack.c.l.b16 %v8067
    %v8115 = vunpack.c.h.b16 %v8067
    %v8116 = vunpack.c.l.b16 %v8068
    %v8117 = vunpack.c.h.b16 %v8068
    %v8118 = vunpack.c.l.b16 %v8069
    %v8119 = vunpack.c.h.b16 %v8069
    %v8120 = vunpack.c.l.b16 %v8070
    %v8121 = vunpack.c.h.b16 %v8070
    %v8122 = vunpack.c.l.b16 %v8071
    %v8123 = vunpack.c.h.b16 %v8071
    %v8124 = vunpack.c.l.b16 %v8072
    %v8125 = vunpack.c.h.b16 %v8072
    %v8126 = vunpack.c.l.b16 %v8073
    %v8127 = vunpack.c.h.b16 %v8073
    %v8128 = vunpack.c.l.b16 %v8074
    %v8129 = vunpack.c.h.b16 %v8074
    %v8130 = vunpack.c.l.b16 %v8075
    %v8131 = vunpack.c.h.b16 %v8075
    %v8132 = vunpack.c.l.b16 %v8076
    %v8133 = vunpack.c.h.b16 %v8076
    %v8134 = vunpack.c.l.b16 %v8077
    %v8135 = vunpack.c.h.b16 %v8077
    %v8136 = vunpack.c.l.b16 %v8078
    %v8137 = vunpack.c.h.b16 %v8078
    %v8138 = vunpack.c.l.b16 %v8079
    %v8139 = vunpack.c.h.b16 %v8079
    %v8140 = vpack.c.b16 %v8124, %v8108
    %v8141 = vpack.c.b16 %v8125, %v8109
    %v8142 = vpack.c.b16 %v8126, %v8110
    %v8143 = vpack.c.b16 %v8127, %v8111
    %v8144 = vpack.c.b16 %v8128, %v8112
    %v8145 = vpack.c.b16 %v8129, %v8113
    %v8146 = vpack.c.b16 %v8130, %v8114
    %v8147 = vpack.c.b16 %v8131, %v8115
    %v8148 = vpack.c.b16 %v8132, %v8116
    %v8149 = vpack.c.b16 %v8133, %v8117
    %v8150 = vpack.c.b16 %v8134, %v8118
    %v8151 = vpack.c.b16 %v8135, %v8119
    %v8152 = vpack.c.b16 %v8136, %v8120
    %v8153 = vpack.c.b16 %v8137, %v8121
    %v8154 = vpack.c.b16 %v8138, %v8122
    %v8155 = vpack.c.b16 %v8139, %v8123
    %8172 = vmatpush.bf16.msra.mxu0 %v7580
    %8173 = vmatpush.bf16.msra.mxu0 %v7576
    %8174 = vmatpush.bf16.msra.mxu0 %v7572
    %8175 = vmatpush.bf16.msra.mxu0 %v7568
    %8176 = vmatpush.bf16.msra.mxu0 %v7564
    %8177 = vmatpush.bf16.msra.mxu0 %v7560
    %8178 = vmatpush.bf16.msra.mxu0 %v7556
    %8179 = vmatpush.bf16.msra.mxu0 %v7552
    %8180 = vmatmul.bf16.gmra.mxu0 %v8140
    %v8181 = vpop.f32.mrf.mxu0
    %v8182 = vadd.f32 %v8085, %v8181
    %v8183 = vpop.f32.mrf.mxu0
    %v8184 = vadd.f32 %v8090, %v8183
    %8185 = vdwg.mxu0
    %8186 = vmatpush.bf16.msra.mxu0 %v7612
    %8187 = vmatpush.bf16.msra.mxu0 %v7608
    %8188 = vmatpush.bf16.msra.mxu0 %v7604
    %8189 = vmatpush.bf16.msra.mxu0 %v7600
    %8190 = vmatpush.bf16.msra.mxu0 %v7596
    %8191 = vmatpush.bf16.msra.mxu0 %v7592
    %8192 = vmatpush.bf16.msra.mxu0 %v7588
    %8193 = vmatpush.bf16.msra.mxu0 %v7584
    %8194 = vmatmul.bf16.gmra.mxu0 %v8141
    %v8195 = vpop.f32.mrf.mxu0
    %v8196 = vadd.f32 %v8182, %v8195
    %v8197 = vpop.f32.mrf.mxu0
    %v8198 = vadd.f32 %v8184, %v8197
    %8199 = vdwg.mxu0
    %8200 = vmatpush.bf16.msra.mxu0 %v7644
    %8201 = vmatpush.bf16.msra.mxu0 %v7640
    %8202 = vmatpush.bf16.msra.mxu0 %v7636
    %8203 = vmatpush.bf16.msra.mxu0 %v7632
    %8204 = vmatpush.bf16.msra.mxu0 %v7628
    %8205 = vmatpush.bf16.msra.mxu0 %v7624
    %8206 = vmatpush.bf16.msra.mxu0 %v7620
    %8207 = vmatpush.bf16.msra.mxu0 %v7616
    %8208 = vmatmul.bf16.gmra.mxu0 %v8142
    %v8209 = vpop.f32.mrf.mxu0
    %v8210 = vadd.f32 %v8196, %v8209
    %v8211 = vpop.f32.mrf.mxu0
    %v8212 = vadd.f32 %v8198, %v8211
    %8213 = vdwg.mxu0
    %8214 = vmatpush.bf16.msra.mxu0 %v7676
    %8215 = vmatpush.bf16.msra.mxu0 %v7672
    %8216 = vmatpush.bf16.msra.mxu0 %v7668
    %8217 = vmatpush.bf16.msra.mxu0 %v7664
    %8218 = vmatpush.bf16.msra.mxu0 %v7660
    %8219 = vmatpush.bf16.msra.mxu0 %v7656
    %8220 = vmatpush.bf16.msra.mxu0 %v7652
    %8221 = vmatpush.bf16.msra.mxu0 %v7648
    %8222 = vmatmul.bf16.gmra.mxu0 %v8143
    %v8223 = vpop.f32.mrf.mxu0
    %v8224 = vadd.f32 %v8210, %v8223
    %v8225 = vpop.f32.mrf.mxu0
    %v8226 = vadd.f32 %v8212, %v8225
    %8227 = vdwg.mxu0
    %8228 = vmatpush.bf16.msra.mxu0 %v7708
    %8229 = vmatpush.bf16.msra.mxu0 %v7704
    %8230 = vmatpush.bf16.msra.mxu0 %v7700
    %8231 = vmatpush.bf16.msra.mxu0 %v7696
    %8232 = vmatpush.bf16.msra.mxu0 %v7692
    %8233 = vmatpush.bf16.msra.mxu0 %v7688
    %8234 = vmatpush.bf16.msra.mxu0 %v7684
    %8235 = vmatpush.bf16.msra.mxu0 %v7680
    %8236 = vmatmul.bf16.gmra.mxu0 %v8144
    %v8237 = vpop.f32.mrf.mxu0
    %v8238 = vadd.f32 %v8224, %v8237
    %v8239 = vpop.f32.mrf.mxu0
    %v8240 = vadd.f32 %v8226, %v8239
    %8241 = vdwg.mxu0
    %8242 = vmatpush.bf16.msra.mxu0 %v7740
    %8243 = vmatpush.bf16.msra.mxu0 %v7736
    %8244 = vmatpush.bf16.msra.mxu0 %v7732
    %8245 = vmatpush.bf16.msra.mxu0 %v7728
    %8246 = vmatpush.bf16.msra.mxu0 %v7724
    %8247 = vmatpush.bf16.msra.mxu0 %v7720
    %8248 = vmatpush.bf16.msra.mxu0 %v7716
    %8249 = vmatpush.bf16.msra.mxu0 %v7712
    %8250 = vmatmul.bf16.gmra.mxu0 %v8145
    %v8251 = vpop.f32.mrf.mxu0
    %v8252 = vadd.f32 %v8238, %v8251
    %v8253 = vpop.f32.mrf.mxu0
    %v8254 = vadd.f32 %v8240, %v8253
    %8255 = vdwg.mxu0
    %8256 = vmatpush.bf16.msra.mxu0 %v7772
    %8257 = vmatpush.bf16.msra.mxu0 %v7768
    %8258 = vmatpush.bf16.msra.mxu0 %v7764
    %8259 = vmatpush.bf16.msra.mxu0 %v7760
    %8260 = vmatpush.bf16.msra.mxu0 %v7756
    %8261 = vmatpush.bf16.msra.mxu0 %v7752
    %8262 = vmatpush.bf16.msra.mxu0 %v7748
    %8263 = vmatpush.bf16.msra.mxu0 %v7744
    %8264 = vmatmul.bf16.gmra.mxu0 %v8146
    %v8265 = vpop.f32.mrf.mxu0
    %v8266 = vadd.f32 %v8252, %v8265
    %v8267 = vpop.f32.mrf.mxu0
    %v8268 = vadd.f32 %v8254, %v8267
    %8269 = vdwg.mxu0
    %8270 = vmatpush.bf16.msra.mxu0 %v7804
    %8271 = vmatpush.bf16.msra.mxu0 %v7800
    %8272 = vmatpush.bf16.msra.mxu0 %v7796
    %8273 = vmatpush.bf16.msra.mxu0 %v7792
    %8274 = vmatpush.bf16.msra.mxu0 %v7788
    %8275 = vmatpush.bf16.msra.mxu0 %v7784
    %8276 = vmatpush.bf16.msra.mxu0 %v7780
    %8277 = vmatpush.bf16.msra.mxu0 %v7776
    %8278 = vmatmul.bf16.gmra.mxu0 %v8147
    %v8279 = vpop.f32.mrf.mxu0
    %v8280 = vadd.f32 %v8266, %v8279
    %v8281 = vpop.f32.mrf.mxu0
    %v8282 = vadd.f32 %v8268, %v8281
    %8283 = vdwg.mxu0
    %8284 = vmatpush.bf16.msra.mxu0 %v7836
    %8285 = vmatpush.bf16.msra.mxu0 %v7832
    %8286 = vmatpush.bf16.msra.mxu0 %v7828
    %8287 = vmatpush.bf16.msra.mxu0 %v7824
    %8288 = vmatpush.bf16.msra.mxu0 %v7820
    %8289 = vmatpush.bf16.msra.mxu0 %v7816
    %8290 = vmatpush.bf16.msra.mxu0 %v7812
    %8291 = vmatpush.bf16.msra.mxu0 %v7808
    %8292 = vmatmul.bf16.gmra.mxu0 %v8148
    %v8293 = vpop.f32.mrf.mxu0
    %v8294 = vadd.f32 %v8280, %v8293
    %v8295 = vpop.f32.mrf.mxu0
    %v8296 = vadd.f32 %v8282, %v8295
    %8297 = vdwg.mxu0
    %8298 = vmatpush.bf16.msra.mxu0 %v7868
    %8299 = vmatpush.bf16.msra.mxu0 %v7864
    %8300 = vmatpush.bf16.msra.mxu0 %v7860
    %8301 = vmatpush.bf16.msra.mxu0 %v7856
    %8302 = vmatpush.bf16.msra.mxu0 %v7852
    %8303 = vmatpush.bf16.msra.mxu0 %v7848
    %8304 = vmatpush.bf16.msra.mxu0 %v7844
    %8305 = vmatpush.bf16.msra.mxu0 %v7840
    %8306 = vmatmul.bf16.gmra.mxu0 %v8149
    %v8307 = vpop.f32.mrf.mxu0
    %v8308 = vadd.f32 %v8294, %v8307
    %v8309 = vpop.f32.mrf.mxu0
    %v8310 = vadd.f32 %v8296, %v8309
    %8311 = vdwg.mxu0
    %8312 = vmatpush.bf16.msra.mxu0 %v7900
    %8313 = vmatpush.bf16.msra.mxu0 %v7896
    %8314 = vmatpush.bf16.msra.mxu0 %v7892
    %8315 = vmatpush.bf16.msra.mxu0 %v7888
    %8316 = vmatpush.bf16.msra.mxu0 %v7884
    %8317 = vmatpush.bf16.msra.mxu0 %v7880
    %8318 = vmatpush.bf16.msra.mxu0 %v7876
    %8319 = vmatpush.bf16.msra.mxu0 %v7872
    %8320 = vmatmul.bf16.gmra.mxu0 %v8150
    %v8321 = vpop.f32.mrf.mxu0
    %v8322 = vadd.f32 %v8308, %v8321
    %v8323 = vpop.f32.mrf.mxu0
    %v8324 = vadd.f32 %v8310, %v8323
    %8325 = vdwg.mxu0
    %8326 = vmatpush.bf16.msra.mxu0 %v7932
    %8327 = vmatpush.bf16.msra.mxu0 %v7928
    %8328 = vmatpush.bf16.msra.mxu0 %v7924
    %8329 = vmatpush.bf16.msra.mxu0 %v7920
    %8330 = vmatpush.bf16.msra.mxu0 %v7916
    %8331 = vmatpush.bf16.msra.mxu0 %v7912
    %8332 = vmatpush.bf16.msra.mxu0 %v7908
    %8333 = vmatpush.bf16.msra.mxu0 %v7904
    %8334 = vmatmul.bf16.gmra.mxu0 %v8151
    %v8335 = vpop.f32.mrf.mxu0
    %v8336 = vadd.f32 %v8322, %v8335
    %v8337 = vpop.f32.mrf.mxu0
    %v8338 = vadd.f32 %v8324, %v8337
    %8339 = vdwg.mxu0
    %8340 = vmatpush.bf16.msra.mxu0 %v7964
    %8341 = vmatpush.bf16.msra.mxu0 %v7960
    %8342 = vmatpush.bf16.msra.mxu0 %v7956
    %8343 = vmatpush.bf16.msra.mxu0 %v7952
    %8344 = vmatpush.bf16.msra.mxu0 %v7948
    %8345 = vmatpush.bf16.msra.mxu0 %v7944
    %8346 = vmatpush.bf16.msra.mxu0 %v7940
    %8347 = vmatpush.bf16.msra.mxu0 %v7936
    %8348 = vmatmul.bf16.gmra.mxu0 %v8152
    %v8349 = vpop.f32.mrf.mxu0
    %v8350 = vadd.f32 %v8336, %v8349
    %v8351 = vpop.f32.mrf.mxu0
    %v8352 = vadd.f32 %v8338, %v8351
    %8353 = vdwg.mxu0
    %8354 = vmatpush.bf16.msra.mxu0 %v7996
    %8355 = vmatpush.bf16.msra.mxu0 %v7992
    %8356 = vmatpush.bf16.msra.mxu0 %v7988
    %8357 = vmatpush.bf16.msra.mxu0 %v7984
    %8358 = vmatpush.bf16.msra.mxu0 %v7980
    %8359 = vmatpush.bf16.msra.mxu0 %v7976
    %8360 = vmatpush.bf16.msra.mxu0 %v7972
    %8361 = vmatpush.bf16.msra.mxu0 %v7968
    %8362 = vmatmul.bf16.gmra.mxu0 %v8153
    %v8363 = vpop.f32.mrf.mxu0
    %v8364 = vadd.f32 %v8350, %v8363
    %v8365 = vpop.f32.mrf.mxu0
    %v8366 = vadd.f32 %v8352, %v8365
    %8367 = vdwg.mxu0
    %8368 = vmatpush.bf16.msra.mxu0 %v8028
    %8369 = vmatpush.bf16.msra.mxu0 %v8024
    %8370 = vmatpush.bf16.msra.mxu0 %v8020
    %8371 = vmatpush.bf16.msra.mxu0 %v8016
    %8372 = vmatpush.bf16.msra.mxu0 %v8012
    %8373 = vmatpush.bf16.msra.mxu0 %v8008
    %8374 = vmatpush.bf16.msra.mxu0 %v8004
    %8375 = vmatpush.bf16.msra.mxu0 %v8000
    %8376 = vmatmul.bf16.gmra.mxu0 %v8154
    %v8377 = vpop.f32.mrf.mxu0
    %v8378 = vadd.f32 %v8364, %v8377
    %v8379 = vpop.f32.mrf.mxu0
    %v8380 = vadd.f32 %v8366, %v8379
    %8381 = vdwg.mxu0
    %8382 = vmatpush.bf16.msra.mxu0 %v8060
    %8383 = vmatpush.bf16.msra.mxu0 %v8056
    %8384 = vmatpush.bf16.msra.mxu0 %v8052
    %8385 = vmatpush.bf16.msra.mxu0 %v8048
    %8386 = vmatpush.bf16.msra.mxu0 %v8044
    %8387 = vmatpush.bf16.msra.mxu0 %v8040
    %8388 = vmatpush.bf16.msra.mxu0 %v8036
    %8389 = vmatpush.bf16.msra.mxu0 %v8032
    %8390 = vmatmul.bf16.gmra.mxu0 %v8155
    %v8391 = vpop.f32.mrf.mxu0
    %v8392 = vadd.f32 %v8378, %v8391
    %v8393 = vpop.f32.mrf.mxu0
    %v8394 = vadd.f32 %v8380, %v8393
    %8395 = vdwg.mxu0
    %8396 = vmatpush.bf16.msra.mxu0 %v7581
    %8397 = vmatpush.bf16.msra.mxu0 %v7577
    %8398 = vmatpush.bf16.msra.mxu0 %v7573
    %8399 = vmatpush.bf16.msra.mxu0 %v7569
    %8400 = vmatpush.bf16.msra.mxu0 %v7565
    %8401 = vmatpush.bf16.msra.mxu0 %v7561
    %8402 = vmatpush.bf16.msra.mxu0 %v7557
    %8403 = vmatpush.bf16.msra.mxu0 %v7553
    %8404 = vmatmul.bf16.gmra.mxu0 %v8140
    %v8405 = vpop.f32.mrf.mxu0
    %v8406 = vadd.f32 %v8085, %v8405
    %v8407 = vpop.f32.mrf.mxu0
    %v8408 = vadd.f32 %v8090, %v8407
    %8409 = vdwg.mxu0
    %8410 = vmatpush.bf16.msra.mxu0 %v7613
    %8411 = vmatpush.bf16.msra.mxu0 %v7609
    %8412 = vmatpush.bf16.msra.mxu0 %v7605
    %8413 = vmatpush.bf16.msra.mxu0 %v7601
    %8414 = vmatpush.bf16.msra.mxu0 %v7597
    %8415 = vmatpush.bf16.msra.mxu0 %v7593
    %8416 = vmatpush.bf16.msra.mxu0 %v7589
    %8417 = vmatpush.bf16.msra.mxu0 %v7585
    %8418 = vmatmul.bf16.gmra.mxu0 %v8141
    %v8419 = vpop.f32.mrf.mxu0
    %v8420 = vadd.f32 %v8406, %v8419
    %v8421 = vpop.f32.mrf.mxu0
    %v8422 = vadd.f32 %v8408, %v8421
    %8423 = vdwg.mxu0
    %8424 = vmatpush.bf16.msra.mxu0 %v7645
    %8425 = vmatpush.bf16.msra.mxu0 %v7641
    %8426 = vmatpush.bf16.msra.mxu0 %v7637
    %8427 = vmatpush.bf16.msra.mxu0 %v7633
    %8428 = vmatpush.bf16.msra.mxu0 %v7629
    %8429 = vmatpush.bf16.msra.mxu0 %v7625
    %8430 = vmatpush.bf16.msra.mxu0 %v7621
    %8431 = vmatpush.bf16.msra.mxu0 %v7617
    %8432 = vmatmul.bf16.gmra.mxu0 %v8142
    %v8433 = vpop.f32.mrf.mxu0
    %v8434 = vadd.f32 %v8420, %v8433
    %v8435 = vpop.f32.mrf.mxu0
    %v8436 = vadd.f32 %v8422, %v8435
    %8437 = vdwg.mxu0
    %8438 = vmatpush.bf16.msra.mxu0 %v7677
    %8439 = vmatpush.bf16.msra.mxu0 %v7673
    %8440 = vmatpush.bf16.msra.mxu0 %v7669
    %8441 = vmatpush.bf16.msra.mxu0 %v7665
    %8442 = vmatpush.bf16.msra.mxu0 %v7661
    %8443 = vmatpush.bf16.msra.mxu0 %v7657
    %8444 = vmatpush.bf16.msra.mxu0 %v7653
    %8445 = vmatpush.bf16.msra.mxu0 %v7649
    %8446 = vmatmul.bf16.gmra.mxu0 %v8143
    %v8447 = vpop.f32.mrf.mxu0
    %v8448 = vadd.f32 %v8434, %v8447
    %v8449 = vpop.f32.mrf.mxu0
    %v8450 = vadd.f32 %v8436, %v8449
    %8451 = vdwg.mxu0
    %8452 = vmatpush.bf16.msra.mxu0 %v7709
    %8453 = vmatpush.bf16.msra.mxu0 %v7705
    %8454 = vmatpush.bf16.msra.mxu0 %v7701
    %8455 = vmatpush.bf16.msra.mxu0 %v7697
    %8456 = vmatpush.bf16.msra.mxu0 %v7693
    %8457 = vmatpush.bf16.msra.mxu0 %v7689
    %8458 = vmatpush.bf16.msra.mxu0 %v7685
    %8459 = vmatpush.bf16.msra.mxu0 %v7681
    %8460 = vmatmul.bf16.gmra.mxu0 %v8144
    %v8461 = vpop.f32.mrf.mxu0
    %v8462 = vadd.f32 %v8448, %v8461
    %v8463 = vpop.f32.mrf.mxu0
    %v8464 = vadd.f32 %v8450, %v8463
    %8465 = vdwg.mxu0
    %8466 = vmatpush.bf16.msra.mxu0 %v7741
    %8467 = vmatpush.bf16.msra.mxu0 %v7737
    %8468 = vmatpush.bf16.msra.mxu0 %v7733
    %8469 = vmatpush.bf16.msra.mxu0 %v7729
    %8470 = vmatpush.bf16.msra.mxu0 %v7725
    %8471 = vmatpush.bf16.msra.mxu0 %v7721
    %8472 = vmatpush.bf16.msra.mxu0 %v7717
    %8473 = vmatpush.bf16.msra.mxu0 %v7713
    %8474 = vmatmul.bf16.gmra.mxu0 %v8145
    %v8475 = vpop.f32.mrf.mxu0
    %v8476 = vadd.f32 %v8462, %v8475
    %v8477 = vpop.f32.mrf.mxu0
    %v8478 = vadd.f32 %v8464, %v8477
    %8479 = vdwg.mxu0
    %8480 = vmatpush.bf16.msra.mxu0 %v7773
    %8481 = vmatpush.bf16.msra.mxu0 %v7769
    %8482 = vmatpush.bf16.msra.mxu0 %v7765
    %8483 = vmatpush.bf16.msra.mxu0 %v7761
    %8484 = vmatpush.bf16.msra.mxu0 %v7757
    %8485 = vmatpush.bf16.msra.mxu0 %v7753
    %8486 = vmatpush.bf16.msra.mxu0 %v7749
    %8487 = vmatpush.bf16.msra.mxu0 %v7745
    %8488 = vmatmul.bf16.gmra.mxu0 %v8146
    %v8489 = vpop.f32.mrf.mxu0
    %v8490 = vadd.f32 %v8476, %v8489
    %v8491 = vpop.f32.mrf.mxu0
    %v8492 = vadd.f32 %v8478, %v8491
    %8493 = vdwg.mxu0
    %8494 = vmatpush.bf16.msra.mxu0 %v7805
    %8495 = vmatpush.bf16.msra.mxu0 %v7801
    %8496 = vmatpush.bf16.msra.mxu0 %v7797
    %8497 = vmatpush.bf16.msra.mxu0 %v7793
    %8498 = vmatpush.bf16.msra.mxu0 %v7789
    %8499 = vmatpush.bf16.msra.mxu0 %v7785
    %8500 = vmatpush.bf16.msra.mxu0 %v7781
    %8501 = vmatpush.bf16.msra.mxu0 %v7777
    %8502 = vmatmul.bf16.gmra.mxu0 %v8147
    %v8503 = vpop.f32.mrf.mxu0
    %v8504 = vadd.f32 %v8490, %v8503
    %v8505 = vpop.f32.mrf.mxu0
    %v8506 = vadd.f32 %v8492, %v8505
    %8507 = vdwg.mxu0
    %8508 = vmatpush.bf16.msra.mxu0 %v7837
    %8509 = vmatpush.bf16.msra.mxu0 %v7833
    %8510 = vmatpush.bf16.msra.mxu0 %v7829
    %8511 = vmatpush.bf16.msra.mxu0 %v7825
    %8512 = vmatpush.bf16.msra.mxu0 %v7821
    %8513 = vmatpush.bf16.msra.mxu0 %v7817
    %8514 = vmatpush.bf16.msra.mxu0 %v7813
    %8515 = vmatpush.bf16.msra.mxu0 %v7809
    %8516 = vmatmul.bf16.gmra.mxu0 %v8148
    %v8517 = vpop.f32.mrf.mxu0
    %v8518 = vadd.f32 %v8504, %v8517
    %v8519 = vpop.f32.mrf.mxu0
    %v8520 = vadd.f32 %v8506, %v8519
    %8521 = vdwg.mxu0
    %8522 = vmatpush.bf16.msra.mxu0 %v7869
    %8523 = vmatpush.bf16.msra.mxu0 %v7865
    %8524 = vmatpush.bf16.msra.mxu0 %v7861
    %8525 = vmatpush.bf16.msra.mxu0 %v7857
    %8526 = vmatpush.bf16.msra.mxu0 %v7853
    %8527 = vmatpush.bf16.msra.mxu0 %v7849
    %8528 = vmatpush.bf16.msra.mxu0 %v7845
    %8529 = vmatpush.bf16.msra.mxu0 %v7841
    %8530 = vmatmul.bf16.gmra.mxu0 %v8149
    %v8531 = vpop.f32.mrf.mxu0
    %v8532 = vadd.f32 %v8518, %v8531
    %v8533 = vpop.f32.mrf.mxu0
    %v8534 = vadd.f32 %v8520, %v8533
    %8535 = vdwg.mxu0
    %8536 = vmatpush.bf16.msra.mxu0 %v7901
    %8537 = vmatpush.bf16.msra.mxu0 %v7897
    %8538 = vmatpush.bf16.msra.mxu0 %v7893
    %8539 = vmatpush.bf16.msra.mxu0 %v7889
    %8540 = vmatpush.bf16.msra.mxu0 %v7885
    %8541 = vmatpush.bf16.msra.mxu0 %v7881
    %8542 = vmatpush.bf16.msra.mxu0 %v7877
    %8543 = vmatpush.bf16.msra.mxu0 %v7873
    %8544 = vmatmul.bf16.gmra.mxu0 %v8150
    %v8545 = vpop.f32.mrf.mxu0
    %v8546 = vadd.f32 %v8532, %v8545
    %v8547 = vpop.f32.mrf.mxu0
    %v8548 = vadd.f32 %v8534, %v8547
    %8549 = vdwg.mxu0
    %8550 = vmatpush.bf16.msra.mxu0 %v7933
    %8551 = vmatpush.bf16.msra.mxu0 %v7929
    %8552 = vmatpush.bf16.msra.mxu0 %v7925
    %8553 = vmatpush.bf16.msra.mxu0 %v7921
    %8554 = vmatpush.bf16.msra.mxu0 %v7917
    %8555 = vmatpush.bf16.msra.mxu0 %v7913
    %8556 = vmatpush.bf16.msra.mxu0 %v7909
    %8557 = vmatpush.bf16.msra.mxu0 %v7905
    %8558 = vmatmul.bf16.gmra.mxu0 %v8151
    %v8559 = vpop.f32.mrf.mxu0
    %v8560 = vadd.f32 %v8546, %v8559
    %v8561 = vpop.f32.mrf.mxu0
    %v8562 = vadd.f32 %v8548, %v8561
    %8563 = vdwg.mxu0
    %8564 = vmatpush.bf16.msra.mxu0 %v7965
    %8565 = vmatpush.bf16.msra.mxu0 %v7961
    %8566 = vmatpush.bf16.msra.mxu0 %v7957
    %8567 = vmatpush.bf16.msra.mxu0 %v7953
    %8568 = vmatpush.bf16.msra.mxu0 %v7949
    %8569 = vmatpush.bf16.msra.mxu0 %v7945
    %8570 = vmatpush.bf16.msra.mxu0 %v7941
    %8571 = vmatpush.bf16.msra.mxu0 %v7937
    %8572 = vmatmul.bf16.gmra.mxu0 %v8152
    %v8573 = vpop.f32.mrf.mxu0
    %v8574 = vadd.f32 %v8560, %v8573
    %v8575 = vpop.f32.mrf.mxu0
    %v8576 = vadd.f32 %v8562, %v8575
    %8577 = vdwg.mxu0
    %8578 = vmatpush.bf16.msra.mxu0 %v7997
    %8579 = vmatpush.bf16.msra.mxu0 %v7993
    %8580 = vmatpush.bf16.msra.mxu0 %v7989
    %8581 = vmatpush.bf16.msra.mxu0 %v7985
    %8582 = vmatpush.bf16.msra.mxu0 %v7981
    %8583 = vmatpush.bf16.msra.mxu0 %v7977
    %8584 = vmatpush.bf16.msra.mxu0 %v7973
    %8585 = vmatpush.bf16.msra.mxu0 %v7969
    %8586 = vmatmul.bf16.gmra.mxu0 %v8153
    %v8587 = vpop.f32.mrf.mxu0
    %v8588 = vadd.f32 %v8574, %v8587
    %v8589 = vpop.f32.mrf.mxu0
    %v8590 = vadd.f32 %v8576, %v8589
    %8591 = vdwg.mxu0
    %8592 = vmatpush.bf16.msra.mxu0 %v8029
    %8593 = vmatpush.bf16.msra.mxu0 %v8025
    %8594 = vmatpush.bf16.msra.mxu0 %v8021
    %8595 = vmatpush.bf16.msra.mxu0 %v8017
    %8596 = vmatpush.bf16.msra.mxu0 %v8013
    %8597 = vmatpush.bf16.msra.mxu0 %v8009
    %8598 = vmatpush.bf16.msra.mxu0 %v8005
    %8599 = vmatpush.bf16.msra.mxu0 %v8001
    %8600 = vmatmul.bf16.gmra.mxu0 %v8154
    %v8601 = vpop.f32.mrf.mxu0
    %v8602 = vadd.f32 %v8588, %v8601
    %v8603 = vpop.f32.mrf.mxu0
    %v8604 = vadd.f32 %v8590, %v8603
    %8605 = vdwg.mxu0
    %8606 = vmatpush.bf16.msra.mxu0 %v8061
    %8607 = vmatpush.bf16.msra.mxu0 %v8057
    %8608 = vmatpush.bf16.msra.mxu0 %v8053
    %8609 = vmatpush.bf16.msra.mxu0 %v8049
    %8610 = vmatpush.bf16.msra.mxu0 %v8045
    %8611 = vmatpush.bf16.msra.mxu0 %v8041
    %8612 = vmatpush.bf16.msra.mxu0 %v8037
    %8613 = vmatpush.bf16.msra.mxu0 %v8033
    %8614 = vmatmul.bf16.gmra.mxu0 %v8155
    %v8615 = vpop.f32.mrf.mxu0
    %v8616 = vadd.f32 %v8602, %v8615
    %v8617 = vpop.f32.mrf.mxu0
    %v8618 = vadd.f32 %v8604, %v8617
    %8619 = vdwg.mxu0
    %8620 = vmatpush.bf16.msra.mxu0 %v7582
    %8621 = vmatpush.bf16.msra.mxu0 %v7578
    %8622 = vmatpush.bf16.msra.mxu0 %v7574
    %8623 = vmatpush.bf16.msra.mxu0 %v7570
    %8624 = vmatpush.bf16.msra.mxu0 %v7566
    %8625 = vmatpush.bf16.msra.mxu0 %v7562
    %8626 = vmatpush.bf16.msra.mxu0 %v7558
    %8627 = vmatpush.bf16.msra.mxu0 %v7554
    %8628 = vmatmul.bf16.gmra.mxu0 %v8140
    %v8629 = vpop.f32.mrf.mxu0
    %v8630 = vadd.f32 %v8085, %v8629
    %v8631 = vpop.f32.mrf.mxu0
    %v8632 = vadd.f32 %v8090, %v8631
    %8633 = vdwg.mxu0
    %8634 = vmatpush.bf16.msra.mxu0 %v7614
    %8635 = vmatpush.bf16.msra.mxu0 %v7610
    %8636 = vmatpush.bf16.msra.mxu0 %v7606
    %8637 = vmatpush.bf16.msra.mxu0 %v7602
    %8638 = vmatpush.bf16.msra.mxu0 %v7598
    %8639 = vmatpush.bf16.msra.mxu0 %v7594
    %8640 = vmatpush.bf16.msra.mxu0 %v7590
    %8641 = vmatpush.bf16.msra.mxu0 %v7586
    %8642 = vmatmul.bf16.gmra.mxu0 %v8141
    %v8643 = vpop.f32.mrf.mxu0
    %v8644 = vadd.f32 %v8630, %v8643
    %v8645 = vpop.f32.mrf.mxu0
    %v8646 = vadd.f32 %v8632, %v8645
    %8647 = vdwg.mxu0
    %8648 = vmatpush.bf16.msra.mxu0 %v7646
    %8649 = vmatpush.bf16.msra.mxu0 %v7642
    %8650 = vmatpush.bf16.msra.mxu0 %v7638
    %8651 = vmatpush.bf16.msra.mxu0 %v7634
    %8652 = vmatpush.bf16.msra.mxu0 %v7630
    %8653 = vmatpush.bf16.msra.mxu0 %v7626
    %8654 = vmatpush.bf16.msra.mxu0 %v7622
    %8655 = vmatpush.bf16.msra.mxu0 %v7618
    %8656 = vmatmul.bf16.gmra.mxu0 %v8142
    %v8657 = vpop.f32.mrf.mxu0
    %v8658 = vadd.f32 %v8644, %v8657
    %v8659 = vpop.f32.mrf.mxu0
    %v8660 = vadd.f32 %v8646, %v8659
    %8661 = vdwg.mxu0
    %8662 = vmatpush.bf16.msra.mxu0 %v7678
    %8663 = vmatpush.bf16.msra.mxu0 %v7674
    %8664 = vmatpush.bf16.msra.mxu0 %v7670
    %8665 = vmatpush.bf16.msra.mxu0 %v7666
    %8666 = vmatpush.bf16.msra.mxu0 %v7662
    %8667 = vmatpush.bf16.msra.mxu0 %v7658
    %8668 = vmatpush.bf16.msra.mxu0 %v7654
    %8669 = vmatpush.bf16.msra.mxu0 %v7650
    %8670 = vmatmul.bf16.gmra.mxu0 %v8143
    %v8671 = vpop.f32.mrf.mxu0
    %v8672 = vadd.f32 %v8658, %v8671
    %v8673 = vpop.f32.mrf.mxu0
    %v8674 = vadd.f32 %v8660, %v8673
    %8675 = vdwg.mxu0
    %8676 = vmatpush.bf16.msra.mxu0 %v7710
    %8677 = vmatpush.bf16.msra.mxu0 %v7706
    %8678 = vmatpush.bf16.msra.mxu0 %v7702
    %8679 = vmatpush.bf16.msra.mxu0 %v7698
    %8680 = vmatpush.bf16.msra.mxu0 %v7694
    %8681 = vmatpush.bf16.msra.mxu0 %v7690
    %8682 = vmatpush.bf16.msra.mxu0 %v7686
    %8683 = vmatpush.bf16.msra.mxu0 %v7682
    %8684 = vmatmul.bf16.gmra.mxu0 %v8144
    %v8685 = vpop.f32.mrf.mxu0
    %v8686 = vadd.f32 %v8672, %v8685
    %v8687 = vpop.f32.mrf.mxu0
    %v8688 = vadd.f32 %v8674, %v8687
    %8689 = vdwg.mxu0
    %8690 = vmatpush.bf16.msra.mxu0 %v7742
    %8691 = vmatpush.bf16.msra.mxu0 %v7738
    %8692 = vmatpush.bf16.msra.mxu0 %v7734
    %8693 = vmatpush.bf16.msra.mxu0 %v7730
    %8694 = vmatpush.bf16.msra.mxu0 %v7726
    %8695 = vmatpush.bf16.msra.mxu0 %v7722
    %8696 = vmatpush.bf16.msra.mxu0 %v7718
    %8697 = vmatpush.bf16.msra.mxu0 %v7714
    %8698 = vmatmul.bf16.gmra.mxu0 %v8145
    %v8699 = vpop.f32.mrf.mxu0
    %v8700 = vadd.f32 %v8686, %v8699
    %v8701 = vpop.f32.mrf.mxu0
    %v8702 = vadd.f32 %v8688, %v8701
    %8703 = vdwg.mxu0
    %8704 = vmatpush.bf16.msra.mxu0 %v7774
    %8705 = vmatpush.bf16.msra.mxu0 %v7770
    %8706 = vmatpush.bf16.msra.mxu0 %v7766
    %8707 = vmatpush.bf16.msra.mxu0 %v7762
    %8708 = vmatpush.bf16.msra.mxu0 %v7758
    %8709 = vmatpush.bf16.msra.mxu0 %v7754
    %8710 = vmatpush.bf16.msra.mxu0 %v7750
    %8711 = vmatpush.bf16.msra.mxu0 %v7746
    %8712 = vmatmul.bf16.gmra.mxu0 %v8146
    %v8713 = vpop.f32.mrf.mxu0
    %v8714 = vadd.f32 %v8700, %v8713
    %v8715 = vpop.f32.mrf.mxu0
    %v8716 = vadd.f32 %v8702, %v8715
    %8717 = vdwg.mxu0
    %8718 = vmatpush.bf16.msra.mxu0 %v7806
    %8719 = vmatpush.bf16.msra.mxu0 %v7802
    %8720 = vmatpush.bf16.msra.mxu0 %v7798
    %8721 = vmatpush.bf16.msra.mxu0 %v7794
    %8722 = vmatpush.bf16.msra.mxu0 %v7790
    %8723 = vmatpush.bf16.msra.mxu0 %v7786
    %8724 = vmatpush.bf16.msra.mxu0 %v7782
    %8725 = vmatpush.bf16.msra.mxu0 %v7778
    %8726 = vmatmul.bf16.gmra.mxu0 %v8147
    %v8727 = vpop.f32.mrf.mxu0
    %v8728 = vadd.f32 %v8714, %v8727
    %v8729 = vpop.f32.mrf.mxu0
    %v8730 = vadd.f32 %v8716, %v8729
    %8731 = vdwg.mxu0
    %8732 = vmatpush.bf16.msra.mxu0 %v7838
    %8733 = vmatpush.bf16.msra.mxu0 %v7834
    %8734 = vmatpush.bf16.msra.mxu0 %v7830
    %8735 = vmatpush.bf16.msra.mxu0 %v7826
    %8736 = vmatpush.bf16.msra.mxu0 %v7822
    %8737 = vmatpush.bf16.msra.mxu0 %v7818
    %8738 = vmatpush.bf16.msra.mxu0 %v7814
    %8739 = vmatpush.bf16.msra.mxu0 %v7810
    %8740 = vmatmul.bf16.gmra.mxu0 %v8148
    %v8741 = vpop.f32.mrf.mxu0
    %v8742 = vadd.f32 %v8728, %v8741
    %v8743 = vpop.f32.mrf.mxu0
    %v8744 = vadd.f32 %v8730, %v8743
    %8745 = vdwg.mxu0
    %8746 = vmatpush.bf16.msra.mxu0 %v7870
    %8747 = vmatpush.bf16.msra.mxu0 %v7866
    %8748 = vmatpush.bf16.msra.mxu0 %v7862
    %8749 = vmatpush.bf16.msra.mxu0 %v7858
    %8750 = vmatpush.bf16.msra.mxu0 %v7854
    %8751 = vmatpush.bf16.msra.mxu0 %v7850
    %8752 = vmatpush.bf16.msra.mxu0 %v7846
    %8753 = vmatpush.bf16.msra.mxu0 %v7842
    %8754 = vmatmul.bf16.gmra.mxu0 %v8149
    %v8755 = vpop.f32.mrf.mxu0
    %v8756 = vadd.f32 %v8742, %v8755
    %v8757 = vpop.f32.mrf.mxu0
    %v8758 = vadd.f32 %v8744, %v8757
    %8759 = vdwg.mxu0
    %8760 = vmatpush.bf16.msra.mxu0 %v7902
    %8761 = vmatpush.bf16.msra.mxu0 %v7898
    %8762 = vmatpush.bf16.msra.mxu0 %v7894
    %8763 = vmatpush.bf16.msra.mxu0 %v7890
    %8764 = vmatpush.bf16.msra.mxu0 %v7886
    %8765 = vmatpush.bf16.msra.mxu0 %v7882
    %8766 = vmatpush.bf16.msra.mxu0 %v7878
    %8767 = vmatpush.bf16.msra.mxu0 %v7874
    %8768 = vmatmul.bf16.gmra.mxu0 %v8150
    %v8769 = vpop.f32.mrf.mxu0
    %v8770 = vadd.f32 %v8756, %v8769
    %v8771 = vpop.f32.mrf.mxu0
    %v8772 = vadd.f32 %v8758, %v8771
    %8773 = vdwg.mxu0
    %8774 = vmatpush.bf16.msra.mxu0 %v7934
    %8775 = vmatpush.bf16.msra.mxu0 %v7930
    %8776 = vmatpush.bf16.msra.mxu0 %v7926
    %8777 = vmatpush.bf16.msra.mxu0 %v7922
    %8778 = vmatpush.bf16.msra.mxu0 %v7918
    %8779 = vmatpush.bf16.msra.mxu0 %v7914
    %8780 = vmatpush.bf16.msra.mxu0 %v7910
    %8781 = vmatpush.bf16.msra.mxu0 %v7906
    %8782 = vmatmul.bf16.gmra.mxu0 %v8151
    %v8783 = vpop.f32.mrf.mxu0
    %v8784 = vadd.f32 %v8770, %v8783
    %v8785 = vpop.f32.mrf.mxu0
    %v8786 = vadd.f32 %v8772, %v8785
    %8787 = vdwg.mxu0
    %8788 = vmatpush.bf16.msra.mxu0 %v7966
    %8789 = vmatpush.bf16.msra.mxu0 %v7962
    %8790 = vmatpush.bf16.msra.mxu0 %v7958
    %8791 = vmatpush.bf16.msra.mxu0 %v7954
    %8792 = vmatpush.bf16.msra.mxu0 %v7950
    %8793 = vmatpush.bf16.msra.mxu0 %v7946
    %8794 = vmatpush.bf16.msra.mxu0 %v7942
    %8795 = vmatpush.bf16.msra.mxu0 %v7938
    %8796 = vmatmul.bf16.gmra.mxu0 %v8152
    %v8797 = vpop.f32.mrf.mxu0
    %v8798 = vadd.f32 %v8784, %v8797
    %v8799 = vpop.f32.mrf.mxu0
    %v8800 = vadd.f32 %v8786, %v8799
    %8801 = vdwg.mxu0
    %8802 = vmatpush.bf16.msra.mxu0 %v7998
    %8803 = vmatpush.bf16.msra.mxu0 %v7994
    %8804 = vmatpush.bf16.msra.mxu0 %v7990
    %8805 = vmatpush.bf16.msra.mxu0 %v7986
    %8806 = vmatpush.bf16.msra.mxu0 %v7982
    %8807 = vmatpush.bf16.msra.mxu0 %v7978
    %8808 = vmatpush.bf16.msra.mxu0 %v7974
    %8809 = vmatpush.bf16.msra.mxu0 %v7970
    %8810 = vmatmul.bf16.gmra.mxu0 %v8153
    %v8811 = vpop.f32.mrf.mxu0
    %v8812 = vadd.f32 %v8798, %v8811
    %v8813 = vpop.f32.mrf.mxu0
    %v8814 = vadd.f32 %v8800, %v8813
    %8815 = vdwg.mxu0
    %8816 = vmatpush.bf16.msra.mxu0 %v8030
    %8817 = vmatpush.bf16.msra.mxu0 %v8026
    %8818 = vmatpush.bf16.msra.mxu0 %v8022
    %8819 = vmatpush.bf16.msra.mxu0 %v8018
    %8820 = vmatpush.bf16.msra.mxu0 %v8014
    %8821 = vmatpush.bf16.msra.mxu0 %v8010
    %8822 = vmatpush.bf16.msra.mxu0 %v8006
    %8823 = vmatpush.bf16.msra.mxu0 %v8002
    %8824 = vmatmul.bf16.gmra.mxu0 %v8154
    %v8825 = vpop.f32.mrf.mxu0
    %v8826 = vadd.f32 %v8812, %v8825
    %v8827 = vpop.f32.mrf.mxu0
    %v8828 = vadd.f32 %v8814, %v8827
    %8829 = vdwg.mxu0
    %8830 = vmatpush.bf16.msra.mxu0 %v8062
    %8831 = vmatpush.bf16.msra.mxu0 %v8058
    %8832 = vmatpush.bf16.msra.mxu0 %v8054
    %8833 = vmatpush.bf16.msra.mxu0 %v8050
    %8834 = vmatpush.bf16.msra.mxu0 %v8046
    %8835 = vmatpush.bf16.msra.mxu0 %v8042
    %8836 = vmatpush.bf16.msra.mxu0 %v8038
    %8837 = vmatpush.bf16.msra.mxu0 %v8034
    %8838 = vmatmul.bf16.gmra.mxu0 %v8155
    %v8839 = vpop.f32.mrf.mxu0
    %v8840 = vadd.f32 %v8826, %v8839
    %v8841 = vpop.f32.mrf.mxu0
    %v8842 = vadd.f32 %v8828, %v8841
    %8843 = vdwg.mxu0
    %8844 = vmatpush.bf16.msra.mxu0 %v7583
    %8845 = vmatpush.bf16.msra.mxu0 %v7579
    %8846 = vmatpush.bf16.msra.mxu0 %v7575
    %8847 = vmatpush.bf16.msra.mxu0 %v7571
    %8848 = vmatpush.bf16.msra.mxu0 %v7567
    %8849 = vmatpush.bf16.msra.mxu0 %v7563
    %8850 = vmatpush.bf16.msra.mxu0 %v7559
    %8851 = vmatpush.bf16.msra.mxu0 %v7555
    %8852 = vmatmul.bf16.gmra.mxu0 %v8140
    %v8853 = vpop.f32.mrf.mxu0
    %v8854 = vadd.f32 %v8085, %v8853
    %v8855 = vpop.f32.mrf.mxu0
    %v8856 = vadd.f32 %v8090, %v8855
    %8857 = vdwg.mxu0
    %8858 = vmatpush.bf16.msra.mxu0 %v7615
    %8859 = vmatpush.bf16.msra.mxu0 %v7611
    %8860 = vmatpush.bf16.msra.mxu0 %v7607
    %8861 = vmatpush.bf16.msra.mxu0 %v7603
    %8862 = vmatpush.bf16.msra.mxu0 %v7599
    %8863 = vmatpush.bf16.msra.mxu0 %v7595
    %8864 = vmatpush.bf16.msra.mxu0 %v7591
    %8865 = vmatpush.bf16.msra.mxu0 %v7587
    %8866 = vmatmul.bf16.gmra.mxu0 %v8141
    %v8867 = vpop.f32.mrf.mxu0
    %v8868 = vadd.f32 %v8854, %v8867
    %v8869 = vpop.f32.mrf.mxu0
    %v8870 = vadd.f32 %v8856, %v8869
    %8871 = vdwg.mxu0
    %8872 = vmatpush.bf16.msra.mxu0 %v7647
    %8873 = vmatpush.bf16.msra.mxu0 %v7643
    %8874 = vmatpush.bf16.msra.mxu0 %v7639
    %8875 = vmatpush.bf16.msra.mxu0 %v7635
    %8876 = vmatpush.bf16.msra.mxu0 %v7631
    %8877 = vmatpush.bf16.msra.mxu0 %v7627
    %8878 = vmatpush.bf16.msra.mxu0 %v7623
    %8879 = vmatpush.bf16.msra.mxu0 %v7619
    %8880 = vmatmul.bf16.gmra.mxu0 %v8142
    %v8881 = vpop.f32.mrf.mxu0
    %v8882 = vadd.f32 %v8868, %v8881
    %v8883 = vpop.f32.mrf.mxu0
    %v8884 = vadd.f32 %v8870, %v8883
    %8885 = vdwg.mxu0
    %8886 = vmatpush.bf16.msra.mxu0 %v7679
    %8887 = vmatpush.bf16.msra.mxu0 %v7675
    %8888 = vmatpush.bf16.msra.mxu0 %v7671
    %8889 = vmatpush.bf16.msra.mxu0 %v7667
    %8890 = vmatpush.bf16.msra.mxu0 %v7663
    %8891 = vmatpush.bf16.msra.mxu0 %v7659
    %8892 = vmatpush.bf16.msra.mxu0 %v7655
    %8893 = vmatpush.bf16.msra.mxu0 %v7651
    %8894 = vmatmul.bf16.gmra.mxu0 %v8143
    %v8895 = vpop.f32.mrf.mxu0
    %v8896 = vadd.f32 %v8882, %v8895
    %v8897 = vpop.f32.mrf.mxu0
    %v8898 = vadd.f32 %v8884, %v8897
    %8899 = vdwg.mxu0
    %8900 = vmatpush.bf16.msra.mxu0 %v7711
    %8901 = vmatpush.bf16.msra.mxu0 %v7707
    %8902 = vmatpush.bf16.msra.mxu0 %v7703
    %8903 = vmatpush.bf16.msra.mxu0 %v7699
    %8904 = vmatpush.bf16.msra.mxu0 %v7695
    %8905 = vmatpush.bf16.msra.mxu0 %v7691
    %8906 = vmatpush.bf16.msra.mxu0 %v7687
    %8907 = vmatpush.bf16.msra.mxu0 %v7683
    %8908 = vmatmul.bf16.gmra.mxu0 %v8144
    %v8909 = vpop.f32.mrf.mxu0
    %v8910 = vadd.f32 %v8896, %v8909
    %v8911 = vpop.f32.mrf.mxu0
    %v8912 = vadd.f32 %v8898, %v8911
    %8913 = vdwg.mxu0
    %8914 = vmatpush.bf16.msra.mxu0 %v7743
    %8915 = vmatpush.bf16.msra.mxu0 %v7739
    %8916 = vmatpush.bf16.msra.mxu0 %v7735
    %8917 = vmatpush.bf16.msra.mxu0 %v7731
    %8918 = vmatpush.bf16.msra.mxu0 %v7727
    %8919 = vmatpush.bf16.msra.mxu0 %v7723
    %8920 = vmatpush.bf16.msra.mxu0 %v7719
    %8921 = vmatpush.bf16.msra.mxu0 %v7715
    %8922 = vmatmul.bf16.gmra.mxu0 %v8145
    %v8923 = vpop.f32.mrf.mxu0
    %v8924 = vadd.f32 %v8910, %v8923
    %v8925 = vpop.f32.mrf.mxu0
    %v8926 = vadd.f32 %v8912, %v8925
    %8927 = vdwg.mxu0
    %8928 = vmatpush.bf16.msra.mxu0 %v7775
    %8929 = vmatpush.bf16.msra.mxu0 %v7771
    %8930 = vmatpush.bf16.msra.mxu0 %v7767
    %8931 = vmatpush.bf16.msra.mxu0 %v7763
    %8932 = vmatpush.bf16.msra.mxu0 %v7759
    %8933 = vmatpush.bf16.msra.mxu0 %v7755
    %8934 = vmatpush.bf16.msra.mxu0 %v7751
    %8935 = vmatpush.bf16.msra.mxu0 %v7747
    %8936 = vmatmul.bf16.gmra.mxu0 %v8146
    %v8937 = vpop.f32.mrf.mxu0
    %v8938 = vadd.f32 %v8924, %v8937
    %v8939 = vpop.f32.mrf.mxu0
    %v8940 = vadd.f32 %v8926, %v8939
    %8941 = vdwg.mxu0
    %8942 = vmatpush.bf16.msra.mxu0 %v7807
    %8943 = vmatpush.bf16.msra.mxu0 %v7803
    %8944 = vmatpush.bf16.msra.mxu0 %v7799
    %8945 = vmatpush.bf16.msra.mxu0 %v7795
    %8946 = vmatpush.bf16.msra.mxu0 %v7791
    %8947 = vmatpush.bf16.msra.mxu0 %v7787
    %8948 = vmatpush.bf16.msra.mxu0 %v7783
    %8949 = vmatpush.bf16.msra.mxu0 %v7779
    %8950 = vmatmul.bf16.gmra.mxu0 %v8147
    %v8951 = vpop.f32.mrf.mxu0
    %v8952 = vadd.f32 %v8938, %v8951
    %v8953 = vpop.f32.mrf.mxu0
    %v8954 = vadd.f32 %v8940, %v8953
    %8955 = vdwg.mxu0
    %8956 = vmatpush.bf16.msra.mxu0 %v7839
    %8957 = vmatpush.bf16.msra.mxu0 %v7835
    %8958 = vmatpush.bf16.msra.mxu0 %v7831
    %8959 = vmatpush.bf16.msra.mxu0 %v7827
    %8960 = vmatpush.bf16.msra.mxu0 %v7823
    %8961 = vmatpush.bf16.msra.mxu0 %v7819
    %8962 = vmatpush.bf16.msra.mxu0 %v7815
    %8963 = vmatpush.bf16.msra.mxu0 %v7811
    %8964 = vmatmul.bf16.gmra.mxu0 %v8148
    %v8965 = vpop.f32.mrf.mxu0
    %v8966 = vadd.f32 %v8952, %v8965
    %v8967 = vpop.f32.mrf.mxu0
    %v8968 = vadd.f32 %v8954, %v8967
    %8969 = vdwg.mxu0
    %8970 = vmatpush.bf16.msra.mxu0 %v7871
    %8971 = vmatpush.bf16.msra.mxu0 %v7867
    %8972 = vmatpush.bf16.msra.mxu0 %v7863
    %8973 = vmatpush.bf16.msra.mxu0 %v7859
    %8974 = vmatpush.bf16.msra.mxu0 %v7855
    %8975 = vmatpush.bf16.msra.mxu0 %v7851
    %8976 = vmatpush.bf16.msra.mxu0 %v7847
    %8977 = vmatpush.bf16.msra.mxu0 %v7843
    %8978 = vmatmul.bf16.gmra.mxu0 %v8149
    %v8979 = vpop.f32.mrf.mxu0
    %v8980 = vadd.f32 %v8966, %v8979
    %v8981 = vpop.f32.mrf.mxu0
    %v8982 = vadd.f32 %v8968, %v8981
    %8983 = vdwg.mxu0
    %8984 = vmatpush.bf16.msra.mxu0 %v7903
    %8985 = vmatpush.bf16.msra.mxu0 %v7899
    %8986 = vmatpush.bf16.msra.mxu0 %v7895
    %8987 = vmatpush.bf16.msra.mxu0 %v7891
    %8988 = vmatpush.bf16.msra.mxu0 %v7887
    %8989 = vmatpush.bf16.msra.mxu0 %v7883
    %8990 = vmatpush.bf16.msra.mxu0 %v7879
    %8991 = vmatpush.bf16.msra.mxu0 %v7875
    %8992 = vmatmul.bf16.gmra.mxu0 %v8150
    %v8993 = vpop.f32.mrf.mxu0
    %v8994 = vadd.f32 %v8980, %v8993
    %v8995 = vpop.f32.mrf.mxu0
    %v8996 = vadd.f32 %v8982, %v8995
    %8997 = vdwg.mxu0
    %8998 = vmatpush.bf16.msra.mxu0 %v7935
    %8999 = vmatpush.bf16.msra.mxu0 %v7931
    %9000 = vmatpush.bf16.msra.mxu0 %v7927
    %9001 = vmatpush.bf16.msra.mxu0 %v7923
    %9002 = vmatpush.bf16.msra.mxu0 %v7919
    %9003 = vmatpush.bf16.msra.mxu0 %v7915
    %9004 = vmatpush.bf16.msra.mxu0 %v7911
    %9005 = vmatpush.bf16.msra.mxu0 %v7907
    %9006 = vmatmul.bf16.gmra.mxu0 %v8151
    %v9007 = vpop.f32.mrf.mxu0
    %v9008 = vadd.f32 %v8994, %v9007
    %v9009 = vpop.f32.mrf.mxu0
    %v9010 = vadd.f32 %v8996, %v9009
    %9011 = vdwg.mxu0
    %9012 = vmatpush.bf16.msra.mxu0 %v7967
    %9013 = vmatpush.bf16.msra.mxu0 %v7963
    %9014 = vmatpush.bf16.msra.mxu0 %v7959
    %9015 = vmatpush.bf16.msra.mxu0 %v7955
    %9016 = vmatpush.bf16.msra.mxu0 %v7951
    %9017 = vmatpush.bf16.msra.mxu0 %v7947
    %9018 = vmatpush.bf16.msra.mxu0 %v7943
    %9019 = vmatpush.bf16.msra.mxu0 %v7939
    %9020 = vmatmul.bf16.gmra.mxu0 %v8152
    %v9021 = vpop.f32.mrf.mxu0
    %v9022 = vadd.f32 %v9008, %v9021
    %v9023 = vpop.f32.mrf.mxu0
    %v9024 = vadd.f32 %v9010, %v9023
    %9025 = vdwg.mxu0
    %9026 = vmatpush.bf16.msra.mxu0 %v7999
    %9027 = vmatpush.bf16.msra.mxu0 %v7995
    %9028 = vmatpush.bf16.msra.mxu0 %v7991
    %9029 = vmatpush.bf16.msra.mxu0 %v7987
    %9030 = vmatpush.bf16.msra.mxu0 %v7983
    %9031 = vmatpush.bf16.msra.mxu0 %v7979
    %9032 = vmatpush.bf16.msra.mxu0 %v7975
    %9033 = vmatpush.bf16.msra.mxu0 %v7971
    %9034 = vmatmul.bf16.gmra.mxu0 %v8153
    %v9035 = vpop.f32.mrf.mxu0
    %v9036 = vadd.f32 %v9022, %v9035
    %v9037 = vpop.f32.mrf.mxu0
    %v9038 = vadd.f32 %v9024, %v9037
    %9039 = vdwg.mxu0
    %9040 = vmatpush.bf16.msra.mxu0 %v8031
    %9041 = vmatpush.bf16.msra.mxu0 %v8027
    %9042 = vmatpush.bf16.msra.mxu0 %v8023
    %9043 = vmatpush.bf16.msra.mxu0 %v8019
    %9044 = vmatpush.bf16.msra.mxu0 %v8015
    %9045 = vmatpush.bf16.msra.mxu0 %v8011
    %9046 = vmatpush.bf16.msra.mxu0 %v8007
    %9047 = vmatpush.bf16.msra.mxu0 %v8003
    %9048 = vmatmul.bf16.gmra.mxu0 %v8154
    %v9049 = vpop.f32.mrf.mxu0
    %v9050 = vadd.f32 %v9036, %v9049
    %v9051 = vpop.f32.mrf.mxu0
    %v9052 = vadd.f32 %v9038, %v9051
    %9053 = vdwg.mxu0
    %9054 = vmatpush.bf16.msra.mxu0 %v8063
    %9055 = vmatpush.bf16.msra.mxu0 %v8059
    %9056 = vmatpush.bf16.msra.mxu0 %v8055
    %9057 = vmatpush.bf16.msra.mxu0 %v8051
    %9058 = vmatpush.bf16.msra.mxu0 %v8047
    %9059 = vmatpush.bf16.msra.mxu0 %v8043
    %9060 = vmatpush.bf16.msra.mxu0 %v8039
    %9061 = vmatpush.bf16.msra.mxu0 %v8035
    %9062 = vmatmul.bf16.gmra.mxu0 %v8155
    %v9063 = vpop.f32.mrf.mxu0
    %v9064 = vadd.f32 %v9050, %v9063
    %v9065 = vpop.f32.mrf.mxu0
    %v9066 = vadd.f32 %v9052, %v9065
    %9067 = vdwg.mxu0
    %v9068 = vadd.f32 %v1104, %v8392
    %v9069 = vadd.f32 %v1105, %v8616
    %v9070 = vadd.f32 %v1106, %v8840
    %v9071 = vadd.f32 %v1107, %v9064
    %v9072 = vadd.f32 %v1108, %v8394
    %v9073 = vadd.f32 %v1109, %v8618
    %v9074 = vadd.f32 %v1110, %v8842
    %v9075 = vadd.f32 %v1111, %v9066
    %v9076 = vadd.f32 %v9068, %v9072
    %v9077 = vrot.slane %v9076, 4
    %v9078 = vadd.f32 %v9076, %v9077
    %v9079 = vrot.slane %v9078, 2
    %v9080 = vadd.f32 %v9078, %v9079
    %v9081 = vrot.slane %v9080, 1
    %v9082 = vadd.f32 %v9080, %v9081
    %v9083 = vadd.f32 %v9069, %v9073
    %v9084 = vrot.slane %v9083, 4
    %v9085 = vadd.f32 %v9083, %v9084
    %v9086 = vrot.slane %v9085, 2
    %v9087 = vadd.f32 %v9085, %v9086
    %v9088 = vrot.slane %v9087, 1
    %v9089 = vadd.f32 %v9087, %v9088
    %v9090 = vadd.f32 %v9070, %v9074
    %v9091 = vrot.slane %v9090, 4
    %v9092 = vadd.f32 %v9090, %v9091
    %v9093 = vrot.slane %v9092, 2
    %v9094 = vadd.f32 %v9092, %v9093
    %v9095 = vrot.slane %v9094, 1
    %v9096 = vadd.f32 %v9094, %v9095
    %v9097 = vadd.f32 %v9071, %v9075
    %v9098 = vrot.slane %v9097, 4
    %v9099 = vadd.f32 %v9097, %v9098
    %v9100 = vrot.slane %v9099, 2
    %v9101 = vadd.f32 %v9099, %v9100
    %v9102 = vrot.slane %v9101, 1
    %v9103 = vadd.f32 %v9101, %v9102
    %v9104 = vmul.f32 %v9082, %v967
    %v9105 = vmul.f32 %v9089, %v967
    %v9106 = vmul.f32 %v9096, %v967
    %v9107 = vmul.f32 %v9103, %v967
    %v9108 = vsub.f32 %v9068, %v9104
    %v9109 = vsub.f32 %v9069, %v9105
    %v9110 = vsub.f32 %v9070, %v9106
    %v9111 = vsub.f32 %v9071, %v9107
    %v9112 = vsub.f32 %v9072, %v9104
    %v9113 = vsub.f32 %v9073, %v9105
    %v9114 = vsub.f32 %v9074, %v9106
    %v9115 = vsub.f32 %v9075, %v9107
    %v9116 = vmul.f32 %v9108, %v9108
    %v9117 = vmul.f32 %v9109, %v9109
    %v9118 = vmul.f32 %v9110, %v9110
    %v9119 = vmul.f32 %v9111, %v9111
    %v9120 = vmul.f32 %v9112, %v9112
    %v9121 = vmul.f32 %v9113, %v9113
    %v9122 = vmul.f32 %v9114, %v9114
    %v9123 = vmul.f32 %v9115, %v9115
    %v9124 = vadd.f32 %v9116, %v9120
    %v9125 = vrot.slane %v9124, 4
    %v9126 = vadd.f32 %v9124, %v9125
    %v9127 = vrot.slane %v9126, 2
    %v9128 = vadd.f32 %v9126, %v9127
    %v9129 = vrot.slane %v9128, 1
    %v9130 = vadd.f32 %v9128, %v9129
    %v9131 = vadd.f32 %v9117, %v9121
    %v9132 = vrot.slane %v9131, 4
    %v9133 = vadd.f32 %v9131, %v9132
    %v9134 = vrot.slane %v9133, 2
    %v9135 = vadd.f32 %v9133, %v9134
    %v9136 = vrot.slane %v9135, 1
    %v9137 = vadd.f32 %v9135, %v9136
    %v9138 = vadd.f32 %v9118, %v9122
    %v9139 = vrot.slane %v9138, 4
    %v9140 = vadd.f32 %v9138, %v9139
    %v9141 = vrot.slane %v9140, 2
    %v9142 = vadd.f32 %v9140, %v9141
    %v9143 = vrot.slane %v9142, 1
    %v9144 = vadd.f32 %v9142, %v9143
    %v9145 = vadd.f32 %v9119, %v9123
    %v9146 = vrot.slane %v9145, 4
    %v9147 = vadd.f32 %v9145, %v9146
    %v9148 = vrot.slane %v9147, 2
    %v9149 = vadd.f32 %v9147, %v9148
    %v9150 = vrot.slane %v9149, 1
    %v9151 = vadd.f32 %v9149, %v9150
    %v9152 = vmul.f32 %v9130, %v967
    %v9153 = vmul.f32 %v9137, %v967
    %v9154 = vmul.f32 %v9144, %v967
    %v9155 = vmul.f32 %v9151, %v967
    %v9156 = vadd.f32 %v9152, 1e-05
    %v9157 = vadd.f32 %v9153, 1e-05
    %v9158 = vadd.f32 %v9154, 1e-05
    %v9159 = vadd.f32 %v9155, 1e-05
    %v9160 = vrsqrt.pop %v9156
    %v9161 = vmul.f32 %v9160, %v9156
    %v9162 = vmul.f32 %v9161, %v9160
    %v9163 = vmul.f32 0.5, %v9162
    %v9164 = vsub.f32 1.5, %v9163
    %v9165 = vmul.f32 %v9160, %v9164
    %vm9166 = vweird.f32 %v9156
    %vm9167 = vweird.f32 %v9160
    %vm9168 = vmor %vm9166, %vm9167
    %v9169 = vsel %vm9168, %v9160, %v9165
    %v9170 = vrsqrt.pop %v9157
    %v9171 = vmul.f32 %v9170, %v9157
    %v9172 = vmul.f32 %v9171, %v9170
    %v9173 = vmul.f32 0.5, %v9172
    %v9174 = vsub.f32 1.5, %v9173
    %v9175 = vmul.f32 %v9170, %v9174
    %vm9176 = vweird.f32 %v9157
    %vm9177 = vweird.f32 %v9170
    %vm9178 = vmor %vm9176, %vm9177
    %v9179 = vsel %vm9178, %v9170, %v9175
    %v9180 = vrsqrt.pop %v9158
    %v9181 = vmul.f32 %v9180, %v9158
    %v9182 = vmul.f32 %v9181, %v9180
    %v9183 = vmul.f32 0.5, %v9182
    %v9184 = vsub.f32 1.5, %v9183
    %v9185 = vmul.f32 %v9180, %v9184
    %vm9186 = vweird.f32 %v9158
    %vm9187 = vweird.f32 %v9180
    %vm9188 = vmor %vm9186, %vm9187
    %v9189 = vsel %vm9188, %v9180, %v9185
    %v9190 = vrsqrt.pop %v9159
    %v9191 = vmul.f32 %v9190, %v9159
    %v9192 = vmul.f32 %v9191, %v9190
    %v9193 = vmul.f32 0.5, %v9192
    %v9194 = vsub.f32 1.5, %v9193
    %v9195 = vmul.f32 %v9190, %v9194
    %vm9196 = vweird.f32 %v9159
    %vm9197 = vweird.f32 %v9190
    %vm9198 = vmor %vm9196, %vm9197
    %v9199 = vsel %vm9198, %v9190, %v9195
    %v9200 = vmul.f32 %v9108, %v9169
    %v9201 = vmul.f32 %v9109, %v9179
    %v9202 = vmul.f32 %v9110, %v9189
    %v9203 = vmul.f32 %v9111, %v9199
    %v9204 = vmul.f32 %v9112, %v9169
    %v9205 = vmul.f32 %v9113, %v9179
    %v9206 = vmul.f32 %v9114, %v9189
    %v9207 = vmul.f32 %v9115, %v9199
    %v9208 = vld [vmem:[%s12] sm:$0xff]
    %v9209 = vld [vmem:[%s12 + $0x8] sm:$0xff]
    %9211 = vset.pattern.permute.xlu0 0
    %9212 = vperm.xlu0 %9211, %v9208
    %v9213 = vpop.permute.xlu0 %9212
    %9216 = vset.pattern.permute.xlu0 0
    %9217 = vperm.xlu0 %9216, %v9209
    %v9218 = vpop.permute.xlu0 %9217
    %v9220 = vmul.f32 %v9200, %v9213
    %v9221 = vmul.f32 %v9201, %v9213
    %v9222 = vmul.f32 %v9202, %v9213
    %v9223 = vmul.f32 %v9203, %v9213
    %v9224 = vmul.f32 %v9204, %v9218
    %v9225 = vmul.f32 %v9205, %v9218
    %v9226 = vmul.f32 %v9206, %v9218
    %v9227 = vmul.f32 %v9207, %v9218
    %v9228 = vld [vmem:[%s13] sm:$0xff]
    %v9229 = vld [vmem:[%s13 + $0x8] sm:$0xff]
    %9231 = vset.pattern.permute.xlu0 0
    %9232 = vperm.xlu0 %9231, %v9228
    %v9233 = vpop.permute.xlu0 %9232
    %9236 = vset.pattern.permute.xlu0 0
    %9237 = vperm.xlu0 %9236, %v9229
    %v9238 = vpop.permute.xlu0 %9237
    %v9240 = vadd.f32 %v9220, %v9233
    %v9241 = vadd.f32 %v9221, %v9233
    %v9242 = vadd.f32 %v9222, %v9233
    %v9243 = vadd.f32 %v9223, %v9233
    %v9244 = vadd.f32 %v9224, %v9238
    %v9245 = vadd.f32 %v9225, %v9238
    %v9246 = vadd.f32 %v9226, %v9238
    %v9247 = vadd.f32 %v9227, %v9238
    %v9248 = vld [vmem:[%s14] sm:$0xff]
    %v9249 = vld [vmem:[%s14 + $0x8] sm:$0xff]
    %v9250 = vadd.f32 %v9240, %v9241
    %9251 = vadd.xlane.f32.xlu0 %v9250
    %v9252 = vpop.xlane.xlu0 %9251
    %v9253 = vadd.f32 %v9244, %v9245
    %9254 = vadd.xlane.f32.xlu0 %v9253
    %v9255 = vpop.xlane.xlu0 %9254
    %v9256 = vmul.f32 %v9252, %v9248
    %v9257 = vmul.f32 %v9255, %v9249
    %vm9258 = vcmask 64512
    %v9259 = vsel %vm9258, %v9256, 0.0
    %v9260 = vsel %vm9258, %v9257, 0.0
    %v9261 = vadd.f32 %v9259, %v9260
    %v9262 = vrot.slane %v9261, 4
    %v9263 = vadd.f32 %v9261, %v9262
    %v9264 = vrot.slane %v9263, 2
    %v9265 = vadd.f32 %v9263, %v9264
    %v9266 = vrot.slane %v9265, 1
    %v9267 = vadd.f32 %v9265, %v9266
    %v9268 = vadd.f32 %v9242, %v9243
    %9269 = vadd.xlane.f32.xlu0 %v9268
    %v9270 = vpop.xlane.xlu0 %9269
    %v9271 = vadd.f32 %v9246, %v9247
    %9272 = vadd.xlane.f32.xlu0 %v9271
    %v9273 = vpop.xlane.xlu0 %9272
    %v9274 = vmul.f32 %v9270, %v9248
    %v9275 = vmul.f32 %v9273, %v9249
    %v9276 = vsel %vm9258, %v9274, 0.0
    %v9277 = vsel %vm9258, %v9275, 0.0
    %v9278 = vadd.f32 %v9276, %v9277
    %v9279 = vrot.slane %v9278, 4
    %v9280 = vadd.f32 %v9278, %v9279
    %v9281 = vrot.slane %v9280, 2
    %v9282 = vadd.f32 %v9280, %v9281
    %v9283 = vrot.slane %v9282, 1
    %v9284 = vadd.f32 %v9282, %v9283
    %vm9285 = vcmask 1040384
    %v9286 = vsel %vm9285, %v9267, %v9284
    %v9287 = vmul.f32 %v9286, 0.00390625
    %v9288 = vld [vmem:[%s15] sm:$0x1]
    %v9290 = vperm.slane %v9288, 0
    %v9292 = vadd.f32 %v9287, %v9290
    %vm9293 = vcmask 58368
    %9294 = vst.msk [vmem:[#allocation2] sm:$0x3] %vm9293, %v9292
    // Predicated region
    $region66: #{tpu_custom_call.1} parent=1 // pred_check
      _
    $region67: #{tpu_custom_call.1} parent=1 // pred_check_branch
      %9296 = sbr.rel (0) target = $region69
    $region68: #{tpu_custom_call.1} parent=1 // pred_region
      %9298 = vsyncadd [#allocation3], 0
      %s9300 = sshll.u32 [#allocation2], 4
      %s9301 = int_to_ptr.vmem [resolvable:$true] %s9300
      %s9302 = sshll.u32 %s16, 4
      %s9303 = int_to_ptr.hbm [resolvable:$true] %s9302
      %9305 = dma.vmem_to_hbm [thread:$0]  %s9301, 32, %s9303, [#allocation3]
    $region69: #{tpu_custom_call.1} parent=1 // pred_fallthru
      _
    // Predicated region
    $region70: #{tpu_custom_call.1} parent=1 // pred_check
      _
    $region71: #{tpu_custom_call.1} parent=1 // pred_check_branch
      %9307 = sbr.rel (0) target = $region73
    $region72: #{tpu_custom_call.1} parent=1 // pred_region
      %9309 = dma.done [#allocation3], 32
    $region73: #{tpu_custom_call.1} parent=1 // pred_fallthru
      _
    %9310 = vsyncpa [#allocation3], 1

</llo_original>
